<compile_context>
chip_gen: v6e
topology: v6e:2x2x1
jax: 0.10.0
libtpu: 0.0.40
codegen_flags: <defaults>
</compile_context>

<pallas_src>
import functools

import jax
import jax.numpy as jnp
from jax.experimental import pallas as pl
from jax.experimental.pallas import tpu as pltpu


# -----------------------------------------------------------------------------
# Fused forward kernel
# -----------------------------------------------------------------------------
def _fused_kernel(
    # inputs -------------------------------------------------------------------
    xf_ref,                        # (L*N, C_in)  raw input, (t, n)-major rows
    w1_ref, b1_ref,                # conv1: (3*C_in, C), (1, C)   im2col layout
    w2_ref, b2_ref,                # conv2: (3*C,   C), (1, C)
    wih1_ref, whh1_ref, bl1_ref,   # lstm1: (C_in, 4H), (H, 4H), (1, 4H)  gates i|f|g|o
    wih2_ref, whh2_ref, bl2_ref,   # lstm2: (C,    4H), (H, 4H), (1, 4H)
    wih3_ref, whh3_ref, bl3_ref,   # lstm3: (C,    4H), (H, 4H), (1, 4H)
    w1a_ref, w1b_ref, w1c_ref, bf1_ref,   # fc1 split row-wise: (H, F1) x3, (1, F1)
    wf2_ref, bf2_ref,              # fc2: (F1, OUT), (1, OUT)
    # outputs ------------------------------------------------------------------
    seq_ref,                       # (L*N, OUT)   full_pred_seqs, (t, n)-major
    fin_ref,                       # (N, OUT)     final_predictions (last timestep)
    # VMEM scratch ---------------------------------------------------------------
    xpad_ref,                      # ((L+2)*N, C_in)   time-padded input
    medpad_ref,                    # ((L/2+2)*N, C)    time-padded features_medium
    short_ref,                     # ((L/4)*N, C)      features_short
    out1_ref, out2_ref, out3_ref,  # LSTM output sequences, (t, n)-major
    hid_ref,                       # (L*N, F1)         fc1 activations
    *, n, length):
    f32 = jnp.float32
    l2 = length // 2
    l4 = length // 4
    h = whh1_ref.shape[0]          # lstm hidden size

    # ---- Conv1d(kernel=3, padding=1) as one im2col matmul + MaxPool1d(2, 2) ----
    def conv_pool(padded_ref, t_in, w_ref, bias_ref, dst_ref, dst_off):
        # im2col: tap k of the (t, n)-major padded buffer is a contiguous slice
        # shifted by k*N rows -> one (t_in*N, 3*c_in) x (3*c_in, C) matmul.
        xcol = jnp.concatenate(
            [padded_ref[pl.ds(0 * n, t_in * n), :],
             padded_ref[pl.ds(1 * n, t_in * n), :],
             padded_ref[pl.ds(2 * n, t_in * n), :]], axis=1)
        conv = jnp.dot(xcol, w_ref[...], preferred_element_type=f32) + bias_ref[...]
        # MaxPool1d(2, 2): adjacent timestep pairs are adjacent N-row blocks.
        for tp in range(t_in // 2):
            lo = conv[(2 * tp) * n:(2 * tp + 1) * n, :]
            hi = conv[(2 * tp + 1) * n:(2 * tp + 2) * n, :]
            dst_ref[pl.ds((dst_off + tp) * n, n), :] = jnp.maximum(lo, hi)

    # stage 1: conv1 + pool1 -> features_medium (stored into its padded buffer)
    xpad_ref[...] = jnp.zeros_like(xpad_ref)
    xpad_ref[pl.ds(n, length * n), :] = xf_ref[...]
    medpad_ref[...] = jnp.zeros_like(medpad_ref)
    conv_pool(xpad_ref, length, w1_ref, b1_ref, medpad_ref, 1)

    # stage 2: conv2 + pool2 -> features_short
    conv_pool(medpad_ref, l2, w2_ref, b2_ref, short_ref, 0)

    # ---- single-layer LSTM, PyTorch gate order (i, f, g, o), fused gates -------
    def run_lstm(x_seq, wih_ref, whh_ref, b_ref, t_len, out_ref):
        # Hoisted input projection: one (t_len*N, D) x (D, 4H) matmul + bias.
        xw = jnp.dot(x_seq, wih_ref[...], preferred_element_type=f32) + b_ref[...]
        whh = whh_ref[...]
        h_t = jnp.zeros((n, h), f32)
        c_t = jnp.zeros((n, h), f32)
        # Sequential recurrence, fully unrolled in-kernel (t_len is small/static).
        for t in range(t_len):
            gates = (xw[t * n:(t + 1) * n, :]
                     + jnp.dot(h_t, whh, preferred_element_type=f32))   # (N, 4H)
            i_g = jax.nn.sigmoid(gates[:, 0:h])
            f_g = jax.nn.sigmoid(gates[:, h:2 * h])
            g_g = jnp.tanh(gates[:, 2 * h:3 * h])
            o_g = jax.nn.sigmoid(gates[:, 3 * h:4 * h])
            c_t = f_g * c_t + i_g * g_g
            h_t = o_g * jnp.tanh(c_t)
            out_ref[pl.ds(t * n, n), :] = h_t

    # TODO(synk): reference constructs lstm1 with input_size=cnn_out_channels but
    # feeds it raw x (input_size channels); here lstm1 is sized for its actual input.
    run_lstm(xf_ref[...], wih1_ref, whh1_ref, bl1_ref, length, out1_ref)
    run_lstm(medpad_ref[pl.ds(n, l2 * n), :], wih2_ref, whh2_ref, bl2_ref, l2, out2_ref)
    run_lstm(short_ref[...], wih3_ref, whh3_ref, bl3_ref, l4, out3_ref)

    # ---- fc2(fc1(concat)) with the repeat-upsample + concat fused into fc1 -----
    # TODO(synk): torch.concat(lstm1, lstm2, lstm3) in the reference is invalid
    # (LSTM returns tuples; sequence lengths differ).  Interpreted as feature-dim
    # concat of the three LSTM output sequences with the pooled branches
    # repeat-upsampled 2x / 4x in time, implemented as three row-split fc1 matmuls.
    p1 = jnp.dot(out1_ref[...], w1a_ref[...], preferred_element_type=f32)   # (L*N,  F1)
    p2 = jnp.dot(out2_ref[...], w1b_ref[...], preferred_element_type=f32)   # (L/2*N,F1)
    p3 = jnp.dot(out3_ref[...], w1c_ref[...], preferred_element_type=f32)   # (L/4*N,F1)
    bf1 = bf1_ref[...]
    for t in range(length):
        hid_ref[pl.ds(t * n, n), :] = (
            p1[t * n:(t + 1) * n, :]
            + p2[(t // 2) * n:(t // 2 + 1) * n, :]
            + p3[(t // 4) * n:(t // 4 + 1) * n, :]
            + bf1)
    preds = jnp.dot(hid_ref[...], wf2_ref[...], preferred_element_type=f32) + bf2_ref[...]
    seq_ref[...] = preds                                       # (L*N, OUT)
    fin_ref[...] = preds[(length - 1) * n:length * n, :]        # last timestep


# -----------------------------------------------------------------------------
# Wrapper: one pallas_call for the whole model
# -----------------------------------------------------------------------------
def hybrid_cnn_lstm_forward(x, params):
    """x: (N, C_in, L) as in PyTorch Conv1d (NCL)."""
    n, c_in, length = x.shape
    assert length % 4 == 0, "sequence length must be divisible by 4 (two 2x pools)"
    l2, l4 = length // 2, length // 4
    c = params["cnn1_b"].shape[1]
    h = params["l1_whh"].shape[0]
    f1 = params["fc1_b"].shape[1]
    out_dim = params["fc2_b"].shape[1]

    # Single layout-plumbing step: NCL -> (t, n)-major flat rows (L*N, C_in).
    xf = jnp.transpose(x, (2, 0, 1)).reshape(length * n, c_in)

    vmem = pltpu.MemorySpace.VMEM
    seq_flat, final_predictions = pl.pallas_call(
        functools.partial(_fused_kernel, n=n, length=length),
        out_shape=(jax.ShapeDtypeStruct((length * n, out_dim), jnp.float32),
                   jax.ShapeDtypeStruct((n, out_dim), jnp.float32)),
        in_specs=[pl.BlockSpec(memory_space=vmem)] * 20,
        out_specs=(pl.BlockSpec(memory_space=vmem),
                   pl.BlockSpec(memory_space=vmem)),
        scratch_shapes=[
            pltpu.VMEM(((length + 2) * n, c_in), jnp.float32),   # xpad
            pltpu.VMEM(((l2 + 2) * n, c), jnp.float32),          # medpad
            pltpu.VMEM((l4 * n, c), jnp.float32),                # short
            pltpu.VMEM((length * n, h), jnp.float32),            # out1
            pltpu.VMEM((l2 * n, h), jnp.float32),                # out2
            pltpu.VMEM((l4 * n, h), jnp.float32),                # out3
            pltpu.VMEM((length * n, f1), jnp.float32),           # hid
        ],
    )(xf,
      params["cnn1_w"], params["cnn1_b"], params["cnn2_w"], params["cnn2_b"],
      params["l1_wih"], params["l1_whh"], params["l1_b"],
      params["l2_wih"], params["l2_whh"], params["l2_b"],
      params["l3_wih"], params["l3_whh"], params["l3_b"],
      params["fc1_wa"], params["fc1_wb"], params["fc1_wc"], params["fc1_b"],
      params["fc2_w"], params["fc2_b"])

    # (t, n)-major flat -> (N, L, OUT) for the public API.
    full_pred_seqs = seq_flat.reshape(length, n, out_dim).transpose(1, 0, 2)
    return final_predictions, full_pred_seqs


# -----------------------------------------------------------------------------
# Deterministic parameter init (synthetic; shapes/layouts from module __init__,
# pre-packed into the fused kernel layouts)
# -----------------------------------------------------------------------------
def init_params(input_size=2, cnn_out=16, hidden=50, output_size=2, fc_hidden=100):
    key = jax.random.PRNGKey(0)
    keys = iter(jax.random.split(key, 32))

    def init(shape, scale=0.1):
        return jax.random.normal(next(keys), shape, jnp.float32) * scale

    g = 4 * hidden

    def lstm_params(d_in):
        # Fused layouts: W_ih^T -> (D, 4H), W_hh^T -> (H, 4H), (b_ih + b_hh) -> (1, 4H);
        # gate column order is PyTorch's (i, f, g, o).
        return init((d_in, g)), init((hidden, g)), init((1, g))

    l1 = lstm_params(input_size)   # TODO(synk): see lstm1 input-size note in kernel
    l2 = lstm_params(cnn_out)
    l3 = lstm_params(cnn_out)
    return {
        # Conv weights in im2col layout (3*C_in, C_out): rows are tap-major.
        "cnn1_w": init((3 * input_size, cnn_out)), "cnn1_b": init((1, cnn_out)),
        "cnn2_w": init((3 * cnn_out, cnn_out)), "cnn2_b": init((1, cnn_out)),
        "l1_wih": l1[0], "l1_whh": l1[1], "l1_b": l1[2],
        "l2_wih": l2[0], "l2_whh": l2[1], "l2_b": l2[2],
        "l3_wih": l3[0], "l3_whh": l3[1], "l3_b": l3[2],
        # fc1 weight (3H, 100) split row-wise by source branch (out1 | out2 | out3).
        "fc1_wa": init((hidden, fc_hidden)), "fc1_wb": init((hidden, fc_hidden)),
        "fc1_wc": init((hidden, fc_hidden)), "fc1_b": init((1, fc_hidden)),
        "fc2_w": init((fc_hidden, output_size)), "fc2_b": init((1, output_size)),
    }


if __name__ == "__main__":
    params = init_params()
    # x: (batch=2, channels=input_size=2, seq_len=16), PyTorch NCL convention
    x = jax.random.normal(jax.random.PRNGKey(0), (2, 2, 16), jnp.float32)

    fwd = jax.jit(functools.partial(hybrid_cnn_lstm_forward, params=params))
    final_predictions, full_pred_seqs = fwd(x)
    jax.block_until_ready((final_predictions, full_pred_seqs))

    assert final_predictions.shape == (2, 2)
    assert full_pred_seqs.shape == (2, 16, 2)
    print("KERNEL_OK")
</pallas_src>

<mosaic_0001>
module attributes {stable_mosaic.version = 11 : i64} {
  func.func @_fused_kernel(%arg0: memref<32x2xf32, #tpu.memory_space<vmem>>, %arg1: memref<6x16xf32, #tpu.memory_space<vmem>>, %arg2: memref<1x16xf32, #tpu.memory_space<vmem>>, %arg3: memref<48x16xf32, #tpu.memory_space<vmem>>, %arg4: memref<1x16xf32, #tpu.memory_space<vmem>>, %arg5: memref<2x200xf32, #tpu.memory_space<vmem>>, %arg6: memref<50x200xf32, #tpu.memory_space<vmem>>, %arg7: memref<1x200xf32, #tpu.memory_space<vmem>>, %arg8: memref<16x200xf32, #tpu.memory_space<vmem>>, %arg9: memref<50x200xf32, #tpu.memory_space<vmem>>, %arg10: memref<1x200xf32, #tpu.memory_space<vmem>>, %arg11: memref<16x200xf32, #tpu.memory_space<vmem>>, %arg12: memref<50x200xf32, #tpu.memory_space<vmem>>, %arg13: memref<1x200xf32, #tpu.memory_space<vmem>>, %arg14: memref<50x100xf32, #tpu.memory_space<vmem>>, %arg15: memref<50x100xf32, #tpu.memory_space<vmem>>, %arg16: memref<50x100xf32, #tpu.memory_space<vmem>>, %arg17: memref<1x100xf32, #tpu.memory_space<vmem>>, %arg18: memref<100x2xf32, #tpu.memory_space<vmem>>, %arg19: memref<1x2xf32, #tpu.memory_space<vmem>>, %arg20: memref<32x2xf32, #tpu.memory_space<vmem>>, %arg21: memref<2x2xf32, #tpu.memory_space<vmem>>, %arg22: memref<36x2xf32, #tpu.memory_space<vmem>>, %arg23: memref<20x16xf32, #tpu.memory_space<vmem>>, %arg24: memref<8x16xf32, #tpu.memory_space<vmem>>, %arg25: memref<32x50xf32, #tpu.memory_space<vmem>>, %arg26: memref<16x50xf32, #tpu.memory_space<vmem>>, %arg27: memref<8x50xf32, #tpu.memory_space<vmem>>, %arg28: memref<32x100xf32, #tpu.memory_space<vmem>>) attributes {dimension_semantics = [], scalar_prefetch = 0 : i64, scratch_operands = 7 : i64, tpu.core_type = #tpu.core_type<tc>} {
    %cst = arith.constant 0.000000e+00 : f32
    %0 = vector.broadcast %cst : f32 to vector<36x2xf32>
    %c0 = arith.constant 0 : index
    %c0_0 = arith.constant 0 : index
    %1 = vector.load %arg22[%c0, %c0_0] : memref<36x2xf32, #tpu.memory_space<vmem>>, vector<36x2xf32>
    tpu.vector_store %arg22[%c0, %c0_0], %0 {strides = array<i32>} : memref<36x2xf32, #tpu.memory_space<vmem>>, vector<36x2xf32>,
    %c0_1 = arith.constant 0 : index
    %c0_2 = arith.constant 0 : index
    %2 = vector.load %arg0[%c0_1, %c0_2] : memref<32x2xf32, #tpu.memory_space<vmem>>, vector<32x2xf32>
    %c2 = arith.constant 2 : index
    %c0_3 = arith.constant 0 : index
    %3 = vector.load %arg22[%c2, %c0_3] : memref<36x2xf32, #tpu.memory_space<vmem>>, vector<32x2xf32>
    tpu.vector_store %arg22[%c2, %c0_3], %2 {strides = array<i32>} : memref<36x2xf32, #tpu.memory_space<vmem>>, vector<32x2xf32>,
    %cst_4 = arith.constant 0.000000e+00 : f32
    %4 = vector.broadcast %cst_4 : f32 to vector<20x16xf32>
    %c0_5 = arith.constant 0 : index
    %c0_6 = arith.constant 0 : index
    %5 = vector.load %arg23[%c0_5, %c0_6] : memref<20x16xf32, #tpu.memory_space<vmem>>, vector<20x16xf32>
    tpu.vector_store %arg23[%c0_5, %c0_6], %4 {strides = array<i32>} : memref<20x16xf32, #tpu.memory_space<vmem>>, vector<20x16xf32>,
    %c0_7 = arith.constant 0 : index
    %c0_8 = arith.constant 0 : index
    %6 = vector.load %arg22[%c0_7, %c0_8] : memref<36x2xf32, #tpu.memory_space<vmem>>, vector<32x2xf32>
    %c2_9 = arith.constant 2 : index
    %c0_10 = arith.constant 0 : index
    %7 = vector.load %arg22[%c2_9, %c0_10] : memref<36x2xf32, #tpu.memory_space<vmem>>, vector<32x2xf32>
    %c4 = arith.constant 4 : index
    %c0_11 = arith.constant 0 : index
    %8 = vector.load %arg22[%c4, %c0_11] : memref<36x2xf32, #tpu.memory_space<vmem>>, vector<32x2xf32>
    %9 = tpu.concatenate %6, %7, %8 in 1 : vector<32x2xf32>, vector<32x2xf32>, vector<32x2xf32> -> vector<32x6xf32>
    %c0_12 = arith.constant 0 : index
    %c0_13 = arith.constant 0 : index
    %10 = vector.load %arg1[%c0_12, %c0_13] : memref<6x16xf32, #tpu.memory_space<vmem>>, vector<6x16xf32>
    %cst_14 = arith.constant dense<0.000000e+00> : vector<32x16xf32>
    %11 = tpu.matmul %9, %10, %cst_14 {dimension_numbers = #tpu.dot_dimension_numbers<[1], [0], [0], [1], [0, 0, 1, 1], [], []>} : vector<32x6xf32>, vector<6x16xf32>, vector<32x16xf32> -> vector<32x16xf32>
    %c0_15 = arith.constant 0 : index
    %c0_16 = arith.constant 0 : index
    %12 = vector.load %arg2[%c0_15, %c0_16] : memref<1x16xf32, #tpu.memory_space<vmem>>, vector<1x16xf32>
    %13 = vector.broadcast %12 : vector<1x16xf32> to vector<32x16xf32>
    %14 = arith.addf %11, %13 : vector<32x16xf32>
    %15 = vector.extract_strided_slice %14 {offsets = [0, 0], sizes = [2, 16], strides = [1, 1]} : vector<32x16xf32> to vector<2x16xf32>
    %16 = vector.extract_strided_slice %14 {offsets = [2, 0], sizes = [2, 16], strides = [1, 1]} : vector<32x16xf32> to vector<2x16xf32>
    %17 = arith.maximumf %15, %16 : vector<2x16xf32>
    %c2_17 = arith.constant 2 : index
    %c0_18 = arith.constant 0 : index
    %18 = vector.load %arg23[%c2_17, %c0_18] : memref<20x16xf32, #tpu.memory_space<vmem>>, vector<2x16xf32>
    tpu.vector_store %arg23[%c2_17, %c0_18], %17 {strides = array<i32>} : memref<20x16xf32, #tpu.memory_space<vmem>>, vector<2x16xf32>,
    %19 = vector.extract_strided_slice %14 {offsets = [4, 0], sizes = [2, 16], strides = [1, 1]} : vector<32x16xf32> to vector<2x16xf32>
    %20 = vector.extract_strided_slice %14 {offsets = [6, 0], sizes = [2, 16], strides = [1, 1]} : vector<32x16xf32> to vector<2x16xf32>
    %21 = arith.maximumf %19, %20 : vector<2x16xf32>
    %c4_19 = arith.constant 4 : index
    %c0_20 = arith.constant 0 : index
    %22 = vector.load %arg23[%c4_19, %c0_20] : memref<20x16xf32, #tpu.memory_space<vmem>>, vector<2x16xf32>
    tpu.vector_store %arg23[%c4_19, %c0_20], %21 {strides = array<i32>} : memref<20x16xf32, #tpu.memory_space<vmem>>, vector<2x16xf32>,
    %23 = vector.extract_strided_slice %14 {offsets = [8, 0], sizes = [2, 16], strides = [1, 1]} : vector<32x16xf32> to vector<2x16xf32>
    %24 = vector.extract_strided_slice %14 {offsets = [10, 0], sizes = [2, 16], strides = [1, 1]} : vector<32x16xf32> to vector<2x16xf32>
    %25 = arith.maximumf %23, %24 : vector<2x16xf32>
    %c6 = arith.constant 6 : index
    %c0_21 = arith.constant 0 : index
    %26 = vector.load %arg23[%c6, %c0_21] : memref<20x16xf32, #tpu.memory_space<vmem>>, vector<2x16xf32>
    tpu.vector_store %arg23[%c6, %c0_21], %25 {strides = array<i32>} : memref<20x16xf32, #tpu.memory_space<vmem>>, vector<2x16xf32>,
    %27 = vector.extract_strided_slice %14 {offsets = [12, 0], sizes = [2, 16], strides = [1, 1]} : vector<32x16xf32> to vector<2x16xf32>
    %28 = vector.extract_strided_slice %14 {offsets = [14, 0], sizes = [2, 16], strides = [1, 1]} : vector<32x16xf32> to vector<2x16xf32>
    %29 = arith.maximumf %27, %28 : vector<2x16xf32>
    %c8 = arith.constant 8 : index
    %c0_22 = arith.constant 0 : index
    %30 = vector.load %arg23[%c8, %c0_22] : memref<20x16xf32, #tpu.memory_space<vmem>>, vector<2x16xf32>
    tpu.vector_store %arg23[%c8, %c0_22], %29 {strides = array<i32>} : memref<20x16xf32, #tpu.memory_space<vmem>>, vector<2x16xf32>,
    %31 = vector.extract_strided_slice %14 {offsets = [16, 0], sizes = [2, 16], strides = [1, 1]} : vector<32x16xf32> to vector<2x16xf32>
    %32 = vector.extract_strided_slice %14 {offsets = [18, 0], sizes = [2, 16], strides = [1, 1]} : vector<32x16xf32> to vector<2x16xf32>
    %33 = arith.maximumf %31, %32 : vector<2x16xf32>
    %c10 = arith.constant 10 : index
    %c0_23 = arith.constant 0 : index
    %34 = vector.load %arg23[%c10, %c0_23] : memref<20x16xf32, #tpu.memory_space<vmem>>, vector<2x16xf32>
    tpu.vector_store %arg23[%c10, %c0_23], %33 {strides = array<i32>} : memref<20x16xf32, #tpu.memory_space<vmem>>, vector<2x16xf32>,
    %35 = vector.extract_strided_slice %14 {offsets = [20, 0], sizes = [2, 16], strides = [1, 1]} : vector<32x16xf32> to vector<2x16xf32>
    %36 = vector.extract_strided_slice %14 {offsets = [22, 0], sizes = [2, 16], strides = [1, 1]} : vector<32x16xf32> to vector<2x16xf32>
    %37 = arith.maximumf %35, %36 : vector<2x16xf32>
    %c12 = arith.constant 12 : index
    %c0_24 = arith.constant 0 : index
    %38 = vector.load %arg23[%c12, %c0_24] : memref<20x16xf32, #tpu.memory_space<vmem>>, vector<2x16xf32>
    tpu.vector_store %arg23[%c12, %c0_24], %37 {strides = array<i32>} : memref<20x16xf32, #tpu.memory_space<vmem>>, vector<2x16xf32>,
    %39 = vector.extract_strided_slice %14 {offsets = [24, 0], sizes = [2, 16], strides = [1, 1]} : vector<32x16xf32> to vector<2x16xf32>
    %40 = vector.extract_strided_slice %14 {offsets = [26, 0], sizes = [2, 16], strides = [1, 1]} : vector<32x16xf32> to vector<2x16xf32>
    %41 = arith.maximumf %39, %40 : vector<2x16xf32>
    %c14 = arith.constant 14 : index
    %c0_25 = arith.constant 0 : index
    %42 = vector.load %arg23[%c14, %c0_25] : memref<20x16xf32, #tpu.memory_space<vmem>>, vector<2x16xf32>
    tpu.vector_store %arg23[%c14, %c0_25], %41 {strides = array<i32>} : memref<20x16xf32, #tpu.memory_space<vmem>>, vector<2x16xf32>,
    %43 = vector.extract_strided_slice %14 {offsets = [28, 0], sizes = [2, 16], strides = [1, 1]} : vector<32x16xf32> to vector<2x16xf32>
    %44 = vector.extract_strided_slice %14 {offsets = [30, 0], sizes = [2, 16], strides = [1, 1]} : vector<32x16xf32> to vector<2x16xf32>
    %45 = arith.maximumf %43, %44 : vector<2x16xf32>
    %c16 = arith.constant 16 : index
    %c0_26 = arith.constant 0 : index
    %46 = vector.load %arg23[%c16, %c0_26] : memref<20x16xf32, #tpu.memory_space<vmem>>, vector<2x16xf32>
    tpu.vector_store %arg23[%c16, %c0_26], %45 {strides = array<i32>} : memref<20x16xf32, #tpu.memory_space<vmem>>, vector<2x16xf32>,
    %c0_27 = arith.constant 0 : index
    %c0_28 = arith.constant 0 : index
    %47 = vector.load %arg23[%c0_27, %c0_28] : memref<20x16xf32, #tpu.memory_space<vmem>>, vector<16x16xf32>
    %c2_29 = arith.constant 2 : index
    %c0_30 = arith.constant 0 : index
    %48 = vector.load %arg23[%c2_29, %c0_30] : memref<20x16xf32, #tpu.memory_space<vmem>>, vector<16x16xf32>
    %c4_31 = arith.constant 4 : index
    %c0_32 = arith.constant 0 : index
    %49 = vector.load %arg23[%c4_31, %c0_32] : memref<20x16xf32, #tpu.memory_space<vmem>>, vector<16x16xf32>
    %50 = tpu.concatenate %47, %48, %49 in 1 : vector<16x16xf32>, vector<16x16xf32>, vector<16x16xf32> -> vector<16x48xf32>
    %c0_33 = arith.constant 0 : index
    %c0_34 = arith.constant 0 : index
    %51 = vector.load %arg3[%c0_33, %c0_34] : memref<48x16xf32, #tpu.memory_space<vmem>>, vector<48x16xf32>
    %cst_35 = arith.constant dense<0.000000e+00> : vector<16x16xf32>
    %52 = tpu.matmul %50, %51, %cst_35 {dimension_numbers = #tpu.dot_dimension_numbers<[1], [0], [0], [1], [0, 0, 1, 1], [], []>} : vector<16x48xf32>, vector<48x16xf32>, vector<16x16xf32> -> vector<16x16xf32>
    %c0_36 = arith.constant 0 : index
    %c0_37 = arith.constant 0 : index
    %53 = vector.load %arg4[%c0_36, %c0_37] : memref<1x16xf32, #tpu.memory_space<vmem>>, vector<1x16xf32>
    %54 = vector.broadcast %53 : vector<1x16xf32> to vector<16x16xf32>
    %55 = arith.addf %52, %54 : vector<16x16xf32>
    %56 = vector.extract_strided_slice %55 {offsets = [0, 0], sizes = [2, 16], strides = [1, 1]} : vector<16x16xf32> to vector<2x16xf32>
    %57 = vector.extract_strided_slice %55 {offsets = [2, 0], sizes = [2, 16], strides = [1, 1]} : vector<16x16xf32> to vector<2x16xf32>
    %58 = arith.maximumf %56, %57 : vector<2x16xf32>
    %c0_38 = arith.constant 0 : index
    %c0_39 = arith.constant 0 : index
    %59 = vector.load %arg24[%c0_38, %c0_39] : memref<8x16xf32, #tpu.memory_space<vmem>>, vector<2x16xf32>
    tpu.vector_store %arg24[%c0_38, %c0_39], %58 {strides = array<i32>} : memref<8x16xf32, #tpu.memory_space<vmem>>, vector<2x16xf32>,
    %60 = vector.extract_strided_slice %55 {offsets = [4, 0], sizes = [2, 16], strides = [1, 1]} : vector<16x16xf32> to vector<2x16xf32>
    %61 = vector.extract_strided_slice %55 {offsets = [6, 0], sizes = [2, 16], strides = [1, 1]} : vector<16x16xf32> to vector<2x16xf32>
    %62 = arith.maximumf %60, %61 : vector<2x16xf32>
    %c2_40 = arith.constant 2 : index
    %c0_41 = arith.constant 0 : index
    %63 = vector.load %arg24[%c2_40, %c0_41] : memref<8x16xf32, #tpu.memory_space<vmem>>, vector<2x16xf32>
    tpu.vector_store %arg24[%c2_40, %c0_41], %62 {strides = array<i32>} : memref<8x16xf32, #tpu.memory_space<vmem>>, vector<2x16xf32>,
    %64 = vector.extract_strided_slice %55 {offsets = [8, 0], sizes = [2, 16], strides = [1, 1]} : vector<16x16xf32> to vector<2x16xf32>
    %65 = vector.extract_strided_slice %55 {offsets = [10, 0], sizes = [2, 16], strides = [1, 1]} : vector<16x16xf32> to vector<2x16xf32>
    %66 = arith.maximumf %64, %65 : vector<2x16xf32>
    %c4_42 = arith.constant 4 : index
    %c0_43 = arith.constant 0 : index
    %67 = vector.load %arg24[%c4_42, %c0_43] : memref<8x16xf32, #tpu.memory_space<vmem>>, vector<2x16xf32>
    tpu.vector_store %arg24[%c4_42, %c0_43], %66 {strides = array<i32>} : memref<8x16xf32, #tpu.memory_space<vmem>>, vector<2x16xf32>,
    %68 = vector.extract_strided_slice %55 {offsets = [12, 0], sizes = [2, 16], strides = [1, 1]} : vector<16x16xf32> to vector<2x16xf32>
    %69 = vector.extract_strided_slice %55 {offsets = [14, 0], sizes = [2, 16], strides = [1, 1]} : vector<16x16xf32> to vector<2x16xf32>
    %70 = arith.maximumf %68, %69 : vector<2x16xf32>
    %c6_44 = arith.constant 6 : index
    %c0_45 = arith.constant 0 : index
    %71 = vector.load %arg24[%c6_44, %c0_45] : memref<8x16xf32, #tpu.memory_space<vmem>>, vector<2x16xf32>
    tpu.vector_store %arg24[%c6_44, %c0_45], %70 {strides = array<i32>} : memref<8x16xf32, #tpu.memory_space<vmem>>, vector<2x16xf32>,
    %c0_46 = arith.constant 0 : index
    %c0_47 = arith.constant 0 : index
    %72 = vector.load %arg0[%c0_46, %c0_47] : memref<32x2xf32, #tpu.memory_space<vmem>>, vector<32x2xf32>
    %c0_48 = arith.constant 0 : index
    %c0_49 = arith.constant 0 : index
    %73 = vector.load %arg5[%c0_48, %c0_49] : memref<2x200xf32, #tpu.memory_space<vmem>>, vector<2x200xf32>
    %cst_50 = arith.constant dense<0.000000e+00> : vector<32x200xf32>
    %74 = tpu.matmul %72, %73, %cst_50 {dimension_numbers = #tpu.dot_dimension_numbers<[1], [0], [0], [1], [0, 0, 1, 1], [], []>} : vector<32x2xf32>, vector<2x200xf32>, vector<32x200xf32> -> vector<32x200xf32>
    %c0_51 = arith.constant 0 : index
    %c0_52 = arith.constant 0 : index
    %75 = vector.load %arg7[%c0_51, %c0_52] : memref<1x200xf32, #tpu.memory_space<vmem>>, vector<1x200xf32>
    %76 = vector.broadcast %75 : vector<1x200xf32> to vector<32x200xf32>
    %77 = arith.addf %74, %76 : vector<32x200xf32>
    %c0_53 = arith.constant 0 : index
    %c0_54 = arith.constant 0 : index
    %78 = vector.load %arg6[%c0_53, %c0_54] : memref<50x200xf32, #tpu.memory_space<vmem>>, vector<50x200xf32>
    %cst_55 = arith.constant 0.000000e+00 : f32
    %79 = vector.broadcast %cst_55 : f32 to vector<2x50xf32>
    %cst_56 = arith.constant 0.000000e+00 : f32
    %80 = vector.broadcast %cst_56 : f32 to vector<2x50xf32>
    %81 = vector.extract_strided_slice %77 {offsets = [0, 0], sizes = [2, 200], strides = [1, 1]} : vector<32x200xf32> to vector<2x200xf32>
    %cst_57 = arith.constant dense<0.000000e+00> : vector<2x200xf32>
    %82 = tpu.matmul %79, %78, %cst_57 {dimension_numbers = #tpu.dot_dimension_numbers<[1], [0], [0], [1], [0, 0, 1, 1], [], []>} : vector<2x50xf32>, vector<50x200xf32>, vector<2x200xf32> -> vector<2x200xf32>
    %83 = arith.addf %81, %82 : vector<2x200xf32>
    %84 = vector.extract_strided_slice %83 {offsets = [0, 0], sizes = [2, 50], strides = [1, 1]} : vector<2x200xf32> to vector<2x50xf32>
    %85 = arith.negf %84 : vector<2x50xf32>
    %86 = math.exp %85 : vector<2x50xf32>
    %cst_58 = arith.constant 1.000000e+00 : f32
    %87 = vector.broadcast %cst_58 : f32 to vector<2x50xf32>
    %88 = arith.addf %87, %86 : vector<2x50xf32>
    %89 = arith.divf %87, %88 : vector<2x50xf32>
    %90 = vector.extract_strided_slice %83 {offsets = [0, 50], sizes = [2, 50], strides = [1, 1]} : vector<2x200xf32> to vector<2x50xf32>
    %91 = arith.negf %90 : vector<2x50xf32>
    %92 = math.exp %91 : vector<2x50xf32>
    %cst_59 = arith.constant 1.000000e+00 : f32
    %93 = vector.broadcast %cst_59 : f32 to vector<2x50xf32>
    %94 = arith.addf %93, %92 : vector<2x50xf32>
    %95 = arith.divf %93, %94 : vector<2x50xf32>
    %96 = vector.extract_strided_slice %83 {offsets = [0, 100], sizes = [2, 50], strides = [1, 1]} : vector<2x200xf32> to vector<2x50xf32>
    %97 = math.tanh %96 : vector<2x50xf32>
    %98 = vector.extract_strided_slice %83 {offsets = [0, 150], sizes = [2, 50], strides = [1, 1]} : vector<2x200xf32> to vector<2x50xf32>
    %99 = arith.negf %98 : vector<2x50xf32>
    %100 = math.exp %99 : vector<2x50xf32>
    %cst_60 = arith.constant 1.000000e+00 : f32
    %101 = vector.broadcast %cst_60 : f32 to vector<2x50xf32>
    %102 = arith.addf %101, %100 : vector<2x50xf32>
    %103 = arith.divf %101, %102 : vector<2x50xf32>
    %104 = arith.mulf %95, %80 : vector<2x50xf32>
    %105 = arith.mulf %89, %97 : vector<2x50xf32>
    %106 = arith.addf %104, %105 : vector<2x50xf32>
    %107 = math.tanh %106 : vector<2x50xf32>
    %108 = arith.mulf %103, %107 : vector<2x50xf32>
    %c0_61 = arith.constant 0 : index
    %c0_62 = arith.constant 0 : index
    %109 = vector.load %arg25[%c0_61, %c0_62] : memref<32x50xf32, #tpu.memory_space<vmem>>, vector<2x50xf32>
    tpu.vector_store %arg25[%c0_61, %c0_62], %108 {strides = array<i32>} : memref<32x50xf32, #tpu.memory_space<vmem>>, vector<2x50xf32>,
    %110 = vector.extract_strided_slice %77 {offsets = [2, 0], sizes = [2, 200], strides = [1, 1]} : vector<32x200xf32> to vector<2x200xf32>
    %cst_63 = arith.constant dense<0.000000e+00> : vector<2x200xf32>
    %111 = tpu.matmul %108, %78, %cst_63 {dimension_numbers = #tpu.dot_dimension_numbers<[1], [0], [0], [1], [0, 0, 1, 1], [], []>} : vector<2x50xf32>, vector<50x200xf32>, vector<2x200xf32> -> vector<2x200xf32>
    %112 = arith.addf %110, %111 : vector<2x200xf32>
    %113 = vector.extract_strided_slice %112 {offsets = [0, 0], sizes = [2, 50], strides = [1, 1]} : vector<2x200xf32> to vector<2x50xf32>
    %114 = arith.negf %113 : vector<2x50xf32>
    %115 = math.exp %114 : vector<2x50xf32>
    %cst_64 = arith.constant 1.000000e+00 : f32
    %116 = vector.broadcast %cst_64 : f32 to vector<2x50xf32>
    %117 = arith.addf %116, %115 : vector<2x50xf32>
    %118 = arith.divf %116, %117 : vector<2x50xf32>
    %119 = vector.extract_strided_slice %112 {offsets = [0, 50], sizes = [2, 50], strides = [1, 1]} : vector<2x200xf32> to vector<2x50xf32>
    %120 = arith.negf %119 : vector<2x50xf32>
    %121 = math.exp %120 : vector<2x50xf32>
    %cst_65 = arith.constant 1.000000e+00 : f32
    %122 = vector.broadcast %cst_65 : f32 to vector<2x50xf32>
    %123 = arith.addf %122, %121 : vector<2x50xf32>
    %124 = arith.divf %122, %123 : vector<2x50xf32>
    %125 = vector.extract_strided_slice %112 {offsets = [0, 100], sizes = [2, 50], strides = [1, 1]} : vector<2x200xf32> to vector<2x50xf32>
    %126 = math.tanh %125 : vector<2x50xf32>
    %127 = vector.extract_strided_slice %112 {offsets = [0, 150], sizes = [2, 50], strides = [1, 1]} : vector<2x200xf32> to vector<2x50xf32>
    %128 = arith.negf %127 : vector<2x50xf32>
    %129 = math.exp %128 : vector<2x50xf32>
    %cst_66 = arith.constant 1.000000e+00 : f32
    %130 = vector.broadcast %cst_66 : f32 to vector<2x50xf32>
    %131 = arith.addf %130, %129 : vector<2x50xf32>
    %132 = arith.divf %130, %131 : vector<2x50xf32>
    %133 = arith.mulf %124, %106 : vector<2x50xf32>
    %134 = arith.mulf %118, %126 : vector<2x50xf32>
    %135 = arith.addf %133, %134 : vector<2x50xf32>
    %136 = math.tanh %135 : vector<2x50xf32>
    %137 = arith.mulf %132, %136 : vector<2x50xf32>
    %c2_67 = arith.constant 2 : index
    %c0_68 = arith.constant 0 : index
    %138 = vector.load %arg25[%c2_67, %c0_68] : memref<32x50xf32, #tpu.memory_space<vmem>>, vector<2x50xf32>
    tpu.vector_store %arg25[%c2_67, %c0_68], %137 {strides = array<i32>} : memref<32x50xf32, #tpu.memory_space<vmem>>, vector<2x50xf32>,
    %139 = vector.extract_strided_slice %77 {offsets = [4, 0], sizes = [2, 200], strides = [1, 1]} : vector<32x200xf32> to vector<2x200xf32>
    %cst_69 = arith.constant dense<0.000000e+00> : vector<2x200xf32>
    %140 = tpu.matmul %137, %78, %cst_69 {dimension_numbers = #tpu.dot_dimension_numbers<[1], [0], [0], [1], [0, 0, 1, 1], [], []>} : vector<2x50xf32>, vector<50x200xf32>, vector<2x200xf32> -> vector<2x200xf32>
    %141 = arith.addf %139, %140 : vector<2x200xf32>
    %142 = vector.extract_strided_slice %141 {offsets = [0, 0], sizes = [2, 50], strides = [1, 1]} : vector<2x200xf32> to vector<2x50xf32>
    %143 = arith.negf %142 : vector<2x50xf32>
    %144 = math.exp %143 : vector<2x50xf32>
    %cst_70 = arith.constant 1.000000e+00 : f32
    %145 = vector.broadcast %cst_70 : f32 to vector<2x50xf32>
    %146 = arith.addf %145, %144 : vector<2x50xf32>
    %147 = arith.divf %145, %146 : vector<2x50xf32>
    %148 = vector.extract_strided_slice %141 {offsets = [0, 50], sizes = [2, 50], strides = [1, 1]} : vector<2x200xf32> to vector<2x50xf32>
    %149 = arith.negf %148 : vector<2x50xf32>
    %150 = math.exp %149 : vector<2x50xf32>
    %cst_71 = arith.constant 1.000000e+00 : f32
    %151 = vector.broadcast %cst_71 : f32 to vector<2x50xf32>
    %152 = arith.addf %151, %150 : vector<2x50xf32>
    %153 = arith.divf %151, %152 : vector<2x50xf32>
    %154 = vector.extract_strided_slice %141 {offsets = [0, 100], sizes = [2, 50], strides = [1, 1]} : vector<2x200xf32> to vector<2x50xf32>
    %155 = math.tanh %154 : vector<2x50xf32>
    %156 = vector.extract_strided_slice %141 {offsets = [0, 150], sizes = [2, 50], strides = [1, 1]} : vector<2x200xf32> to vector<2x50xf32>
    %157 = arith.negf %156 : vector<2x50xf32>
    %158 = math.exp %157 : vector<2x50xf32>
    %cst_72 = arith.constant 1.000000e+00 : f32
    %159 = vector.broadcast %cst_72 : f32 to vector<2x50xf32>
    %160 = arith.addf %159, %158 : vector<2x50xf32>
    %161 = arith.divf %159, %160 : vector<2x50xf32>
    %162 = arith.mulf %153, %135 : vector<2x50xf32>
    %163 = arith.mulf %147, %155 : vector<2x50xf32>
    %164 = arith.addf %162, %163 : vector<2x50xf32>
    %165 = math.tanh %164 : vector<2x50xf32>
    %166 = arith.mulf %161, %165 : vector<2x50xf32>
    %c4_73 = arith.constant 4 : index
    %c0_74 = arith.constant 0 : index
    %167 = vector.load %arg25[%c4_73, %c0_74] : memref<32x50xf32, #tpu.memory_space<vmem>>, vector<2x50xf32>
    tpu.vector_store %arg25[%c4_73, %c0_74], %166 {strides = array<i32>} : memref<32x50xf32, #tpu.memory_space<vmem>>, vector<2x50xf32>,
    %168 = vector.extract_strided_slice %77 {offsets = [6, 0], sizes = [2, 200], strides = [1, 1]} : vector<32x200xf32> to vector<2x200xf32>
    %cst_75 = arith.constant dense<0.000000e+00> : vector<2x200xf32>
    %169 = tpu.matmul %166, %78, %cst_75 {dimension_numbers = #tpu.dot_dimension_numbers<[1], [0], [0], [1], [0, 0, 1, 1], [], []>} : vector<2x50xf32>, vector<50x200xf32>, vector<2x200xf32> -> vector<2x200xf32>
    %170 = arith.addf %168, %169 : vector<2x200xf32>
    %171 = vector.extract_strided_slice %170 {offsets = [0, 0], sizes = [2, 50], strides = [1, 1]} : vector<2x200xf32> to vector<2x50xf32>
    %172 = arith.negf %171 : vector<2x50xf32>
    %173 = math.exp %172 : vector<2x50xf32>
    %cst_76 = arith.constant 1.000000e+00 : f32
    %174 = vector.broadcast %cst_76 : f32 to vector<2x50xf32>
    %175 = arith.addf %174, %173 : vector<2x50xf32>
    %176 = arith.divf %174, %175 : vector<2x50xf32>
    %177 = vector.extract_strided_slice %170 {offsets = [0, 50], sizes = [2, 50], strides = [1, 1]} : vector<2x200xf32> to vector<2x50xf32>
    %178 = arith.negf %177 : vector<2x50xf32>
    %179 = math.exp %178 : vector<2x50xf32>
    %cst_77 = arith.constant 1.000000e+00 : f32
    %180 = vector.broadcast %cst_77 : f32 to vector<2x50xf32>
    %181 = arith.addf %180, %179 : vector<2x50xf32>
    %182 = arith.divf %180, %181 : vector<2x50xf32>
    %183 = vector.extract_strided_slice %170 {offsets = [0, 100], sizes = [2, 50], strides = [1, 1]} : vector<2x200xf32> to vector<2x50xf32>
    %184 = math.tanh %183 : vector<2x50xf32>
    %185 = vector.extract_strided_slice %170 {offsets = [0, 150], sizes = [2, 50], strides = [1, 1]} : vector<2x200xf32> to vector<2x50xf32>
    %186 = arith.negf %185 : vector<2x50xf32>
    %187 = math.exp %186 : vector<2x50xf32>
    %cst_78 = arith.constant 1.000000e+00 : f32
    %188 = vector.broadcast %cst_78 : f32 to vector<2x50xf32>
    %189 = arith.addf %188, %187 : vector<2x50xf32>
    %190 = arith.divf %188, %189 : vector<2x50xf32>
    %191 = arith.mulf %182, %164 : vector<2x50xf32>
    %192 = arith.mulf %176, %184 : vector<2x50xf32>
    %193 = arith.addf %191, %192 : vector<2x50xf32>
    %194 = math.tanh %193 : vector<2x50xf32>
    %195 = arith.mulf %190, %194 : vector<2x50xf32>
    %c6_79 = arith.constant 6 : index
    %c0_80 = arith.constant 0 : index
    %196 = vector.load %arg25[%c6_79, %c0_80] : memref<32x50xf32, #tpu.memory_space<vmem>>, vector<2x50xf32>
    tpu.vector_store %arg25[%c6_79, %c0_80], %195 {strides = array<i32>} : memref<32x50xf32, #tpu.memory_space<vmem>>, vector<2x50xf32>,
    %197 = vector.extract_strided_slice %77 {offsets = [8, 0], sizes = [2, 200], strides = [1, 1]} : vector<32x200xf32> to vector<2x200xf32>
    %cst_81 = arith.constant dense<0.000000e+00> : vector<2x200xf32>
    %198 = tpu.matmul %195, %78, %cst_81 {dimension_numbers = #tpu.dot_dimension_numbers<[1], [0], [0], [1], [0, 0, 1, 1], [], []>} : vector<2x50xf32>, vector<50x200xf32>, vector<2x200xf32> -> vector<2x200xf32>
    %199 = arith.addf %197, %198 : vector<2x200xf32>
    %200 = vector.extract_strided_slice %199 {offsets = [0, 0], sizes = [2, 50], strides = [1, 1]} : vector<2x200xf32> to vector<2x50xf32>
    %201 = arith.negf %200 : vector<2x50xf32>
    %202 = math.exp %201 : vector<2x50xf32>
    %cst_82 = arith.constant 1.000000e+00 : f32
    %203 = vector.broadcast %cst_82 : f32 to vector<2x50xf32>
    %204 = arith.addf %203, %202 : vector<2x50xf32>
    %205 = arith.divf %203, %204 : vector<2x50xf32>
    %206 = vector.extract_strided_slice %199 {offsets = [0, 50], sizes = [2, 50], strides = [1, 1]} : vector<2x200xf32> to vector<2x50xf32>
    %207 = arith.negf %206 : vector<2x50xf32>
    %208 = math.exp %207 : vector<2x50xf32>
    %cst_83 = arith.constant 1.000000e+00 : f32
    %209 = vector.broadcast %cst_83 : f32 to vector<2x50xf32>
    %210 = arith.addf %209, %208 : vector<2x50xf32>
    %211 = arith.divf %209, %210 : vector<2x50xf32>
    %212 = vector.extract_strided_slice %199 {offsets = [0, 100], sizes = [2, 50], strides = [1, 1]} : vector<2x200xf32> to vector<2x50xf32>
    %213 = math.tanh %212 : vector<2x50xf32>
    %214 = vector.extract_strided_slice %199 {offsets = [0, 150], sizes = [2, 50], strides = [1, 1]} : vector<2x200xf32> to vector<2x50xf32>
    %215 = arith.negf %214 : vector<2x50xf32>
    %216 = math.exp %215 : vector<2x50xf32>
    %cst_84 = arith.constant 1.000000e+00 : f32
    %217 = vector.broadcast %cst_84 : f32 to vector<2x50xf32>
    %218 = arith.addf %217, %216 : vector<2x50xf32>
    %219 = arith.divf %217, %218 : vector<2x50xf32>
    %220 = arith.mulf %211, %193 : vector<2x50xf32>
    %221 = arith.mulf %205, %213 : vector<2x50xf32>
    %222 = arith.addf %220, %221 : vector<2x50xf32>
    %223 = math.tanh %222 : vector<2x50xf32>
    %224 = arith.mulf %219, %223 : vector<2x50xf32>
    %c8_85 = arith.constant 8 : index
    %c0_86 = arith.constant 0 : index
    %225 = vector.load %arg25[%c8_85, %c0_86] : memref<32x50xf32, #tpu.memory_space<vmem>>, vector<2x50xf32>
    tpu.vector_store %arg25[%c8_85, %c0_86], %224 {strides = array<i32>} : memref<32x50xf32, #tpu.memory_space<vmem>>, vector<2x50xf32>,
    %226 = vector.extract_strided_slice %77 {offsets = [10, 0], sizes = [2, 200], strides = [1, 1]} : vector<32x200xf32> to vector<2x200xf32>
    %cst_87 = arith.constant dense<0.000000e+00> : vector<2x200xf32>
    %227 = tpu.matmul %224, %78, %cst_87 {dimension_numbers = #tpu.dot_dimension_numbers<[1], [0], [0], [1], [0, 0, 1, 1], [], []>} : vector<2x50xf32>, vector<50x200xf32>, vector<2x200xf32> -> vector<2x200xf32>
    %228 = arith.addf %226, %227 : vector<2x200xf32>
    %229 = vector.extract_strided_slice %228 {offsets = [0, 0], sizes = [2, 50], strides = [1, 1]} : vector<2x200xf32> to vector<2x50xf32>
    %230 = arith.negf %229 : vector<2x50xf32>
    %231 = math.exp %230 : vector<2x50xf32>
    %cst_88 = arith.constant 1.000000e+00 : f32
    %232 = vector.broadcast %cst_88 : f32 to vector<2x50xf32>
    %233 = arith.addf %232, %231 : vector<2x50xf32>
    %234 = arith.divf %232, %233 : vector<2x50xf32>
    %235 = vector.extract_strided_slice %228 {offsets = [0, 50], sizes = [2, 50], strides = [1, 1]} : vector<2x200xf32> to vector<2x50xf32>
    %236 = arith.negf %235 : vector<2x50xf32>
    %237 = math.exp %236 : vector<2x50xf32>
    %cst_89 = arith.constant 1.000000e+00 : f32
    %238 = vector.broadcast %cst_89 : f32 to vector<2x50xf32>
    %239 = arith.addf %238, %237 : vector<2x50xf32>
    %240 = arith.divf %238, %239 : vector<2x50xf32>
    %241 = vector.extract_strided_slice %228 {offsets = [0, 100], sizes = [2, 50], strides = [1, 1]} : vector<2x200xf32> to vector<2x50xf32>
    %242 = math.tanh %241 : vector<2x50xf32>
    %243 = vector.extract_strided_slice %228 {offsets = [0, 150], sizes = [2, 50], strides = [1, 1]} : vector<2x200xf32> to vector<2x50xf32>
    %244 = arith.negf %243 : vector<2x50xf32>
    %245 = math.exp %244 : vector<2x50xf32>
    %cst_90 = arith.constant 1.000000e+00 : f32
    %246 = vector.broadcast %cst_90 : f32 to vector<2x50xf32>
    %247 = arith.addf %246, %245 : vector<2x50xf32>
    %248 = arith.divf %246, %247 : vector<2x50xf32>
    %249 = arith.mulf %240, %222 : vector<2x50xf32>
    %250 = arith.mulf %234, %242 : vector<2x50xf32>
    %251 = arith.addf %249, %250 : vector<2x50xf32>
    %252 = math.tanh %251 : vector<2x50xf32>
    %253 = arith.mulf %248, %252 : vector<2x50xf32>
    %c10_91 = arith.constant 10 : index
    %c0_92 = arith.constant 0 : index
    %254 = vector.load %arg25[%c10_91, %c0_92] : memref<32x50xf32, #tpu.memory_space<vmem>>, vector<2x50xf32>
    tpu.vector_store %arg25[%c10_91, %c0_92], %253 {strides = array<i32>} : memref<32x50xf32, #tpu.memory_space<vmem>>, vector<2x50xf32>,
    %255 = vector.extract_strided_slice %77 {offsets = [12, 0], sizes = [2, 200], strides = [1, 1]} : vector<32x200xf32> to vector<2x200xf32>
    %cst_93 = arith.constant dense<0.000000e+00> : vector<2x200xf32>
    %256 = tpu.matmul %253, %78, %cst_93 {dimension_numbers = #tpu.dot_dimension_numbers<[1], [0], [0], [1], [0, 0, 1, 1], [], []>} : vector<2x50xf32>, vector<50x200xf32>, vector<2x200xf32> -> vector<2x200xf32>
    %257 = arith.addf %255, %256 : vector<2x200xf32>
    %258 = vector.extract_strided_slice %257 {offsets = [0, 0], sizes = [2, 50], strides = [1, 1]} : vector<2x200xf32> to vector<2x50xf32>
    %259 = arith.negf %258 : vector<2x50xf32>
    %260 = math.exp %259 : vector<2x50xf32>
    %cst_94 = arith.constant 1.000000e+00 : f32
    %261 = vector.broadcast %cst_94 : f32 to vector<2x50xf32>
    %262 = arith.addf %261, %260 : vector<2x50xf32>
    %263 = arith.divf %261, %262 : vector<2x50xf32>
    %264 = vector.extract_strided_slice %257 {offsets = [0, 50], sizes = [2, 50], strides = [1, 1]} : vector<2x200xf32> to vector<2x50xf32>
    %265 = arith.negf %264 : vector<2x50xf32>
    %266 = math.exp %265 : vector<2x50xf32>
    %cst_95 = arith.constant 1.000000e+00 : f32
    %267 = vector.broadcast %cst_95 : f32 to vector<2x50xf32>
    %268 = arith.addf %267, %266 : vector<2x50xf32>
    %269 = arith.divf %267, %268 : vector<2x50xf32>
    %270 = vector.extract_strided_slice %257 {offsets = [0, 100], sizes = [2, 50], strides = [1, 1]} : vector<2x200xf32> to vector<2x50xf32>
    %271 = math.tanh %270 : vector<2x50xf32>
    %272 = vector.extract_strided_slice %257 {offsets = [0, 150], sizes = [2, 50], strides = [1, 1]} : vector<2x200xf32> to vector<2x50xf32>
    %273 = arith.negf %272 : vector<2x50xf32>
    %274 = math.exp %273 : vector<2x50xf32>
    %cst_96 = arith.constant 1.000000e+00 : f32
    %275 = vector.broadcast %cst_96 : f32 to vector<2x50xf32>
    %276 = arith.addf %275, %274 : vector<2x50xf32>
    %277 = arith.divf %275, %276 : vector<2x50xf32>
    %278 = arith.mulf %269, %251 : vector<2x50xf32>
    %279 = arith.mulf %263, %271 : vector<2x50xf32>
    %280 = arith.addf %278, %279 : vector<2x50xf32>
    %281 = math.tanh %280 : vector<2x50xf32>
    %282 = arith.mulf %277, %281 : vector<2x50xf32>
    %c12_97 = arith.constant 12 : index
    %c0_98 = arith.constant 0 : index
    %283 = vector.load %arg25[%c12_97, %c0_98] : memref<32x50xf32, #tpu.memory_space<vmem>>, vector<2x50xf32>
    tpu.vector_store %arg25[%c12_97, %c0_98], %282 {strides = array<i32>} : memref<32x50xf32, #tpu.memory_space<vmem>>, vector<2x50xf32>,
    %284 = vector.extract_strided_slice %77 {offsets = [14, 0], sizes = [2, 200], strides = [1, 1]} : vector<32x200xf32> to vector<2x200xf32>
    %cst_99 = arith.constant dense<0.000000e+00> : vector<2x200xf32>
    %285 = tpu.matmul %282, %78, %cst_99 {dimension_numbers = #tpu.dot_dimension_numbers<[1], [0], [0], [1], [0, 0, 1, 1], [], []>} : vector<2x50xf32>, vector<50x200xf32>, vector<2x200xf32> -> vector<2x200xf32>
    %286 = arith.addf %284, %285 : vector<2x200xf32>
    %287 = vector.extract_strided_slice %286 {offsets = [0, 0], sizes = [2, 50], strides = [1, 1]} : vector<2x200xf32> to vector<2x50xf32>
    %288 = arith.negf %287 : vector<2x50xf32>
    %289 = math.exp %288 : vector<2x50xf32>
    %cst_100 = arith.constant 1.000000e+00 : f32
    %290 = vector.broadcast %cst_100 : f32 to vector<2x50xf32>
    %291 = arith.addf %290, %289 : vector<2x50xf32>
    %292 = arith.divf %290, %291 : vector<2x50xf32>
    %293 = vector.extract_strided_slice %286 {offsets = [0, 50], sizes = [2, 50], strides = [1, 1]} : vector<2x200xf32> to vector<2x50xf32>
    %294 = arith.negf %293 : vector<2x50xf32>
    %295 = math.exp %294 : vector<2x50xf32>
    %cst_101 = arith.constant 1.000000e+00 : f32
    %296 = vector.broadcast %cst_101 : f32 to vector<2x50xf32>
    %297 = arith.addf %296, %295 : vector<2x50xf32>
    %298 = arith.divf %296, %297 : vector<2x50xf32>
    %299 = vector.extract_strided_slice %286 {offsets = [0, 100], sizes = [2, 50], strides = [1, 1]} : vector<2x200xf32> to vector<2x50xf32>
    %300 = math.tanh %299 : vector<2x50xf32>
    %301 = vector.extract_strided_slice %286 {offsets = [0, 150], sizes = [2, 50], strides = [1, 1]} : vector<2x200xf32> to vector<2x50xf32>
    %302 = arith.negf %301 : vector<2x50xf32>
    %303 = math.exp %302 : vector<2x50xf32>
    %cst_102 = arith.constant 1.000000e+00 : f32
    %304 = vector.broadcast %cst_102 : f32 to vector<2x50xf32>
    %305 = arith.addf %304, %303 : vector<2x50xf32>
    %306 = arith.divf %304, %305 : vector<2x50xf32>
    %307 = arith.mulf %298, %280 : vector<2x50xf32>
    %308 = arith.mulf %292, %300 : vector<2x50xf32>
    %309 = arith.addf %307, %308 : vector<2x50xf32>
    %310 = math.tanh %309 : vector<2x50xf32>
    %311 = arith.mulf %306, %310 : vector<2x50xf32>
    %c14_103 = arith.constant 14 : index
    %c0_104 = arith.constant 0 : index
    %312 = vector.load %arg25[%c14_103, %c0_104] : memref<32x50xf32, #tpu.memory_space<vmem>>, vector<2x50xf32>
    tpu.vector_store %arg25[%c14_103, %c0_104], %311 {strides = array<i32>} : memref<32x50xf32, #tpu.memory_space<vmem>>, vector<2x50xf32>,
    %313 = vector.extract_strided_slice %77 {offsets = [16, 0], sizes = [2, 200], strides = [1, 1]} : vector<32x200xf32> to vector<2x200xf32>
    %cst_105 = arith.constant dense<0.000000e+00> : vector<2x200xf32>
    %314 = tpu.matmul %311, %78, %cst_105 {dimension_numbers = #tpu.dot_dimension_numbers<[1], [0], [0], [1], [0, 0, 1, 1], [], []>} : vector<2x50xf32>, vector<50x200xf32>, vector<2x200xf32> -> vector<2x200xf32>
    %315 = arith.addf %313, %314 : vector<2x200xf32>
    %316 = vector.extract_strided_slice %315 {offsets = [0, 0], sizes = [2, 50], strides = [1, 1]} : vector<2x200xf32> to vector<2x50xf32>
    %317 = arith.negf %316 : vector<2x50xf32>
    %318 = math.exp %317 : vector<2x50xf32>
    %cst_106 = arith.constant 1.000000e+00 : f32
    %319 = vector.broadcast %cst_106 : f32 to vector<2x50xf32>
    %320 = arith.addf %319, %318 : vector<2x50xf32>
    %321 = arith.divf %319, %320 : vector<2x50xf32>
    %322 = vector.extract_strided_slice %315 {offsets = [0, 50], sizes = [2, 50], strides = [1, 1]} : vector<2x200xf32> to vector<2x50xf32>
    %323 = arith.negf %322 : vector<2x50xf32>
    %324 = math.exp %323 : vector<2x50xf32>
    %cst_107 = arith.constant 1.000000e+00 : f32
    %325 = vector.broadcast %cst_107 : f32 to vector<2x50xf32>
    %326 = arith.addf %325, %324 : vector<2x50xf32>
    %327 = arith.divf %325, %326 : vector<2x50xf32>
    %328 = vector.extract_strided_slice %315 {offsets = [0, 100], sizes = [2, 50], strides = [1, 1]} : vector<2x200xf32> to vector<2x50xf32>
    %329 = math.tanh %328 : vector<2x50xf32>
    %330 = vector.extract_strided_slice %315 {offsets = [0, 150], sizes = [2, 50], strides = [1, 1]} : vector<2x200xf32> to vector<2x50xf32>
    %331 = arith.negf %330 : vector<2x50xf32>
    %332 = math.exp %331 : vector<2x50xf32>
    %cst_108 = arith.constant 1.000000e+00 : f32
    %333 = vector.broadcast %cst_108 : f32 to vector<2x50xf32>
    %334 = arith.addf %333, %332 : vector<2x50xf32>
    %335 = arith.divf %333, %334 : vector<2x50xf32>
    %336 = arith.mulf %327, %309 : vector<2x50xf32>
    %337 = arith.mulf %321, %329 : vector<2x50xf32>
    %338 = arith.addf %336, %337 : vector<2x50xf32>
    %339 = math.tanh %338 : vector<2x50xf32>
    %340 = arith.mulf %335, %339 : vector<2x50xf32>
    %c16_109 = arith.constant 16 : index
    %c0_110 = arith.constant 0 : index
    %341 = vector.load %arg25[%c16_109, %c0_110] : memref<32x50xf32, #tpu.memory_space<vmem>>, vector<2x50xf32>
    tpu.vector_store %arg25[%c16_109, %c0_110], %340 {strides = array<i32>} : memref<32x50xf32, #tpu.memory_space<vmem>>, vector<2x50xf32>,
    %342 = vector.extract_strided_slice %77 {offsets = [18, 0], sizes = [2, 200], strides = [1, 1]} : vector<32x200xf32> to vector<2x200xf32>
    %cst_111 = arith.constant dense<0.000000e+00> : vector<2x200xf32>
    %343 = tpu.matmul %340, %78, %cst_111 {dimension_numbers = #tpu.dot_dimension_numbers<[1], [0], [0], [1], [0, 0, 1, 1], [], []>} : vector<2x50xf32>, vector<50x200xf32>, vector<2x200xf32> -> vector<2x200xf32>
    %344 = arith.addf %342, %343 : vector<2x200xf32>
    %345 = vector.extract_strided_slice %344 {offsets = [0, 0], sizes = [2, 50], strides = [1, 1]} : vector<2x200xf32> to vector<2x50xf32>
    %346 = arith.negf %345 : vector<2x50xf32>
    %347 = math.exp %346 : vector<2x50xf32>
    %cst_112 = arith.constant 1.000000e+00 : f32
    %348 = vector.broadcast %cst_112 : f32 to vector<2x50xf32>
    %349 = arith.addf %348, %347 : vector<2x50xf32>
    %350 = arith.divf %348, %349 : vector<2x50xf32>
    %351 = vector.extract_strided_slice %344 {offsets = [0, 50], sizes = [2, 50], strides = [1, 1]} : vector<2x200xf32> to vector<2x50xf32>
    %352 = arith.negf %351 : vector<2x50xf32>
    %353 = math.exp %352 : vector<2x50xf32>
    %cst_113 = arith.constant 1.000000e+00 : f32
    %354 = vector.broadcast %cst_113 : f32 to vector<2x50xf32>
    %355 = arith.addf %354, %353 : vector<2x50xf32>
    %356 = arith.divf %354, %355 : vector<2x50xf32>
    %357 = vector.extract_strided_slice %344 {offsets = [0, 100], sizes = [2, 50], strides = [1, 1]} : vector<2x200xf32> to vector<2x50xf32>
    %358 = math.tanh %357 : vector<2x50xf32>
    %359 = vector.extract_strided_slice %344 {offsets = [0, 150], sizes = [2, 50], strides = [1, 1]} : vector<2x200xf32> to vector<2x50xf32>
    %360 = arith.negf %359 : vector<2x50xf32>
    %361 = math.exp %360 : vector<2x50xf32>
    %cst_114 = arith.constant 1.000000e+00 : f32
    %362 = vector.broadcast %cst_114 : f32 to vector<2x50xf32>
    %363 = arith.addf %362, %361 : vector<2x50xf32>
    %364 = arith.divf %362, %363 : vector<2x50xf32>
    %365 = arith.mulf %356, %338 : vector<2x50xf32>
    %366 = arith.mulf %350, %358 : vector<2x50xf32>
    %367 = arith.addf %365, %366 : vector<2x50xf32>
    %368 = math.tanh %367 : vector<2x50xf32>
    %369 = arith.mulf %364, %368 : vector<2x50xf32>
    %c18 = arith.constant 18 : index
    %c0_115 = arith.constant 0 : index
    %370 = vector.load %arg25[%c18, %c0_115] : memref<32x50xf32, #tpu.memory_space<vmem>>, vector<2x50xf32>
    tpu.vector_store %arg25[%c18, %c0_115], %369 {strides = array<i32>} : memref<32x50xf32, #tpu.memory_space<vmem>>, vector<2x50xf32>,
    %371 = vector.extract_strided_slice %77 {offsets = [20, 0], sizes = [2, 200], strides = [1, 1]} : vector<32x200xf32> to vector<2x200xf32>
    %cst_116 = arith.constant dense<0.000000e+00> : vector<2x200xf32>
    %372 = tpu.matmul %369, %78, %cst_116 {dimension_numbers = #tpu.dot_dimension_numbers<[1], [0], [0], [1], [0, 0, 1, 1], [], []>} : vector<2x50xf32>, vector<50x200xf32>, vector<2x200xf32> -> vector<2x200xf32>
    %373 = arith.addf %371, %372 : vector<2x200xf32>
    %374 = vector.extract_strided_slice %373 {offsets = [0, 0], sizes = [2, 50], strides = [1, 1]} : vector<2x200xf32> to vector<2x50xf32>
    %375 = arith.negf %374 : vector<2x50xf32>
    %376 = math.exp %375 : vector<2x50xf32>
    %cst_117 = arith.constant 1.000000e+00 : f32
    %377 = vector.broadcast %cst_117 : f32 to vector<2x50xf32>
    %378 = arith.addf %377, %376 : vector<2x50xf32>
    %379 = arith.divf %377, %378 : vector<2x50xf32>
    %380 = vector.extract_strided_slice %373 {offsets = [0, 50], sizes = [2, 50], strides = [1, 1]} : vector<2x200xf32> to vector<2x50xf32>
    %381 = arith.negf %380 : vector<2x50xf32>
    %382 = math.exp %381 : vector<2x50xf32>
    %cst_118 = arith.constant 1.000000e+00 : f32
    %383 = vector.broadcast %cst_118 : f32 to vector<2x50xf32>
    %384 = arith.addf %383, %382 : vector<2x50xf32>
    %385 = arith.divf %383, %384 : vector<2x50xf32>
    %386 = vector.extract_strided_slice %373 {offsets = [0, 100], sizes = [2, 50], strides = [1, 1]} : vector<2x200xf32> to vector<2x50xf32>
    %387 = math.tanh %386 : vector<2x50xf32>
    %388 = vector.extract_strided_slice %373 {offsets = [0, 150], sizes = [2, 50], strides = [1, 1]} : vector<2x200xf32> to vector<2x50xf32>
    %389 = arith.negf %388 : vector<2x50xf32>
    %390 = math.exp %389 : vector<2x50xf32>
    %cst_119 = arith.constant 1.000000e+00 : f32
    %391 = vector.broadcast %cst_119 : f32 to vector<2x50xf32>
    %392 = arith.addf %391, %390 : vector<2x50xf32>
    %393 = arith.divf %391, %392 : vector<2x50xf32>
    %394 = arith.mulf %385, %367 : vector<2x50xf32>
    %395 = arith.mulf %379, %387 : vector<2x50xf32>
    %396 = arith.addf %394, %395 : vector<2x50xf32>
    %397 = math.tanh %396 : vector<2x50xf32>
    %398 = arith.mulf %393, %397 : vector<2x50xf32>
    %c20 = arith.constant 20 : index
    %c0_120 = arith.constant 0 : index
    %399 = vector.load %arg25[%c20, %c0_120] : memref<32x50xf32, #tpu.memory_space<vmem>>, vector<2x50xf32>
    tpu.vector_store %arg25[%c20, %c0_120], %398 {strides = array<i32>} : memref<32x50xf32, #tpu.memory_space<vmem>>, vector<2x50xf32>,
    %400 = vector.extract_strided_slice %77 {offsets = [22, 0], sizes = [2, 200], strides = [1, 1]} : vector<32x200xf32> to vector<2x200xf32>
    %cst_121 = arith.constant dense<0.000000e+00> : vector<2x200xf32>
    %401 = tpu.matmul %398, %78, %cst_121 {dimension_numbers = #tpu.dot_dimension_numbers<[1], [0], [0], [1], [0, 0, 1, 1], [], []>} : vector<2x50xf32>, vector<50x200xf32>, vector<2x200xf32> -> vector<2x200xf32>
    %402 = arith.addf %400, %401 : vector<2x200xf32>
    %403 = vector.extract_strided_slice %402 {offsets = [0, 0], sizes = [2, 50], strides = [1, 1]} : vector<2x200xf32> to vector<2x50xf32>
    %404 = arith.negf %403 : vector<2x50xf32>
    %405 = math.exp %404 : vector<2x50xf32>
    %cst_122 = arith.constant 1.000000e+00 : f32
    %406 = vector.broadcast %cst_122 : f32 to vector<2x50xf32>
    %407 = arith.addf %406, %405 : vector<2x50xf32>
    %408 = arith.divf %406, %407 : vector<2x50xf32>
    %409 = vector.extract_strided_slice %402 {offsets = [0, 50], sizes = [2, 50], strides = [1, 1]} : vector<2x200xf32> to vector<2x50xf32>
    %410 = arith.negf %409 : vector<2x50xf32>
    %411 = math.exp %410 : vector<2x50xf32>
    %cst_123 = arith.constant 1.000000e+00 : f32
    %412 = vector.broadcast %cst_123 : f32 to vector<2x50xf32>
    %413 = arith.addf %412, %411 : vector<2x50xf32>
    %414 = arith.divf %412, %413 : vector<2x50xf32>
    %415 = vector.extract_strided_slice %402 {offsets = [0, 100], sizes = [2, 50], strides = [1, 1]} : vector<2x200xf32> to vector<2x50xf32>
    %416 = math.tanh %415 : vector<2x50xf32>
    %417 = vector.extract_strided_slice %402 {offsets = [0, 150], sizes = [2, 50], strides = [1, 1]} : vector<2x200xf32> to vector<2x50xf32>
    %418 = arith.negf %417 : vector<2x50xf32>
    %419 = math.exp %418 : vector<2x50xf32>
    %cst_124 = arith.constant 1.000000e+00 : f32
    %420 = vector.broadcast %cst_124 : f32 to vector<2x50xf32>
    %421 = arith.addf %420, %419 : vector<2x50xf32>
    %422 = arith.divf %420, %421 : vector<2x50xf32>
    %423 = arith.mulf %414, %396 : vector<2x50xf32>
    %424 = arith.mulf %408, %416 : vector<2x50xf32>
    %425 = arith.addf %423, %424 : vector<2x50xf32>
    %426 = math.tanh %425 : vector<2x50xf32>
    %427 = arith.mulf %422, %426 : vector<2x50xf32>
    %c22 = arith.constant 22 : index
    %c0_125 = arith.constant 0 : index
    %428 = vector.load %arg25[%c22, %c0_125] : memref<32x50xf32, #tpu.memory_space<vmem>>, vector<2x50xf32>
    tpu.vector_store %arg25[%c22, %c0_125], %427 {strides = array<i32>} : memref<32x50xf32, #tpu.memory_space<vmem>>, vector<2x50xf32>,
    %429 = vector.extract_strided_slice %77 {offsets = [24, 0], sizes = [2, 200], strides = [1, 1]} : vector<32x200xf32> to vector<2x200xf32>
    %cst_126 = arith.constant dense<0.000000e+00> : vector<2x200xf32>
    %430 = tpu.matmul %427, %78, %cst_126 {dimension_numbers = #tpu.dot_dimension_numbers<[1], [0], [0], [1], [0, 0, 1, 1], [], []>} : vector<2x50xf32>, vector<50x200xf32>, vector<2x200xf32> -> vector<2x200xf32>
    %431 = arith.addf %429, %430 : vector<2x200xf32>
    %432 = vector.extract_strided_slice %431 {offsets = [0, 0], sizes = [2, 50], strides = [1, 1]} : vector<2x200xf32> to vector<2x50xf32>
    %433 = arith.negf %432 : vector<2x50xf32>
    %434 = math.exp %433 : vector<2x50xf32>
    %cst_127 = arith.constant 1.000000e+00 : f32
    %435 = vector.broadcast %cst_127 : f32 to vector<2x50xf32>
    %436 = arith.addf %435, %434 : vector<2x50xf32>
    %437 = arith.divf %435, %436 : vector<2x50xf32>
    %438 = vector.extract_strided_slice %431 {offsets = [0, 50], sizes = [2, 50], strides = [1, 1]} : vector<2x200xf32> to vector<2x50xf32>
    %439 = arith.negf %438 : vector<2x50xf32>
    %440 = math.exp %439 : vector<2x50xf32>
    %cst_128 = arith.constant 1.000000e+00 : f32
    %441 = vector.broadcast %cst_128 : f32 to vector<2x50xf32>
    %442 = arith.addf %441, %440 : vector<2x50xf32>
    %443 = arith.divf %441, %442 : vector<2x50xf32>
    %444 = vector.extract_strided_slice %431 {offsets = [0, 100], sizes = [2, 50], strides = [1, 1]} : vector<2x200xf32> to vector<2x50xf32>
    %445 = math.tanh %444 : vector<2x50xf32>
    %446 = vector.extract_strided_slice %431 {offsets = [0, 150], sizes = [2, 50], strides = [1, 1]} : vector<2x200xf32> to vector<2x50xf32>
    %447 = arith.negf %446 : vector<2x50xf32>
    %448 = math.exp %447 : vector<2x50xf32>
    %cst_129 = arith.constant 1.000000e+00 : f32
    %449 = vector.broadcast %cst_129 : f32 to vector<2x50xf32>
    %450 = arith.addf %449, %448 : vector<2x50xf32>
    %451 = arith.divf %449, %450 : vector<2x50xf32>
    %452 = arith.mulf %443, %425 : vector<2x50xf32>
    %453 = arith.mulf %437, %445 : vector<2x50xf32>
    %454 = arith.addf %452, %453 : vector<2x50xf32>
    %455 = math.tanh %454 : vector<2x50xf32>
    %456 = arith.mulf %451, %455 : vector<2x50xf32>
    %c24 = arith.constant 24 : index
    %c0_130 = arith.constant 0 : index
    %457 = vector.load %arg25[%c24, %c0_130] : memref<32x50xf32, #tpu.memory_space<vmem>>, vector<2x50xf32>
    tpu.vector_store %arg25[%c24, %c0_130], %456 {strides = array<i32>} : memref<32x50xf32, #tpu.memory_space<vmem>>, vector<2x50xf32>,
    %458 = vector.extract_strided_slice %77 {offsets = [26, 0], sizes = [2, 200], strides = [1, 1]} : vector<32x200xf32> to vector<2x200xf32>
    %cst_131 = arith.constant dense<0.000000e+00> : vector<2x200xf32>
    %459 = tpu.matmul %456, %78, %cst_131 {dimension_numbers = #tpu.dot_dimension_numbers<[1], [0], [0], [1], [0, 0, 1, 1], [], []>} : vector<2x50xf32>, vector<50x200xf32>, vector<2x200xf32> -> vector<2x200xf32>
    %460 = arith.addf %458, %459 : vector<2x200xf32>
    %461 = vector.extract_strided_slice %460 {offsets = [0, 0], sizes = [2, 50], strides = [1, 1]} : vector<2x200xf32> to vector<2x50xf32>
    %462 = arith.negf %461 : vector<2x50xf32>
    %463 = math.exp %462 : vector<2x50xf32>
    %cst_132 = arith.constant 1.000000e+00 : f32
    %464 = vector.broadcast %cst_132 : f32 to vector<2x50xf32>
    %465 = arith.addf %464, %463 : vector<2x50xf32>
    %466 = arith.divf %464, %465 : vector<2x50xf32>
    %467 = vector.extract_strided_slice %460 {offsets = [0, 50], sizes = [2, 50], strides = [1, 1]} : vector<2x200xf32> to vector<2x50xf32>
    %468 = arith.negf %467 : vector<2x50xf32>
    %469 = math.exp %468 : vector<2x50xf32>
    %cst_133 = arith.constant 1.000000e+00 : f32
    %470 = vector.broadcast %cst_133 : f32 to vector<2x50xf32>
    %471 = arith.addf %470, %469 : vector<2x50xf32>
    %472 = arith.divf %470, %471 : vector<2x50xf32>
    %473 = vector.extract_strided_slice %460 {offsets = [0, 100], sizes = [2, 50], strides = [1, 1]} : vector<2x200xf32> to vector<2x50xf32>
    %474 = math.tanh %473 : vector<2x50xf32>
    %475 = vector.extract_strided_slice %460 {offsets = [0, 150], sizes = [2, 50], strides = [1, 1]} : vector<2x200xf32> to vector<2x50xf32>
    %476 = arith.negf %475 : vector<2x50xf32>
    %477 = math.exp %476 : vector<2x50xf32>
    %cst_134 = arith.constant 1.000000e+00 : f32
    %478 = vector.broadcast %cst_134 : f32 to vector<2x50xf32>
    %479 = arith.addf %478, %477 : vector<2x50xf32>
    %480 = arith.divf %478, %479 : vector<2x50xf32>
    %481 = arith.mulf %472, %454 : vector<2x50xf32>
    %482 = arith.mulf %466, %474 : vector<2x50xf32>
    %483 = arith.addf %481, %482 : vector<2x50xf32>
    %484 = math.tanh %483 : vector<2x50xf32>
    %485 = arith.mulf %480, %484 : vector<2x50xf32>
    %c26 = arith.constant 26 : index
    %c0_135 = arith.constant 0 : index
    %486 = vector.load %arg25[%c26, %c0_135] : memref<32x50xf32, #tpu.memory_space<vmem>>, vector<2x50xf32>
    tpu.vector_store %arg25[%c26, %c0_135], %485 {strides = array<i32>} : memref<32x50xf32, #tpu.memory_space<vmem>>, vector<2x50xf32>,
    %487 = vector.extract_strided_slice %77 {offsets = [28, 0], sizes = [2, 200], strides = [1, 1]} : vector<32x200xf32> to vector<2x200xf32>
    %cst_136 = arith.constant dense<0.000000e+00> : vector<2x200xf32>
    %488 = tpu.matmul %485, %78, %cst_136 {dimension_numbers = #tpu.dot_dimension_numbers<[1], [0], [0], [1], [0, 0, 1, 1], [], []>} : vector<2x50xf32>, vector<50x200xf32>, vector<2x200xf32> -> vector<2x200xf32>
    %489 = arith.addf %487, %488 : vector<2x200xf32>
    %490 = vector.extract_strided_slice %489 {offsets = [0, 0], sizes = [2, 50], strides = [1, 1]} : vector<2x200xf32> to vector<2x50xf32>
    %491 = arith.negf %490 : vector<2x50xf32>
    %492 = math.exp %491 : vector<2x50xf32>
    %cst_137 = arith.constant 1.000000e+00 : f32
    %493 = vector.broadcast %cst_137 : f32 to vector<2x50xf32>
    %494 = arith.addf %493, %492 : vector<2x50xf32>
    %495 = arith.divf %493, %494 : vector<2x50xf32>
    %496 = vector.extract_strided_slice %489 {offsets = [0, 50], sizes = [2, 50], strides = [1, 1]} : vector<2x200xf32> to vector<2x50xf32>
    %497 = arith.negf %496 : vector<2x50xf32>
    %498 = math.exp %497 : vector<2x50xf32>
    %cst_138 = arith.constant 1.000000e+00 : f32
    %499 = vector.broadcast %cst_138 : f32 to vector<2x50xf32>
    %500 = arith.addf %499, %498 : vector<2x50xf32>
    %501 = arith.divf %499, %500 : vector<2x50xf32>
    %502 = vector.extract_strided_slice %489 {offsets = [0, 100], sizes = [2, 50], strides = [1, 1]} : vector<2x200xf32> to vector<2x50xf32>
    %503 = math.tanh %502 : vector<2x50xf32>
    %504 = vector.extract_strided_slice %489 {offsets = [0, 150], sizes = [2, 50], strides = [1, 1]} : vector<2x200xf32> to vector<2x50xf32>
    %505 = arith.negf %504 : vector<2x50xf32>
    %506 = math.exp %505 : vector<2x50xf32>
    %cst_139 = arith.constant 1.000000e+00 : f32
    %507 = vector.broadcast %cst_139 : f32 to vector<2x50xf32>
    %508 = arith.addf %507, %506 : vector<2x50xf32>
    %509 = arith.divf %507, %508 : vector<2x50xf32>
    %510 = arith.mulf %501, %483 : vector<2x50xf32>
    %511 = arith.mulf %495, %503 : vector<2x50xf32>
    %512 = arith.addf %510, %511 : vector<2x50xf32>
    %513 = math.tanh %512 : vector<2x50xf32>
    %514 = arith.mulf %509, %513 : vector<2x50xf32>
    %c28 = arith.constant 28 : index
    %c0_140 = arith.constant 0 : index
    %515 = vector.load %arg25[%c28, %c0_140] : memref<32x50xf32, #tpu.memory_space<vmem>>, vector<2x50xf32>
    tpu.vector_store %arg25[%c28, %c0_140], %514 {strides = array<i32>} : memref<32x50xf32, #tpu.memory_space<vmem>>, vector<2x50xf32>,
    %516 = vector.extract_strided_slice %77 {offsets = [30, 0], sizes = [2, 200], strides = [1, 1]} : vector<32x200xf32> to vector<2x200xf32>
    %cst_141 = arith.constant dense<0.000000e+00> : vector<2x200xf32>
    %517 = tpu.matmul %514, %78, %cst_141 {dimension_numbers = #tpu.dot_dimension_numbers<[1], [0], [0], [1], [0, 0, 1, 1], [], []>} : vector<2x50xf32>, vector<50x200xf32>, vector<2x200xf32> -> vector<2x200xf32>
    %518 = arith.addf %516, %517 : vector<2x200xf32>
    %519 = vector.extract_strided_slice %518 {offsets = [0, 0], sizes = [2, 50], strides = [1, 1]} : vector<2x200xf32> to vector<2x50xf32>
    %520 = arith.negf %519 : vector<2x50xf32>
    %521 = math.exp %520 : vector<2x50xf32>
    %cst_142 = arith.constant 1.000000e+00 : f32
    %522 = vector.broadcast %cst_142 : f32 to vector<2x50xf32>
    %523 = arith.addf %522, %521 : vector<2x50xf32>
    %524 = arith.divf %522, %523 : vector<2x50xf32>
    %525 = vector.extract_strided_slice %518 {offsets = [0, 50], sizes = [2, 50], strides = [1, 1]} : vector<2x200xf32> to vector<2x50xf32>
    %526 = arith.negf %525 : vector<2x50xf32>
    %527 = math.exp %526 : vector<2x50xf32>
    %cst_143 = arith.constant 1.000000e+00 : f32
    %528 = vector.broadcast %cst_143 : f32 to vector<2x50xf32>
    %529 = arith.addf %528, %527 : vector<2x50xf32>
    %530 = arith.divf %528, %529 : vector<2x50xf32>
    %531 = vector.extract_strided_slice %518 {offsets = [0, 100], sizes = [2, 50], strides = [1, 1]} : vector<2x200xf32> to vector<2x50xf32>
    %532 = math.tanh %531 : vector<2x50xf32>
    %533 = vector.extract_strided_slice %518 {offsets = [0, 150], sizes = [2, 50], strides = [1, 1]} : vector<2x200xf32> to vector<2x50xf32>
    %534 = arith.negf %533 : vector<2x50xf32>
    %535 = math.exp %534 : vector<2x50xf32>
    %cst_144 = arith.constant 1.000000e+00 : f32
    %536 = vector.broadcast %cst_144 : f32 to vector<2x50xf32>
    %537 = arith.addf %536, %535 : vector<2x50xf32>
    %538 = arith.divf %536, %537 : vector<2x50xf32>
    %539 = arith.mulf %530, %512 : vector<2x50xf32>
    %540 = arith.mulf %524, %532 : vector<2x50xf32>
    %541 = arith.addf %539, %540 : vector<2x50xf32>
    %542 = math.tanh %541 : vector<2x50xf32>
    %543 = arith.mulf %538, %542 : vector<2x50xf32>
    %c30 = arith.constant 30 : index
    %c0_145 = arith.constant 0 : index
    %544 = vector.load %arg25[%c30, %c0_145] : memref<32x50xf32, #tpu.memory_space<vmem>>, vector<2x50xf32>
    tpu.vector_store %arg25[%c30, %c0_145], %543 {strides = array<i32>} : memref<32x50xf32, #tpu.memory_space<vmem>>, vector<2x50xf32>,
    %c2_146 = arith.constant 2 : index
    %c0_147 = arith.constant 0 : index
    %545 = vector.load %arg23[%c2_146, %c0_147] : memref<20x16xf32, #tpu.memory_space<vmem>>, vector<16x16xf32>
    %c0_148 = arith.constant 0 : index
    %c0_149 = arith.constant 0 : index
    %546 = vector.load %arg8[%c0_148, %c0_149] : memref<16x200xf32, #tpu.memory_space<vmem>>, vector<16x200xf32>
    %cst_150 = arith.constant dense<0.000000e+00> : vector<16x200xf32>
    %547 = tpu.matmul %545, %546, %cst_150 {dimension_numbers = #tpu.dot_dimension_numbers<[1], [0], [0], [1], [0, 0, 1, 1], [], []>} : vector<16x16xf32>, vector<16x200xf32>, vector<16x200xf32> -> vector<16x200xf32>
    %c0_151 = arith.constant 0 : index
    %c0_152 = arith.constant 0 : index
    %548 = vector.load %arg10[%c0_151, %c0_152] : memref<1x200xf32, #tpu.memory_space<vmem>>, vector<1x200xf32>
    %549 = vector.broadcast %548 : vector<1x200xf32> to vector<16x200xf32>
    %550 = arith.addf %547, %549 : vector<16x200xf32>
    %c0_153 = arith.constant 0 : index
    %c0_154 = arith.constant 0 : index
    %551 = vector.load %arg9[%c0_153, %c0_154] : memref<50x200xf32, #tpu.memory_space<vmem>>, vector<50x200xf32>
    %cst_155 = arith.constant 0.000000e+00 : f32
    %552 = vector.broadcast %cst_155 : f32 to vector<2x50xf32>
    %cst_156 = arith.constant 0.000000e+00 : f32
    %553 = vector.broadcast %cst_156 : f32 to vector<2x50xf32>
    %554 = vector.extract_strided_slice %550 {offsets = [0, 0], sizes = [2, 200], strides = [1, 1]} : vector<16x200xf32> to vector<2x200xf32>
    %cst_157 = arith.constant dense<0.000000e+00> : vector<2x200xf32>
    %555 = tpu.matmul %552, %551, %cst_157 {dimension_numbers = #tpu.dot_dimension_numbers<[1], [0], [0], [1], [0, 0, 1, 1], [], []>} : vector<2x50xf32>, vector<50x200xf32>, vector<2x200xf32> -> vector<2x200xf32>
    %556 = arith.addf %554, %555 : vector<2x200xf32>
    %557 = vector.extract_strided_slice %556 {offsets = [0, 0], sizes = [2, 50], strides = [1, 1]} : vector<2x200xf32> to vector<2x50xf32>
    %558 = arith.negf %557 : vector<2x50xf32>
    %559 = math.exp %558 : vector<2x50xf32>
    %cst_158 = arith.constant 1.000000e+00 : f32
    %560 = vector.broadcast %cst_158 : f32 to vector<2x50xf32>
    %561 = arith.addf %560, %559 : vector<2x50xf32>
    %562 = arith.divf %560, %561 : vector<2x50xf32>
    %563 = vector.extract_strided_slice %556 {offsets = [0, 50], sizes = [2, 50], strides = [1, 1]} : vector<2x200xf32> to vector<2x50xf32>
    %564 = arith.negf %563 : vector<2x50xf32>
    %565 = math.exp %564 : vector<2x50xf32>
    %cst_159 = arith.constant 1.000000e+00 : f32
    %566 = vector.broadcast %cst_159 : f32 to vector<2x50xf32>
    %567 = arith.addf %566, %565 : vector<2x50xf32>
    %568 = arith.divf %566, %567 : vector<2x50xf32>
    %569 = vector.extract_strided_slice %556 {offsets = [0, 100], sizes = [2, 50], strides = [1, 1]} : vector<2x200xf32> to vector<2x50xf32>
    %570 = math.tanh %569 : vector<2x50xf32>
    %571 = vector.extract_strided_slice %556 {offsets = [0, 150], sizes = [2, 50], strides = [1, 1]} : vector<2x200xf32> to vector<2x50xf32>
    %572 = arith.negf %571 : vector<2x50xf32>
    %573 = math.exp %572 : vector<2x50xf32>
    %cst_160 = arith.constant 1.000000e+00 : f32
    %574 = vector.broadcast %cst_160 : f32 to vector<2x50xf32>
    %575 = arith.addf %574, %573 : vector<2x50xf32>
    %576 = arith.divf %574, %575 : vector<2x50xf32>
    %577 = arith.mulf %568, %553 : vector<2x50xf32>
    %578 = arith.mulf %562, %570 : vector<2x50xf32>
    %579 = arith.addf %577, %578 : vector<2x50xf32>
    %580 = math.tanh %579 : vector<2x50xf32>
    %581 = arith.mulf %576, %580 : vector<2x50xf32>
    %c0_161 = arith.constant 0 : index
    %c0_162 = arith.constant 0 : index
    %582 = vector.load %arg26[%c0_161, %c0_162] : memref<16x50xf32, #tpu.memory_space<vmem>>, vector<2x50xf32>
    tpu.vector_store %arg26[%c0_161, %c0_162], %581 {strides = array<i32>} : memref<16x50xf32, #tpu.memory_space<vmem>>, vector<2x50xf32>,
    %583 = vector.extract_strided_slice %550 {offsets = [2, 0], sizes = [2, 200], strides = [1, 1]} : vector<16x200xf32> to vector<2x200xf32>
    %cst_163 = arith.constant dense<0.000000e+00> : vector<2x200xf32>
    %584 = tpu.matmul %581, %551, %cst_163 {dimension_numbers = #tpu.dot_dimension_numbers<[1], [0], [0], [1], [0, 0, 1, 1], [], []>} : vector<2x50xf32>, vector<50x200xf32>, vector<2x200xf32> -> vector<2x200xf32>
    %585 = arith.addf %583, %584 : vector<2x200xf32>
    %586 = vector.extract_strided_slice %585 {offsets = [0, 0], sizes = [2, 50], strides = [1, 1]} : vector<2x200xf32> to vector<2x50xf32>
    %587 = arith.negf %586 : vector<2x50xf32>
    %588 = math.exp %587 : vector<2x50xf32>
    %cst_164 = arith.constant 1.000000e+00 : f32
    %589 = vector.broadcast %cst_164 : f32 to vector<2x50xf32>
    %590 = arith.addf %589, %588 : vector<2x50xf32>
    %591 = arith.divf %589, %590 : vector<2x50xf32>
    %592 = vector.extract_strided_slice %585 {offsets = [0, 50], sizes = [2, 50], strides = [1, 1]} : vector<2x200xf32> to vector<2x50xf32>
    %593 = arith.negf %592 : vector<2x50xf32>
    %594 = math.exp %593 : vector<2x50xf32>
    %cst_165 = arith.constant 1.000000e+00 : f32
    %595 = vector.broadcast %cst_165 : f32 to vector<2x50xf32>
    %596 = arith.addf %595, %594 : vector<2x50xf32>
    %597 = arith.divf %595, %596 : vector<2x50xf32>
    %598 = vector.extract_strided_slice %585 {offsets = [0, 100], sizes = [2, 50], strides = [1, 1]} : vector<2x200xf32> to vector<2x50xf32>
    %599 = math.tanh %598 : vector<2x50xf32>
    %600 = vector.extract_strided_slice %585 {offsets = [0, 150], sizes = [2, 50], strides = [1, 1]} : vector<2x200xf32> to vector<2x50xf32>
    %601 = arith.negf %600 : vector<2x50xf32>
    %602 = math.exp %601 : vector<2x50xf32>
    %cst_166 = arith.constant 1.000000e+00 : f32
    %603 = vector.broadcast %cst_166 : f32 to vector<2x50xf32>
    %604 = arith.addf %603, %602 : vector<2x50xf32>
    %605 = arith.divf %603, %604 : vector<2x50xf32>
    %606 = arith.mulf %597, %579 : vector<2x50xf32>
    %607 = arith.mulf %591, %599 : vector<2x50xf32>
    %608 = arith.addf %606, %607 : vector<2x50xf32>
    %609 = math.tanh %608 : vector<2x50xf32>
    %610 = arith.mulf %605, %609 : vector<2x50xf32>
    %c2_167 = arith.constant 2 : index
    %c0_168 = arith.constant 0 : index
    %611 = vector.load %arg26[%c2_167, %c0_168] : memref<16x50xf32, #tpu.memory_space<vmem>>, vector<2x50xf32>
    tpu.vector_store %arg26[%c2_167, %c0_168], %610 {strides = array<i32>} : memref<16x50xf32, #tpu.memory_space<vmem>>, vector<2x50xf32>,
    %612 = vector.extract_strided_slice %550 {offsets = [4, 0], sizes = [2, 200], strides = [1, 1]} : vector<16x200xf32> to vector<2x200xf32>
    %cst_169 = arith.constant dense<0.000000e+00> : vector<2x200xf32>
    %613 = tpu.matmul %610, %551, %cst_169 {dimension_numbers = #tpu.dot_dimension_numbers<[1], [0], [0], [1], [0, 0, 1, 1], [], []>} : vector<2x50xf32>, vector<50x200xf32>, vector<2x200xf32> -> vector<2x200xf32>
    %614 = arith.addf %612, %613 : vector<2x200xf32>
    %615 = vector.extract_strided_slice %614 {offsets = [0, 0], sizes = [2, 50], strides = [1, 1]} : vector<2x200xf32> to vector<2x50xf32>
    %616 = arith.negf %615 : vector<2x50xf32>
    %617 = math.exp %616 : vector<2x50xf32>
    %cst_170 = arith.constant 1.000000e+00 : f32
    %618 = vector.broadcast %cst_170 : f32 to vector<2x50xf32>
    %619 = arith.addf %618, %617 : vector<2x50xf32>
    %620 = arith.divf %618, %619 : vector<2x50xf32>
    %621 = vector.extract_strided_slice %614 {offsets = [0, 50], sizes = [2, 50], strides = [1, 1]} : vector<2x200xf32> to vector<2x50xf32>
    %622 = arith.negf %621 : vector<2x50xf32>
    %623 = math.exp %622 : vector<2x50xf32>
    %cst_171 = arith.constant 1.000000e+00 : f32
    %624 = vector.broadcast %cst_171 : f32 to vector<2x50xf32>
    %625 = arith.addf %624, %623 : vector<2x50xf32>
    %626 = arith.divf %624, %625 : vector<2x50xf32>
    %627 = vector.extract_strided_slice %614 {offsets = [0, 100], sizes = [2, 50], strides = [1, 1]} : vector<2x200xf32> to vector<2x50xf32>
    %628 = math.tanh %627 : vector<2x50xf32>
    %629 = vector.extract_strided_slice %614 {offsets = [0, 150], sizes = [2, 50], strides = [1, 1]} : vector<2x200xf32> to vector<2x50xf32>
    %630 = arith.negf %629 : vector<2x50xf32>
    %631 = math.exp %630 : vector<2x50xf32>
    %cst_172 = arith.constant 1.000000e+00 : f32
    %632 = vector.broadcast %cst_172 : f32 to vector<2x50xf32>
    %633 = arith.addf %632, %631 : vector<2x50xf32>
    %634 = arith.divf %632, %633 : vector<2x50xf32>
    %635 = arith.mulf %626, %608 : vector<2x50xf32>
    %636 = arith.mulf %620, %628 : vector<2x50xf32>
    %637 = arith.addf %635, %636 : vector<2x50xf32>
    %638 = math.tanh %637 : vector<2x50xf32>
    %639 = arith.mulf %634, %638 : vector<2x50xf32>
    %c4_173 = arith.constant 4 : index
    %c0_174 = arith.constant 0 : index
    %640 = vector.load %arg26[%c4_173, %c0_174] : memref<16x50xf32, #tpu.memory_space<vmem>>, vector<2x50xf32>
    tpu.vector_store %arg26[%c4_173, %c0_174], %639 {strides = array<i32>} : memref<16x50xf32, #tpu.memory_space<vmem>>, vector<2x50xf32>,
    %641 = vector.extract_strided_slice %550 {offsets = [6, 0], sizes = [2, 200], strides = [1, 1]} : vector<16x200xf32> to vector<2x200xf32>
    %cst_175 = arith.constant dense<0.000000e+00> : vector<2x200xf32>
    %642 = tpu.matmul %639, %551, %cst_175 {dimension_numbers = #tpu.dot_dimension_numbers<[1], [0], [0], [1], [0, 0, 1, 1], [], []>} : vector<2x50xf32>, vector<50x200xf32>, vector<2x200xf32> -> vector<2x200xf32>
    %643 = arith.addf %641, %642 : vector<2x200xf32>
    %644 = vector.extract_strided_slice %643 {offsets = [0, 0], sizes = [2, 50], strides = [1, 1]} : vector<2x200xf32> to vector<2x50xf32>
    %645 = arith.negf %644 : vector<2x50xf32>
    %646 = math.exp %645 : vector<2x50xf32>
    %cst_176 = arith.constant 1.000000e+00 : f32
    %647 = vector.broadcast %cst_176 : f32 to vector<2x50xf32>
    %648 = arith.addf %647, %646 : vector<2x50xf32>
    %649 = arith.divf %647, %648 : vector<2x50xf32>
    %650 = vector.extract_strided_slice %643 {offsets = [0, 50], sizes = [2, 50], strides = [1, 1]} : vector<2x200xf32> to vector<2x50xf32>
    %651 = arith.negf %650 : vector<2x50xf32>
    %652 = math.exp %651 : vector<2x50xf32>
    %cst_177 = arith.constant 1.000000e+00 : f32
    %653 = vector.broadcast %cst_177 : f32 to vector<2x50xf32>
    %654 = arith.addf %653, %652 : vector<2x50xf32>
    %655 = arith.divf %653, %654 : vector<2x50xf32>
    %656 = vector.extract_strided_slice %643 {offsets = [0, 100], sizes = [2, 50], strides = [1, 1]} : vector<2x200xf32> to vector<2x50xf32>
    %657 = math.tanh %656 : vector<2x50xf32>
    %658 = vector.extract_strided_slice %643 {offsets = [0, 150], sizes = [2, 50], strides = [1, 1]} : vector<2x200xf32> to vector<2x50xf32>
    %659 = arith.negf %658 : vector<2x50xf32>
    %660 = math.exp %659 : vector<2x50xf32>
    %cst_178 = arith.constant 1.000000e+00 : f32
    %661 = vector.broadcast %cst_178 : f32 to vector<2x50xf32>
    %662 = arith.addf %661, %660 : vector<2x50xf32>
    %663 = arith.divf %661, %662 : vector<2x50xf32>
    %664 = arith.mulf %655, %637 : vector<2x50xf32>
    %665 = arith.mulf %649, %657 : vector<2x50xf32>
    %666 = arith.addf %664, %665 : vector<2x50xf32>
    %667 = math.tanh %666 : vector<2x50xf32>
    %668 = arith.mulf %663, %667 : vector<2x50xf32>
    %c6_179 = arith.constant 6 : index
    %c0_180 = arith.constant 0 : index
    %669 = vector.load %arg26[%c6_179, %c0_180] : memref<16x50xf32, #tpu.memory_space<vmem>>, vector<2x50xf32>
    tpu.vector_store %arg26[%c6_179, %c0_180], %668 {strides = array<i32>} : memref<16x50xf32, #tpu.memory_space<vmem>>, vector<2x50xf32>,
    %670 = vector.extract_strided_slice %550 {offsets = [8, 0], sizes = [2, 200], strides = [1, 1]} : vector<16x200xf32> to vector<2x200xf32>
    %cst_181 = arith.constant dense<0.000000e+00> : vector<2x200xf32>
    %671 = tpu.matmul %668, %551, %cst_181 {dimension_numbers = #tpu.dot_dimension_numbers<[1], [0], [0], [1], [0, 0, 1, 1], [], []>} : vector<2x50xf32>, vector<50x200xf32>, vector<2x200xf32> -> vector<2x200xf32>
    %672 = arith.addf %670, %671 : vector<2x200xf32>
    %673 = vector.extract_strided_slice %672 {offsets = [0, 0], sizes = [2, 50], strides = [1, 1]} : vector<2x200xf32> to vector<2x50xf32>
    %674 = arith.negf %673 : vector<2x50xf32>
    %675 = math.exp %674 : vector<2x50xf32>
    %cst_182 = arith.constant 1.000000e+00 : f32
    %676 = vector.broadcast %cst_182 : f32 to vector<2x50xf32>
    %677 = arith.addf %676, %675 : vector<2x50xf32>
    %678 = arith.divf %676, %677 : vector<2x50xf32>
    %679 = vector.extract_strided_slice %672 {offsets = [0, 50], sizes = [2, 50], strides = [1, 1]} : vector<2x200xf32> to vector<2x50xf32>
    %680 = arith.negf %679 : vector<2x50xf32>
    %681 = math.exp %680 : vector<2x50xf32>
    %cst_183 = arith.constant 1.000000e+00 : f32
    %682 = vector.broadcast %cst_183 : f32 to vector<2x50xf32>
    %683 = arith.addf %682, %681 : vector<2x50xf32>
    %684 = arith.divf %682, %683 : vector<2x50xf32>
    %685 = vector.extract_strided_slice %672 {offsets = [0, 100], sizes = [2, 50], strides = [1, 1]} : vector<2x200xf32> to vector<2x50xf32>
    %686 = math.tanh %685 : vector<2x50xf32>
    %687 = vector.extract_strided_slice %672 {offsets = [0, 150], sizes = [2, 50], strides = [1, 1]} : vector<2x200xf32> to vector<2x50xf32>
    %688 = arith.negf %687 : vector<2x50xf32>
    %689 = math.exp %688 : vector<2x50xf32>
    %cst_184 = arith.constant 1.000000e+00 : f32
    %690 = vector.broadcast %cst_184 : f32 to vector<2x50xf32>
    %691 = arith.addf %690, %689 : vector<2x50xf32>
    %692 = arith.divf %690, %691 : vector<2x50xf32>
    %693 = arith.mulf %684, %666 : vector<2x50xf32>
    %694 = arith.mulf %678, %686 : vector<2x50xf32>
    %695 = arith.addf %693, %694 : vector<2x50xf32>
    %696 = math.tanh %695 : vector<2x50xf32>
    %697 = arith.mulf %692, %696 : vector<2x50xf32>
    %c8_185 = arith.constant 8 : index
    %c0_186 = arith.constant 0 : index
    %698 = vector.load %arg26[%c8_185, %c0_186] : memref<16x50xf32, #tpu.memory_space<vmem>>, vector<2x50xf32>
    tpu.vector_store %arg26[%c8_185, %c0_186], %697 {strides = array<i32>} : memref<16x50xf32, #tpu.memory_space<vmem>>, vector<2x50xf32>,
    %699 = vector.extract_strided_slice %550 {offsets = [10, 0], sizes = [2, 200], strides = [1, 1]} : vector<16x200xf32> to vector<2x200xf32>
    %cst_187 = arith.constant dense<0.000000e+00> : vector<2x200xf32>
    %700 = tpu.matmul %697, %551, %cst_187 {dimension_numbers = #tpu.dot_dimension_numbers<[1], [0], [0], [1], [0, 0, 1, 1], [], []>} : vector<2x50xf32>, vector<50x200xf32>, vector<2x200xf32> -> vector<2x200xf32>
    %701 = arith.addf %699, %700 : vector<2x200xf32>
    %702 = vector.extract_strided_slice %701 {offsets = [0, 0], sizes = [2, 50], strides = [1, 1]} : vector<2x200xf32> to vector<2x50xf32>
    %703 = arith.negf %702 : vector<2x50xf32>
    %704 = math.exp %703 : vector<2x50xf32>
    %cst_188 = arith.constant 1.000000e+00 : f32
    %705 = vector.broadcast %cst_188 : f32 to vector<2x50xf32>
    %706 = arith.addf %705, %704 : vector<2x50xf32>
    %707 = arith.divf %705, %706 : vector<2x50xf32>
    %708 = vector.extract_strided_slice %701 {offsets = [0, 50], sizes = [2, 50], strides = [1, 1]} : vector<2x200xf32> to vector<2x50xf32>
    %709 = arith.negf %708 : vector<2x50xf32>
    %710 = math.exp %709 : vector<2x50xf32>
    %cst_189 = arith.constant 1.000000e+00 : f32
    %711 = vector.broadcast %cst_189 : f32 to vector<2x50xf32>
    %712 = arith.addf %711, %710 : vector<2x50xf32>
    %713 = arith.divf %711, %712 : vector<2x50xf32>
    %714 = vector.extract_strided_slice %701 {offsets = [0, 100], sizes = [2, 50], strides = [1, 1]} : vector<2x200xf32> to vector<2x50xf32>
    %715 = math.tanh %714 : vector<2x50xf32>
    %716 = vector.extract_strided_slice %701 {offsets = [0, 150], sizes = [2, 50], strides = [1, 1]} : vector<2x200xf32> to vector<2x50xf32>
    %717 = arith.negf %716 : vector<2x50xf32>
    %718 = math.exp %717 : vector<2x50xf32>
    %cst_190 = arith.constant 1.000000e+00 : f32
    %719 = vector.broadcast %cst_190 : f32 to vector<2x50xf32>
    %720 = arith.addf %719, %718 : vector<2x50xf32>
    %721 = arith.divf %719, %720 : vector<2x50xf32>
    %722 = arith.mulf %713, %695 : vector<2x50xf32>
    %723 = arith.mulf %707, %715 : vector<2x50xf32>
    %724 = arith.addf %722, %723 : vector<2x50xf32>
    %725 = math.tanh %724 : vector<2x50xf32>
    %726 = arith.mulf %721, %725 : vector<2x50xf32>
    %c10_191 = arith.constant 10 : index
    %c0_192 = arith.constant 0 : index
    %727 = vector.load %arg26[%c10_191, %c0_192] : memref<16x50xf32, #tpu.memory_space<vmem>>, vector<2x50xf32>
    tpu.vector_store %arg26[%c10_191, %c0_192], %726 {strides = array<i32>} : memref<16x50xf32, #tpu.memory_space<vmem>>, vector<2x50xf32>,
    %728 = vector.extract_strided_slice %550 {offsets = [12, 0], sizes = [2, 200], strides = [1, 1]} : vector<16x200xf32> to vector<2x200xf32>
    %cst_193 = arith.constant dense<0.000000e+00> : vector<2x200xf32>
    %729 = tpu.matmul %726, %551, %cst_193 {dimension_numbers = #tpu.dot_dimension_numbers<[1], [0], [0], [1], [0, 0, 1, 1], [], []>} : vector<2x50xf32>, vector<50x200xf32>, vector<2x200xf32> -> vector<2x200xf32>
    %730 = arith.addf %728, %729 : vector<2x200xf32>
    %731 = vector.extract_strided_slice %730 {offsets = [0, 0], sizes = [2, 50], strides = [1, 1]} : vector<2x200xf32> to vector<2x50xf32>
    %732 = arith.negf %731 : vector<2x50xf32>
    %733 = math.exp %732 : vector<2x50xf32>
    %cst_194 = arith.constant 1.000000e+00 : f32
    %734 = vector.broadcast %cst_194 : f32 to vector<2x50xf32>
    %735 = arith.addf %734, %733 : vector<2x50xf32>
    %736 = arith.divf %734, %735 : vector<2x50xf32>
    %737 = vector.extract_strided_slice %730 {offsets = [0, 50], sizes = [2, 50], strides = [1, 1]} : vector<2x200xf32> to vector<2x50xf32>
    %738 = arith.negf %737 : vector<2x50xf32>
    %739 = math.exp %738 : vector<2x50xf32>
    %cst_195 = arith.constant 1.000000e+00 : f32
    %740 = vector.broadcast %cst_195 : f32 to vector<2x50xf32>
    %741 = arith.addf %740, %739 : vector<2x50xf32>
    %742 = arith.divf %740, %741 : vector<2x50xf32>
    %743 = vector.extract_strided_slice %730 {offsets = [0, 100], sizes = [2, 50], strides = [1, 1]} : vector<2x200xf32> to vector<2x50xf32>
    %744 = math.tanh %743 : vector<2x50xf32>
    %745 = vector.extract_strided_slice %730 {offsets = [0, 150], sizes = [2, 50], strides = [1, 1]} : vector<2x200xf32> to vector<2x50xf32>
    %746 = arith.negf %745 : vector<2x50xf32>
    %747 = math.exp %746 : vector<2x50xf32>
    %cst_196 = arith.constant 1.000000e+00 : f32
    %748 = vector.broadcast %cst_196 : f32 to vector<2x50xf32>
    %749 = arith.addf %748, %747 : vector<2x50xf32>
    %750 = arith.divf %748, %749 : vector<2x50xf32>
    %751 = arith.mulf %742, %724 : vector<2x50xf32>
    %752 = arith.mulf %736, %744 : vector<2x50xf32>
    %753 = arith.addf %751, %752 : vector<2x50xf32>
    %754 = math.tanh %753 : vector<2x50xf32>
    %755 = arith.mulf %750, %754 : vector<2x50xf32>
    %c12_197 = arith.constant 12 : index
    %c0_198 = arith.constant 0 : index
    %756 = vector.load %arg26[%c12_197, %c0_198] : memref<16x50xf32, #tpu.memory_space<vmem>>, vector<2x50xf32>
    tpu.vector_store %arg26[%c12_197, %c0_198], %755 {strides = array<i32>} : memref<16x50xf32, #tpu.memory_space<vmem>>, vector<2x50xf32>,
    %757 = vector.extract_strided_slice %550 {offsets = [14, 0], sizes = [2, 200], strides = [1, 1]} : vector<16x200xf32> to vector<2x200xf32>
    %cst_199 = arith.constant dense<0.000000e+00> : vector<2x200xf32>
    %758 = tpu.matmul %755, %551, %cst_199 {dimension_numbers = #tpu.dot_dimension_numbers<[1], [0], [0], [1], [0, 0, 1, 1], [], []>} : vector<2x50xf32>, vector<50x200xf32>, vector<2x200xf32> -> vector<2x200xf32>
    %759 = arith.addf %757, %758 : vector<2x200xf32>
    %760 = vector.extract_strided_slice %759 {offsets = [0, 0], sizes = [2, 50], strides = [1, 1]} : vector<2x200xf32> to vector<2x50xf32>
    %761 = arith.negf %760 : vector<2x50xf32>
    %762 = math.exp %761 : vector<2x50xf32>
    %cst_200 = arith.constant 1.000000e+00 : f32
    %763 = vector.broadcast %cst_200 : f32 to vector<2x50xf32>
    %764 = arith.addf %763, %762 : vector<2x50xf32>
    %765 = arith.divf %763, %764 : vector<2x50xf32>
    %766 = vector.extract_strided_slice %759 {offsets = [0, 50], sizes = [2, 50], strides = [1, 1]} : vector<2x200xf32> to vector<2x50xf32>
    %767 = arith.negf %766 : vector<2x50xf32>
    %768 = math.exp %767 : vector<2x50xf32>
    %cst_201 = arith.constant 1.000000e+00 : f32
    %769 = vector.broadcast %cst_201 : f32 to vector<2x50xf32>
    %770 = arith.addf %769, %768 : vector<2x50xf32>
    %771 = arith.divf %769, %770 : vector<2x50xf32>
    %772 = vector.extract_strided_slice %759 {offsets = [0, 100], sizes = [2, 50], strides = [1, 1]} : vector<2x200xf32> to vector<2x50xf32>
    %773 = math.tanh %772 : vector<2x50xf32>
    %774 = vector.extract_strided_slice %759 {offsets = [0, 150], sizes = [2, 50], strides = [1, 1]} : vector<2x200xf32> to vector<2x50xf32>
    %775 = arith.negf %774 : vector<2x50xf32>
    %776 = math.exp %775 : vector<2x50xf32>
    %cst_202 = arith.constant 1.000000e+00 : f32
    %777 = vector.broadcast %cst_202 : f32 to vector<2x50xf32>
    %778 = arith.addf %777, %776 : vector<2x50xf32>
    %779 = arith.divf %777, %778 : vector<2x50xf32>
    %780 = arith.mulf %771, %753 : vector<2x50xf32>
    %781 = arith.mulf %765, %773 : vector<2x50xf32>
    %782 = arith.addf %780, %781 : vector<2x50xf32>
    %783 = math.tanh %782 : vector<2x50xf32>
    %784 = arith.mulf %779, %783 : vector<2x50xf32>
    %c14_203 = arith.constant 14 : index
    %c0_204 = arith.constant 0 : index
    %785 = vector.load %arg26[%c14_203, %c0_204] : memref<16x50xf32, #tpu.memory_space<vmem>>, vector<2x50xf32>
    tpu.vector_store %arg26[%c14_203, %c0_204], %784 {strides = array<i32>} : memref<16x50xf32, #tpu.memory_space<vmem>>, vector<2x50xf32>,
    %c0_205 = arith.constant 0 : index
    %c0_206 = arith.constant 0 : index
    %786 = vector.load %arg24[%c0_205, %c0_206] : memref<8x16xf32, #tpu.memory_space<vmem>>, vector<8x16xf32>
    %c0_207 = arith.constant 0 : index
    %c0_208 = arith.constant 0 : index
    %787 = vector.load %arg11[%c0_207, %c0_208] : memref<16x200xf32, #tpu.memory_space<vmem>>, vector<16x200xf32>
    %cst_209 = arith.constant dense<0.000000e+00> : vector<8x200xf32>
    %788 = tpu.matmul %786, %787, %cst_209 {dimension_numbers = #tpu.dot_dimension_numbers<[1], [0], [0], [1], [0, 0, 1, 1], [], []>} : vector<8x16xf32>, vector<16x200xf32>, vector<8x200xf32> -> vector<8x200xf32>
    %c0_210 = arith.constant 0 : index
    %c0_211 = arith.constant 0 : index
    %789 = vector.load %arg13[%c0_210, %c0_211] : memref<1x200xf32, #tpu.memory_space<vmem>>, vector<1x200xf32>
    %790 = vector.broadcast %789 : vector<1x200xf32> to vector<8x200xf32>
    %791 = arith.addf %788, %790 : vector<8x200xf32>
    %c0_212 = arith.constant 0 : index
    %c0_213 = arith.constant 0 : index
    %792 = vector.load %arg12[%c0_212, %c0_213] : memref<50x200xf32, #tpu.memory_space<vmem>>, vector<50x200xf32>
    %cst_214 = arith.constant 0.000000e+00 : f32
    %793 = vector.broadcast %cst_214 : f32 to vector<2x50xf32>
    %cst_215 = arith.constant 0.000000e+00 : f32
    %794 = vector.broadcast %cst_215 : f32 to vector<2x50xf32>
    %795 = vector.extract_strided_slice %791 {offsets = [0, 0], sizes = [2, 200], strides = [1, 1]} : vector<8x200xf32> to vector<2x200xf32>
    %cst_216 = arith.constant dense<0.000000e+00> : vector<2x200xf32>
    %796 = tpu.matmul %793, %792, %cst_216 {dimension_numbers = #tpu.dot_dimension_numbers<[1], [0], [0], [1], [0, 0, 1, 1], [], []>} : vector<2x50xf32>, vector<50x200xf32>, vector<2x200xf32> -> vector<2x200xf32>
    %797 = arith.addf %795, %796 : vector<2x200xf32>
    %798 = vector.extract_strided_slice %797 {offsets = [0, 0], sizes = [2, 50], strides = [1, 1]} : vector<2x200xf32> to vector<2x50xf32>
    %799 = arith.negf %798 : vector<2x50xf32>
    %800 = math.exp %799 : vector<2x50xf32>
    %cst_217 = arith.constant 1.000000e+00 : f32
    %801 = vector.broadcast %cst_217 : f32 to vector<2x50xf32>
    %802 = arith.addf %801, %800 : vector<2x50xf32>
    %803 = arith.divf %801, %802 : vector<2x50xf32>
    %804 = vector.extract_strided_slice %797 {offsets = [0, 50], sizes = [2, 50], strides = [1, 1]} : vector<2x200xf32> to vector<2x50xf32>
    %805 = arith.negf %804 : vector<2x50xf32>
    %806 = math.exp %805 : vector<2x50xf32>
    %cst_218 = arith.constant 1.000000e+00 : f32
    %807 = vector.broadcast %cst_218 : f32 to vector<2x50xf32>
    %808 = arith.addf %807, %806 : vector<2x50xf32>
    %809 = arith.divf %807, %808 : vector<2x50xf32>
    %810 = vector.extract_strided_slice %797 {offsets = [0, 100], sizes = [2, 50], strides = [1, 1]} : vector<2x200xf32> to vector<2x50xf32>
    %811 = math.tanh %810 : vector<2x50xf32>
    %812 = vector.extract_strided_slice %797 {offsets = [0, 150], sizes = [2, 50], strides = [1, 1]} : vector<2x200xf32> to vector<2x50xf32>
    %813 = arith.negf %812 : vector<2x50xf32>
    %814 = math.exp %813 : vector<2x50xf32>
    %cst_219 = arith.constant 1.000000e+00 : f32
    %815 = vector.broadcast %cst_219 : f32 to vector<2x50xf32>
    %816 = arith.addf %815, %814 : vector<2x50xf32>
    %817 = arith.divf %815, %816 : vector<2x50xf32>
    %818 = arith.mulf %809, %794 : vector<2x50xf32>
    %819 = arith.mulf %803, %811 : vector<2x50xf32>
    %820 = arith.addf %818, %819 : vector<2x50xf32>
    %821 = math.tanh %820 : vector<2x50xf32>
    %822 = arith.mulf %817, %821 : vector<2x50xf32>
    %c0_220 = arith.constant 0 : index
    %c0_221 = arith.constant 0 : index
    %823 = vector.load %arg27[%c0_220, %c0_221] : memref<8x50xf32, #tpu.memory_space<vmem>>, vector<2x50xf32>
    tpu.vector_store %arg27[%c0_220, %c0_221], %822 {strides = array<i32>} : memref<8x50xf32, #tpu.memory_space<vmem>>, vector<2x50xf32>,
    %824 = vector.extract_strided_slice %791 {offsets = [2, 0], sizes = [2, 200], strides = [1, 1]} : vector<8x200xf32> to vector<2x200xf32>
    %cst_222 = arith.constant dense<0.000000e+00> : vector<2x200xf32>
    %825 = tpu.matmul %822, %792, %cst_222 {dimension_numbers = #tpu.dot_dimension_numbers<[1], [0], [0], [1], [0, 0, 1, 1], [], []>} : vector<2x50xf32>, vector<50x200xf32>, vector<2x200xf32> -> vector<2x200xf32>
    %826 = arith.addf %824, %825 : vector<2x200xf32>
    %827 = vector.extract_strided_slice %826 {offsets = [0, 0], sizes = [2, 50], strides = [1, 1]} : vector<2x200xf32> to vector<2x50xf32>
    %828 = arith.negf %827 : vector<2x50xf32>
    %829 = math.exp %828 : vector<2x50xf32>
    %cst_223 = arith.constant 1.000000e+00 : f32
    %830 = vector.broadcast %cst_223 : f32 to vector<2x50xf32>
    %831 = arith.addf %830, %829 : vector<2x50xf32>
    %832 = arith.divf %830, %831 : vector<2x50xf32>
    %833 = vector.extract_strided_slice %826 {offsets = [0, 50], sizes = [2, 50], strides = [1, 1]} : vector<2x200xf32> to vector<2x50xf32>
    %834 = arith.negf %833 : vector<2x50xf32>
    %835 = math.exp %834 : vector<2x50xf32>
    %cst_224 = arith.constant 1.000000e+00 : f32
    %836 = vector.broadcast %cst_224 : f32 to vector<2x50xf32>
    %837 = arith.addf %836, %835 : vector<2x50xf32>
    %838 = arith.divf %836, %837 : vector<2x50xf32>
    %839 = vector.extract_strided_slice %826 {offsets = [0, 100], sizes = [2, 50], strides = [1, 1]} : vector<2x200xf32> to vector<2x50xf32>
    %840 = math.tanh %839 : vector<2x50xf32>
    %841 = vector.extract_strided_slice %826 {offsets = [0, 150], sizes = [2, 50], strides = [1, 1]} : vector<2x200xf32> to vector<2x50xf32>
    %842 = arith.negf %841 : vector<2x50xf32>
    %843 = math.exp %842 : vector<2x50xf32>
    %cst_225 = arith.constant 1.000000e+00 : f32
    %844 = vector.broadcast %cst_225 : f32 to vector<2x50xf32>
    %845 = arith.addf %844, %843 : vector<2x50xf32>
    %846 = arith.divf %844, %845 : vector<2x50xf32>
    %847 = arith.mulf %838, %820 : vector<2x50xf32>
    %848 = arith.mulf %832, %840 : vector<2x50xf32>
    %849 = arith.addf %847, %848 : vector<2x50xf32>
    %850 = math.tanh %849 : vector<2x50xf32>
    %851 = arith.mulf %846, %850 : vector<2x50xf32>
    %c2_226 = arith.constant 2 : index
    %c0_227 = arith.constant 0 : index
    %852 = vector.load %arg27[%c2_226, %c0_227] : memref<8x50xf32, #tpu.memory_space<vmem>>, vector<2x50xf32>
    tpu.vector_store %arg27[%c2_226, %c0_227], %851 {strides = array<i32>} : memref<8x50xf32, #tpu.memory_space<vmem>>, vector<2x50xf32>,
    %853 = vector.extract_strided_slice %791 {offsets = [4, 0], sizes = [2, 200], strides = [1, 1]} : vector<8x200xf32> to vector<2x200xf32>
    %cst_228 = arith.constant dense<0.000000e+00> : vector<2x200xf32>
    %854 = tpu.matmul %851, %792, %cst_228 {dimension_numbers = #tpu.dot_dimension_numbers<[1], [0], [0], [1], [0, 0, 1, 1], [], []>} : vector<2x50xf32>, vector<50x200xf32>, vector<2x200xf32> -> vector<2x200xf32>
    %855 = arith.addf %853, %854 : vector<2x200xf32>
    %856 = vector.extract_strided_slice %855 {offsets = [0, 0], sizes = [2, 50], strides = [1, 1]} : vector<2x200xf32> to vector<2x50xf32>
    %857 = arith.negf %856 : vector<2x50xf32>
    %858 = math.exp %857 : vector<2x50xf32>
    %cst_229 = arith.constant 1.000000e+00 : f32
    %859 = vector.broadcast %cst_229 : f32 to vector<2x50xf32>
    %860 = arith.addf %859, %858 : vector<2x50xf32>
    %861 = arith.divf %859, %860 : vector<2x50xf32>
    %862 = vector.extract_strided_slice %855 {offsets = [0, 50], sizes = [2, 50], strides = [1, 1]} : vector<2x200xf32> to vector<2x50xf32>
    %863 = arith.negf %862 : vector<2x50xf32>
    %864 = math.exp %863 : vector<2x50xf32>
    %cst_230 = arith.constant 1.000000e+00 : f32
    %865 = vector.broadcast %cst_230 : f32 to vector<2x50xf32>
    %866 = arith.addf %865, %864 : vector<2x50xf32>
    %867 = arith.divf %865, %866 : vector<2x50xf32>
    %868 = vector.extract_strided_slice %855 {offsets = [0, 100], sizes = [2, 50], strides = [1, 1]} : vector<2x200xf32> to vector<2x50xf32>
    %869 = math.tanh %868 : vector<2x50xf32>
    %870 = vector.extract_strided_slice %855 {offsets = [0, 150], sizes = [2, 50], strides = [1, 1]} : vector<2x200xf32> to vector<2x50xf32>
    %871 = arith.negf %870 : vector<2x50xf32>
    %872 = math.exp %871 : vector<2x50xf32>
    %cst_231 = arith.constant 1.000000e+00 : f32
    %873 = vector.broadcast %cst_231 : f32 to vector<2x50xf32>
    %874 = arith.addf %873, %872 : vector<2x50xf32>
    %875 = arith.divf %873, %874 : vector<2x50xf32>
    %876 = arith.mulf %867, %849 : vector<2x50xf32>
    %877 = arith.mulf %861, %869 : vector<2x50xf32>
    %878 = arith.addf %876, %877 : vector<2x50xf32>
    %879 = math.tanh %878 : vector<2x50xf32>
    %880 = arith.mulf %875, %879 : vector<2x50xf32>
    %c4_232 = arith.constant 4 : index
    %c0_233 = arith.constant 0 : index
    %881 = vector.load %arg27[%c4_232, %c0_233] : memref<8x50xf32, #tpu.memory_space<vmem>>, vector<2x50xf32>
    tpu.vector_store %arg27[%c4_232, %c0_233], %880 {strides = array<i32>} : memref<8x50xf32, #tpu.memory_space<vmem>>, vector<2x50xf32>,
    %882 = vector.extract_strided_slice %791 {offsets = [6, 0], sizes = [2, 200], strides = [1, 1]} : vector<8x200xf32> to vector<2x200xf32>
    %cst_234 = arith.constant dense<0.000000e+00> : vector<2x200xf32>
    %883 = tpu.matmul %880, %792, %cst_234 {dimension_numbers = #tpu.dot_dimension_numbers<[1], [0], [0], [1], [0, 0, 1, 1], [], []>} : vector<2x50xf32>, vector<50x200xf32>, vector<2x200xf32> -> vector<2x200xf32>
    %884 = arith.addf %882, %883 : vector<2x200xf32>
    %885 = vector.extract_strided_slice %884 {offsets = [0, 0], sizes = [2, 50], strides = [1, 1]} : vector<2x200xf32> to vector<2x50xf32>
    %886 = arith.negf %885 : vector<2x50xf32>
    %887 = math.exp %886 : vector<2x50xf32>
    %cst_235 = arith.constant 1.000000e+00 : f32
    %888 = vector.broadcast %cst_235 : f32 to vector<2x50xf32>
    %889 = arith.addf %888, %887 : vector<2x50xf32>
    %890 = arith.divf %888, %889 : vector<2x50xf32>
    %891 = vector.extract_strided_slice %884 {offsets = [0, 50], sizes = [2, 50], strides = [1, 1]} : vector<2x200xf32> to vector<2x50xf32>
    %892 = arith.negf %891 : vector<2x50xf32>
    %893 = math.exp %892 : vector<2x50xf32>
    %cst_236 = arith.constant 1.000000e+00 : f32
    %894 = vector.broadcast %cst_236 : f32 to vector<2x50xf32>
    %895 = arith.addf %894, %893 : vector<2x50xf32>
    %896 = arith.divf %894, %895 : vector<2x50xf32>
    %897 = vector.extract_strided_slice %884 {offsets = [0, 100], sizes = [2, 50], strides = [1, 1]} : vector<2x200xf32> to vector<2x50xf32>
    %898 = math.tanh %897 : vector<2x50xf32>
    %899 = vector.extract_strided_slice %884 {offsets = [0, 150], sizes = [2, 50], strides = [1, 1]} : vector<2x200xf32> to vector<2x50xf32>
    %900 = arith.negf %899 : vector<2x50xf32>
    %901 = math.exp %900 : vector<2x50xf32>
    %cst_237 = arith.constant 1.000000e+00 : f32
    %902 = vector.broadcast %cst_237 : f32 to vector<2x50xf32>
    %903 = arith.addf %902, %901 : vector<2x50xf32>
    %904 = arith.divf %902, %903 : vector<2x50xf32>
    %905 = arith.mulf %896, %878 : vector<2x50xf32>
    %906 = arith.mulf %890, %898 : vector<2x50xf32>
    %907 = arith.addf %905, %906 : vector<2x50xf32>
    %908 = math.tanh %907 : vector<2x50xf32>
    %909 = arith.mulf %904, %908 : vector<2x50xf32>
    %c6_238 = arith.constant 6 : index
    %c0_239 = arith.constant 0 : index
    %910 = vector.load %arg27[%c6_238, %c0_239] : memref<8x50xf32, #tpu.memory_space<vmem>>, vector<2x50xf32>
    tpu.vector_store %arg27[%c6_238, %c0_239], %909 {strides = array<i32>} : memref<8x50xf32, #tpu.memory_space<vmem>>, vector<2x50xf32>,
    %c0_240 = arith.constant 0 : index
    %c0_241 = arith.constant 0 : index
    %911 = vector.load %arg25[%c0_240, %c0_241] : memref<32x50xf32, #tpu.memory_space<vmem>>, vector<32x50xf32>
    %c0_242 = arith.constant 0 : index
    %c0_243 = arith.constant 0 : index
    %912 = vector.load %arg14[%c0_242, %c0_243] : memref<50x100xf32, #tpu.memory_space<vmem>>, vector<50x100xf32>
    %cst_244 = arith.constant dense<0.000000e+00> : vector<32x100xf32>
    %913 = tpu.matmul %911, %912, %cst_244 {dimension_numbers = #tpu.dot_dimension_numbers<[1], [0], [0], [1], [0, 0, 1, 1], [], []>} : vector<32x50xf32>, vector<50x100xf32>, vector<32x100xf32> -> vector<32x100xf32>
    %c0_245 = arith.constant 0 : index
    %c0_246 = arith.constant 0 : index
    %914 = vector.load %arg26[%c0_245, %c0_246] : memref<16x50xf32, #tpu.memory_space<vmem>>, vector<16x50xf32>
    %c0_247 = arith.constant 0 : index
    %c0_248 = arith.constant 0 : index
    %915 = vector.load %arg15[%c0_247, %c0_248] : memref<50x100xf32, #tpu.memory_space<vmem>>, vector<50x100xf32>
    %cst_249 = arith.constant dense<0.000000e+00> : vector<16x100xf32>
    %916 = tpu.matmul %914, %915, %cst_249 {dimension_numbers = #tpu.dot_dimension_numbers<[1], [0], [0], [1], [0, 0, 1, 1], [], []>} : vector<16x50xf32>, vector<50x100xf32>, vector<16x100xf32> -> vector<16x100xf32>
    %c0_250 = arith.constant 0 : index
    %c0_251 = arith.constant 0 : index
    %917 = vector.load %arg27[%c0_250, %c0_251] : memref<8x50xf32, #tpu.memory_space<vmem>>, vector<8x50xf32>
    %c0_252 = arith.constant 0 : index
    %c0_253 = arith.constant 0 : index
    %918 = vector.load %arg16[%c0_252, %c0_253] : memref<50x100xf32, #tpu.memory_space<vmem>>, vector<50x100xf32>
    %cst_254 = arith.constant dense<0.000000e+00> : vector<8x100xf32>
    %919 = tpu.matmul %917, %918, %cst_254 {dimension_numbers = #tpu.dot_dimension_numbers<[1], [0], [0], [1], [0, 0, 1, 1], [], []>} : vector<8x50xf32>, vector<50x100xf32>, vector<8x100xf32> -> vector<8x100xf32>
    %c0_255 = arith.constant 0 : index
    %c0_256 = arith.constant 0 : index
    %920 = vector.load %arg17[%c0_255, %c0_256] : memref<1x100xf32, #tpu.memory_space<vmem>>, vector<1x100xf32>
    %921 = vector.extract_strided_slice %913 {offsets = [0, 0], sizes = [2, 100], strides = [1, 1]} : vector<32x100xf32> to vector<2x100xf32>
    %922 = vector.extract_strided_slice %916 {offsets = [0, 0], sizes = [2, 100], strides = [1, 1]} : vector<16x100xf32> to vector<2x100xf32>
    %923 = arith.addf %921, %922 : vector<2x100xf32>
    %924 = vector.extract_strided_slice %919 {offsets = [0, 0], sizes = [2, 100], strides = [1, 1]} : vector<8x100xf32> to vector<2x100xf32>
    %925 = arith.addf %923, %924 : vector<2x100xf32>
    %926 = vector.broadcast %920 : vector<1x100xf32> to vector<2x100xf32>
    %927 = arith.addf %925, %926 : vector<2x100xf32>
    %c0_257 = arith.constant 0 : index
    %c0_258 = arith.constant 0 : index
    %928 = vector.load %arg28[%c0_257, %c0_258] : memref<32x100xf32, #tpu.memory_space<vmem>>, vector<2x100xf32>
    tpu.vector_store %arg28[%c0_257, %c0_258], %927 {strides = array<i32>} : memref<32x100xf32, #tpu.memory_space<vmem>>, vector<2x100xf32>,
    %929 = vector.extract_strided_slice %913 {offsets = [2, 0], sizes = [2, 100], strides = [1, 1]} : vector<32x100xf32> to vector<2x100xf32>
    %930 = vector.extract_strided_slice %916 {offsets = [0, 0], sizes = [2, 100], strides = [1, 1]} : vector<16x100xf32> to vector<2x100xf32>
    %931 = arith.addf %929, %930 : vector<2x100xf32>
    %932 = vector.extract_strided_slice %919 {offsets = [0, 0], sizes = [2, 100], strides = [1, 1]} : vector<8x100xf32> to vector<2x100xf32>
    %933 = arith.addf %931, %932 : vector<2x100xf32>
    %934 = vector.broadcast %920 : vector<1x100xf32> to vector<2x100xf32>
    %935 = arith.addf %933, %934 : vector<2x100xf32>
    %c2_259 = arith.constant 2 : index
    %c0_260 = arith.constant 0 : index
    %936 = vector.load %arg28[%c2_259, %c0_260] : memref<32x100xf32, #tpu.memory_space<vmem>>, vector<2x100xf32>
    tpu.vector_store %arg28[%c2_259, %c0_260], %935 {strides = array<i32>} : memref<32x100xf32, #tpu.memory_space<vmem>>, vector<2x100xf32>,
    %937 = vector.extract_strided_slice %913 {offsets = [4, 0], sizes = [2, 100], strides = [1, 1]} : vector<32x100xf32> to vector<2x100xf32>
    %938 = vector.extract_strided_slice %916 {offsets = [2, 0], sizes = [2, 100], strides = [1, 1]} : vector<16x100xf32> to vector<2x100xf32>
    %939 = arith.addf %937, %938 : vector<2x100xf32>
    %940 = vector.extract_strided_slice %919 {offsets = [0, 0], sizes = [2, 100], strides = [1, 1]} : vector<8x100xf32> to vector<2x100xf32>
    %941 = arith.addf %939, %940 : vector<2x100xf32>
    %942 = vector.broadcast %920 : vector<1x100xf32> to vector<2x100xf32>
    %943 = arith.addf %941, %942 : vector<2x100xf32>
    %c4_261 = arith.constant 4 : index
    %c0_262 = arith.constant 0 : index
    %944 = vector.load %arg28[%c4_261, %c0_262] : memref<32x100xf32, #tpu.memory_space<vmem>>, vector<2x100xf32>
    tpu.vector_store %arg28[%c4_261, %c0_262], %943 {strides = array<i32>} : memref<32x100xf32, #tpu.memory_space<vmem>>, vector<2x100xf32>,
    %945 = vector.extract_strided_slice %913 {offsets = [6, 0], sizes = [2, 100], strides = [1, 1]} : vector<32x100xf32> to vector<2x100xf32>
    %946 = vector.extract_strided_slice %916 {offsets = [2, 0], sizes = [2, 100], strides = [1, 1]} : vector<16x100xf32> to vector<2x100xf32>
    %947 = arith.addf %945, %946 : vector<2x100xf32>
    %948 = vector.extract_strided_slice %919 {offsets = [0, 0], sizes = [2, 100], strides = [1, 1]} : vector<8x100xf32> to vector<2x100xf32>
    %949 = arith.addf %947, %948 : vector<2x100xf32>
    %950 = vector.broadcast %920 : vector<1x100xf32> to vector<2x100xf32>
    %951 = arith.addf %949, %950 : vector<2x100xf32>
    %c6_263 = arith.constant 6 : index
    %c0_264 = arith.constant 0 : index
    %952 = vector.load %arg28[%c6_263, %c0_264] : memref<32x100xf32, #tpu.memory_space<vmem>>, vector<2x100xf32>
    tpu.vector_store %arg28[%c6_263, %c0_264], %951 {strides = array<i32>} : memref<32x100xf32, #tpu.memory_space<vmem>>, vector<2x100xf32>,
    %953 = vector.extract_strided_slice %913 {offsets = [8, 0], sizes = [2, 100], strides = [1, 1]} : vector<32x100xf32> to vector<2x100xf32>
    %954 = vector.extract_strided_slice %916 {offsets = [4, 0], sizes = [2, 100], strides = [1, 1]} : vector<16x100xf32> to vector<2x100xf32>
    %955 = arith.addf %953, %954 : vector<2x100xf32>
    %956 = vector.extract_strided_slice %919 {offsets = [2, 0], sizes = [2, 100], strides = [1, 1]} : vector<8x100xf32> to vector<2x100xf32>
    %957 = arith.addf %955, %956 : vector<2x100xf32>
    %958 = vector.broadcast %920 : vector<1x100xf32> to vector<2x100xf32>
    %959 = arith.addf %957, %958 : vector<2x100xf32>
    %c8_265 = arith.constant 8 : index
    %c0_266 = arith.constant 0 : index
    %960 = vector.load %arg28[%c8_265, %c0_266] : memref<32x100xf32, #tpu.memory_space<vmem>>, vector<2x100xf32>
    tpu.vector_store %arg28[%c8_265, %c0_266], %959 {strides = array<i32>} : memref<32x100xf32, #tpu.memory_space<vmem>>, vector<2x100xf32>,
    %961 = vector.extract_strided_slice %913 {offsets = [10, 0], sizes = [2, 100], strides = [1, 1]} : vector<32x100xf32> to vector<2x100xf32>
    %962 = vector.extract_strided_slice %916 {offsets = [4, 0], sizes = [2, 100], strides = [1, 1]} : vector<16x100xf32> to vector<2x100xf32>
    %963 = arith.addf %961, %962 : vector<2x100xf32>
    %964 = vector.extract_strided_slice %919 {offsets = [2, 0], sizes = [2, 100], strides = [1, 1]} : vector<8x100xf32> to vector<2x100xf32>
    %965 = arith.addf %963, %964 : vector<2x100xf32>
    %966 = vector.broadcast %920 : vector<1x100xf32> to vector<2x100xf32>
    %967 = arith.addf %965, %966 : vector<2x100xf32>
    %c10_267 = arith.constant 10 : index
    %c0_268 = arith.constant 0 : index
    %968 = vector.load %arg28[%c10_267, %c0_268] : memref<32x100xf32, #tpu.memory_space<vmem>>, vector<2x100xf32>
    tpu.vector_store %arg28[%c10_267, %c0_268], %967 {strides = array<i32>} : memref<32x100xf32, #tpu.memory_space<vmem>>, vector<2x100xf32>,
    %969 = vector.extract_strided_slice %913 {offsets = [12, 0], sizes = [2, 100], strides = [1, 1]} : vector<32x100xf32> to vector<2x100xf32>
    %970 = vector.extract_strided_slice %916 {offsets = [6, 0], sizes = [2, 100], strides = [1, 1]} : vector<16x100xf32> to vector<2x100xf32>
    %971 = arith.addf %969, %970 : vector<2x100xf32>
    %972 = vector.extract_strided_slice %919 {offsets = [2, 0], sizes = [2, 100], strides = [1, 1]} : vector<8x100xf32> to vector<2x100xf32>
    %973 = arith.addf %971, %972 : vector<2x100xf32>
    %974 = vector.broadcast %920 : vector<1x100xf32> to vector<2x100xf32>
    %975 = arith.addf %973, %974 : vector<2x100xf32>
    %c12_269 = arith.constant 12 : index
    %c0_270 = arith.constant 0 : index
    %976 = vector.load %arg28[%c12_269, %c0_270] : memref<32x100xf32, #tpu.memory_space<vmem>>, vector<2x100xf32>
    tpu.vector_store %arg28[%c12_269, %c0_270], %975 {strides = array<i32>} : memref<32x100xf32, #tpu.memory_space<vmem>>, vector<2x100xf32>,
    %977 = vector.extract_strided_slice %913 {offsets = [14, 0], sizes = [2, 100], strides = [1, 1]} : vector<32x100xf32> to vector<2x100xf32>
    %978 = vector.extract_strided_slice %916 {offsets = [6, 0], sizes = [2, 100], strides = [1, 1]} : vector<16x100xf32> to vector<2x100xf32>
    %979 = arith.addf %977, %978 : vector<2x100xf32>
    %980 = vector.extract_strided_slice %919 {offsets = [2, 0], sizes = [2, 100], strides = [1, 1]} : vector<8x100xf32> to vector<2x100xf32>
    %981 = arith.addf %979, %980 : vector<2x100xf32>
    %982 = vector.broadcast %920 : vector<1x100xf32> to vector<2x100xf32>
    %983 = arith.addf %981, %982 : vector<2x100xf32>
    %c14_271 = arith.constant 14 : index
    %c0_272 = arith.constant 0 : index
    %984 = vector.load %arg28[%c14_271, %c0_272] : memref<32x100xf32, #tpu.memory_space<vmem>>, vector<2x100xf32>
    tpu.vector_store %arg28[%c14_271, %c0_272], %983 {strides = array<i32>} : memref<32x100xf32, #tpu.memory_space<vmem>>, vector<2x100xf32>,
    %985 = vector.extract_strided_slice %913 {offsets = [16, 0], sizes = [2, 100], strides = [1, 1]} : vector<32x100xf32> to vector<2x100xf32>
    %986 = vector.extract_strided_slice %916 {offsets = [8, 0], sizes = [2, 100], strides = [1, 1]} : vector<16x100xf32> to vector<2x100xf32>
    %987 = arith.addf %985, %986 : vector<2x100xf32>
    %988 = vector.extract_strided_slice %919 {offsets = [4, 0], sizes = [2, 100], strides = [1, 1]} : vector<8x100xf32> to vector<2x100xf32>
    %989 = arith.addf %987, %988 : vector<2x100xf32>
    %990 = vector.broadcast %920 : vector<1x100xf32> to vector<2x100xf32>
    %991 = arith.addf %989, %990 : vector<2x100xf32>
    %c16_273 = arith.constant 16 : index
    %c0_274 = arith.constant 0 : index
    %992 = vector.load %arg28[%c16_273, %c0_274] : memref<32x100xf32, #tpu.memory_space<vmem>>, vector<2x100xf32>
    tpu.vector_store %arg28[%c16_273, %c0_274], %991 {strides = array<i32>} : memref<32x100xf32, #tpu.memory_space<vmem>>, vector<2x100xf32>,
    %993 = vector.extract_strided_slice %913 {offsets = [18, 0], sizes = [2, 100], strides = [1, 1]} : vector<32x100xf32> to vector<2x100xf32>
    %994 = vector.extract_strided_slice %916 {offsets = [8, 0], sizes = [2, 100], strides = [1, 1]} : vector<16x100xf32> to vector<2x100xf32>
    %995 = arith.addf %993, %994 : vector<2x100xf32>
    %996 = vector.extract_strided_slice %919 {offsets = [4, 0], sizes = [2, 100], strides = [1, 1]} : vector<8x100xf32> to vector<2x100xf32>
    %997 = arith.addf %995, %996 : vector<2x100xf32>
    %998 = vector.broadcast %920 : vector<1x100xf32> to vector<2x100xf32>
    %999 = arith.addf %997, %998 : vector<2x100xf32>
    %c18_275 = arith.constant 18 : index
    %c0_276 = arith.constant 0 : index
    %1000 = vector.load %arg28[%c18_275, %c0_276] : memref<32x100xf32, #tpu.memory_space<vmem>>, vector<2x100xf32>
    tpu.vector_store %arg28[%c18_275, %c0_276], %999 {strides = array<i32>} : memref<32x100xf32, #tpu.memory_space<vmem>>, vector<2x100xf32>,
    %1001 = vector.extract_strided_slice %913 {offsets = [20, 0], sizes = [2, 100], strides = [1, 1]} : vector<32x100xf32> to vector<2x100xf32>
    %1002 = vector.extract_strided_slice %916 {offsets = [10, 0], sizes = [2, 100], strides = [1, 1]} : vector<16x100xf32> to vector<2x100xf32>
    %1003 = arith.addf %1001, %1002 : vector<2x100xf32>
    %1004 = vector.extract_strided_slice %919 {offsets = [4, 0], sizes = [2, 100], strides = [1, 1]} : vector<8x100xf32> to vector<2x100xf32>
    %1005 = arith.addf %1003, %1004 : vector<2x100xf32>
    %1006 = vector.broadcast %920 : vector<1x100xf32> to vector<2x100xf32>
    %1007 = arith.addf %1005, %1006 : vector<2x100xf32>
    %c20_277 = arith.constant 20 : index
    %c0_278 = arith.constant 0 : index
    %1008 = vector.load %arg28[%c20_277, %c0_278] : memref<32x100xf32, #tpu.memory_space<vmem>>, vector<2x100xf32>
    tpu.vector_store %arg28[%c20_277, %c0_278], %1007 {strides = array<i32>} : memref<32x100xf32, #tpu.memory_space<vmem>>, vector<2x100xf32>,
    %1009 = vector.extract_strided_slice %913 {offsets = [22, 0], sizes = [2, 100], strides = [1, 1]} : vector<32x100xf32> to vector<2x100xf32>
    %1010 = vector.extract_strided_slice %916 {offsets = [10, 0], sizes = [2, 100], strides = [1, 1]} : vector<16x100xf32> to vector<2x100xf32>
    %1011 = arith.addf %1009, %1010 : vector<2x100xf32>
    %1012 = vector.extract_strided_slice %919 {offsets = [4, 0], sizes = [2, 100], strides = [1, 1]} : vector<8x100xf32> to vector<2x100xf32>
    %1013 = arith.addf %1011, %1012 : vector<2x100xf32>
    %1014 = vector.broadcast %920 : vector<1x100xf32> to vector<2x100xf32>
    %1015 = arith.addf %1013, %1014 : vector<2x100xf32>
    %c22_279 = arith.constant 22 : index
    %c0_280 = arith.constant 0 : index
    %1016 = vector.load %arg28[%c22_279, %c0_280] : memref<32x100xf32, #tpu.memory_space<vmem>>, vector<2x100xf32>
    tpu.vector_store %arg28[%c22_279, %c0_280], %1015 {strides = array<i32>} : memref<32x100xf32, #tpu.memory_space<vmem>>, vector<2x100xf32>,
    %1017 = vector.extract_strided_slice %913 {offsets = [24, 0], sizes = [2, 100], strides = [1, 1]} : vector<32x100xf32> to vector<2x100xf32>
    %1018 = vector.extract_strided_slice %916 {offsets = [12, 0], sizes = [2, 100], strides = [1, 1]} : vector<16x100xf32> to vector<2x100xf32>
    %1019 = arith.addf %1017, %1018 : vector<2x100xf32>
    %1020 = vector.extract_strided_slice %919 {offsets = [6, 0], sizes = [2, 100], strides = [1, 1]} : vector<8x100xf32> to vector<2x100xf32>
    %1021 = arith.addf %1019, %1020 : vector<2x100xf32>
    %1022 = vector.broadcast %920 : vector<1x100xf32> to vector<2x100xf32>
    %1023 = arith.addf %1021, %1022 : vector<2x100xf32>
    %c24_281 = arith.constant 24 : index
    %c0_282 = arith.constant 0 : index
    %1024 = vector.load %arg28[%c24_281, %c0_282] : memref<32x100xf32, #tpu.memory_space<vmem>>, vector<2x100xf32>
    tpu.vector_store %arg28[%c24_281, %c0_282], %1023 {strides = array<i32>} : memref<32x100xf32, #tpu.memory_space<vmem>>, vector<2x100xf32>,
    %1025 = vector.extract_strided_slice %913 {offsets = [26, 0], sizes = [2, 100], strides = [1, 1]} : vector<32x100xf32> to vector<2x100xf32>
    %1026 = vector.extract_strided_slice %916 {offsets = [12, 0], sizes = [2, 100], strides = [1, 1]} : vector<16x100xf32> to vector<2x100xf32>
    %1027 = arith.addf %1025, %1026 : vector<2x100xf32>
    %1028 = vector.extract_strided_slice %919 {offsets = [6, 0], sizes = [2, 100], strides = [1, 1]} : vector<8x100xf32> to vector<2x100xf32>
    %1029 = arith.addf %1027, %1028 : vector<2x100xf32>
    %1030 = vector.broadcast %920 : vector<1x100xf32> to vector<2x100xf32>
    %1031 = arith.addf %1029, %1030 : vector<2x100xf32>
    %c26_283 = arith.constant 26 : index
    %c0_284 = arith.constant 0 : index
    %1032 = vector.load %arg28[%c26_283, %c0_284] : memref<32x100xf32, #tpu.memory_space<vmem>>, vector<2x100xf32>
    tpu.vector_store %arg28[%c26_283, %c0_284], %1031 {strides = array<i32>} : memref<32x100xf32, #tpu.memory_space<vmem>>, vector<2x100xf32>,
    %1033 = vector.extract_strided_slice %913 {offsets = [28, 0], sizes = [2, 100], strides = [1, 1]} : vector<32x100xf32> to vector<2x100xf32>
    %1034 = vector.extract_strided_slice %916 {offsets = [14, 0], sizes = [2, 100], strides = [1, 1]} : vector<16x100xf32> to vector<2x100xf32>
    %1035 = arith.addf %1033, %1034 : vector<2x100xf32>
    %1036 = vector.extract_strided_slice %919 {offsets = [6, 0], sizes = [2, 100], strides = [1, 1]} : vector<8x100xf32> to vector<2x100xf32>
    %1037 = arith.addf %1035, %1036 : vector<2x100xf32>
    %1038 = vector.broadcast %920 : vector<1x100xf32> to vector<2x100xf32>
    %1039 = arith.addf %1037, %1038 : vector<2x100xf32>
    %c28_285 = arith.constant 28 : index
    %c0_286 = arith.constant 0 : index
    %1040 = vector.load %arg28[%c28_285, %c0_286] : memref<32x100xf32, #tpu.memory_space<vmem>>, vector<2x100xf32>
    tpu.vector_store %arg28[%c28_285, %c0_286], %1039 {strides = array<i32>} : memref<32x100xf32, #tpu.memory_space<vmem>>, vector<2x100xf32>,
    %1041 = vector.extract_strided_slice %913 {offsets = [30, 0], sizes = [2, 100], strides = [1, 1]} : vector<32x100xf32> to vector<2x100xf32>
    %1042 = vector.extract_strided_slice %916 {offsets = [14, 0], sizes = [2, 100], strides = [1, 1]} : vector<16x100xf32> to vector<2x100xf32>
    %1043 = arith.addf %1041, %1042 : vector<2x100xf32>
    %1044 = vector.extract_strided_slice %919 {offsets = [6, 0], sizes = [2, 100], strides = [1, 1]} : vector<8x100xf32> to vector<2x100xf32>
    %1045 = arith.addf %1043, %1044 : vector<2x100xf32>
    %1046 = vector.broadcast %920 : vector<1x100xf32> to vector<2x100xf32>
    %1047 = arith.addf %1045, %1046 : vector<2x100xf32>
    %c30_287 = arith.constant 30 : index
    %c0_288 = arith.constant 0 : index
    %1048 = vector.load %arg28[%c30_287, %c0_288] : memref<32x100xf32, #tpu.memory_space<vmem>>, vector<2x100xf32>
    tpu.vector_store %arg28[%c30_287, %c0_288], %1047 {strides = array<i32>} : memref<32x100xf32, #tpu.memory_space<vmem>>, vector<2x100xf32>,
    %c0_289 = arith.constant 0 : index
    %c0_290 = arith.constant 0 : index
    %1049 = vector.load %arg28[%c0_289, %c0_290] : memref<32x100xf32, #tpu.memory_space<vmem>>, vector<32x100xf32>
    %c0_291 = arith.constant 0 : index
    %c0_292 = arith.constant 0 : index
    %1050 = vector.load %arg18[%c0_291, %c0_292] : memref<100x2xf32, #tpu.memory_space<vmem>>, vector<100x2xf32>
    %cst_293 = arith.constant dense<0.000000e+00> : vector<32x2xf32>
    %1051 = tpu.matmul %1049, %1050, %cst_293 {dimension_numbers = #tpu.dot_dimension_numbers<[1], [0], [0], [1], [0, 0, 1, 1], [], []>} : vector<32x100xf32>, vector<100x2xf32>, vector<32x2xf32> -> vector<32x2xf32>
    %c0_294 = arith.constant 0 : index
    %c0_295 = arith.constant 0 : index
    %1052 = vector.load %arg19[%c0_294, %c0_295] : memref<1x2xf32, #tpu.memory_space<vmem>>, vector<1x2xf32>
    %1053 = vector.broadcast %1052 : vector<1x2xf32> to vector<32x2xf32>
    %1054 = arith.addf %1051, %1053 : vector<32x2xf32>
    %c0_296 = arith.constant 0 : index
    %c0_297 = arith.constant 0 : index
    %1055 = vector.load %arg20[%c0_296, %c0_297] : memref<32x2xf32, #tpu.memory_space<vmem>>, vector<32x2xf32>
    tpu.vector_store %arg20[%c0_296, %c0_297], %1054 {strides = array<i32>} : memref<32x2xf32, #tpu.memory_space<vmem>>, vector<32x2xf32>,
    %1056 = vector.extract_strided_slice %1054 {offsets = [30, 0], sizes = [2, 2], strides = [1, 1]} : vector<32x2xf32> to vector<2x2xf32>
    %c0_298 = arith.constant 0 : index
    %c0_299 = arith.constant 0 : index
    %1057 = vector.load %arg21[%c0_298, %c0_299] : memref<2x2xf32, #tpu.memory_space<vmem>>, vector<2x2xf32>
    tpu.vector_store %arg21[%c0_298, %c0_299], %1056 {strides = array<i32>} : memref<2x2xf32, #tpu.memory_space<vmem>>, vector<2x2xf32>,
    return
  }
}

</mosaic_0001>

<llo_original>
// kernel: hybrid_cnn_lstm_forward.1
$region0: #{hybrid_cnn_lstm_forward.1}
  #allocation0 [shape = 'u32[]', space=smem, size = 0x4, offset = 0x4, fixed_abs, tag = 'smem constant byte address 0x4 - core index']
  #allocation1 [shape = 'u32[144,128]{1,0:T(1,128)}', space=vmem, size = 0x12000, scoped, tag = 'internal scratch']
  #allocation2 [shape = 'f32[36,2]{1,0:T(8,128)}', space=vmem, size = 0x5000, scoped, tag = 'scratch operand']
  #allocation3 [shape = 'f32[20,16]{1,0:T(8,128)}', space=vmem, size = 0x3000, scoped, tag = 'scratch operand']
  #allocation4 [shape = 'f32[8,16]{1,0:T(8,128)}', space=vmem, size = 0x1000, scoped, tag = 'scratch operand']
  #allocation5 [shape = 'f32[32,50]{1,0:T(8,128)}', space=vmem, size = 0x4000, scoped, tag = 'scratch operand']
  #allocation6 [shape = 'f32[16,50]{1,0:T(8,128)}', space=vmem, size = 0x2000, scoped, tag = 'scratch operand']
  #allocation7 [shape = 'f32[8,50]{1,0:T(8,128)}', space=vmem, size = 0x1000, scoped, tag = 'scratch operand']
  #allocation8 [shape = 'f32[32,100]{1,0:T(8,128)}', space=vmem, size = 0x4000, scoped, tag = 'scratch operand']
  %s0 = inlined_call_operand.vmem [shape: f32[32,2], index: 0, kind: input, shape index: {}]
  %s1 = inlined_call_operand.vmem [shape: f32[6,16], index: 1, kind: input, shape index: {}]
  %s2 = inlined_call_operand.hbm [shape: f32[1,16], index: 2, kind: input, shape index: {}]
  %s3 = inlined_call_operand.hbm [shape: f32[48,16], index: 3, kind: input, shape index: {}]
  %s4 = inlined_call_operand.hbm [shape: f32[1,16], index: 4, kind: input, shape index: {}]
  %s5 = inlined_call_operand.vmem [shape: f32[2,200], index: 5, kind: input, shape index: {}]
  %s6 = inlined_call_operand.hbm [shape: f32[50,200], index: 6, kind: input, shape index: {}]
  %s7 = inlined_call_operand.hbm [shape: f32[1,200], index: 7, kind: input, shape index: {}]
  %s8 = inlined_call_operand.hbm [shape: f32[16,200], index: 8, kind: input, shape index: {}]
  %s9 = inlined_call_operand.hbm [shape: f32[50,200], index: 9, kind: input, shape index: {}]
  %s10 = inlined_call_operand.hbm [shape: f32[1,200], index: 10, kind: input, shape index: {}]
  %s11 = inlined_call_operand.hbm [shape: f32[16,200], index: 11, kind: input, shape index: {}]
  %s12 = inlined_call_operand.hbm [shape: f32[50,200], index: 12, kind: input, shape index: {}]
  %s13 = inlined_call_operand.hbm [shape: f32[1,200], index: 13, kind: input, shape index: {}]
  %s14 = inlined_call_operand.hbm [shape: f32[50,100], index: 14, kind: input, shape index: {}]
  %s15 = inlined_call_operand.hbm [shape: f32[50,100], index: 15, kind: input, shape index: {}]
  %s16 = inlined_call_operand.vmem [shape: f32[50,100], index: 16, kind: input, shape index: {}]
  %s17 = inlined_call_operand.vmem [shape: f32[1,100], index: 17, kind: input, shape index: {}]
  %s18 = inlined_call_operand.hbm [shape: f32[100,2], index: 18, kind: input, shape index: {}]
  %s19 = inlined_call_operand.vmem [shape: f32[1,2], index: 19, kind: input, shape index: {}]
  %s20 = inlined_call_operand.vmem [shape: f32[32,2], index: 20, kind: output, shape index: {0}]
  %s21 = inlined_call_operand.hbm [shape: f32[2,2], index: 21, kind: output, shape index: {1}]
  %22 = xla_tuple %s20, %s21
  %s23 = sld [smem:[#allocation0]]
  $region154: #{hybrid_cnn_lstm_forward.1} parent=0
    _
  %s25 = ssub.s32 1, %s23
  %s26 = scalar_select 0, %s25, %s23
  $region1: #{hybrid_cnn_lstm_forward.1} parent=0
    #allocation9 [shape = 'u8[512]{0}', space=vmem, size = 0x400, scoped, tag = 'input window, operand 2, single buffered']
    #allocation10 [shape = 's32[1]{0}', space=sflag, size = 0x4, scoped, tag = 'scoped memory for hybrid_cnn_lstm_forward.1']
    #allocation11 [shape = 's32[1]{0}', space=sflag, size = 0x4, scoped, tag = 'scoped memory for hybrid_cnn_lstm_forward.1']
    #allocation12 [shape = 'u8[24576]{0}', space=vmem, size = 0x6000, scoped, tag = 'input window, operand 3, single buffered']
    #allocation13 [shape = 's32[1]{0}', space=sflag, size = 0x4, scoped, tag = 'scoped memory for hybrid_cnn_lstm_forward.1']
    #allocation14 [shape = 'u8[512]{0}', space=vmem, size = 0x400, scoped, tag = 'input window, operand 4, single buffered']
    #allocation15 [shape = 'u8[57344]{0}', space=vmem, size = 0xe000, scoped, tag = 'input window, operand 6, single buffered']
    #allocation16 [shape = 's32[1]{0}', space=sflag, size = 0x4, scoped, tag = 'scoped memory for hybrid_cnn_lstm_forward.1']
    #allocation17 [shape = 'u8[1024]{0}', space=vmem, size = 0x400, scoped, tag = 'input window, operand 7, single buffered']
    #allocation18 [shape = 'u8[16384]{0}', space=vmem, size = 0x4000, scoped, tag = 'input window, operand 8, single buffered']
    #allocation19 [shape = 's32[1]{0}', space=sflag, size = 0x4, scoped, tag = 'scoped memory for hybrid_cnn_lstm_forward.1']
    #allocation20 [shape = 'u8[57344]{0}', space=vmem, size = 0xe000, scoped, tag = 'input window, operand 9, single buffered']
    #allocation21 [shape = 'u8[1024]{0}', space=vmem, size = 0x400, scoped, tag = 'input window, operand 10, single buffered']
    #allocation22 [shape = 's32[1]{0}', space=sflag, size = 0x4, scoped, tag = 'scoped memory for hybrid_cnn_lstm_forward.1']
    #allocation23 [shape = 'u8[16384]{0}', space=vmem, size = 0x4000, scoped, tag = 'input window, operand 11, single buffered']
    #allocation24 [shape = 'u8[57344]{0}', space=vmem, size = 0xe000, scoped, tag = 'input window, operand 12, single buffered']
    #allocation25 [shape = 's32[1]{0}', space=sflag, size = 0x4, scoped, tag = 'scoped memory for hybrid_cnn_lstm_forward.1']
    #allocation26 [shape = 'u8[1024]{0}', space=vmem, size = 0x400, scoped, tag = 'input window, operand 13, single buffered']
    #allocation27 [shape = 'u8[28672]{0}', space=vmem, size = 0x7000, scoped, tag = 'input window, operand 14, single buffered']
    #allocation28 [shape = 's32[1]{0}', space=sflag, size = 0x4, scoped, tag = 'scoped memory for hybrid_cnn_lstm_forward.1']
    #allocation29 [shape = 'u8[28672]{0}', space=vmem, size = 0x7000, scoped, tag = 'input window, operand 15, single buffered']
    #allocation30 [shape = 'u8[53248]{0}', space=vmem, size = 0xd000, scoped, tag = 'input window, operand 18, single buffered']
    #allocation31 [shape = 's32[1]{0}', space=sflag, size = 0x4, scoped, tag = 'scoped memory for hybrid_cnn_lstm_forward.1']
    #allocation32 [shape = 'u8[1024]{0}', space=vmem, size = 0x400, scoped, tag = 'output window, operand 1, single buffered']
    %27 = vsyncpa [#allocation10], 0
    %28 = vsyncpa [#allocation13], 0
    %29 = vsyncpa [#allocation16], 0
    %30 = vsyncpa [#allocation19], 0
    %31 = vsyncpa [#allocation22], 0
    %32 = vsyncpa [#allocation25], 0
    %33 = vsyncpa [#allocation28], 0
    %34 = vsyncpa [#allocation31], 0
    %35 = vsyncpa [#allocation11], 0
    // Predicated region
    $region2: #{hybrid_cnn_lstm_forward.1} parent=1 // pred_check
      _
    $region3: #{hybrid_cnn_lstm_forward.1} parent=1 // pred_check_branch
      %37 = sbr.rel (0) target = $region5
    $region4: #{hybrid_cnn_lstm_forward.1} parent=1 // pred_region
      _
    $region5: #{hybrid_cnn_lstm_forward.1} parent=1 // pred_fallthru
      _
    // Predicated region
    $region6: #{hybrid_cnn_lstm_forward.1} parent=1 // pred_check
      _
    $region7: #{hybrid_cnn_lstm_forward.1} parent=1 // pred_check_branch
      %39 = sbr.rel (0) target = $region9
    $region8: #{hybrid_cnn_lstm_forward.1} parent=1 // pred_region
      _
    $region9: #{hybrid_cnn_lstm_forward.1} parent=1 // pred_fallthru
      _
    // Predicated region
    $region10: #{hybrid_cnn_lstm_forward.1} parent=1 // pred_check
      _
    $region11: #{hybrid_cnn_lstm_forward.1} parent=1 // pred_check_branch
      %41 = sbr.rel (0) target = $region13
    $region12: #{hybrid_cnn_lstm_forward.1} parent=1 // pred_region
      %s43 = ssub.s32 16, 16
      %44 = vsyncadd [#allocation10], %s43
      %s46 = sshll.u32 [#allocation9], 4
      %s47 = int_to_ptr.vmem [resolvable:$true] %s46
      %49 = dma.hbm_to_vmem [thread:$0]  %s2, 16, %s47, [#allocation10]
    $region13: #{hybrid_cnn_lstm_forward.1} parent=1 // pred_fallthru
      _
    // Predicated region
    $region14: #{hybrid_cnn_lstm_forward.1} parent=1 // pred_check
      _
    $region15: #{hybrid_cnn_lstm_forward.1} parent=1 // pred_check_branch
      %51 = sbr.rel (0) target = $region17
    $region16: #{hybrid_cnn_lstm_forward.1} parent=1 // pred_region
      %s53 = ssub.s32 768, 768
      %54 = vsyncadd [#allocation13], %s53
      %s55 = sshll.u32 [#allocation12], 4
      %s56 = int_to_ptr.vmem [resolvable:$true] %s55
      %61 = dma.hbm_to_vmem [thread:$0]  %s3, 768, %s56, [#allocation13], 128, 128, 8
    $region17: #{hybrid_cnn_lstm_forward.1} parent=1 // pred_fallthru
      _
    // Predicated region
    $region18: #{hybrid_cnn_lstm_forward.1} parent=1 // pred_check
      _
    $region19: #{hybrid_cnn_lstm_forward.1} parent=1 // pred_check_branch
      %63 = sbr.rel (0) target = $region21
    $region20: #{hybrid_cnn_lstm_forward.1} parent=1 // pred_region
      %s65 = ssub.s32 16, 16
      %66 = vsyncadd [#allocation13], %s65
      %s68 = sshll.u32 [#allocation14], 4
      %s69 = int_to_ptr.vmem [resolvable:$true] %s68
      %71 = dma.hbm_to_vmem [thread:$0]  %s4, 16, %s69, [#allocation13]
    $region21: #{hybrid_cnn_lstm_forward.1} parent=1 // pred_fallthru
      _
    // Predicated region
    $region22: #{hybrid_cnn_lstm_forward.1} parent=1 // pred_check
      _
    $region23: #{hybrid_cnn_lstm_forward.1} parent=1 // pred_check_branch
      %73 = sbr.rel (0) target = $region25
    $region24: #{hybrid_cnn_lstm_forward.1} parent=1 // pred_region
      _
    $region25: #{hybrid_cnn_lstm_forward.1} parent=1 // pred_fallthru
      _
    // Predicated region
    $region26: #{hybrid_cnn_lstm_forward.1} parent=1 // pred_check
      _
    $region27: #{hybrid_cnn_lstm_forward.1} parent=1 // pred_check_branch
      %75 = sbr.rel (0) target = $region29
    $region28: #{hybrid_cnn_lstm_forward.1} parent=1 // pred_region
      %s77 = ssub.s32 1792, 1792
      %78 = vsyncadd [#allocation16], %s77
      %s79 = sshll.u32 [#allocation15], 4
      %s80 = int_to_ptr.vmem [resolvable:$true] %s79
      %85 = dma.hbm_to_vmem [thread:$0]  %s6, 1792, %s80, [#allocation16], 256, 256, 16
    $region29: #{hybrid_cnn_lstm_forward.1} parent=1 // pred_fallthru
      _
    // Predicated region
    $region30: #{hybrid_cnn_lstm_forward.1} parent=1 // pred_check
      _
    $region31: #{hybrid_cnn_lstm_forward.1} parent=1 // pred_check_branch
      %87 = sbr.rel (0) target = $region33
    $region32: #{hybrid_cnn_lstm_forward.1} parent=1 // pred_region
      %s89 = ssub.s32 32, 32
      %90 = vsyncadd [#allocation16], %s89
      %s92 = sshll.u32 [#allocation17], 4
      %s93 = int_to_ptr.vmem [resolvable:$true] %s92
      %95 = dma.hbm_to_vmem [thread:$0]  %s7, 32, %s93, [#allocation16]
    $region33: #{hybrid_cnn_lstm_forward.1} parent=1 // pred_fallthru
      _
    // Predicated region
    $region34: #{hybrid_cnn_lstm_forward.1} parent=1 // pred_check
      _
    $region35: #{hybrid_cnn_lstm_forward.1} parent=1 // pred_check_branch
      %97 = sbr.rel (0) target = $region37
    $region36: #{hybrid_cnn_lstm_forward.1} parent=1 // pred_region
      %s99 = ssub.s32 512, 512
      %100 = vsyncadd [#allocation19], %s99
      %s101 = sshll.u32 [#allocation18], 4
      %s102 = int_to_ptr.vmem [resolvable:$true] %s101
      %107 = dma.hbm_to_vmem [thread:$0]  %s8, 512, %s102, [#allocation19], 256, 256, 16
    $region37: #{hybrid_cnn_lstm_forward.1} parent=1 // pred_fallthru
      _
    // Predicated region
    $region38: #{hybrid_cnn_lstm_forward.1} parent=1 // pred_check
      _
    $region39: #{hybrid_cnn_lstm_forward.1} parent=1 // pred_check_branch
      %109 = sbr.rel (0) target = $region41
    $region40: #{hybrid_cnn_lstm_forward.1} parent=1 // pred_region
      %s111 = ssub.s32 1792, 1792
      %112 = vsyncadd [#allocation19], %s111
      %s113 = sshll.u32 [#allocation20], 4
      %s114 = int_to_ptr.vmem [resolvable:$true] %s113
      %119 = dma.hbm_to_vmem [thread:$0]  %s9, 1792, %s114, [#allocation19], 256, 256, 16
    $region41: #{hybrid_cnn_lstm_forward.1} parent=1 // pred_fallthru
      _
    // Predicated region
    $region42: #{hybrid_cnn_lstm_forward.1} parent=1 // pred_check
      _
    $region43: #{hybrid_cnn_lstm_forward.1} parent=1 // pred_check_branch
      %121 = sbr.rel (0) target = $region45
    $region44: #{hybrid_cnn_lstm_forward.1} parent=1 // pred_region
      %s123 = ssub.s32 32, 32
      %124 = vsyncadd [#allocation22], %s123
      %s126 = sshll.u32 [#allocation21], 4
      %s127 = int_to_ptr.vmem [resolvable:$true] %s126
      %129 = dma.hbm_to_vmem [thread:$0]  %s10, 32, %s127, [#allocation22]
    $region45: #{hybrid_cnn_lstm_forward.1} parent=1 // pred_fallthru
      _
    // Predicated region
    $region46: #{hybrid_cnn_lstm_forward.1} parent=1 // pred_check
      _
    $region47: #{hybrid_cnn_lstm_forward.1} parent=1 // pred_check_branch
      %131 = sbr.rel (0) target = $region49
    $region48: #{hybrid_cnn_lstm_forward.1} parent=1 // pred_region
      %s133 = ssub.s32 512, 512
      %134 = vsyncadd [#allocation22], %s133
      %s135 = sshll.u32 [#allocation23], 4
      %s136 = int_to_ptr.vmem [resolvable:$true] %s135
      %141 = dma.hbm_to_vmem [thread:$0]  %s11, 512, %s136, [#allocation22], 256, 256, 16
    $region49: #{hybrid_cnn_lstm_forward.1} parent=1 // pred_fallthru
      _
    // Predicated region
    $region50: #{hybrid_cnn_lstm_forward.1} parent=1 // pred_check
      _
    $region51: #{hybrid_cnn_lstm_forward.1} parent=1 // pred_check_branch
      %143 = sbr.rel (0) target = $region53
    $region52: #{hybrid_cnn_lstm_forward.1} parent=1 // pred_region
      %s145 = ssub.s32 1792, 1792
      %146 = vsyncadd [#allocation25], %s145
      %s147 = sshll.u32 [#allocation24], 4
      %s148 = int_to_ptr.vmem [resolvable:$true] %s147
      %153 = dma.hbm_to_vmem [thread:$0]  %s12, 1792, %s148, [#allocation25], 256, 256, 16
    $region53: #{hybrid_cnn_lstm_forward.1} parent=1 // pred_fallthru
      _
    // Predicated region
    $region54: #{hybrid_cnn_lstm_forward.1} parent=1 // pred_check
      _
    $region55: #{hybrid_cnn_lstm_forward.1} parent=1 // pred_check_branch
      %155 = sbr.rel (0) target = $region57
    $region56: #{hybrid_cnn_lstm_forward.1} parent=1 // pred_region
      %s157 = ssub.s32 32, 32
      %158 = vsyncadd [#allocation25], %s157
      %s160 = sshll.u32 [#allocation26], 4
      %s161 = int_to_ptr.vmem [resolvable:$true] %s160
      %163 = dma.hbm_to_vmem [thread:$0]  %s13, 32, %s161, [#allocation25]
    $region57: #{hybrid_cnn_lstm_forward.1} parent=1 // pred_fallthru
      _
    // Predicated region
    $region58: #{hybrid_cnn_lstm_forward.1} parent=1 // pred_check
      _
    $region59: #{hybrid_cnn_lstm_forward.1} parent=1 // pred_check_branch
      %165 = sbr.rel (0) target = $region61
    $region60: #{hybrid_cnn_lstm_forward.1} parent=1 // pred_region
      %s167 = ssub.s32 896, 896
      %168 = vsyncadd [#allocation28], %s167
      %s169 = sshll.u32 [#allocation27], 4
      %s170 = int_to_ptr.vmem [resolvable:$true] %s169
      %175 = dma.hbm_to_vmem [thread:$0]  %s14, 896, %s170, [#allocation28], 128, 128, 8
    $region61: #{hybrid_cnn_lstm_forward.1} parent=1 // pred_fallthru
      _
    // Predicated region
    $region62: #{hybrid_cnn_lstm_forward.1} parent=1 // pred_check
      _
    $region63: #{hybrid_cnn_lstm_forward.1} parent=1 // pred_check_branch
      %177 = sbr.rel (0) target = $region65
    $region64: #{hybrid_cnn_lstm_forward.1} parent=1 // pred_region
      %s179 = ssub.s32 896, 896
      %180 = vsyncadd [#allocation28], %s179
      %s181 = sshll.u32 [#allocation29], 4
      %s182 = int_to_ptr.vmem [resolvable:$true] %s181
      %187 = dma.hbm_to_vmem [thread:$0]  %s15, 896, %s182, [#allocation28], 128, 128, 8
    $region65: #{hybrid_cnn_lstm_forward.1} parent=1 // pred_fallthru
      _
    // Predicated region
    $region66: #{hybrid_cnn_lstm_forward.1} parent=1 // pred_check
      _
    $region67: #{hybrid_cnn_lstm_forward.1} parent=1 // pred_check_branch
      %189 = sbr.rel (0) target = $region69
    $region68: #{hybrid_cnn_lstm_forward.1} parent=1 // pred_region
      _
    $region69: #{hybrid_cnn_lstm_forward.1} parent=1 // pred_fallthru
      _
    // Predicated region
    $region70: #{hybrid_cnn_lstm_forward.1} parent=1 // pred_check
      _
    $region71: #{hybrid_cnn_lstm_forward.1} parent=1 // pred_check_branch
      %191 = sbr.rel (0) target = $region73
    $region72: #{hybrid_cnn_lstm_forward.1} parent=1 // pred_region
      _
    $region73: #{hybrid_cnn_lstm_forward.1} parent=1 // pred_fallthru
      _
    // Predicated region
    $region74: #{hybrid_cnn_lstm_forward.1} parent=1 // pred_check
      _
    $region75: #{hybrid_cnn_lstm_forward.1} parent=1 // pred_check_branch
      %193 = sbr.rel (0) target = $region77
    $region76: #{hybrid_cnn_lstm_forward.1} parent=1 // pred_region
      %s195 = ssub.s32 1664, 1664
      %196 = vsyncadd [#allocation31], %s195
      %s197 = sshll.u32 [#allocation30], 4
      %s198 = int_to_ptr.vmem [resolvable:$true] %s197
      %203 = dma.hbm_to_vmem [thread:$0]  %s18, 1664, %s198, [#allocation31], 128, 128, 8
    $region77: #{hybrid_cnn_lstm_forward.1} parent=1 // pred_fallthru
      _
    // Predicated region
    $region78: #{hybrid_cnn_lstm_forward.1} parent=1 // pred_check
      _
    $region79: #{hybrid_cnn_lstm_forward.1} parent=1 // pred_check_branch
      %205 = sbr.rel (0) target = $region81
    $region80: #{hybrid_cnn_lstm_forward.1} parent=1 // pred_region
      _
    $region81: #{hybrid_cnn_lstm_forward.1} parent=1 // pred_fallthru
      _
    // Predicated region
    $region82: #{hybrid_cnn_lstm_forward.1} parent=1 // pred_check
      _
    $region83: #{hybrid_cnn_lstm_forward.1} parent=1 // pred_check_branch
      %207 = sbr.rel (0) target = $region85
    $region84: #{hybrid_cnn_lstm_forward.1} parent=1 // pred_region
      %208 = dma.done [#allocation10], 16
    $region85: #{hybrid_cnn_lstm_forward.1} parent=1 // pred_fallthru
      _
    // Predicated region
    $region86: #{hybrid_cnn_lstm_forward.1} parent=1 // pred_check
      _
    $region87: #{hybrid_cnn_lstm_forward.1} parent=1 // pred_check_branch
      %210 = sbr.rel (0) target = $region89
    $region88: #{hybrid_cnn_lstm_forward.1} parent=1 // pred_region
      %211 = dma.done [#allocation13], 768
    $region89: #{hybrid_cnn_lstm_forward.1} parent=1 // pred_fallthru
      _
    // Predicated region
    $region90: #{hybrid_cnn_lstm_forward.1} parent=1 // pred_check
      _
    $region91: #{hybrid_cnn_lstm_forward.1} parent=1 // pred_check_branch
      %213 = sbr.rel (0) target = $region93
    $region92: #{hybrid_cnn_lstm_forward.1} parent=1 // pred_region
      %214 = dma.done [#allocation13], 16
    $region93: #{hybrid_cnn_lstm_forward.1} parent=1 // pred_fallthru
      _
    // Predicated region
    $region94: #{hybrid_cnn_lstm_forward.1} parent=1 // pred_check
      _
    $region95: #{hybrid_cnn_lstm_forward.1} parent=1 // pred_check_branch
      %216 = sbr.rel (0) target = $region97
    $region96: #{hybrid_cnn_lstm_forward.1} parent=1 // pred_region
      %217 = dma.done [#allocation16], 1792
    $region97: #{hybrid_cnn_lstm_forward.1} parent=1 // pred_fallthru
      _
    // Predicated region
    $region98: #{hybrid_cnn_lstm_forward.1} parent=1 // pred_check
      _
    $region99: #{hybrid_cnn_lstm_forward.1} parent=1 // pred_check_branch
      %219 = sbr.rel (0) target = $region101
    $region100: #{hybrid_cnn_lstm_forward.1} parent=1 // pred_region
      %220 = dma.done [#allocation16], 32
    $region101: #{hybrid_cnn_lstm_forward.1} parent=1 // pred_fallthru
      _
    // Predicated region
    $region102: #{hybrid_cnn_lstm_forward.1} parent=1 // pred_check
      _
    $region103: #{hybrid_cnn_lstm_forward.1} parent=1 // pred_check_branch
      %222 = sbr.rel (0) target = $region105
    $region104: #{hybrid_cnn_lstm_forward.1} parent=1 // pred_region
      %223 = dma.done [#allocation19], 512
    $region105: #{hybrid_cnn_lstm_forward.1} parent=1 // pred_fallthru
      _
    // Predicated region
    $region106: #{hybrid_cnn_lstm_forward.1} parent=1 // pred_check
      _
    $region107: #{hybrid_cnn_lstm_forward.1} parent=1 // pred_check_branch
      %225 = sbr.rel (0) target = $region109
    $region108: #{hybrid_cnn_lstm_forward.1} parent=1 // pred_region
      %226 = dma.done [#allocation19], 1792
    $region109: #{hybrid_cnn_lstm_forward.1} parent=1 // pred_fallthru
      _
    // Predicated region
    $region110: #{hybrid_cnn_lstm_forward.1} parent=1 // pred_check
      _
    $region111: #{hybrid_cnn_lstm_forward.1} parent=1 // pred_check_branch
      %228 = sbr.rel (0) target = $region113
    $region112: #{hybrid_cnn_lstm_forward.1} parent=1 // pred_region
      %229 = dma.done [#allocation22], 32
    $region113: #{hybrid_cnn_lstm_forward.1} parent=1 // pred_fallthru
      _
    // Predicated region
    $region114: #{hybrid_cnn_lstm_forward.1} parent=1 // pred_check
      _
    $region115: #{hybrid_cnn_lstm_forward.1} parent=1 // pred_check_branch
      %231 = sbr.rel (0) target = $region117
    $region116: #{hybrid_cnn_lstm_forward.1} parent=1 // pred_region
      %232 = dma.done [#allocation22], 512
    $region117: #{hybrid_cnn_lstm_forward.1} parent=1 // pred_fallthru
      _
    // Predicated region
    $region118: #{hybrid_cnn_lstm_forward.1} parent=1 // pred_check
      _
    $region119: #{hybrid_cnn_lstm_forward.1} parent=1 // pred_check_branch
      %234 = sbr.rel (0) target = $region121
    $region120: #{hybrid_cnn_lstm_forward.1} parent=1 // pred_region
      %235 = dma.done [#allocation25], 1792
    $region121: #{hybrid_cnn_lstm_forward.1} parent=1 // pred_fallthru
      _
    // Predicated region
    $region122: #{hybrid_cnn_lstm_forward.1} parent=1 // pred_check
      _
    $region123: #{hybrid_cnn_lstm_forward.1} parent=1 // pred_check_branch
      %237 = sbr.rel (0) target = $region125
    $region124: #{hybrid_cnn_lstm_forward.1} parent=1 // pred_region
      %238 = dma.done [#allocation25], 32
    $region125: #{hybrid_cnn_lstm_forward.1} parent=1 // pred_fallthru
      _
    // Predicated region
    $region126: #{hybrid_cnn_lstm_forward.1} parent=1 // pred_check
      _
    $region127: #{hybrid_cnn_lstm_forward.1} parent=1 // pred_check_branch
      %240 = sbr.rel (0) target = $region129
    $region128: #{hybrid_cnn_lstm_forward.1} parent=1 // pred_region
      %241 = dma.done [#allocation28], 896
    $region129: #{hybrid_cnn_lstm_forward.1} parent=1 // pred_fallthru
      _
    // Predicated region
    $region130: #{hybrid_cnn_lstm_forward.1} parent=1 // pred_check
      _
    $region131: #{hybrid_cnn_lstm_forward.1} parent=1 // pred_check_branch
      %243 = sbr.rel (0) target = $region133
    $region132: #{hybrid_cnn_lstm_forward.1} parent=1 // pred_region
      %244 = dma.done [#allocation28], 896
    $region133: #{hybrid_cnn_lstm_forward.1} parent=1 // pred_fallthru
      _
    // Predicated region
    $region134: #{hybrid_cnn_lstm_forward.1} parent=1 // pred_check
      _
    $region135: #{hybrid_cnn_lstm_forward.1} parent=1 // pred_check_branch
      %246 = sbr.rel (0) target = $region137
    $region136: #{hybrid_cnn_lstm_forward.1} parent=1 // pred_region
      %247 = dma.done [#allocation31], 1664
    $region137: #{hybrid_cnn_lstm_forward.1} parent=1 // pred_fallthru
      _
    %vm248 = vcmask 15360
    %249 = vst.msk [vmem:[#allocation2] sm:$0xff] %vm248, 0.0
    %250 = vst.msk [vmem:[#allocation2 + $0x8] sm:$0xff] %vm248, 0.0
    %251 = vst.msk [vmem:[#allocation2 + $0x10] sm:$0xff] %vm248, 0.0
    %252 = vst.msk [vmem:[#allocation2 + $0x18] sm:$0xff] %vm248, 0.0
    %vm253 = vcmask 11264
    %254 = vst.msk [vmem:[#allocation2 + $0x20] sm:$0xf] %vm253, 0.0
    %v255 = vld [vmem:[%s0] sm:$0xff]
    %v256 = vld [vmem:[%s0 + $0x8] sm:$0xff]
    %v257 = vld [vmem:[%s0 + $0x10] sm:$0xff]
    %v258 = vld [vmem:[%s0 + $0x18] sm:$0xff]
    %259 = vst.msk [vmem:[#allocation2 + $0x2] sm:$0xff] %vm248, %v255
    %260 = vst.msk [vmem:[#allocation2 + $0xa] sm:$0xff] %vm248, %v256
    %261 = vst.msk [vmem:[#allocation2 + $0x12] sm:$0xff] %vm248, %v257
    %262 = vst.msk [vmem:[#allocation2 + $0x1a] sm:$0xff] %vm248, %v258
    %vm263 = vcmask 130048
    %264 = vst.msk [vmem:[#allocation3] sm:$0xff] %vm263, 0.0
    %265 = vst.msk [vmem:[#allocation3 + $0x8] sm:$0xff] %vm263, 0.0
    %vm266 = vcmask 125952
    %267 = vst.msk [vmem:[#allocation3 + $0x10] sm:$0xf] %vm266, 0.0
    %v268 = vld [vmem:[#allocation2] sm:$0xff]
    %v269 = vld [vmem:[#allocation2 + $0x8] sm:$0xff]
    %v270 = vld [vmem:[#allocation2 + $0x10] sm:$0xff]
    %v271 = vld [vmem:[#allocation2 + $0x18] sm:$0xff]
    %v272 = vld [vmem:[#allocation2 + $0x2] sm:$0xff]
    %v273 = vld [vmem:[#allocation2 + $0xa] sm:$0xff]
    %v274 = vld [vmem:[#allocation2 + $0x12] sm:$0xff]
    %v275 = vld [vmem:[#allocation2 + $0x1a] sm:$0xff]
    %v276 = vld [vmem:[#allocation2 + $0x4] sm:$0xff]
    %v277 = vld [vmem:[#allocation2 + $0xc] sm:$0xff]
    %v278 = vld [vmem:[#allocation2 + $0x14] sm:$0xff]
    %v279 = vld [vmem:[#allocation2 + $0x1c] sm:$0xff]
    %284 = vrot.lane.b32.xlu0 %v272, 2
    %v285 = vpop.permute.xlu0 %284
    %286 = vrot.lane.b32.xlu0 %v273, 2
    %v287 = vpop.permute.xlu0 %286
    %288 = vrot.lane.b32.xlu0 %v274, 2
    %v289 = vpop.permute.xlu0 %288
    %290 = vrot.lane.b32.xlu0 %v275, 2
    %v291 = vpop.permute.xlu0 %290
    %300 = vrot.lane.b32.xlu0 %v276, 4
    %v301 = vpop.permute.xlu0 %300
    %302 = vrot.lane.b32.xlu0 %v277, 4
    %v303 = vpop.permute.xlu0 %302
    %304 = vrot.lane.b32.xlu0 %v278, 4
    %v305 = vpop.permute.xlu0 %304
    %306 = vrot.lane.b32.xlu0 %v279, 4
    %v307 = vpop.permute.xlu0 %306
    %v312 = vsel %vm248, %v268, %v285
    %v313 = vsel %vm248, %v269, %v287
    %v314 = vsel %vm248, %v270, %v289
    %v315 = vsel %vm248, %v271, %v291
    %vm316 = vcmask 31744
    %v317 = vsel %vm316, %v312, %v301
    %v318 = vsel %vm316, %v313, %v303
    %v319 = vsel %vm316, %v314, %v305
    %v320 = vsel %vm316, %v315, %v307
    %v321 = vld [vmem:[%s1] sm:$0x3f]
    %v322 = vld [vmem:[#allocation9] sm:$0x1]
    %v324 = vlaneseq
    %v325 = vshrl.u32 %v324, 7
    %v326 = vsub.s32 0, %v325
    %v327 = vrot.slane %v322, %v326
    %vm329 = vcmask 48128
    %v331 = vsel %vm329, %v317, 0
    %v334 = vsel %vm329, %v318, 0
    %v337 = vsel %vm329, %v319, 0
    %v340 = vsel %vm329, %v320, 0
    %vm342 = vcmask 1045504
    %v344 = vsel %vm342, %v321, 0
    %346 = vmatprep.subr.mxu0 0.0
    %347 = vmatpush1.msra.mxu0 0.0
    %348 = vmatprep.subr.mxu0 0.0
    %349 = vmatpush1.msra.mxu0 0.0
    %350 = vmatprep.subr.mxu0 0.0
    %351 = vmatpush1.msra.mxu0 0.0
    %352 = vmatprep.subr.mxu0 0.0
    %353 = vmatpush1.msra.mxu0 0.0
    %354 = vmatprep.subr.mxu0 0.0
    %355 = vmatpush1.msra.mxu0 0.0
    %356 = vmatprep.subr.mxu0 0.0
    %357 = vmatpush1.msra.mxu0 0.0
    %358 = vmatprep.subr.mxu0 0.0
    %359 = vmatpush1.msra.mxu0 0.0
    %360 = vmatprep.subr.mxu0 0.0
    %361 = vmatpush1.msra.mxu0 0.0
    %362 = vmatprep.subr.mxu0 0.0
    %363 = vmatpush1.msra.mxu0 0.0
    %364 = vmatprep.subr.mxu0 0.0
    %365 = vmatpush1.msra.mxu0 0.0
    %366 = vmatprep.subr.mxu0 0.0
    %367 = vmatpush1.msra.mxu0 0.0
    %368 = vmatprep.subr.mxu0 0.0
    %369 = vmatpush1.msra.mxu0 0.0
    %370 = vmatprep.subr.mxu0 0.0
    %371 = vmatpush1.msra.mxu0 0.0
    %372 = vmatprep.subr.mxu0 0.0
    %373 = vmatpush1.msra.mxu0 0.0
    %374 = vmatprep.subr.mxu0 0.0
    %375 = vmatpush1.msra.mxu0 0.0
    %376 = vmatprep.subr.mxu0 0.0
    %377 = vmatpush1.msra.mxu0 %v344
    %378 = vmatprep.subr.mxu0 0.0
    %379 = vmatpush2.msra.mxu0 0.0
    %380 = vmatprep.subr.mxu0 0.0
    %381 = vmatpush2.msra.mxu0 0.0
    %382 = vmatprep.subr.mxu0 0.0
    %383 = vmatpush2.msra.mxu0 0.0
    %384 = vmatprep.subr.mxu0 0.0
    %385 = vmatpush2.msra.mxu0 0.0
    %386 = vmatprep.subr.mxu0 0.0
    %387 = vmatpush2.msra.mxu0 0.0
    %388 = vmatprep.subr.mxu0 0.0
    %389 = vmatpush2.msra.mxu0 0.0
    %390 = vmatprep.subr.mxu0 0.0
    %391 = vmatpush2.msra.mxu0 0.0
    %392 = vmatprep.subr.mxu0 0.0
    %393 = vmatpush2.msra.mxu0 0.0
    %394 = vmatprep.subr.mxu0 0.0
    %395 = vmatpush2.msra.mxu0 0.0
    %396 = vmatprep.subr.mxu0 0.0
    %397 = vmatpush2.msra.mxu0 0.0
    %398 = vmatprep.subr.mxu0 0.0
    %399 = vmatpush2.msra.mxu0 0.0
    %400 = vmatprep.subr.mxu0 0.0
    %401 = vmatpush2.msra.mxu0 0.0
    %402 = vmatprep.subr.mxu0 0.0
    %403 = vmatpush2.msra.mxu0 0.0
    %404 = vmatprep.subr.mxu0 0.0
    %405 = vmatpush2.msra.mxu0 0.0
    %406 = vmatprep.subr.mxu0 0.0
    %407 = vmatpush2.msra.mxu0 0.0
    %408 = vmatprep.subr.mxu0 0.0
    %409 = vmatpush2.msra.mxu0 0.0
    %410 = vmatprep.mubr.f32.mxu0 0.0
    %411 = vmatmul.mubr.f32.gmra.mxu0 %v331
    %v412 = vpop.f32.mrf.mxu0
    %v413 = vadd.f32 %v327, %v412
    %v414 = vpop.f32.mrf.mxu0
    %415 = vmatprep.mubr.f32.mxu0 0.0
    %416 = vmatmul.mubr.f32.gmra.mxu0 %v334
    %v417 = vpop.f32.mrf.mxu0
    %v418 = vadd.f32 %v327, %v417
    %v419 = vpop.f32.mrf.mxu0
    %420 = vmatprep.mubr.f32.mxu0 0.0
    %421 = vmatmul.mubr.f32.gmra.mxu0 %v337
    %v422 = vpop.f32.mrf.mxu0
    %v423 = vadd.f32 %v327, %v422
    %v424 = vpop.f32.mrf.mxu0
    %425 = vmatprep.mubr.f32.mxu0 0.0
    %426 = vmatmul.mubr.f32.gmra.mxu0 %v340
    %v427 = vpop.f32.mrf.mxu0
    %v428 = vadd.f32 %v327, %v427
    %v429 = vpop.f32.mrf.mxu0
    %430 = vdwg.mxu0
    %v432 = vrot.slane %v413, 2
    %v434 = vmax.f32 %v413, %v432
    %vm435 = vcmask 123904
    %436 = vst.msk [vmem:[#allocation3 + $0x2] sm:$0x3] %vm435, %v434
    %vm437 = vcmask 128004
    %438 = vst.msk [vmem:[#allocation3] sm:$0x30] %vm437, %v434
    %v440 = vrot.slane %v418, 2
    %v442 = vmax.f32 %v418, %v440
    %443 = vst.msk [vmem:[#allocation3 + $0x6] sm:$0x3] %vm435, %v442
    %444 = vst.msk [vmem:[#allocation3 + $0x4] sm:$0x30] %vm437, %v442
    %v446 = vrot.slane %v423, 2
    %v448 = vmax.f32 %v423, %v446
    %449 = vst.msk [vmem:[#allocation3 + $0xa] sm:$0x3] %vm435, %v448
    %450 = vst.msk [vmem:[#allocation3 + $0x8] sm:$0x30] %vm437, %v448
    %v452 = vrot.slane %v428, 2
    %v454 = vmax.f32 %v428, %v452
    %455 = vst.msk [vmem:[#allocation3 + $0xe] sm:$0x3] %vm435, %v454
    %456 = vst.msk [vmem:[#allocation3 + $0xc] sm:$0x30] %vm437, %v454
    %v457 = vld [vmem:[#allocation3] sm:$0xff]
    %v458 = vld [vmem:[#allocation3 + $0x8] sm:$0xff]
    %v459 = vld [vmem:[#allocation3 + $0x2] sm:$0xff]
    %v460 = vld [vmem:[#allocation3 + $0xa] sm:$0xff]
    %v461 = vld [vmem:[#allocation3 + $0x4] sm:$0xff]
    %v462 = vld [vmem:[#allocation3 + $0xc] sm:$0xff]
    %465 = vrot.lane.b32.xlu0 %v459, 16
    %v466 = vpop.permute.xlu0 %465
    %467 = vrot.lane.b32.xlu0 %v460, 16
    %v468 = vpop.permute.xlu0 %467
    %473 = vrot.lane.b32.xlu0 %v461, 32
    %v474 = vpop.permute.xlu0 %473
    %475 = vrot.lane.b32.xlu0 %v462, 32
    %v476 = vpop.permute.xlu0 %475
    %v479 = vsel %vm263, %v457, %v466
    %v480 = vsel %vm263, %v458, %v468
    %vm481 = vcmask 261120
    %v482 = vsel %vm481, %v479, %v474
    %v483 = vsel %vm481, %v480, %v476
    %v484 = vld [vmem:[#allocation12] sm:$0xff]
    %v485 = vld [vmem:[#allocation12 + $0x8] sm:$0xff]
    %v486 = vld [vmem:[#allocation12 + $0x10] sm:$0xff]
    %v487 = vld [vmem:[#allocation12 + $0x18] sm:$0xff]
    %v488 = vld [vmem:[#allocation12 + $0x20] sm:$0xff]
    %v489 = vld [vmem:[#allocation12 + $0x28] sm:$0xff]
    %v490 = vld [vmem:[#allocation14] sm:$0x1]
    %v492 = vlaneseq
    %v493 = vshrl.u32 %v492, 7
    %v494 = vsub.s32 0, %v493
    %v495 = vrot.slane %v490, %v494
    %vm497 = vcmask 392192
    %v499 = vsel %vm497, %v482, 0
    %v502 = vsel %vm497, %v483, 0
    %504 = vmatprep.subr.mxu0 0.0
    %505 = vmatpush1.msra.mxu0 0.0
    %506 = vmatprep.subr.mxu0 0.0
    %507 = vmatpush1.msra.mxu0 0.0
    %508 = vmatprep.subr.mxu0 0.0
    %509 = vmatpush1.msra.mxu0 0.0
    %510 = vmatprep.subr.mxu0 0.0
    %511 = vmatpush1.msra.mxu0 0.0
    %512 = vmatprep.subr.mxu0 0.0
    %513 = vmatpush1.msra.mxu0 0.0
    %514 = vmatprep.subr.mxu0 0.0
    %515 = vmatpush1.msra.mxu0 0.0
    %516 = vmatprep.subr.mxu0 0.0
    %517 = vmatpush1.msra.mxu0 0.0
    %518 = vmatprep.subr.mxu0 0.0
    %519 = vmatpush1.msra.mxu0 0.0
    %520 = vmatprep.subr.mxu0 0.0
    %521 = vmatpush1.msra.mxu0 0.0
    %522 = vmatprep.subr.mxu0 0.0
    %523 = vmatpush1.msra.mxu0 0.0
    %524 = vmatprep.subr.mxu0 0.0
    %525 = vmatpush1.msra.mxu0 %v489
    %526 = vmatprep.subr.mxu0 0.0
    %527 = vmatpush1.msra.mxu0 %v488
    %528 = vmatprep.subr.mxu0 0.0
    %529 = vmatpush1.msra.mxu0 %v487
    %530 = vmatprep.subr.mxu0 0.0
    %531 = vmatpush1.msra.mxu0 %v486
    %532 = vmatprep.subr.mxu0 0.0
    %533 = vmatpush1.msra.mxu0 %v485
    %534 = vmatprep.subr.mxu0 0.0
    %535 = vmatpush1.msra.mxu0 %v484
    %536 = vmatprep.subr.mxu0 0.0
    %537 = vmatpush2.msra.mxu0 0.0
    %538 = vmatprep.subr.mxu0 0.0
    %539 = vmatpush2.msra.mxu0 0.0
    %540 = vmatprep.subr.mxu0 0.0
    %541 = vmatpush2.msra.mxu0 0.0
    %542 = vmatprep.subr.mxu0 0.0
    %543 = vmatpush2.msra.mxu0 0.0
    %544 = vmatprep.subr.mxu0 0.0
    %545 = vmatpush2.msra.mxu0 0.0
    %546 = vmatprep.subr.mxu0 0.0
    %547 = vmatpush2.msra.mxu0 0.0
    %548 = vmatprep.subr.mxu0 0.0
    %549 = vmatpush2.msra.mxu0 0.0
    %550 = vmatprep.subr.mxu0 0.0
    %551 = vmatpush2.msra.mxu0 0.0
    %552 = vmatprep.subr.mxu0 0.0
    %553 = vmatpush2.msra.mxu0 0.0
    %554 = vmatprep.subr.mxu0 0.0
    %555 = vmatpush2.msra.mxu0 0.0
    %556 = vmatprep.subr.mxu0 0.0
    %557 = vmatpush2.msra.mxu0 0.0
    %558 = vmatprep.subr.mxu0 0.0
    %559 = vmatpush2.msra.mxu0 0.0
    %560 = vmatprep.subr.mxu0 0.0
    %561 = vmatpush2.msra.mxu0 0.0
    %562 = vmatprep.subr.mxu0 0.0
    %563 = vmatpush2.msra.mxu0 0.0
    %564 = vmatprep.subr.mxu0 0.0
    %565 = vmatpush2.msra.mxu0 0.0
    %566 = vmatprep.subr.mxu0 0.0
    %567 = vmatpush2.msra.mxu0 0.0
    %568 = vmatprep.mubr.f32.mxu0 0.0
    %569 = vmatmul.mubr.f32.gmra.mxu0 %v499
    %v570 = vpop.f32.mrf.mxu0
    %v571 = vadd.f32 %v495, %v570
    %v572 = vpop.f32.mrf.mxu0
    %573 = vmatprep.mubr.f32.mxu0 0.0
    %574 = vmatmul.mubr.f32.gmra.mxu0 %v502
    %v575 = vpop.f32.mrf.mxu0
    %v576 = vadd.f32 %v495, %v575
    %v577 = vpop.f32.mrf.mxu0
    %578 = vdwg.mxu0
    %v580 = vrot.slane %v571, 2
    %v582 = vmax.f32 %v571, %v580
    %583 = vst.msk [vmem:[#allocation4] sm:$0x3] %vm435, %v582
    %584 = vst.msk [vmem:[#allocation4 - $0x2] sm:$0x30] %vm437, %v582
    %v586 = vrot.slane %v576, 2
    %v588 = vmax.f32 %v576, %v586
    %589 = vst.msk [vmem:[#allocation4 + $0x4] sm:$0x3] %vm435, %v588
    %590 = vst.msk [vmem:[#allocation4 + $0x2] sm:$0x30] %vm437, %v588
    %v591 = vld [vmem:[%s0] sm:$0xff]
    %v592 = vld [vmem:[%s0 + $0x8] sm:$0xff]
    %v593 = vld [vmem:[%s0 + $0x10] sm:$0xff]
    %v594 = vld [vmem:[%s0 + $0x18] sm:$0xff]
    %v595 = vld [vmem:[%s5] sm:$0xf]
    %v596 = vld [vmem:[#allocation17] sm:$0x3]
    %v598 = vlaneseq
    %v599 = vshrl.u32 %v598, 7
    %v600 = vsub.s32 0, %v599
    %v601 = vrot.slane %v596, %v600
    %v602 = vlaneseq
    %v603 = vshrl.u32 %v602, 7
    %v604 = vsub.s32 1, %v603
    %v605 = vrot.slane %v596, %v604
    %v610 = vunpack.c.l.s4 1983009808
    %v611 = vunpack.c.0.s8 %v610
    %v612 = vlaneseq
    %v613 = vshrl.u32 %v612, 7
    %v614 = vsub.s32 %v611, %v613
    %v615 = vrot.slane %v595, %v614
    %v616 = vcombine.high %v615, %v615
    %v618 = vsel %vm248, %v591, 0
    %v621 = vsel %vm248, %v592, 0
    %v624 = vsel %vm248, %v593, 0
    %v627 = vsel %vm248, %v594, 0
    %vm629 = vcmask 1041408
    %v630 = vsel %vm629, %v615, 0
    %v632 = vsel %vm629, %v616, 0
    %634 = vmatprep.subr.mxu0 0.0
    %635 = vmatpush1.msra.mxu0 0.0
    %636 = vmatprep.subr.mxu0 0.0
    %637 = vmatpush1.msra.mxu0 0.0
    %638 = vmatprep.subr.mxu0 0.0
    %639 = vmatpush1.msra.mxu0 0.0
    %640 = vmatprep.subr.mxu0 0.0
    %641 = vmatpush1.msra.mxu0 0.0
    %642 = vmatprep.subr.mxu0 0.0
    %643 = vmatpush1.msra.mxu0 0.0
    %644 = vmatprep.subr.mxu0 0.0
    %645 = vmatpush1.msra.mxu0 0.0
    %646 = vmatprep.subr.mxu0 0.0
    %647 = vmatpush1.msra.mxu0 0.0
    %648 = vmatprep.subr.mxu0 0.0
    %649 = vmatpush1.msra.mxu0 0.0
    %650 = vmatprep.subr.mxu0 0.0
    %651 = vmatpush1.msra.mxu0 0.0
    %652 = vmatprep.subr.mxu0 0.0
    %653 = vmatpush1.msra.mxu0 0.0
    %654 = vmatprep.subr.mxu0 0.0
    %655 = vmatpush1.msra.mxu0 0.0
    %656 = vmatprep.subr.mxu0 0.0
    %657 = vmatpush1.msra.mxu0 0.0
    %658 = vmatprep.subr.mxu0 0.0
    %659 = vmatpush1.msra.mxu0 0.0
    %660 = vmatprep.subr.mxu0 0.0
    %661 = vmatpush1.msra.mxu0 0.0
    %662 = vmatprep.subr.mxu0 0.0
    %663 = vmatpush1.msra.mxu0 0.0
    %664 = vmatprep.subr.mxu0 %v632
    %665 = vmatpush1.msra.mxu0 %v630
    %666 = vmatprep.subr.mxu0 0.0
    %667 = vmatpush2.msra.mxu0 0.0
    %668 = vmatprep.subr.mxu0 0.0
    %669 = vmatpush2.msra.mxu0 0.0
    %670 = vmatprep.subr.mxu0 0.0
    %671 = vmatpush2.msra.mxu0 0.0
    %672 = vmatprep.subr.mxu0 0.0
    %673 = vmatpush2.msra.mxu0 0.0
    %674 = vmatprep.subr.mxu0 0.0
    %675 = vmatpush2.msra.mxu0 0.0
    %676 = vmatprep.subr.mxu0 0.0
    %677 = vmatpush2.msra.mxu0 0.0
    %678 = vmatprep.subr.mxu0 0.0
    %679 = vmatpush2.msra.mxu0 0.0
    %680 = vmatprep.subr.mxu0 0.0
    %681 = vmatpush2.msra.mxu0 0.0
    %682 = vmatprep.subr.mxu0 0.0
    %683 = vmatpush2.msra.mxu0 0.0
    %684 = vmatprep.subr.mxu0 0.0
    %685 = vmatpush2.msra.mxu0 0.0
    %686 = vmatprep.subr.mxu0 0.0
    %687 = vmatpush2.msra.mxu0 0.0
    %688 = vmatprep.subr.mxu0 0.0
    %689 = vmatpush2.msra.mxu0 0.0
    %690 = vmatprep.subr.mxu0 0.0
    %691 = vmatpush2.msra.mxu0 0.0
    %692 = vmatprep.subr.mxu0 0.0
    %693 = vmatpush2.msra.mxu0 0.0
    %694 = vmatprep.subr.mxu0 0.0
    %695 = vmatpush2.msra.mxu0 0.0
    %696 = vmatprep.subr.mxu0 0.0
    %697 = vmatpush2.msra.mxu0 0.0
    %698 = vmatprep.mubr.f32.mxu0 0.0
    %699 = vmatmul.mubr.f32.gmra.mxu0 %v618
    %v700 = vpop.f32.mrf.mxu0
    %v701 = vadd.f32 %v601, %v700
    %v702 = vpop.f32.mrf.mxu0
    %v703 = vadd.f32 %v605, %v702
    %704 = vmatprep.mubr.f32.mxu0 0.0
    %705 = vmatmul.mubr.f32.gmra.mxu0 %v621
    %v706 = vpop.f32.mrf.mxu0
    %v707 = vadd.f32 %v601, %v706
    %v708 = vpop.f32.mrf.mxu0
    %v709 = vadd.f32 %v605, %v708
    %710 = vmatprep.mubr.f32.mxu0 0.0
    %711 = vmatmul.mubr.f32.gmra.mxu0 %v624
    %v712 = vpop.f32.mrf.mxu0
    %v713 = vadd.f32 %v601, %v712
    %v714 = vpop.f32.mrf.mxu0
    %v715 = vadd.f32 %v605, %v714
    %716 = vmatprep.mubr.f32.mxu0 0.0
    %717 = vmatmul.mubr.f32.gmra.mxu0 %v627
    %v718 = vpop.f32.mrf.mxu0
    %v719 = vadd.f32 %v601, %v718
    %v720 = vpop.f32.mrf.mxu0
    %v721 = vadd.f32 %v605, %v720
    %722 = vdwg.mxu0
    %v723 = vld [vmem:[#allocation15] sm:$0xff]
    %v724 = vld [vmem:[#allocation15 + $0x8] sm:$0xff]
    %v725 = vld [vmem:[#allocation15 + $0x10] sm:$0xff]
    %v726 = vld [vmem:[#allocation15 + $0x18] sm:$0xff]
    %v727 = vld [vmem:[#allocation15 + $0x20] sm:$0xff]
    %v728 = vld [vmem:[#allocation15 + $0x28] sm:$0xff]
    %v729 = vld [vmem:[#allocation15 + $0x30] sm:$0xff]
    %v730 = vld [vmem:[#allocation15 + $0x38] sm:$0xff]
    %v731 = vld [vmem:[#allocation15 + $0x40] sm:$0xff]
    %v732 = vld [vmem:[#allocation15 + $0x48] sm:$0xff]
    %v733 = vld [vmem:[#allocation15 + $0x50] sm:$0xff]
    %v734 = vld [vmem:[#allocation15 + $0x58] sm:$0xff]
    %v735 = vld [vmem:[#allocation15 + $0x60] sm:$0x3]
    %v736 = vld [vmem:[#allocation15 + $0x68] sm:$0x3]
    %vm737 = vcmask 408576
    %v739 = vsel %vm737, 0.0, 0
    %v742 = vsel %vm629, %v735, 0
    %v745 = vsel %vm629, %v736, 0
    %747 = vmatprep.subr.mxu0 0.0
    %748 = vmatpush1.msra.mxu0 0.0
    %749 = vmatprep.subr.mxu0 0.0
    %750 = vmatpush1.msra.mxu0 0.0
    %751 = vmatprep.subr.mxu0 0.0
    %752 = vmatpush1.msra.mxu0 0.0
    %753 = vmatprep.subr.mxu0 0.0
    %754 = vmatpush1.msra.mxu0 0.0
    %755 = vmatprep.subr.mxu0 0.0
    %756 = vmatpush1.msra.mxu0 0.0
    %757 = vmatprep.subr.mxu0 0.0
    %758 = vmatpush1.msra.mxu0 0.0
    %759 = vmatprep.subr.mxu0 0.0
    %760 = vmatpush1.msra.mxu0 0.0
    %761 = vmatprep.subr.mxu0 0.0
    %762 = vmatpush1.msra.mxu0 0.0
    %763 = vmatprep.subr.mxu0 0.0
    %764 = vmatpush1.msra.mxu0 0.0
    %765 = vmatprep.subr.mxu0 %v745
    %766 = vmatpush1.msra.mxu0 %v742
    %767 = vmatprep.subr.mxu0 %v734
    %768 = vmatpush1.msra.mxu0 %v733
    %769 = vmatprep.subr.mxu0 %v732
    %770 = vmatpush1.msra.mxu0 %v731
    %771 = vmatprep.subr.mxu0 %v730
    %772 = vmatpush1.msra.mxu0 %v729
    %773 = vmatprep.subr.mxu0 %v728
    %774 = vmatpush1.msra.mxu0 %v727
    %775 = vmatprep.subr.mxu0 %v726
    %776 = vmatpush1.msra.mxu0 %v725
    %777 = vmatprep.subr.mxu0 %v724
    %778 = vmatpush1.msra.mxu0 %v723
    %779 = vmatprep.subr.mxu0 0.0
    %780 = vmatpush2.msra.mxu0 0.0
    %781 = vmatprep.subr.mxu0 0.0
    %782 = vmatpush2.msra.mxu0 0.0
    %783 = vmatprep.subr.mxu0 0.0
    %784 = vmatpush2.msra.mxu0 0.0
    %785 = vmatprep.subr.mxu0 0.0
    %786 = vmatpush2.msra.mxu0 0.0
    %787 = vmatprep.subr.mxu0 0.0
    %788 = vmatpush2.msra.mxu0 0.0
    %789 = vmatprep.subr.mxu0 0.0
    %790 = vmatpush2.msra.mxu0 0.0
    %791 = vmatprep.subr.mxu0 0.0
    %792 = vmatpush2.msra.mxu0 0.0
    %793 = vmatprep.subr.mxu0 0.0
    %794 = vmatpush2.msra.mxu0 0.0
    %795 = vmatprep.subr.mxu0 0.0
    %796 = vmatpush2.msra.mxu0 0.0
    %797 = vmatprep.subr.mxu0 0.0
    %798 = vmatpush2.msra.mxu0 0.0
    %799 = vmatprep.subr.mxu0 0.0
    %800 = vmatpush2.msra.mxu0 0.0
    %801 = vmatprep.subr.mxu0 0.0
    %802 = vmatpush2.msra.mxu0 0.0
    %803 = vmatprep.subr.mxu0 0.0
    %804 = vmatpush2.msra.mxu0 0.0
    %805 = vmatprep.subr.mxu0 0.0
    %806 = vmatpush2.msra.mxu0 0.0
    %807 = vmatprep.subr.mxu0 0.0
    %808 = vmatpush2.msra.mxu0 0.0
    %809 = vmatprep.subr.mxu0 0.0
    %810 = vmatpush2.msra.mxu0 0.0
    %811 = vmatprep.mubr.f32.mxu0 0.0
    %812 = vmatmul.mubr.f32.gmra.mxu0 %v739
    %v813 = vpop.f32.mrf.mxu0
    %v814 = vadd.f32 0.0, %v813
    %v815 = vpop.f32.mrf.mxu0
    %v816 = vadd.f32 0.0, %v815
    %817 = vdwg.mxu0
    %v818 = vadd.f32 %v701, %v814
    %v819 = vadd.f32 %v703, %v816
    %v820 = vxor.u32 %v818, 2147483648
    %v821 = vmul.f32 %v820, 1.442695
    %v822 = vpow.pop %v821
    %v823 = vadd.f32 %v822, 1.0
    %v824 = vrcp.pop %v823
    %v825 = vmul.f32 1.0, %v824
    %v826 = vtanh.pop %v818
    %v827 = vtanh.pop %v819
    %v828 = vxor.u32 %v819, 2147483648
    %v829 = vmul.f32 %v828, 1.442695
    %v830 = vpow.pop %v829
    %v831 = vadd.f32 %v830, 1.0
    %v832 = vrcp.pop %v831
    %v833 = vmul.f32 1.0, %v832
    %v834 = vmul.f32 %v825, 0.0
    %837 = vrot.lane.b32.xlu0 %v826, 28
    %v838 = vpop.permute.xlu0 %837
    %839 = vrot.lane.b32.xlu0 %v827, 28
    %v840 = vpop.permute.xlu0 %839
    %vm841 = vcmask 228352
    %v842 = vsel %vm841, %v838, %v840
    %v844 = vmul.f32 %v825, %v842
    %846 = vrot.lane.b32.xlu0 %v844, 50
    %v847 = vpop.permute.xlu0 %846
    %v849 = vadd.f32 %v834, %v847
    %v850 = vtanh.pop %v849
    %852 = vrot.lane.b32.xlu0 %v850, 100
    %v853 = vpop.permute.xlu0 %852
    %v855 = vmul.f32 %v833, %v853
    %857 = vrot.lane.b32.xlu0 %v855, 106
    %v858 = vpop.permute.xlu0 %857
    %vm860 = vcmask 402432
    %861 = vst.msk [vmem:[#allocation5] sm:$0x3] %vm860, %v858
    %v862 = vsel %vm737, %v858, 0
    %864 = vmatprep.subr.mxu0 0.0
    %865 = vmatpush1.msra.mxu0 0.0
    %866 = vmatprep.subr.mxu0 0.0
    %867 = vmatpush1.msra.mxu0 0.0
    %868 = vmatprep.subr.mxu0 0.0
    %869 = vmatpush1.msra.mxu0 0.0
    %870 = vmatprep.subr.mxu0 0.0
    %871 = vmatpush1.msra.mxu0 0.0
    %872 = vmatprep.subr.mxu0 0.0
    %873 = vmatpush1.msra.mxu0 0.0
    %874 = vmatprep.subr.mxu0 0.0
    %875 = vmatpush1.msra.mxu0 0.0
    %876 = vmatprep.subr.mxu0 0.0
    %877 = vmatpush1.msra.mxu0 0.0
    %878 = vmatprep.subr.mxu0 0.0
    %879 = vmatpush1.msra.mxu0 0.0
    %880 = vmatprep.subr.mxu0 0.0
    %881 = vmatpush1.msra.mxu0 0.0
    %882 = vmatprep.subr.mxu0 %v745
    %883 = vmatpush1.msra.mxu0 %v742
    %884 = vmatprep.subr.mxu0 %v734
    %885 = vmatpush1.msra.mxu0 %v733
    %886 = vmatprep.subr.mxu0 %v732
    %887 = vmatpush1.msra.mxu0 %v731
    %888 = vmatprep.subr.mxu0 %v730
    %889 = vmatpush1.msra.mxu0 %v729
    %890 = vmatprep.subr.mxu0 %v728
    %891 = vmatpush1.msra.mxu0 %v727
    %892 = vmatprep.subr.mxu0 %v726
    %893 = vmatpush1.msra.mxu0 %v725
    %894 = vmatprep.subr.mxu0 %v724
    %895 = vmatpush1.msra.mxu0 %v723
    %896 = vmatprep.subr.mxu0 0.0
    %897 = vmatpush2.msra.mxu0 0.0
    %898 = vmatprep.subr.mxu0 0.0
    %899 = vmatpush2.msra.mxu0 0.0
    %900 = vmatprep.subr.mxu0 0.0
    %901 = vmatpush2.msra.mxu0 0.0
    %902 = vmatprep.subr.mxu0 0.0
    %903 = vmatpush2.msra.mxu0 0.0
    %904 = vmatprep.subr.mxu0 0.0
    %905 = vmatpush2.msra.mxu0 0.0
    %906 = vmatprep.subr.mxu0 0.0
    %907 = vmatpush2.msra.mxu0 0.0
    %908 = vmatprep.subr.mxu0 0.0
    %909 = vmatpush2.msra.mxu0 0.0
    %910 = vmatprep.subr.mxu0 0.0
    %911 = vmatpush2.msra.mxu0 0.0
    %912 = vmatprep.subr.mxu0 0.0
    %913 = vmatpush2.msra.mxu0 0.0
    %914 = vmatprep.subr.mxu0 0.0
    %915 = vmatpush2.msra.mxu0 0.0
    %916 = vmatprep.subr.mxu0 0.0
    %917 = vmatpush2.msra.mxu0 0.0
    %918 = vmatprep.subr.mxu0 0.0
    %919 = vmatpush2.msra.mxu0 0.0
    %920 = vmatprep.subr.mxu0 0.0
    %921 = vmatpush2.msra.mxu0 0.0
    %922 = vmatprep.subr.mxu0 0.0
    %923 = vmatpush2.msra.mxu0 0.0
    %924 = vmatprep.subr.mxu0 0.0
    %925 = vmatpush2.msra.mxu0 0.0
    %926 = vmatprep.subr.mxu0 0.0
    %927 = vmatpush2.msra.mxu0 0.0
    %928 = vmatprep.mubr.f32.mxu0 0.0
    %929 = vmatmul.mubr.f32.gmra.mxu0 %v862
    %v930 = vpop.f32.mrf.mxu0
    %v931 = vadd.f32 0.0, %v930
    %v932 = vpop.f32.mrf.mxu0
    %v933 = vadd.f32 0.0, %v932
    %934 = vdwg.mxu0
    %v937 = vrot.slane %v931, 6
    %v938 = vrot.slane %v933, 6
    %v941 = vadd.f32 %v701, %v937
    %v942 = vadd.f32 %v703, %v938
    %v943 = vxor.u32 %v941, 2147483648
    %v944 = vmul.f32 %v943, 1.442695
    %v945 = vpow.pop %v944
    %v946 = vadd.f32 %v945, 1.0
    %v947 = vrcp.pop %v946
    %v948 = vmul.f32 1.0, %v947
    %v949 = vtanh.pop %v941
    %v950 = vtanh.pop %v942
    %v951 = vxor.u32 %v942, 2147483648
    %v952 = vmul.f32 %v951, 1.442695
    %v953 = vpow.pop %v952
    %v954 = vadd.f32 %v953, 1.0
    %v955 = vrcp.pop %v954
    %v956 = vmul.f32 1.0, %v955
    %v958 = vrot.slane %v849, 6
    %v960 = vmul.f32 %v948, %v958
    %963 = vrot.lane.b32.xlu0 %v949, 28
    %v964 = vpop.permute.xlu0 %963
    %965 = vrot.lane.b32.xlu0 %v950, 28
    %v966 = vpop.permute.xlu0 %965
    %v967 = vsel %vm841, %v964, %v966
    %v969 = vmul.f32 %v948, %v967
    %971 = vrot.lane.b32.xlu0 %v969, 50
    %v972 = vpop.permute.xlu0 %971
    %v974 = vadd.f32 %v960, %v972
    %v975 = vtanh.pop %v974
    %977 = vrot.lane.b32.xlu0 %v975, 100
    %v978 = vpop.permute.xlu0 %977
    %v980 = vmul.f32 %v956, %v978
    %982 = vrot.lane.b32.xlu0 %v980, 106
    %v983 = vpop.permute.xlu0 %982
    %vm985 = vcmask 404482
    %986 = vst.msk [vmem:[#allocation5] sm:$0xc] %vm985, %v983
    %v987 = vrot.slane %v980, 2
    %988 = vrot.lane.b32.xlu0 %v987, 106
    %v989 = vpop.permute.xlu0 %988
    %v990 = vsel %vm737, %v989, 0
    %992 = vmatprep.subr.mxu0 0.0
    %993 = vmatpush1.msra.mxu0 0.0
    %994 = vmatprep.subr.mxu0 0.0
    %995 = vmatpush1.msra.mxu0 0.0
    %996 = vmatprep.subr.mxu0 0.0
    %997 = vmatpush1.msra.mxu0 0.0
    %998 = vmatprep.subr.mxu0 0.0
    %999 = vmatpush1.msra.mxu0 0.0
    %1000 = vmatprep.subr.mxu0 0.0
    %1001 = vmatpush1.msra.mxu0 0.0
    %1002 = vmatprep.subr.mxu0 0.0
    %1003 = vmatpush1.msra.mxu0 0.0
    %1004 = vmatprep.subr.mxu0 0.0
    %1005 = vmatpush1.msra.mxu0 0.0
    %1006 = vmatprep.subr.mxu0 0.0
    %1007 = vmatpush1.msra.mxu0 0.0
    %1008 = vmatprep.subr.mxu0 0.0
    %1009 = vmatpush1.msra.mxu0 0.0
    %1010 = vmatprep.subr.mxu0 %v745
    %1011 = vmatpush1.msra.mxu0 %v742
    %1012 = vmatprep.subr.mxu0 %v734
    %1013 = vmatpush1.msra.mxu0 %v733
    %1014 = vmatprep.subr.mxu0 %v732
    %1015 = vmatpush1.msra.mxu0 %v731
    %1016 = vmatprep.subr.mxu0 %v730
    %1017 = vmatpush1.msra.mxu0 %v729
    %1018 = vmatprep.subr.mxu0 %v728
    %1019 = vmatpush1.msra.mxu0 %v727
    %1020 = vmatprep.subr.mxu0 %v726
    %1021 = vmatpush1.msra.mxu0 %v725
    %1022 = vmatprep.subr.mxu0 %v724
    %1023 = vmatpush1.msra.mxu0 %v723
    %1024 = vmatprep.subr.mxu0 0.0
    %1025 = vmatpush2.msra.mxu0 0.0
    %1026 = vmatprep.subr.mxu0 0.0
    %1027 = vmatpush2.msra.mxu0 0.0
    %1028 = vmatprep.subr.mxu0 0.0
    %1029 = vmatpush2.msra.mxu0 0.0
    %1030 = vmatprep.subr.mxu0 0.0
    %1031 = vmatpush2.msra.mxu0 0.0
    %1032 = vmatprep.subr.mxu0 0.0
    %1033 = vmatpush2.msra.mxu0 0.0
    %1034 = vmatprep.subr.mxu0 0.0
    %1035 = vmatpush2.msra.mxu0 0.0
    %1036 = vmatprep.subr.mxu0 0.0
    %1037 = vmatpush2.msra.mxu0 0.0
    %1038 = vmatprep.subr.mxu0 0.0
    %1039 = vmatpush2.msra.mxu0 0.0
    %1040 = vmatprep.subr.mxu0 0.0
    %1041 = vmatpush2.msra.mxu0 0.0
    %1042 = vmatprep.subr.mxu0 0.0
    %1043 = vmatpush2.msra.mxu0 0.0
    %1044 = vmatprep.subr.mxu0 0.0
    %1045 = vmatpush2.msra.mxu0 0.0
    %1046 = vmatprep.subr.mxu0 0.0
    %1047 = vmatpush2.msra.mxu0 0.0
    %1048 = vmatprep.subr.mxu0 0.0
    %1049 = vmatpush2.msra.mxu0 0.0
    %1050 = vmatprep.subr.mxu0 0.0
    %1051 = vmatpush2.msra.mxu0 0.0
    %1052 = vmatprep.subr.mxu0 0.0
    %1053 = vmatpush2.msra.mxu0 0.0
    %1054 = vmatprep.subr.mxu0 0.0
    %1055 = vmatpush2.msra.mxu0 0.0
    %1056 = vmatprep.mubr.f32.mxu0 0.0
    %1057 = vmatmul.mubr.f32.gmra.mxu0 %v990
    %v1058 = vpop.f32.mrf.mxu0
    %v1059 = vadd.f32 0.0, %v1058
    %v1060 = vpop.f32.mrf.mxu0
    %v1061 = vadd.f32 0.0, %v1060
    %1062 = vdwg.mxu0
    %v1065 = vrot.slane %v1059, 4
    %v1066 = vrot.slane %v1061, 4
    %v1069 = vadd.f32 %v701, %v1065
    %v1070 = vadd.f32 %v703, %v1066
    %v1071 = vxor.u32 %v1069, 2147483648
    %v1072 = vmul.f32 %v1071, 1.442695
    %v1073 = vpow.pop %v1072
    %v1074 = vadd.f32 %v1073, 1.0
    %v1075 = vrcp.pop %v1074
    %v1076 = vmul.f32 1.0, %v1075
    %v1077 = vtanh.pop %v1069
    %v1078 = vtanh.pop %v1070
    %v1079 = vxor.u32 %v1070, 2147483648
    %v1080 = vmul.f32 %v1079, 1.442695
    %v1081 = vpow.pop %v1080
    %v1082 = vadd.f32 %v1081, 1.0
    %v1083 = vrcp.pop %v1082
    %v1084 = vmul.f32 1.0, %v1083
    %v1086 = vrot.slane %v974, 6
    %v1088 = vmul.f32 %v1076, %v1086
    %1091 = vrot.lane.b32.xlu0 %v1077, 28
    %v1092 = vpop.permute.xlu0 %1091
    %1093 = vrot.lane.b32.xlu0 %v1078, 28
    %v1094 = vpop.permute.xlu0 %1093
    %v1095 = vsel %vm841, %v1092, %v1094
    %v1097 = vmul.f32 %v1076, %v1095
    %1099 = vrot.lane.b32.xlu0 %v1097, 50
    %v1100 = vpop.permute.xlu0 %1099
    %v1102 = vadd.f32 %v1088, %v1100
    %v1103 = vtanh.pop %v1102
    %1105 = vrot.lane.b32.xlu0 %v1103, 100
    %v1106 = vpop.permute.xlu0 %1105
    %v1108 = vmul.f32 %v1084, %v1106
    %1110 = vrot.lane.b32.xlu0 %v1108, 106
    %v1111 = vpop.permute.xlu0 %1110
    %vm1113 = vcmask 406532
    %1114 = vst.msk [vmem:[#allocation5] sm:$0x30] %vm1113, %v1111
    %v1115 = vrot.slane %v1108, 4
    %1116 = vrot.lane.b32.xlu0 %v1115, 106
    %v1117 = vpop.permute.xlu0 %1116
    %v1118 = vsel %vm737, %v1117, 0
    %1120 = vmatprep.subr.mxu0 0.0
    %1121 = vmatpush1.msra.mxu0 0.0
    %1122 = vmatprep.subr.mxu0 0.0
    %1123 = vmatpush1.msra.mxu0 0.0
    %1124 = vmatprep.subr.mxu0 0.0
    %1125 = vmatpush1.msra.mxu0 0.0
    %1126 = vmatprep.subr.mxu0 0.0
    %1127 = vmatpush1.msra.mxu0 0.0
    %1128 = vmatprep.subr.mxu0 0.0
    %1129 = vmatpush1.msra.mxu0 0.0
    %1130 = vmatprep.subr.mxu0 0.0
    %1131 = vmatpush1.msra.mxu0 0.0
    %1132 = vmatprep.subr.mxu0 0.0
    %1133 = vmatpush1.msra.mxu0 0.0
    %1134 = vmatprep.subr.mxu0 0.0
    %1135 = vmatpush1.msra.mxu0 0.0
    %1136 = vmatprep.subr.mxu0 0.0
    %1137 = vmatpush1.msra.mxu0 0.0
    %1138 = vmatprep.subr.mxu0 %v745
    %1139 = vmatpush1.msra.mxu0 %v742
    %1140 = vmatprep.subr.mxu0 %v734
    %1141 = vmatpush1.msra.mxu0 %v733
    %1142 = vmatprep.subr.mxu0 %v732
    %1143 = vmatpush1.msra.mxu0 %v731
    %1144 = vmatprep.subr.mxu0 %v730
    %1145 = vmatpush1.msra.mxu0 %v729
    %1146 = vmatprep.subr.mxu0 %v728
    %1147 = vmatpush1.msra.mxu0 %v727
    %1148 = vmatprep.subr.mxu0 %v726
    %1149 = vmatpush1.msra.mxu0 %v725
    %1150 = vmatprep.subr.mxu0 %v724
    %1151 = vmatpush1.msra.mxu0 %v723
    %1152 = vmatprep.subr.mxu0 0.0
    %1153 = vmatpush2.msra.mxu0 0.0
    %1154 = vmatprep.subr.mxu0 0.0
    %1155 = vmatpush2.msra.mxu0 0.0
    %1156 = vmatprep.subr.mxu0 0.0
    %1157 = vmatpush2.msra.mxu0 0.0
    %1158 = vmatprep.subr.mxu0 0.0
    %1159 = vmatpush2.msra.mxu0 0.0
    %1160 = vmatprep.subr.mxu0 0.0
    %1161 = vmatpush2.msra.mxu0 0.0
    %1162 = vmatprep.subr.mxu0 0.0
    %1163 = vmatpush2.msra.mxu0 0.0
    %1164 = vmatprep.subr.mxu0 0.0
    %1165 = vmatpush2.msra.mxu0 0.0
    %1166 = vmatprep.subr.mxu0 0.0
    %1167 = vmatpush2.msra.mxu0 0.0
    %1168 = vmatprep.subr.mxu0 0.0
    %1169 = vmatpush2.msra.mxu0 0.0
    %1170 = vmatprep.subr.mxu0 0.0
    %1171 = vmatpush2.msra.mxu0 0.0
    %1172 = vmatprep.subr.mxu0 0.0
    %1173 = vmatpush2.msra.mxu0 0.0
    %1174 = vmatprep.subr.mxu0 0.0
    %1175 = vmatpush2.msra.mxu0 0.0
    %1176 = vmatprep.subr.mxu0 0.0
    %1177 = vmatpush2.msra.mxu0 0.0
    %1178 = vmatprep.subr.mxu0 0.0
    %1179 = vmatpush2.msra.mxu0 0.0
    %1180 = vmatprep.subr.mxu0 0.0
    %1181 = vmatpush2.msra.mxu0 0.0
    %1182 = vmatprep.subr.mxu0 0.0
    %1183 = vmatpush2.msra.mxu0 0.0
    %1184 = vmatprep.mubr.f32.mxu0 0.0
    %1185 = vmatmul.mubr.f32.gmra.mxu0 %v1118
    %v1186 = vpop.f32.mrf.mxu0
    %v1187 = vadd.f32 0.0, %v1186
    %v1188 = vpop.f32.mrf.mxu0
    %v1189 = vadd.f32 0.0, %v1188
    %1190 = vdwg.mxu0
    %v1193 = vrot.slane %v1187, 2
    %v1194 = vrot.slane %v1189, 2
    %v1197 = vadd.f32 %v701, %v1193
    %v1198 = vadd.f32 %v703, %v1194
    %v1199 = vxor.u32 %v1197, 2147483648
    %v1200 = vmul.f32 %v1199, 1.442695
    %v1201 = vpow.pop %v1200
    %v1202 = vadd.f32 %v1201, 1.0
    %v1203 = vrcp.pop %v1202
    %v1204 = vmul.f32 1.0, %v1203
    %v1205 = vtanh.pop %v1197
    %v1206 = vtanh.pop %v1198
    %v1207 = vxor.u32 %v1198, 2147483648
    %v1208 = vmul.f32 %v1207, 1.442695
    %v1209 = vpow.pop %v1208
    %v1210 = vadd.f32 %v1209, 1.0
    %v1211 = vrcp.pop %v1210
    %v1212 = vmul.f32 1.0, %v1211
    %v1214 = vrot.slane %v1102, 6
    %v1216 = vmul.f32 %v1204, %v1214
    %1219 = vrot.lane.b32.xlu0 %v1205, 28
    %v1220 = vpop.permute.xlu0 %1219
    %1221 = vrot.lane.b32.xlu0 %v1206, 28
    %v1222 = vpop.permute.xlu0 %1221
    %v1223 = vsel %vm841, %v1220, %v1222
    %v1225 = vmul.f32 %v1204, %v1223
    %1227 = vrot.lane.b32.xlu0 %v1225, 50
    %v1228 = vpop.permute.xlu0 %1227
    %v1230 = vadd.f32 %v1216, %v1228
    %v1231 = vtanh.pop %v1230
    %1233 = vrot.lane.b32.xlu0 %v1231, 100
    %v1234 = vpop.permute.xlu0 %1233
    %v1236 = vmul.f32 %v1212, %v1234
    %1238 = vrot.lane.b32.xlu0 %v1236, 106
    %v1239 = vpop.permute.xlu0 %1238
    %vm1241 = vcmask 408582
    %1242 = vst.msk [vmem:[#allocation5] sm:$0xc0] %vm1241, %v1239
    %v1243 = vrot.slane %v1236, 6
    %1244 = vrot.lane.b32.xlu0 %v1243, 106
    %v1245 = vpop.permute.xlu0 %1244
    %v1246 = vsel %vm737, %v1245, 0
    %1248 = vmatprep.subr.mxu0 0.0
    %1249 = vmatpush1.msra.mxu0 0.0
    %1250 = vmatprep.subr.mxu0 0.0
    %1251 = vmatpush1.msra.mxu0 0.0
    %1252 = vmatprep.subr.mxu0 0.0
    %1253 = vmatpush1.msra.mxu0 0.0
    %1254 = vmatprep.subr.mxu0 0.0
    %1255 = vmatpush1.msra.mxu0 0.0
    %1256 = vmatprep.subr.mxu0 0.0
    %1257 = vmatpush1.msra.mxu0 0.0
    %1258 = vmatprep.subr.mxu0 0.0
    %1259 = vmatpush1.msra.mxu0 0.0
    %1260 = vmatprep.subr.mxu0 0.0
    %1261 = vmatpush1.msra.mxu0 0.0
    %1262 = vmatprep.subr.mxu0 0.0
    %1263 = vmatpush1.msra.mxu0 0.0
    %1264 = vmatprep.subr.mxu0 0.0
    %1265 = vmatpush1.msra.mxu0 0.0
    %1266 = vmatprep.subr.mxu0 %v745
    %1267 = vmatpush1.msra.mxu0 %v742
    %1268 = vmatprep.subr.mxu0 %v734
    %1269 = vmatpush1.msra.mxu0 %v733
    %1270 = vmatprep.subr.mxu0 %v732
    %1271 = vmatpush1.msra.mxu0 %v731
    %1272 = vmatprep.subr.mxu0 %v730
    %1273 = vmatpush1.msra.mxu0 %v729
    %1274 = vmatprep.subr.mxu0 %v728
    %1275 = vmatpush1.msra.mxu0 %v727
    %1276 = vmatprep.subr.mxu0 %v726
    %1277 = vmatpush1.msra.mxu0 %v725
    %1278 = vmatprep.subr.mxu0 %v724
    %1279 = vmatpush1.msra.mxu0 %v723
    %1280 = vmatprep.subr.mxu0 0.0
    %1281 = vmatpush2.msra.mxu0 0.0
    %1282 = vmatprep.subr.mxu0 0.0
    %1283 = vmatpush2.msra.mxu0 0.0
    %1284 = vmatprep.subr.mxu0 0.0
    %1285 = vmatpush2.msra.mxu0 0.0
    %1286 = vmatprep.subr.mxu0 0.0
    %1287 = vmatpush2.msra.mxu0 0.0
    %1288 = vmatprep.subr.mxu0 0.0
    %1289 = vmatpush2.msra.mxu0 0.0
    %1290 = vmatprep.subr.mxu0 0.0
    %1291 = vmatpush2.msra.mxu0 0.0
    %1292 = vmatprep.subr.mxu0 0.0
    %1293 = vmatpush2.msra.mxu0 0.0
    %1294 = vmatprep.subr.mxu0 0.0
    %1295 = vmatpush2.msra.mxu0 0.0
    %1296 = vmatprep.subr.mxu0 0.0
    %1297 = vmatpush2.msra.mxu0 0.0
    %1298 = vmatprep.subr.mxu0 0.0
    %1299 = vmatpush2.msra.mxu0 0.0
    %1300 = vmatprep.subr.mxu0 0.0
    %1301 = vmatpush2.msra.mxu0 0.0
    %1302 = vmatprep.subr.mxu0 0.0
    %1303 = vmatpush2.msra.mxu0 0.0
    %1304 = vmatprep.subr.mxu0 0.0
    %1305 = vmatpush2.msra.mxu0 0.0
    %1306 = vmatprep.subr.mxu0 0.0
    %1307 = vmatpush2.msra.mxu0 0.0
    %1308 = vmatprep.subr.mxu0 0.0
    %1309 = vmatpush2.msra.mxu0 0.0
    %1310 = vmatprep.subr.mxu0 0.0
    %1311 = vmatpush2.msra.mxu0 0.0
    %1312 = vmatprep.mubr.f32.mxu0 0.0
    %1313 = vmatmul.mubr.f32.gmra.mxu0 %v1246
    %v1314 = vpop.f32.mrf.mxu0
    %v1315 = vadd.f32 0.0, %v1314
    %v1316 = vpop.f32.mrf.mxu0
    %v1317 = vadd.f32 0.0, %v1316
    %1318 = vdwg.mxu0
    %v1319 = vadd.f32 %v707, %v1315
    %v1320 = vadd.f32 %v709, %v1317
    %v1321 = vxor.u32 %v1319, 2147483648
    %v1322 = vmul.f32 %v1321, 1.442695
    %v1323 = vpow.pop %v1322
    %v1324 = vadd.f32 %v1323, 1.0
    %v1325 = vrcp.pop %v1324
    %v1326 = vmul.f32 1.0, %v1325
    %v1327 = vtanh.pop %v1319
    %v1328 = vtanh.pop %v1320
    %v1329 = vxor.u32 %v1320, 2147483648
    %v1330 = vmul.f32 %v1329, 1.442695
    %v1331 = vpow.pop %v1330
    %v1332 = vadd.f32 %v1331, 1.0
    %v1333 = vrcp.pop %v1332
    %v1334 = vmul.f32 1.0, %v1333
    %v1336 = vrot.slane %v1230, 6
    %v1338 = vmul.f32 %v1326, %v1336
    %1341 = vrot.lane.b32.xlu0 %v1327, 28
    %v1342 = vpop.permute.xlu0 %1341
    %1343 = vrot.lane.b32.xlu0 %v1328, 28
    %v1344 = vpop.permute.xlu0 %1343
    %v1345 = vsel %vm841, %v1342, %v1344
    %v1347 = vmul.f32 %v1326, %v1345
    %1349 = vrot.lane.b32.xlu0 %v1347, 50
    %v1350 = vpop.permute.xlu0 %1349
    %v1352 = vadd.f32 %v1338, %v1350
    %v1353 = vtanh.pop %v1352
    %1355 = vrot.lane.b32.xlu0 %v1353, 100
    %v1356 = vpop.permute.xlu0 %1355
    %v1358 = vmul.f32 %v1334, %v1356
    %1360 = vrot.lane.b32.xlu0 %v1358, 106
    %v1361 = vpop.permute.xlu0 %1360
    %1363 = vst.msk [vmem:[#allocation5 + $0x8] sm:$0x3] %vm860, %v1361
    %v1364 = vsel %vm737, %v1361, 0
    %1366 = vmatprep.subr.mxu0 0.0
    %1367 = vmatpush1.msra.mxu0 0.0
    %1368 = vmatprep.subr.mxu0 0.0
    %1369 = vmatpush1.msra.mxu0 0.0
    %1370 = vmatprep.subr.mxu0 0.0
    %1371 = vmatpush1.msra.mxu0 0.0
    %1372 = vmatprep.subr.mxu0 0.0
    %1373 = vmatpush1.msra.mxu0 0.0
    %1374 = vmatprep.subr.mxu0 0.0
    %1375 = vmatpush1.msra.mxu0 0.0
    %1376 = vmatprep.subr.mxu0 0.0
    %1377 = vmatpush1.msra.mxu0 0.0
    %1378 = vmatprep.subr.mxu0 0.0
    %1379 = vmatpush1.msra.mxu0 0.0
    %1380 = vmatprep.subr.mxu0 0.0
    %1381 = vmatpush1.msra.mxu0 0.0
    %1382 = vmatprep.subr.mxu0 0.0
    %1383 = vmatpush1.msra.mxu0 0.0
    %1384 = vmatprep.subr.mxu0 %v745
    %1385 = vmatpush1.msra.mxu0 %v742
    %1386 = vmatprep.subr.mxu0 %v734
    %1387 = vmatpush1.msra.mxu0 %v733
    %1388 = vmatprep.subr.mxu0 %v732
    %1389 = vmatpush1.msra.mxu0 %v731
    %1390 = vmatprep.subr.mxu0 %v730
    %1391 = vmatpush1.msra.mxu0 %v729
    %1392 = vmatprep.subr.mxu0 %v728
    %1393 = vmatpush1.msra.mxu0 %v727
    %1394 = vmatprep.subr.mxu0 %v726
    %1395 = vmatpush1.msra.mxu0 %v725
    %1396 = vmatprep.subr.mxu0 %v724
    %1397 = vmatpush1.msra.mxu0 %v723
    %1398 = vmatprep.subr.mxu0 0.0
    %1399 = vmatpush2.msra.mxu0 0.0
    %1400 = vmatprep.subr.mxu0 0.0
    %1401 = vmatpush2.msra.mxu0 0.0
    %1402 = vmatprep.subr.mxu0 0.0
    %1403 = vmatpush2.msra.mxu0 0.0
    %1404 = vmatprep.subr.mxu0 0.0
    %1405 = vmatpush2.msra.mxu0 0.0
    %1406 = vmatprep.subr.mxu0 0.0
    %1407 = vmatpush2.msra.mxu0 0.0
    %1408 = vmatprep.subr.mxu0 0.0
    %1409 = vmatpush2.msra.mxu0 0.0
    %1410 = vmatprep.subr.mxu0 0.0
    %1411 = vmatpush2.msra.mxu0 0.0
    %1412 = vmatprep.subr.mxu0 0.0
    %1413 = vmatpush2.msra.mxu0 0.0
    %1414 = vmatprep.subr.mxu0 0.0
    %1415 = vmatpush2.msra.mxu0 0.0
    %1416 = vmatprep.subr.mxu0 0.0
    %1417 = vmatpush2.msra.mxu0 0.0
    %1418 = vmatprep.subr.mxu0 0.0
    %1419 = vmatpush2.msra.mxu0 0.0
    %1420 = vmatprep.subr.mxu0 0.0
    %1421 = vmatpush2.msra.mxu0 0.0
    %1422 = vmatprep.subr.mxu0 0.0
    %1423 = vmatpush2.msra.mxu0 0.0
    %1424 = vmatprep.subr.mxu0 0.0
    %1425 = vmatpush2.msra.mxu0 0.0
    %1426 = vmatprep.subr.mxu0 0.0
    %1427 = vmatpush2.msra.mxu0 0.0
    %1428 = vmatprep.subr.mxu0 0.0
    %1429 = vmatpush2.msra.mxu0 0.0
    %1430 = vmatprep.mubr.f32.mxu0 0.0
    %1431 = vmatmul.mubr.f32.gmra.mxu0 %v1364
    %v1432 = vpop.f32.mrf.mxu0
    %v1433 = vadd.f32 0.0, %v1432
    %v1434 = vpop.f32.mrf.mxu0
    %v1435 = vadd.f32 0.0, %v1434
    %1436 = vdwg.mxu0
    %v1439 = vrot.slane %v1433, 6
    %v1440 = vrot.slane %v1435, 6
    %v1443 = vadd.f32 %v707, %v1439
    %v1444 = vadd.f32 %v709, %v1440
    %v1445 = vxor.u32 %v1443, 2147483648
    %v1446 = vmul.f32 %v1445, 1.442695
    %v1447 = vpow.pop %v1446
    %v1448 = vadd.f32 %v1447, 1.0
    %v1449 = vrcp.pop %v1448
    %v1450 = vmul.f32 1.0, %v1449
    %v1451 = vtanh.pop %v1443
    %v1452 = vtanh.pop %v1444
    %v1453 = vxor.u32 %v1444, 2147483648
    %v1454 = vmul.f32 %v1453, 1.442695
    %v1455 = vpow.pop %v1454
    %v1456 = vadd.f32 %v1455, 1.0
    %v1457 = vrcp.pop %v1456
    %v1458 = vmul.f32 1.0, %v1457
    %v1460 = vrot.slane %v1352, 6
    %v1462 = vmul.f32 %v1450, %v1460
    %1465 = vrot.lane.b32.xlu0 %v1451, 28
    %v1466 = vpop.permute.xlu0 %1465
    %1467 = vrot.lane.b32.xlu0 %v1452, 28
    %v1468 = vpop.permute.xlu0 %1467
    %v1469 = vsel %vm841, %v1466, %v1468
    %v1471 = vmul.f32 %v1450, %v1469
    %1473 = vrot.lane.b32.xlu0 %v1471, 50
    %v1474 = vpop.permute.xlu0 %1473
    %v1476 = vadd.f32 %v1462, %v1474
    %v1477 = vtanh.pop %v1476
    %1479 = vrot.lane.b32.xlu0 %v1477, 100
    %v1480 = vpop.permute.xlu0 %1479
    %v1482 = vmul.f32 %v1458, %v1480
    %1484 = vrot.lane.b32.xlu0 %v1482, 106
    %v1485 = vpop.permute.xlu0 %1484
    %1487 = vst.msk [vmem:[#allocation5 + $0x8] sm:$0xc] %vm985, %v1485
    %v1488 = vrot.slane %v1482, 2
    %1489 = vrot.lane.b32.xlu0 %v1488, 106
    %v1490 = vpop.permute.xlu0 %1489
    %v1491 = vsel %vm737, %v1490, 0
    %1493 = vmatprep.subr.mxu0 0.0
    %1494 = vmatpush1.msra.mxu0 0.0
    %1495 = vmatprep.subr.mxu0 0.0
    %1496 = vmatpush1.msra.mxu0 0.0
    %1497 = vmatprep.subr.mxu0 0.0
    %1498 = vmatpush1.msra.mxu0 0.0
    %1499 = vmatprep.subr.mxu0 0.0
    %1500 = vmatpush1.msra.mxu0 0.0
    %1501 = vmatprep.subr.mxu0 0.0
    %1502 = vmatpush1.msra.mxu0 0.0
    %1503 = vmatprep.subr.mxu0 0.0
    %1504 = vmatpush1.msra.mxu0 0.0
    %1505 = vmatprep.subr.mxu0 0.0
    %1506 = vmatpush1.msra.mxu0 0.0
    %1507 = vmatprep.subr.mxu0 0.0
    %1508 = vmatpush1.msra.mxu0 0.0
    %1509 = vmatprep.subr.mxu0 0.0
    %1510 = vmatpush1.msra.mxu0 0.0
    %1511 = vmatprep.subr.mxu0 %v745
    %1512 = vmatpush1.msra.mxu0 %v742
    %1513 = vmatprep.subr.mxu0 %v734
    %1514 = vmatpush1.msra.mxu0 %v733
    %1515 = vmatprep.subr.mxu0 %v732
    %1516 = vmatpush1.msra.mxu0 %v731
    %1517 = vmatprep.subr.mxu0 %v730
    %1518 = vmatpush1.msra.mxu0 %v729
    %1519 = vmatprep.subr.mxu0 %v728
    %1520 = vmatpush1.msra.mxu0 %v727
    %1521 = vmatprep.subr.mxu0 %v726
    %1522 = vmatpush1.msra.mxu0 %v725
    %1523 = vmatprep.subr.mxu0 %v724
    %1524 = vmatpush1.msra.mxu0 %v723
    %1525 = vmatprep.subr.mxu0 0.0
    %1526 = vmatpush2.msra.mxu0 0.0
    %1527 = vmatprep.subr.mxu0 0.0
    %1528 = vmatpush2.msra.mxu0 0.0
    %1529 = vmatprep.subr.mxu0 0.0
    %1530 = vmatpush2.msra.mxu0 0.0
    %1531 = vmatprep.subr.mxu0 0.0
    %1532 = vmatpush2.msra.mxu0 0.0
    %1533 = vmatprep.subr.mxu0 0.0
    %1534 = vmatpush2.msra.mxu0 0.0
    %1535 = vmatprep.subr.mxu0 0.0
    %1536 = vmatpush2.msra.mxu0 0.0
    %1537 = vmatprep.subr.mxu0 0.0
    %1538 = vmatpush2.msra.mxu0 0.0
    %1539 = vmatprep.subr.mxu0 0.0
    %1540 = vmatpush2.msra.mxu0 0.0
    %1541 = vmatprep.subr.mxu0 0.0
    %1542 = vmatpush2.msra.mxu0 0.0
    %1543 = vmatprep.subr.mxu0 0.0
    %1544 = vmatpush2.msra.mxu0 0.0
    %1545 = vmatprep.subr.mxu0 0.0
    %1546 = vmatpush2.msra.mxu0 0.0
    %1547 = vmatprep.subr.mxu0 0.0
    %1548 = vmatpush2.msra.mxu0 0.0
    %1549 = vmatprep.subr.mxu0 0.0
    %1550 = vmatpush2.msra.mxu0 0.0
    %1551 = vmatprep.subr.mxu0 0.0
    %1552 = vmatpush2.msra.mxu0 0.0
    %1553 = vmatprep.subr.mxu0 0.0
    %1554 = vmatpush2.msra.mxu0 0.0
    %1555 = vmatprep.subr.mxu0 0.0
    %1556 = vmatpush2.msra.mxu0 0.0
    %1557 = vmatprep.mubr.f32.mxu0 0.0
    %1558 = vmatmul.mubr.f32.gmra.mxu0 %v1491
    %v1559 = vpop.f32.mrf.mxu0
    %v1560 = vadd.f32 0.0, %v1559
    %v1561 = vpop.f32.mrf.mxu0
    %v1562 = vadd.f32 0.0, %v1561
    %1563 = vdwg.mxu0
    %v1566 = vrot.slane %v1560, 4
    %v1567 = vrot.slane %v1562, 4
    %v1570 = vadd.f32 %v707, %v1566
    %v1571 = vadd.f32 %v709, %v1567
    %v1572 = vxor.u32 %v1570, 2147483648
    %v1573 = vmul.f32 %v1572, 1.442695
    %v1574 = vpow.pop %v1573
    %v1575 = vadd.f32 %v1574, 1.0
    %v1576 = vrcp.pop %v1575
    %v1577 = vmul.f32 1.0, %v1576
    %v1578 = vtanh.pop %v1570
    %v1579 = vtanh.pop %v1571
    %v1580 = vxor.u32 %v1571, 2147483648
    %v1581 = vmul.f32 %v1580, 1.442695
    %v1582 = vpow.pop %v1581
    %v1583 = vadd.f32 %v1582, 1.0
    %v1584 = vrcp.pop %v1583
    %v1585 = vmul.f32 1.0, %v1584
    %v1587 = vrot.slane %v1476, 6
    %v1589 = vmul.f32 %v1577, %v1587
    %1592 = vrot.lane.b32.xlu0 %v1578, 28
    %v1593 = vpop.permute.xlu0 %1592
    %1594 = vrot.lane.b32.xlu0 %v1579, 28
    %v1595 = vpop.permute.xlu0 %1594
    %v1596 = vsel %vm841, %v1593, %v1595
    %v1598 = vmul.f32 %v1577, %v1596
    %1600 = vrot.lane.b32.xlu0 %v1598, 50
    %v1601 = vpop.permute.xlu0 %1600
    %v1603 = vadd.f32 %v1589, %v1601
    %v1604 = vtanh.pop %v1603
    %1606 = vrot.lane.b32.xlu0 %v1604, 100
    %v1607 = vpop.permute.xlu0 %1606
    %v1609 = vmul.f32 %v1585, %v1607
    %1611 = vrot.lane.b32.xlu0 %v1609, 106
    %v1612 = vpop.permute.xlu0 %1611
    %1614 = vst.msk [vmem:[#allocation5 + $0x8] sm:$0x30] %vm1113, %v1612
    %v1615 = vrot.slane %v1609, 4
    %1616 = vrot.lane.b32.xlu0 %v1615, 106
    %v1617 = vpop.permute.xlu0 %1616
    %v1618 = vsel %vm737, %v1617, 0
    %1620 = vmatprep.subr.mxu0 0.0
    %1621 = vmatpush1.msra.mxu0 0.0
    %1622 = vmatprep.subr.mxu0 0.0
    %1623 = vmatpush1.msra.mxu0 0.0
    %1624 = vmatprep.subr.mxu0 0.0
    %1625 = vmatpush1.msra.mxu0 0.0
    %1626 = vmatprep.subr.mxu0 0.0
    %1627 = vmatpush1.msra.mxu0 0.0
    %1628 = vmatprep.subr.mxu0 0.0
    %1629 = vmatpush1.msra.mxu0 0.0
    %1630 = vmatprep.subr.mxu0 0.0
    %1631 = vmatpush1.msra.mxu0 0.0
    %1632 = vmatprep.subr.mxu0 0.0
    %1633 = vmatpush1.msra.mxu0 0.0
    %1634 = vmatprep.subr.mxu0 0.0
    %1635 = vmatpush1.msra.mxu0 0.0
    %1636 = vmatprep.subr.mxu0 0.0
    %1637 = vmatpush1.msra.mxu0 0.0
    %1638 = vmatprep.subr.mxu0 %v745
    %1639 = vmatpush1.msra.mxu0 %v742
    %1640 = vmatprep.subr.mxu0 %v734
    %1641 = vmatpush1.msra.mxu0 %v733
    %1642 = vmatprep.subr.mxu0 %v732
    %1643 = vmatpush1.msra.mxu0 %v731
    %1644 = vmatprep.subr.mxu0 %v730
    %1645 = vmatpush1.msra.mxu0 %v729
    %1646 = vmatprep.subr.mxu0 %v728
    %1647 = vmatpush1.msra.mxu0 %v727
    %1648 = vmatprep.subr.mxu0 %v726
    %1649 = vmatpush1.msra.mxu0 %v725
    %1650 = vmatprep.subr.mxu0 %v724
    %1651 = vmatpush1.msra.mxu0 %v723
    %1652 = vmatprep.subr.mxu0 0.0
    %1653 = vmatpush2.msra.mxu0 0.0
    %1654 = vmatprep.subr.mxu0 0.0
    %1655 = vmatpush2.msra.mxu0 0.0
    %1656 = vmatprep.subr.mxu0 0.0
    %1657 = vmatpush2.msra.mxu0 0.0
    %1658 = vmatprep.subr.mxu0 0.0
    %1659 = vmatpush2.msra.mxu0 0.0
    %1660 = vmatprep.subr.mxu0 0.0
    %1661 = vmatpush2.msra.mxu0 0.0
    %1662 = vmatprep.subr.mxu0 0.0
    %1663 = vmatpush2.msra.mxu0 0.0
    %1664 = vmatprep.subr.mxu0 0.0
    %1665 = vmatpush2.msra.mxu0 0.0
    %1666 = vmatprep.subr.mxu0 0.0
    %1667 = vmatpush2.msra.mxu0 0.0
    %1668 = vmatprep.subr.mxu0 0.0
    %1669 = vmatpush2.msra.mxu0 0.0
    %1670 = vmatprep.subr.mxu0 0.0
    %1671 = vmatpush2.msra.mxu0 0.0
    %1672 = vmatprep.subr.mxu0 0.0
    %1673 = vmatpush2.msra.mxu0 0.0
    %1674 = vmatprep.subr.mxu0 0.0
    %1675 = vmatpush2.msra.mxu0 0.0
    %1676 = vmatprep.subr.mxu0 0.0
    %1677 = vmatpush2.msra.mxu0 0.0
    %1678 = vmatprep.subr.mxu0 0.0
    %1679 = vmatpush2.msra.mxu0 0.0
    %1680 = vmatprep.subr.mxu0 0.0
    %1681 = vmatpush2.msra.mxu0 0.0
    %1682 = vmatprep.subr.mxu0 0.0
    %1683 = vmatpush2.msra.mxu0 0.0
    %1684 = vmatprep.mubr.f32.mxu0 0.0
    %1685 = vmatmul.mubr.f32.gmra.mxu0 %v1618
    %v1686 = vpop.f32.mrf.mxu0
    %v1687 = vadd.f32 0.0, %v1686
    %v1688 = vpop.f32.mrf.mxu0
    %v1689 = vadd.f32 0.0, %v1688
    %1690 = vdwg.mxu0
    %v1693 = vrot.slane %v1687, 2
    %v1694 = vrot.slane %v1689, 2
    %v1697 = vadd.f32 %v707, %v1693
    %v1698 = vadd.f32 %v709, %v1694
    %v1699 = vxor.u32 %v1697, 2147483648
    %v1700 = vmul.f32 %v1699, 1.442695
    %v1701 = vpow.pop %v1700
    %v1702 = vadd.f32 %v1701, 1.0
    %v1703 = vrcp.pop %v1702
    %v1704 = vmul.f32 1.0, %v1703
    %v1705 = vtanh.pop %v1697
    %v1706 = vtanh.pop %v1698
    %v1707 = vxor.u32 %v1698, 2147483648
    %v1708 = vmul.f32 %v1707, 1.442695
    %v1709 = vpow.pop %v1708
    %v1710 = vadd.f32 %v1709, 1.0
    %v1711 = vrcp.pop %v1710
    %v1712 = vmul.f32 1.0, %v1711
    %v1714 = vrot.slane %v1603, 6
    %v1716 = vmul.f32 %v1704, %v1714
    %1719 = vrot.lane.b32.xlu0 %v1705, 28
    %v1720 = vpop.permute.xlu0 %1719
    %1721 = vrot.lane.b32.xlu0 %v1706, 28
    %v1722 = vpop.permute.xlu0 %1721
    %v1723 = vsel %vm841, %v1720, %v1722
    %v1725 = vmul.f32 %v1704, %v1723
    %1727 = vrot.lane.b32.xlu0 %v1725, 50
    %v1728 = vpop.permute.xlu0 %1727
    %v1730 = vadd.f32 %v1716, %v1728
    %v1731 = vtanh.pop %v1730
    %1733 = vrot.lane.b32.xlu0 %v1731, 100
    %v1734 = vpop.permute.xlu0 %1733
    %v1736 = vmul.f32 %v1712, %v1734
    %1738 = vrot.lane.b32.xlu0 %v1736, 106
    %v1739 = vpop.permute.xlu0 %1738
    %1741 = vst.msk [vmem:[#allocation5 + $0x8] sm:$0xc0] %vm1241, %v1739
    %v1742 = vrot.slane %v1736, 6
    %1743 = vrot.lane.b32.xlu0 %v1742, 106
    %v1744 = vpop.permute.xlu0 %1743
    %v1745 = vsel %vm737, %v1744, 0
    %1747 = vmatprep.subr.mxu0 0.0
    %1748 = vmatpush1.msra.mxu0 0.0
    %1749 = vmatprep.subr.mxu0 0.0
    %1750 = vmatpush1.msra.mxu0 0.0
    %1751 = vmatprep.subr.mxu0 0.0
    %1752 = vmatpush1.msra.mxu0 0.0
    %1753 = vmatprep.subr.mxu0 0.0
    %1754 = vmatpush1.msra.mxu0 0.0
    %1755 = vmatprep.subr.mxu0 0.0
    %1756 = vmatpush1.msra.mxu0 0.0
    %1757 = vmatprep.subr.mxu0 0.0
    %1758 = vmatpush1.msra.mxu0 0.0
    %1759 = vmatprep.subr.mxu0 0.0
    %1760 = vmatpush1.msra.mxu0 0.0
    %1761 = vmatprep.subr.mxu0 0.0
    %1762 = vmatpush1.msra.mxu0 0.0
    %1763 = vmatprep.subr.mxu0 0.0
    %1764 = vmatpush1.msra.mxu0 0.0
    %1765 = vmatprep.subr.mxu0 %v745
    %1766 = vmatpush1.msra.mxu0 %v742
    %1767 = vmatprep.subr.mxu0 %v734
    %1768 = vmatpush1.msra.mxu0 %v733
    %1769 = vmatprep.subr.mxu0 %v732
    %1770 = vmatpush1.msra.mxu0 %v731
    %1771 = vmatprep.subr.mxu0 %v730
    %1772 = vmatpush1.msra.mxu0 %v729
    %1773 = vmatprep.subr.mxu0 %v728
    %1774 = vmatpush1.msra.mxu0 %v727
    %1775 = vmatprep.subr.mxu0 %v726
    %1776 = vmatpush1.msra.mxu0 %v725
    %1777 = vmatprep.subr.mxu0 %v724
    %1778 = vmatpush1.msra.mxu0 %v723
    %1779 = vmatprep.subr.mxu0 0.0
    %1780 = vmatpush2.msra.mxu0 0.0
    %1781 = vmatprep.subr.mxu0 0.0
    %1782 = vmatpush2.msra.mxu0 0.0
    %1783 = vmatprep.subr.mxu0 0.0
    %1784 = vmatpush2.msra.mxu0 0.0
    %1785 = vmatprep.subr.mxu0 0.0
    %1786 = vmatpush2.msra.mxu0 0.0
    %1787 = vmatprep.subr.mxu0 0.0
    %1788 = vmatpush2.msra.mxu0 0.0
    %1789 = vmatprep.subr.mxu0 0.0
    %1790 = vmatpush2.msra.mxu0 0.0
    %1791 = vmatprep.subr.mxu0 0.0
    %1792 = vmatpush2.msra.mxu0 0.0
    %1793 = vmatprep.subr.mxu0 0.0
    %1794 = vmatpush2.msra.mxu0 0.0
    %1795 = vmatprep.subr.mxu0 0.0
    %1796 = vmatpush2.msra.mxu0 0.0
    %1797 = vmatprep.subr.mxu0 0.0
    %1798 = vmatpush2.msra.mxu0 0.0
    %1799 = vmatprep.subr.mxu0 0.0
    %1800 = vmatpush2.msra.mxu0 0.0
    %1801 = vmatprep.subr.mxu0 0.0
    %1802 = vmatpush2.msra.mxu0 0.0
    %1803 = vmatprep.subr.mxu0 0.0
    %1804 = vmatpush2.msra.mxu0 0.0
    %1805 = vmatprep.subr.mxu0 0.0
    %1806 = vmatpush2.msra.mxu0 0.0
    %1807 = vmatprep.subr.mxu0 0.0
    %1808 = vmatpush2.msra.mxu0 0.0
    %1809 = vmatprep.subr.mxu0 0.0
    %1810 = vmatpush2.msra.mxu0 0.0
    %1811 = vmatprep.mubr.f32.mxu0 0.0
    %1812 = vmatmul.mubr.f32.gmra.mxu0 %v1745
    %v1813 = vpop.f32.mrf.mxu0
    %v1814 = vadd.f32 0.0, %v1813
    %v1815 = vpop.f32.mrf.mxu0
    %v1816 = vadd.f32 0.0, %v1815
    %1817 = vdwg.mxu0
    %v1818 = vadd.f32 %v713, %v1814
    %v1819 = vadd.f32 %v715, %v1816
    %v1820 = vxor.u32 %v1818, 2147483648
    %v1821 = vmul.f32 %v1820, 1.442695
    %v1822 = vpow.pop %v1821
    %v1823 = vadd.f32 %v1822, 1.0
    %v1824 = vrcp.pop %v1823
    %v1825 = vmul.f32 1.0, %v1824
    %v1826 = vtanh.pop %v1818
    %v1827 = vtanh.pop %v1819
    %v1828 = vxor.u32 %v1819, 2147483648
    %v1829 = vmul.f32 %v1828, 1.442695
    %v1830 = vpow.pop %v1829
    %v1831 = vadd.f32 %v1830, 1.0
    %v1832 = vrcp.pop %v1831
    %v1833 = vmul.f32 1.0, %v1832
    %v1835 = vrot.slane %v1730, 6
    %v1837 = vmul.f32 %v1825, %v1835
    %1840 = vrot.lane.b32.xlu0 %v1826, 28
    %v1841 = vpop.permute.xlu0 %1840
    %1842 = vrot.lane.b32.xlu0 %v1827, 28
    %v1843 = vpop.permute.xlu0 %1842
    %v1844 = vsel %vm841, %v1841, %v1843
    %v1846 = vmul.f32 %v1825, %v1844
    %1848 = vrot.lane.b32.xlu0 %v1846, 50
    %v1849 = vpop.permute.xlu0 %1848
    %v1851 = vadd.f32 %v1837, %v1849
    %v1852 = vtanh.pop %v1851
    %1854 = vrot.lane.b32.xlu0 %v1852, 100
    %v1855 = vpop.permute.xlu0 %1854
    %v1857 = vmul.f32 %v1833, %v1855
    %1859 = vrot.lane.b32.xlu0 %v1857, 106
    %v1860 = vpop.permute.xlu0 %1859
    %1862 = vst.msk [vmem:[#allocation5 + $0x10] sm:$0x3] %vm860, %v1860
    %v1863 = vsel %vm737, %v1860, 0
    %1865 = vmatprep.subr.mxu0 0.0
    %1866 = vmatpush1.msra.mxu0 0.0
    %1867 = vmatprep.subr.mxu0 0.0
    %1868 = vmatpush1.msra.mxu0 0.0
    %1869 = vmatprep.subr.mxu0 0.0
    %1870 = vmatpush1.msra.mxu0 0.0
    %1871 = vmatprep.subr.mxu0 0.0
    %1872 = vmatpush1.msra.mxu0 0.0
    %1873 = vmatprep.subr.mxu0 0.0
    %1874 = vmatpush1.msra.mxu0 0.0
    %1875 = vmatprep.subr.mxu0 0.0
    %1876 = vmatpush1.msra.mxu0 0.0
    %1877 = vmatprep.subr.mxu0 0.0
    %1878 = vmatpush1.msra.mxu0 0.0
    %1879 = vmatprep.subr.mxu0 0.0
    %1880 = vmatpush1.msra.mxu0 0.0
    %1881 = vmatprep.subr.mxu0 0.0
    %1882 = vmatpush1.msra.mxu0 0.0
    %1883 = vmatprep.subr.mxu0 %v745
    %1884 = vmatpush1.msra.mxu0 %v742
    %1885 = vmatprep.subr.mxu0 %v734
    %1886 = vmatpush1.msra.mxu0 %v733
    %1887 = vmatprep.subr.mxu0 %v732
    %1888 = vmatpush1.msra.mxu0 %v731
    %1889 = vmatprep.subr.mxu0 %v730
    %1890 = vmatpush1.msra.mxu0 %v729
    %1891 = vmatprep.subr.mxu0 %v728
    %1892 = vmatpush1.msra.mxu0 %v727
    %1893 = vmatprep.subr.mxu0 %v726
    %1894 = vmatpush1.msra.mxu0 %v725
    %1895 = vmatprep.subr.mxu0 %v724
    %1896 = vmatpush1.msra.mxu0 %v723
    %1897 = vmatprep.subr.mxu0 0.0
    %1898 = vmatpush2.msra.mxu0 0.0
    %1899 = vmatprep.subr.mxu0 0.0
    %1900 = vmatpush2.msra.mxu0 0.0
    %1901 = vmatprep.subr.mxu0 0.0
    %1902 = vmatpush2.msra.mxu0 0.0
    %1903 = vmatprep.subr.mxu0 0.0
    %1904 = vmatpush2.msra.mxu0 0.0
    %1905 = vmatprep.subr.mxu0 0.0
    %1906 = vmatpush2.msra.mxu0 0.0
    %1907 = vmatprep.subr.mxu0 0.0
    %1908 = vmatpush2.msra.mxu0 0.0
    %1909 = vmatprep.subr.mxu0 0.0
    %1910 = vmatpush2.msra.mxu0 0.0
    %1911 = vmatprep.subr.mxu0 0.0
    %1912 = vmatpush2.msra.mxu0 0.0
    %1913 = vmatprep.subr.mxu0 0.0
    %1914 = vmatpush2.msra.mxu0 0.0
    %1915 = vmatprep.subr.mxu0 0.0
    %1916 = vmatpush2.msra.mxu0 0.0
    %1917 = vmatprep.subr.mxu0 0.0
    %1918 = vmatpush2.msra.mxu0 0.0
    %1919 = vmatprep.subr.mxu0 0.0
    %1920 = vmatpush2.msra.mxu0 0.0
    %1921 = vmatprep.subr.mxu0 0.0
    %1922 = vmatpush2.msra.mxu0 0.0
    %1923 = vmatprep.subr.mxu0 0.0
    %1924 = vmatpush2.msra.mxu0 0.0
    %1925 = vmatprep.subr.mxu0 0.0
    %1926 = vmatpush2.msra.mxu0 0.0
    %1927 = vmatprep.subr.mxu0 0.0
    %1928 = vmatpush2.msra.mxu0 0.0
    %1929 = vmatprep.mubr.f32.mxu0 0.0
    %1930 = vmatmul.mubr.f32.gmra.mxu0 %v1863
    %v1931 = vpop.f32.mrf.mxu0
    %v1932 = vadd.f32 0.0, %v1931
    %v1933 = vpop.f32.mrf.mxu0
    %v1934 = vadd.f32 0.0, %v1933
    %1935 = vdwg.mxu0
    %v1938 = vrot.slane %v1932, 6
    %v1939 = vrot.slane %v1934, 6
    %v1942 = vadd.f32 %v713, %v1938
    %v1943 = vadd.f32 %v715, %v1939
    %v1944 = vxor.u32 %v1942, 2147483648
    %v1945 = vmul.f32 %v1944, 1.442695
    %v1946 = vpow.pop %v1945
    %v1947 = vadd.f32 %v1946, 1.0
    %v1948 = vrcp.pop %v1947
    %v1949 = vmul.f32 1.0, %v1948
    %v1950 = vtanh.pop %v1942
    %v1951 = vtanh.pop %v1943
    %v1952 = vxor.u32 %v1943, 2147483648
    %v1953 = vmul.f32 %v1952, 1.442695
    %v1954 = vpow.pop %v1953
    %v1955 = vadd.f32 %v1954, 1.0
    %v1956 = vrcp.pop %v1955
    %v1957 = vmul.f32 1.0, %v1956
    %v1959 = vrot.slane %v1851, 6
    %v1961 = vmul.f32 %v1949, %v1959
    %1964 = vrot.lane.b32.xlu0 %v1950, 28
    %v1965 = vpop.permute.xlu0 %1964
    %1966 = vrot.lane.b32.xlu0 %v1951, 28
    %v1967 = vpop.permute.xlu0 %1966
    %v1968 = vsel %vm841, %v1965, %v1967
    %v1970 = vmul.f32 %v1949, %v1968
    %1972 = vrot.lane.b32.xlu0 %v1970, 50
    %v1973 = vpop.permute.xlu0 %1972
    %v1975 = vadd.f32 %v1961, %v1973
    %v1976 = vtanh.pop %v1975
    %1978 = vrot.lane.b32.xlu0 %v1976, 100
    %v1979 = vpop.permute.xlu0 %1978
    %v1981 = vmul.f32 %v1957, %v1979
    %1983 = vrot.lane.b32.xlu0 %v1981, 106
    %v1984 = vpop.permute.xlu0 %1983
    %1986 = vst.msk [vmem:[#allocation5 + $0x10] sm:$0xc] %vm985, %v1984
    %v1987 = vrot.slane %v1981, 2
    %1988 = vrot.lane.b32.xlu0 %v1987, 106
    %v1989 = vpop.permute.xlu0 %1988
    %v1990 = vsel %vm737, %v1989, 0
    %1992 = vmatprep.subr.mxu0 0.0
    %1993 = vmatpush1.msra.mxu0 0.0
    %1994 = vmatprep.subr.mxu0 0.0
    %1995 = vmatpush1.msra.mxu0 0.0
    %1996 = vmatprep.subr.mxu0 0.0
    %1997 = vmatpush1.msra.mxu0 0.0
    %1998 = vmatprep.subr.mxu0 0.0
    %1999 = vmatpush1.msra.mxu0 0.0
    %2000 = vmatprep.subr.mxu0 0.0
    %2001 = vmatpush1.msra.mxu0 0.0
    %2002 = vmatprep.subr.mxu0 0.0
    %2003 = vmatpush1.msra.mxu0 0.0
    %2004 = vmatprep.subr.mxu0 0.0
    %2005 = vmatpush1.msra.mxu0 0.0
    %2006 = vmatprep.subr.mxu0 0.0
    %2007 = vmatpush1.msra.mxu0 0.0
    %2008 = vmatprep.subr.mxu0 0.0
    %2009 = vmatpush1.msra.mxu0 0.0
    %2010 = vmatprep.subr.mxu0 %v745
    %2011 = vmatpush1.msra.mxu0 %v742
    %2012 = vmatprep.subr.mxu0 %v734
    %2013 = vmatpush1.msra.mxu0 %v733
    %2014 = vmatprep.subr.mxu0 %v732
    %2015 = vmatpush1.msra.mxu0 %v731
    %2016 = vmatprep.subr.mxu0 %v730
    %2017 = vmatpush1.msra.mxu0 %v729
    %2018 = vmatprep.subr.mxu0 %v728
    %2019 = vmatpush1.msra.mxu0 %v727
    %2020 = vmatprep.subr.mxu0 %v726
    %2021 = vmatpush1.msra.mxu0 %v725
    %2022 = vmatprep.subr.mxu0 %v724
    %2023 = vmatpush1.msra.mxu0 %v723
    %2024 = vmatprep.subr.mxu0 0.0
    %2025 = vmatpush2.msra.mxu0 0.0
    %2026 = vmatprep.subr.mxu0 0.0
    %2027 = vmatpush2.msra.mxu0 0.0
    %2028 = vmatprep.subr.mxu0 0.0
    %2029 = vmatpush2.msra.mxu0 0.0
    %2030 = vmatprep.subr.mxu0 0.0
    %2031 = vmatpush2.msra.mxu0 0.0
    %2032 = vmatprep.subr.mxu0 0.0
    %2033 = vmatpush2.msra.mxu0 0.0
    %2034 = vmatprep.subr.mxu0 0.0
    %2035 = vmatpush2.msra.mxu0 0.0
    %2036 = vmatprep.subr.mxu0 0.0
    %2037 = vmatpush2.msra.mxu0 0.0
    %2038 = vmatprep.subr.mxu0 0.0
    %2039 = vmatpush2.msra.mxu0 0.0
    %2040 = vmatprep.subr.mxu0 0.0
    %2041 = vmatpush2.msra.mxu0 0.0
    %2042 = vmatprep.subr.mxu0 0.0
    %2043 = vmatpush2.msra.mxu0 0.0
    %2044 = vmatprep.subr.mxu0 0.0
    %2045 = vmatpush2.msra.mxu0 0.0
    %2046 = vmatprep.subr.mxu0 0.0
    %2047 = vmatpush2.msra.mxu0 0.0
    %2048 = vmatprep.subr.mxu0 0.0
    %2049 = vmatpush2.msra.mxu0 0.0
    %2050 = vmatprep.subr.mxu0 0.0
    %2051 = vmatpush2.msra.mxu0 0.0
    %2052 = vmatprep.subr.mxu0 0.0
    %2053 = vmatpush2.msra.mxu0 0.0
    %2054 = vmatprep.subr.mxu0 0.0
    %2055 = vmatpush2.msra.mxu0 0.0
    %2056 = vmatprep.mubr.f32.mxu0 0.0
    %2057 = vmatmul.mubr.f32.gmra.mxu0 %v1990
    %v2058 = vpop.f32.mrf.mxu0
    %v2059 = vadd.f32 0.0, %v2058
    %v2060 = vpop.f32.mrf.mxu0
    %v2061 = vadd.f32 0.0, %v2060
    %2062 = vdwg.mxu0
    %v2065 = vrot.slane %v2059, 4
    %v2066 = vrot.slane %v2061, 4
    %v2069 = vadd.f32 %v713, %v2065
    %v2070 = vadd.f32 %v715, %v2066
    %v2071 = vxor.u32 %v2069, 2147483648
    %v2072 = vmul.f32 %v2071, 1.442695
    %v2073 = vpow.pop %v2072
    %v2074 = vadd.f32 %v2073, 1.0
    %v2075 = vrcp.pop %v2074
    %v2076 = vmul.f32 1.0, %v2075
    %v2077 = vtanh.pop %v2069
    %v2078 = vtanh.pop %v2070
    %v2079 = vxor.u32 %v2070, 2147483648
    %v2080 = vmul.f32 %v2079, 1.442695
    %v2081 = vpow.pop %v2080
    %v2082 = vadd.f32 %v2081, 1.0
    %v2083 = vrcp.pop %v2082
    %v2084 = vmul.f32 1.0, %v2083
    %v2086 = vrot.slane %v1975, 6
    %v2088 = vmul.f32 %v2076, %v2086
    %2091 = vrot.lane.b32.xlu0 %v2077, 28
    %v2092 = vpop.permute.xlu0 %2091
    %2093 = vrot.lane.b32.xlu0 %v2078, 28
    %v2094 = vpop.permute.xlu0 %2093
    %v2095 = vsel %vm841, %v2092, %v2094
    %v2097 = vmul.f32 %v2076, %v2095
    %2099 = vrot.lane.b32.xlu0 %v2097, 50
    %v2100 = vpop.permute.xlu0 %2099
    %v2102 = vadd.f32 %v2088, %v2100
    %v2103 = vtanh.pop %v2102
    %2105 = vrot.lane.b32.xlu0 %v2103, 100
    %v2106 = vpop.permute.xlu0 %2105
    %v2108 = vmul.f32 %v2084, %v2106
    %2110 = vrot.lane.b32.xlu0 %v2108, 106
    %v2111 = vpop.permute.xlu0 %2110
    %2113 = vst.msk [vmem:[#allocation5 + $0x10] sm:$0x30] %vm1113, %v2111
    %v2114 = vrot.slane %v2108, 4
    %2115 = vrot.lane.b32.xlu0 %v2114, 106
    %v2116 = vpop.permute.xlu0 %2115
    %v2117 = vsel %vm737, %v2116, 0
    %2119 = vmatprep.subr.mxu0 0.0
    %2120 = vmatpush1.msra.mxu0 0.0
    %2121 = vmatprep.subr.mxu0 0.0
    %2122 = vmatpush1.msra.mxu0 0.0
    %2123 = vmatprep.subr.mxu0 0.0
    %2124 = vmatpush1.msra.mxu0 0.0
    %2125 = vmatprep.subr.mxu0 0.0
    %2126 = vmatpush1.msra.mxu0 0.0
    %2127 = vmatprep.subr.mxu0 0.0
    %2128 = vmatpush1.msra.mxu0 0.0
    %2129 = vmatprep.subr.mxu0 0.0
    %2130 = vmatpush1.msra.mxu0 0.0
    %2131 = vmatprep.subr.mxu0 0.0
    %2132 = vmatpush1.msra.mxu0 0.0
    %2133 = vmatprep.subr.mxu0 0.0
    %2134 = vmatpush1.msra.mxu0 0.0
    %2135 = vmatprep.subr.mxu0 0.0
    %2136 = vmatpush1.msra.mxu0 0.0
    %2137 = vmatprep.subr.mxu0 %v745
    %2138 = vmatpush1.msra.mxu0 %v742
    %2139 = vmatprep.subr.mxu0 %v734
    %2140 = vmatpush1.msra.mxu0 %v733
    %2141 = vmatprep.subr.mxu0 %v732
    %2142 = vmatpush1.msra.mxu0 %v731
    %2143 = vmatprep.subr.mxu0 %v730
    %2144 = vmatpush1.msra.mxu0 %v729
    %2145 = vmatprep.subr.mxu0 %v728
    %2146 = vmatpush1.msra.mxu0 %v727
    %2147 = vmatprep.subr.mxu0 %v726
    %2148 = vmatpush1.msra.mxu0 %v725
    %2149 = vmatprep.subr.mxu0 %v724
    %2150 = vmatpush1.msra.mxu0 %v723
    %2151 = vmatprep.subr.mxu0 0.0
    %2152 = vmatpush2.msra.mxu0 0.0
    %2153 = vmatprep.subr.mxu0 0.0
    %2154 = vmatpush2.msra.mxu0 0.0
    %2155 = vmatprep.subr.mxu0 0.0
    %2156 = vmatpush2.msra.mxu0 0.0
    %2157 = vmatprep.subr.mxu0 0.0
    %2158 = vmatpush2.msra.mxu0 0.0
    %2159 = vmatprep.subr.mxu0 0.0
    %2160 = vmatpush2.msra.mxu0 0.0
    %2161 = vmatprep.subr.mxu0 0.0
    %2162 = vmatpush2.msra.mxu0 0.0
    %2163 = vmatprep.subr.mxu0 0.0
    %2164 = vmatpush2.msra.mxu0 0.0
    %2165 = vmatprep.subr.mxu0 0.0
    %2166 = vmatpush2.msra.mxu0 0.0
    %2167 = vmatprep.subr.mxu0 0.0
    %2168 = vmatpush2.msra.mxu0 0.0
    %2169 = vmatprep.subr.mxu0 0.0
    %2170 = vmatpush2.msra.mxu0 0.0
    %2171 = vmatprep.subr.mxu0 0.0
    %2172 = vmatpush2.msra.mxu0 0.0
    %2173 = vmatprep.subr.mxu0 0.0
    %2174 = vmatpush2.msra.mxu0 0.0
    %2175 = vmatprep.subr.mxu0 0.0
    %2176 = vmatpush2.msra.mxu0 0.0
    %2177 = vmatprep.subr.mxu0 0.0
    %2178 = vmatpush2.msra.mxu0 0.0
    %2179 = vmatprep.subr.mxu0 0.0
    %2180 = vmatpush2.msra.mxu0 0.0
    %2181 = vmatprep.subr.mxu0 0.0
    %2182 = vmatpush2.msra.mxu0 0.0
    %2183 = vmatprep.mubr.f32.mxu0 0.0
    %2184 = vmatmul.mubr.f32.gmra.mxu0 %v2117
    %v2185 = vpop.f32.mrf.mxu0
    %v2186 = vadd.f32 0.0, %v2185
    %v2187 = vpop.f32.mrf.mxu0
    %v2188 = vadd.f32 0.0, %v2187
    %2189 = vdwg.mxu0
    %v2192 = vrot.slane %v2186, 2
    %v2193 = vrot.slane %v2188, 2
    %v2196 = vadd.f32 %v713, %v2192
    %v2197 = vadd.f32 %v715, %v2193
    %v2198 = vxor.u32 %v2196, 2147483648
    %v2199 = vmul.f32 %v2198, 1.442695
    %v2200 = vpow.pop %v2199
    %v2201 = vadd.f32 %v2200, 1.0
    %v2202 = vrcp.pop %v2201
    %v2203 = vmul.f32 1.0, %v2202
    %v2204 = vtanh.pop %v2196
    %v2205 = vtanh.pop %v2197
    %v2206 = vxor.u32 %v2197, 2147483648
    %v2207 = vmul.f32 %v2206, 1.442695
    %v2208 = vpow.pop %v2207
    %v2209 = vadd.f32 %v2208, 1.0
    %v2210 = vrcp.pop %v2209
    %v2211 = vmul.f32 1.0, %v2210
    %v2213 = vrot.slane %v2102, 6
    %v2215 = vmul.f32 %v2203, %v2213
    %2218 = vrot.lane.b32.xlu0 %v2204, 28
    %v2219 = vpop.permute.xlu0 %2218
    %2220 = vrot.lane.b32.xlu0 %v2205, 28
    %v2221 = vpop.permute.xlu0 %2220
    %v2222 = vsel %vm841, %v2219, %v2221
    %v2224 = vmul.f32 %v2203, %v2222
    %2226 = vrot.lane.b32.xlu0 %v2224, 50
    %v2227 = vpop.permute.xlu0 %2226
    %v2229 = vadd.f32 %v2215, %v2227
    %v2230 = vtanh.pop %v2229
    %2232 = vrot.lane.b32.xlu0 %v2230, 100
    %v2233 = vpop.permute.xlu0 %2232
    %v2235 = vmul.f32 %v2211, %v2233
    %2237 = vrot.lane.b32.xlu0 %v2235, 106
    %v2238 = vpop.permute.xlu0 %2237
    %2240 = vst.msk [vmem:[#allocation5 + $0x10] sm:$0xc0] %vm1241, %v2238
    %v2241 = vrot.slane %v2235, 6
    %2242 = vrot.lane.b32.xlu0 %v2241, 106
    %v2243 = vpop.permute.xlu0 %2242
    %v2244 = vsel %vm737, %v2243, 0
    %2246 = vmatprep.subr.mxu0 0.0
    %2247 = vmatpush1.msra.mxu0 0.0
    %2248 = vmatprep.subr.mxu0 0.0
    %2249 = vmatpush1.msra.mxu0 0.0
    %2250 = vmatprep.subr.mxu0 0.0
    %2251 = vmatpush1.msra.mxu0 0.0
    %2252 = vmatprep.subr.mxu0 0.0
    %2253 = vmatpush1.msra.mxu0 0.0
    %2254 = vmatprep.subr.mxu0 0.0
    %2255 = vmatpush1.msra.mxu0 0.0
    %2256 = vmatprep.subr.mxu0 0.0
    %2257 = vmatpush1.msra.mxu0 0.0
    %2258 = vmatprep.subr.mxu0 0.0
    %2259 = vmatpush1.msra.mxu0 0.0
    %2260 = vmatprep.subr.mxu0 0.0
    %2261 = vmatpush1.msra.mxu0 0.0
    %2262 = vmatprep.subr.mxu0 0.0
    %2263 = vmatpush1.msra.mxu0 0.0
    %2264 = vmatprep.subr.mxu0 %v745
    %2265 = vmatpush1.msra.mxu0 %v742
    %2266 = vmatprep.subr.mxu0 %v734
    %2267 = vmatpush1.msra.mxu0 %v733
    %2268 = vmatprep.subr.mxu0 %v732
    %2269 = vmatpush1.msra.mxu0 %v731
    %2270 = vmatprep.subr.mxu0 %v730
    %2271 = vmatpush1.msra.mxu0 %v729
    %2272 = vmatprep.subr.mxu0 %v728
    %2273 = vmatpush1.msra.mxu0 %v727
    %2274 = vmatprep.subr.mxu0 %v726
    %2275 = vmatpush1.msra.mxu0 %v725
    %2276 = vmatprep.subr.mxu0 %v724
    %2277 = vmatpush1.msra.mxu0 %v723
    %2278 = vmatprep.subr.mxu0 0.0
    %2279 = vmatpush2.msra.mxu0 0.0
    %2280 = vmatprep.subr.mxu0 0.0
    %2281 = vmatpush2.msra.mxu0 0.0
    %2282 = vmatprep.subr.mxu0 0.0
    %2283 = vmatpush2.msra.mxu0 0.0
    %2284 = vmatprep.subr.mxu0 0.0
    %2285 = vmatpush2.msra.mxu0 0.0
    %2286 = vmatprep.subr.mxu0 0.0
    %2287 = vmatpush2.msra.mxu0 0.0
    %2288 = vmatprep.subr.mxu0 0.0
    %2289 = vmatpush2.msra.mxu0 0.0
    %2290 = vmatprep.subr.mxu0 0.0
    %2291 = vmatpush2.msra.mxu0 0.0
    %2292 = vmatprep.subr.mxu0 0.0
    %2293 = vmatpush2.msra.mxu0 0.0
    %2294 = vmatprep.subr.mxu0 0.0
    %2295 = vmatpush2.msra.mxu0 0.0
    %2296 = vmatprep.subr.mxu0 0.0
    %2297 = vmatpush2.msra.mxu0 0.0
    %2298 = vmatprep.subr.mxu0 0.0
    %2299 = vmatpush2.msra.mxu0 0.0
    %2300 = vmatprep.subr.mxu0 0.0
    %2301 = vmatpush2.msra.mxu0 0.0
    %2302 = vmatprep.subr.mxu0 0.0
    %2303 = vmatpush2.msra.mxu0 0.0
    %2304 = vmatprep.subr.mxu0 0.0
    %2305 = vmatpush2.msra.mxu0 0.0
    %2306 = vmatprep.subr.mxu0 0.0
    %2307 = vmatpush2.msra.mxu0 0.0
    %2308 = vmatprep.subr.mxu0 0.0
    %2309 = vmatpush2.msra.mxu0 0.0
    %2310 = vmatprep.mubr.f32.mxu0 0.0
    %2311 = vmatmul.mubr.f32.gmra.mxu0 %v2244
    %v2312 = vpop.f32.mrf.mxu0
    %v2313 = vadd.f32 0.0, %v2312
    %v2314 = vpop.f32.mrf.mxu0
    %v2315 = vadd.f32 0.0, %v2314
    %2316 = vdwg.mxu0
    %v2317 = vadd.f32 %v719, %v2313
    %v2318 = vadd.f32 %v721, %v2315
    %v2319 = vxor.u32 %v2317, 2147483648
    %v2320 = vmul.f32 %v2319, 1.442695
    %v2321 = vpow.pop %v2320
    %v2322 = vadd.f32 %v2321, 1.0
    %v2323 = vrcp.pop %v2322
    %v2324 = vmul.f32 1.0, %v2323
    %v2325 = vtanh.pop %v2317
    %v2326 = vtanh.pop %v2318
    %v2327 = vxor.u32 %v2318, 2147483648
    %v2328 = vmul.f32 %v2327, 1.442695
    %v2329 = vpow.pop %v2328
    %v2330 = vadd.f32 %v2329, 1.0
    %v2331 = vrcp.pop %v2330
    %v2332 = vmul.f32 1.0, %v2331
    %v2334 = vrot.slane %v2229, 6
    %v2336 = vmul.f32 %v2324, %v2334
    %2339 = vrot.lane.b32.xlu0 %v2325, 28
    %v2340 = vpop.permute.xlu0 %2339
    %2341 = vrot.lane.b32.xlu0 %v2326, 28
    %v2342 = vpop.permute.xlu0 %2341
    %v2343 = vsel %vm841, %v2340, %v2342
    %v2345 = vmul.f32 %v2324, %v2343
    %2347 = vrot.lane.b32.xlu0 %v2345, 50
    %v2348 = vpop.permute.xlu0 %2347
    %v2350 = vadd.f32 %v2336, %v2348
    %v2351 = vtanh.pop %v2350
    %2353 = vrot.lane.b32.xlu0 %v2351, 100
    %v2354 = vpop.permute.xlu0 %2353
    %v2356 = vmul.f32 %v2332, %v2354
    %2358 = vrot.lane.b32.xlu0 %v2356, 106
    %v2359 = vpop.permute.xlu0 %2358
    %2361 = vst.msk [vmem:[#allocation5 + $0x18] sm:$0x3] %vm860, %v2359
    %v2362 = vsel %vm737, %v2359, 0
    %2364 = vmatprep.subr.mxu0 0.0
    %2365 = vmatpush1.msra.mxu0 0.0
    %2366 = vmatprep.subr.mxu0 0.0
    %2367 = vmatpush1.msra.mxu0 0.0
    %2368 = vmatprep.subr.mxu0 0.0
    %2369 = vmatpush1.msra.mxu0 0.0
    %2370 = vmatprep.subr.mxu0 0.0
    %2371 = vmatpush1.msra.mxu0 0.0
    %2372 = vmatprep.subr.mxu0 0.0
    %2373 = vmatpush1.msra.mxu0 0.0
    %2374 = vmatprep.subr.mxu0 0.0
    %2375 = vmatpush1.msra.mxu0 0.0
    %2376 = vmatprep.subr.mxu0 0.0
    %2377 = vmatpush1.msra.mxu0 0.0
    %2378 = vmatprep.subr.mxu0 0.0
    %2379 = vmatpush1.msra.mxu0 0.0
    %2380 = vmatprep.subr.mxu0 0.0
    %2381 = vmatpush1.msra.mxu0 0.0
    %2382 = vmatprep.subr.mxu0 %v745
    %2383 = vmatpush1.msra.mxu0 %v742
    %2384 = vmatprep.subr.mxu0 %v734
    %2385 = vmatpush1.msra.mxu0 %v733
    %2386 = vmatprep.subr.mxu0 %v732
    %2387 = vmatpush1.msra.mxu0 %v731
    %2388 = vmatprep.subr.mxu0 %v730
    %2389 = vmatpush1.msra.mxu0 %v729
    %2390 = vmatprep.subr.mxu0 %v728
    %2391 = vmatpush1.msra.mxu0 %v727
    %2392 = vmatprep.subr.mxu0 %v726
    %2393 = vmatpush1.msra.mxu0 %v725
    %2394 = vmatprep.subr.mxu0 %v724
    %2395 = vmatpush1.msra.mxu0 %v723
    %2396 = vmatprep.subr.mxu0 0.0
    %2397 = vmatpush2.msra.mxu0 0.0
    %2398 = vmatprep.subr.mxu0 0.0
    %2399 = vmatpush2.msra.mxu0 0.0
    %2400 = vmatprep.subr.mxu0 0.0
    %2401 = vmatpush2.msra.mxu0 0.0
    %2402 = vmatprep.subr.mxu0 0.0
    %2403 = vmatpush2.msra.mxu0 0.0
    %2404 = vmatprep.subr.mxu0 0.0
    %2405 = vmatpush2.msra.mxu0 0.0
    %2406 = vmatprep.subr.mxu0 0.0
    %2407 = vmatpush2.msra.mxu0 0.0
    %2408 = vmatprep.subr.mxu0 0.0
    %2409 = vmatpush2.msra.mxu0 0.0
    %2410 = vmatprep.subr.mxu0 0.0
    %2411 = vmatpush2.msra.mxu0 0.0
    %2412 = vmatprep.subr.mxu0 0.0
    %2413 = vmatpush2.msra.mxu0 0.0
    %2414 = vmatprep.subr.mxu0 0.0
    %2415 = vmatpush2.msra.mxu0 0.0
    %2416 = vmatprep.subr.mxu0 0.0
    %2417 = vmatpush2.msra.mxu0 0.0
    %2418 = vmatprep.subr.mxu0 0.0
    %2419 = vmatpush2.msra.mxu0 0.0
    %2420 = vmatprep.subr.mxu0 0.0
    %2421 = vmatpush2.msra.mxu0 0.0
    %2422 = vmatprep.subr.mxu0 0.0
    %2423 = vmatpush2.msra.mxu0 0.0
    %2424 = vmatprep.subr.mxu0 0.0
    %2425 = vmatpush2.msra.mxu0 0.0
    %2426 = vmatprep.subr.mxu0 0.0
    %2427 = vmatpush2.msra.mxu0 0.0
    %2428 = vmatprep.mubr.f32.mxu0 0.0
    %2429 = vmatmul.mubr.f32.gmra.mxu0 %v2362
    %v2430 = vpop.f32.mrf.mxu0
    %v2431 = vadd.f32 0.0, %v2430
    %v2432 = vpop.f32.mrf.mxu0
    %v2433 = vadd.f32 0.0, %v2432
    %2434 = vdwg.mxu0
    %v2437 = vrot.slane %v2431, 6
    %v2438 = vrot.slane %v2433, 6
    %v2441 = vadd.f32 %v719, %v2437
    %v2442 = vadd.f32 %v721, %v2438
    %v2443 = vxor.u32 %v2441, 2147483648
    %v2444 = vmul.f32 %v2443, 1.442695
    %v2445 = vpow.pop %v2444
    %v2446 = vadd.f32 %v2445, 1.0
    %v2447 = vrcp.pop %v2446
    %v2448 = vmul.f32 1.0, %v2447
    %v2449 = vtanh.pop %v2441
    %v2450 = vtanh.pop %v2442
    %v2451 = vxor.u32 %v2442, 2147483648
    %v2452 = vmul.f32 %v2451, 1.442695
    %v2453 = vpow.pop %v2452
    %v2454 = vadd.f32 %v2453, 1.0
    %v2455 = vrcp.pop %v2454
    %v2456 = vmul.f32 1.0, %v2455
    %v2458 = vrot.slane %v2350, 6
    %v2460 = vmul.f32 %v2448, %v2458
    %2463 = vrot.lane.b32.xlu0 %v2449, 28
    %v2464 = vpop.permute.xlu0 %2463
    %2465 = vrot.lane.b32.xlu0 %v2450, 28
    %v2466 = vpop.permute.xlu0 %2465
    %v2467 = vsel %vm841, %v2464, %v2466
    %v2469 = vmul.f32 %v2448, %v2467
    %2471 = vrot.lane.b32.xlu0 %v2469, 50
    %v2472 = vpop.permute.xlu0 %2471
    %v2474 = vadd.f32 %v2460, %v2472
    %v2475 = vtanh.pop %v2474
    %2477 = vrot.lane.b32.xlu0 %v2475, 100
    %v2478 = vpop.permute.xlu0 %2477
    %v2480 = vmul.f32 %v2456, %v2478
    %2482 = vrot.lane.b32.xlu0 %v2480, 106
    %v2483 = vpop.permute.xlu0 %2482
    %2485 = vst.msk [vmem:[#allocation5 + $0x18] sm:$0xc] %vm985, %v2483
    %v2486 = vrot.slane %v2480, 2
    %2487 = vrot.lane.b32.xlu0 %v2486, 106
    %v2488 = vpop.permute.xlu0 %2487
    %v2489 = vsel %vm737, %v2488, 0
    %2491 = vmatprep.subr.mxu0 0.0
    %2492 = vmatpush1.msra.mxu0 0.0
    %2493 = vmatprep.subr.mxu0 0.0
    %2494 = vmatpush1.msra.mxu0 0.0
    %2495 = vmatprep.subr.mxu0 0.0
    %2496 = vmatpush1.msra.mxu0 0.0
    %2497 = vmatprep.subr.mxu0 0.0
    %2498 = vmatpush1.msra.mxu0 0.0
    %2499 = vmatprep.subr.mxu0 0.0
    %2500 = vmatpush1.msra.mxu0 0.0
    %2501 = vmatprep.subr.mxu0 0.0
    %2502 = vmatpush1.msra.mxu0 0.0
    %2503 = vmatprep.subr.mxu0 0.0
    %2504 = vmatpush1.msra.mxu0 0.0
    %2505 = vmatprep.subr.mxu0 0.0
    %2506 = vmatpush1.msra.mxu0 0.0
    %2507 = vmatprep.subr.mxu0 0.0
    %2508 = vmatpush1.msra.mxu0 0.0
    %2509 = vmatprep.subr.mxu0 %v745
    %2510 = vmatpush1.msra.mxu0 %v742
    %2511 = vmatprep.subr.mxu0 %v734
    %2512 = vmatpush1.msra.mxu0 %v733
    %2513 = vmatprep.subr.mxu0 %v732
    %2514 = vmatpush1.msra.mxu0 %v731
    %2515 = vmatprep.subr.mxu0 %v730
    %2516 = vmatpush1.msra.mxu0 %v729
    %2517 = vmatprep.subr.mxu0 %v728
    %2518 = vmatpush1.msra.mxu0 %v727
    %2519 = vmatprep.subr.mxu0 %v726
    %2520 = vmatpush1.msra.mxu0 %v725
    %2521 = vmatprep.subr.mxu0 %v724
    %2522 = vmatpush1.msra.mxu0 %v723
    %2523 = vmatprep.subr.mxu0 0.0
    %2524 = vmatpush2.msra.mxu0 0.0
    %2525 = vmatprep.subr.mxu0 0.0
    %2526 = vmatpush2.msra.mxu0 0.0
    %2527 = vmatprep.subr.mxu0 0.0
    %2528 = vmatpush2.msra.mxu0 0.0
    %2529 = vmatprep.subr.mxu0 0.0
    %2530 = vmatpush2.msra.mxu0 0.0
    %2531 = vmatprep.subr.mxu0 0.0
    %2532 = vmatpush2.msra.mxu0 0.0
    %2533 = vmatprep.subr.mxu0 0.0
    %2534 = vmatpush2.msra.mxu0 0.0
    %2535 = vmatprep.subr.mxu0 0.0
    %2536 = vmatpush2.msra.mxu0 0.0
    %2537 = vmatprep.subr.mxu0 0.0
    %2538 = vmatpush2.msra.mxu0 0.0
    %2539 = vmatprep.subr.mxu0 0.0
    %2540 = vmatpush2.msra.mxu0 0.0
    %2541 = vmatprep.subr.mxu0 0.0
    %2542 = vmatpush2.msra.mxu0 0.0
    %2543 = vmatprep.subr.mxu0 0.0
    %2544 = vmatpush2.msra.mxu0 0.0
    %2545 = vmatprep.subr.mxu0 0.0
    %2546 = vmatpush2.msra.mxu0 0.0
    %2547 = vmatprep.subr.mxu0 0.0
    %2548 = vmatpush2.msra.mxu0 0.0
    %2549 = vmatprep.subr.mxu0 0.0
    %2550 = vmatpush2.msra.mxu0 0.0
    %2551 = vmatprep.subr.mxu0 0.0
    %2552 = vmatpush2.msra.mxu0 0.0
    %2553 = vmatprep.subr.mxu0 0.0
    %2554 = vmatpush2.msra.mxu0 0.0
    %2555 = vmatprep.mubr.f32.mxu0 0.0
    %2556 = vmatmul.mubr.f32.gmra.mxu0 %v2489
    %v2557 = vpop.f32.mrf.mxu0
    %v2558 = vadd.f32 0.0, %v2557
    %v2559 = vpop.f32.mrf.mxu0
    %v2560 = vadd.f32 0.0, %v2559
    %2561 = vdwg.mxu0
    %v2564 = vrot.slane %v2558, 4
    %v2565 = vrot.slane %v2560, 4
    %v2568 = vadd.f32 %v719, %v2564
    %v2569 = vadd.f32 %v721, %v2565
    %v2570 = vxor.u32 %v2568, 2147483648
    %v2571 = vmul.f32 %v2570, 1.442695
    %v2572 = vpow.pop %v2571
    %v2573 = vadd.f32 %v2572, 1.0
    %v2574 = vrcp.pop %v2573
    %v2575 = vmul.f32 1.0, %v2574
    %v2576 = vtanh.pop %v2568
    %v2577 = vtanh.pop %v2569
    %v2578 = vxor.u32 %v2569, 2147483648
    %v2579 = vmul.f32 %v2578, 1.442695
    %v2580 = vpow.pop %v2579
    %v2581 = vadd.f32 %v2580, 1.0
    %v2582 = vrcp.pop %v2581
    %v2583 = vmul.f32 1.0, %v2582
    %v2585 = vrot.slane %v2474, 6
    %v2587 = vmul.f32 %v2575, %v2585
    %2590 = vrot.lane.b32.xlu0 %v2576, 28
    %v2591 = vpop.permute.xlu0 %2590
    %2592 = vrot.lane.b32.xlu0 %v2577, 28
    %v2593 = vpop.permute.xlu0 %2592
    %v2594 = vsel %vm841, %v2591, %v2593
    %v2596 = vmul.f32 %v2575, %v2594
    %2598 = vrot.lane.b32.xlu0 %v2596, 50
    %v2599 = vpop.permute.xlu0 %2598
    %v2601 = vadd.f32 %v2587, %v2599
    %v2602 = vtanh.pop %v2601
    %2604 = vrot.lane.b32.xlu0 %v2602, 100
    %v2605 = vpop.permute.xlu0 %2604
    %v2607 = vmul.f32 %v2583, %v2605
    %2609 = vrot.lane.b32.xlu0 %v2607, 106
    %v2610 = vpop.permute.xlu0 %2609
    %2612 = vst.msk [vmem:[#allocation5 + $0x18] sm:$0x30] %vm1113, %v2610
    %v2613 = vrot.slane %v2607, 4
    %2614 = vrot.lane.b32.xlu0 %v2613, 106
    %v2615 = vpop.permute.xlu0 %2614
    %v2616 = vsel %vm737, %v2615, 0
    %2618 = vmatprep.subr.mxu0 0.0
    %2619 = vmatpush1.msra.mxu0 0.0
    %2620 = vmatprep.subr.mxu0 0.0
    %2621 = vmatpush1.msra.mxu0 0.0
    %2622 = vmatprep.subr.mxu0 0.0
    %2623 = vmatpush1.msra.mxu0 0.0
    %2624 = vmatprep.subr.mxu0 0.0
    %2625 = vmatpush1.msra.mxu0 0.0
    %2626 = vmatprep.subr.mxu0 0.0
    %2627 = vmatpush1.msra.mxu0 0.0
    %2628 = vmatprep.subr.mxu0 0.0
    %2629 = vmatpush1.msra.mxu0 0.0
    %2630 = vmatprep.subr.mxu0 0.0
    %2631 = vmatpush1.msra.mxu0 0.0
    %2632 = vmatprep.subr.mxu0 0.0
    %2633 = vmatpush1.msra.mxu0 0.0
    %2634 = vmatprep.subr.mxu0 0.0
    %2635 = vmatpush1.msra.mxu0 0.0
    %2636 = vmatprep.subr.mxu0 %v745
    %2637 = vmatpush1.msra.mxu0 %v742
    %2638 = vmatprep.subr.mxu0 %v734
    %2639 = vmatpush1.msra.mxu0 %v733
    %2640 = vmatprep.subr.mxu0 %v732
    %2641 = vmatpush1.msra.mxu0 %v731
    %2642 = vmatprep.subr.mxu0 %v730
    %2643 = vmatpush1.msra.mxu0 %v729
    %2644 = vmatprep.subr.mxu0 %v728
    %2645 = vmatpush1.msra.mxu0 %v727
    %2646 = vmatprep.subr.mxu0 %v726
    %2647 = vmatpush1.msra.mxu0 %v725
    %2648 = vmatprep.subr.mxu0 %v724
    %2649 = vmatpush1.msra.mxu0 %v723
    %2650 = vmatprep.subr.mxu0 0.0
    %2651 = vmatpush2.msra.mxu0 0.0
    %2652 = vmatprep.subr.mxu0 0.0
    %2653 = vmatpush2.msra.mxu0 0.0
    %2654 = vmatprep.subr.mxu0 0.0
    %2655 = vmatpush2.msra.mxu0 0.0
    %2656 = vmatprep.subr.mxu0 0.0
    %2657 = vmatpush2.msra.mxu0 0.0
    %2658 = vmatprep.subr.mxu0 0.0
    %2659 = vmatpush2.msra.mxu0 0.0
    %2660 = vmatprep.subr.mxu0 0.0
    %2661 = vmatpush2.msra.mxu0 0.0
    %2662 = vmatprep.subr.mxu0 0.0
    %2663 = vmatpush2.msra.mxu0 0.0
    %2664 = vmatprep.subr.mxu0 0.0
    %2665 = vmatpush2.msra.mxu0 0.0
    %2666 = vmatprep.subr.mxu0 0.0
    %2667 = vmatpush2.msra.mxu0 0.0
    %2668 = vmatprep.subr.mxu0 0.0
    %2669 = vmatpush2.msra.mxu0 0.0
    %2670 = vmatprep.subr.mxu0 0.0
    %2671 = vmatpush2.msra.mxu0 0.0
    %2672 = vmatprep.subr.mxu0 0.0
    %2673 = vmatpush2.msra.mxu0 0.0
    %2674 = vmatprep.subr.mxu0 0.0
    %2675 = vmatpush2.msra.mxu0 0.0
    %2676 = vmatprep.subr.mxu0 0.0
    %2677 = vmatpush2.msra.mxu0 0.0
    %2678 = vmatprep.subr.mxu0 0.0
    %2679 = vmatpush2.msra.mxu0 0.0
    %2680 = vmatprep.subr.mxu0 0.0
    %2681 = vmatpush2.msra.mxu0 0.0
    %2682 = vmatprep.mubr.f32.mxu0 0.0
    %2683 = vmatmul.mubr.f32.gmra.mxu0 %v2616
    %v2684 = vpop.f32.mrf.mxu0
    %v2685 = vadd.f32 0.0, %v2684
    %v2686 = vpop.f32.mrf.mxu0
    %v2687 = vadd.f32 0.0, %v2686
    %2688 = vdwg.mxu0
    %v2691 = vrot.slane %v2685, 2
    %v2692 = vrot.slane %v2687, 2
    %v2695 = vadd.f32 %v719, %v2691
    %v2696 = vadd.f32 %v721, %v2692
    %v2697 = vxor.u32 %v2695, 2147483648
    %v2698 = vmul.f32 %v2697, 1.442695
    %v2699 = vpow.pop %v2698
    %v2700 = vadd.f32 %v2699, 1.0
    %v2701 = vrcp.pop %v2700
    %v2702 = vmul.f32 1.0, %v2701
    %v2703 = vtanh.pop %v2695
    %v2704 = vtanh.pop %v2696
    %v2705 = vxor.u32 %v2696, 2147483648
    %v2706 = vmul.f32 %v2705, 1.442695
    %v2707 = vpow.pop %v2706
    %v2708 = vadd.f32 %v2707, 1.0
    %v2709 = vrcp.pop %v2708
    %v2710 = vmul.f32 1.0, %v2709
    %v2712 = vrot.slane %v2601, 6
    %v2714 = vmul.f32 %v2702, %v2712
    %2717 = vrot.lane.b32.xlu0 %v2703, 28
    %v2718 = vpop.permute.xlu0 %2717
    %2719 = vrot.lane.b32.xlu0 %v2704, 28
    %v2720 = vpop.permute.xlu0 %2719
    %v2721 = vsel %vm841, %v2718, %v2720
    %v2723 = vmul.f32 %v2702, %v2721
    %2725 = vrot.lane.b32.xlu0 %v2723, 50
    %v2726 = vpop.permute.xlu0 %2725
    %v2728 = vadd.f32 %v2714, %v2726
    %v2729 = vtanh.pop %v2728
    %2731 = vrot.lane.b32.xlu0 %v2729, 100
    %v2732 = vpop.permute.xlu0 %2731
    %v2734 = vmul.f32 %v2710, %v2732
    %2736 = vrot.lane.b32.xlu0 %v2734, 106
    %v2737 = vpop.permute.xlu0 %2736
    %2739 = vst.msk [vmem:[#allocation5 + $0x18] sm:$0xc0] %vm1241, %v2737
    %v2740 = vld [vmem:[#allocation3 + $0x2] sm:$0xff]
    %v2741 = vld [vmem:[#allocation3 + $0xa] sm:$0xff]
    %v2742 = vld [vmem:[#allocation18] sm:$0xff]
    %v2743 = vld [vmem:[#allocation18 + $0x8] sm:$0xff]
    %v2744 = vld [vmem:[#allocation18 + $0x10] sm:$0xff]
    %v2745 = vld [vmem:[#allocation18 + $0x18] sm:$0xff]
    %v2746 = vld [vmem:[#allocation21] sm:$0x3]
    %v2748 = vlaneseq
    %v2749 = vshrl.u32 %v2748, 7
    %v2750 = vsub.s32 0, %v2749
    %v2751 = vrot.slane %v2746, %v2750
    %v2752 = vlaneseq
    %v2753 = vshrl.u32 %v2752, 7
    %v2754 = vsub.s32 1, %v2753
    %v2755 = vrot.slane %v2746, %v2754
    %v2759 = vsel %vm263, %v2740, 0
    %v2762 = vsel %vm263, %v2741, 0
    %2764 = vmatprep.subr.mxu0 0.0
    %2765 = vmatpush1.msra.mxu0 0.0
    %2766 = vmatprep.subr.mxu0 0.0
    %2767 = vmatpush1.msra.mxu0 0.0
    %2768 = vmatprep.subr.mxu0 0.0
    %2769 = vmatpush1.msra.mxu0 0.0
    %2770 = vmatprep.subr.mxu0 0.0
    %2771 = vmatpush1.msra.mxu0 0.0
    %2772 = vmatprep.subr.mxu0 0.0
    %2773 = vmatpush1.msra.mxu0 0.0
    %2774 = vmatprep.subr.mxu0 0.0
    %2775 = vmatpush1.msra.mxu0 0.0
    %2776 = vmatprep.subr.mxu0 0.0
    %2777 = vmatpush1.msra.mxu0 0.0
    %2778 = vmatprep.subr.mxu0 0.0
    %2779 = vmatpush1.msra.mxu0 0.0
    %2780 = vmatprep.subr.mxu0 0.0
    %2781 = vmatpush1.msra.mxu0 0.0
    %2782 = vmatprep.subr.mxu0 0.0
    %2783 = vmatpush1.msra.mxu0 0.0
    %2784 = vmatprep.subr.mxu0 0.0
    %2785 = vmatpush1.msra.mxu0 0.0
    %2786 = vmatprep.subr.mxu0 0.0
    %2787 = vmatpush1.msra.mxu0 0.0
    %2788 = vmatprep.subr.mxu0 0.0
    %2789 = vmatpush1.msra.mxu0 0.0
    %2790 = vmatprep.subr.mxu0 0.0
    %2791 = vmatpush1.msra.mxu0 0.0
    %2792 = vmatprep.subr.mxu0 %v2745
    %2793 = vmatpush1.msra.mxu0 %v2744
    %2794 = vmatprep.subr.mxu0 %v2743
    %2795 = vmatpush1.msra.mxu0 %v2742
    %2796 = vmatprep.subr.mxu0 0.0
    %2797 = vmatpush2.msra.mxu0 0.0
    %2798 = vmatprep.subr.mxu0 0.0
    %2799 = vmatpush2.msra.mxu0 0.0
    %2800 = vmatprep.subr.mxu0 0.0
    %2801 = vmatpush2.msra.mxu0 0.0
    %2802 = vmatprep.subr.mxu0 0.0
    %2803 = vmatpush2.msra.mxu0 0.0
    %2804 = vmatprep.subr.mxu0 0.0
    %2805 = vmatpush2.msra.mxu0 0.0
    %2806 = vmatprep.subr.mxu0 0.0
    %2807 = vmatpush2.msra.mxu0 0.0
    %2808 = vmatprep.subr.mxu0 0.0
    %2809 = vmatpush2.msra.mxu0 0.0
    %2810 = vmatprep.subr.mxu0 0.0
    %2811 = vmatpush2.msra.mxu0 0.0
    %2812 = vmatprep.subr.mxu0 0.0
    %2813 = vmatpush2.msra.mxu0 0.0
    %2814 = vmatprep.subr.mxu0 0.0
    %2815 = vmatpush2.msra.mxu0 0.0
    %2816 = vmatprep.subr.mxu0 0.0
    %2817 = vmatpush2.msra.mxu0 0.0
    %2818 = vmatprep.subr.mxu0 0.0
    %2819 = vmatpush2.msra.mxu0 0.0
    %2820 = vmatprep.subr.mxu0 0.0
    %2821 = vmatpush2.msra.mxu0 0.0
    %2822 = vmatprep.subr.mxu0 0.0
    %2823 = vmatpush2.msra.mxu0 0.0
    %2824 = vmatprep.subr.mxu0 0.0
    %2825 = vmatpush2.msra.mxu0 0.0
    %2826 = vmatprep.subr.mxu0 0.0
    %2827 = vmatpush2.msra.mxu0 0.0
    %2828 = vmatprep.mubr.f32.mxu0 0.0
    %2829 = vmatmul.mubr.f32.gmra.mxu0 %v2759
    %v2830 = vpop.f32.mrf.mxu0
    %v2831 = vadd.f32 %v2751, %v2830
    %v2832 = vpop.f32.mrf.mxu0
    %v2833 = vadd.f32 %v2755, %v2832
    %2834 = vmatprep.mubr.f32.mxu0 0.0
    %2835 = vmatmul.mubr.f32.gmra.mxu0 %v2762
    %v2836 = vpop.f32.mrf.mxu0
    %v2837 = vadd.f32 %v2751, %v2836
    %v2838 = vpop.f32.mrf.mxu0
    %v2839 = vadd.f32 %v2755, %v2838
    %2840 = vdwg.mxu0
    %v2841 = vld [vmem:[#allocation20] sm:$0xff]
    %v2842 = vld [vmem:[#allocation20 + $0x8] sm:$0xff]
    %v2843 = vld [vmem:[#allocation20 + $0x10] sm:$0xff]
    %v2844 = vld [vmem:[#allocation20 + $0x18] sm:$0xff]
    %v2845 = vld [vmem:[#allocation20 + $0x20] sm:$0xff]
    %v2846 = vld [vmem:[#allocation20 + $0x28] sm:$0xff]
    %v2847 = vld [vmem:[#allocation20 + $0x30] sm:$0xff]
    %v2848 = vld [vmem:[#allocation20 + $0x38] sm:$0xff]
    %v2849 = vld [vmem:[#allocation20 + $0x40] sm:$0xff]
    %v2850 = vld [vmem:[#allocation20 + $0x48] sm:$0xff]
    %v2851 = vld [vmem:[#allocation20 + $0x50] sm:$0xff]
    %v2852 = vld [vmem:[#allocation20 + $0x58] sm:$0xff]
    %v2853 = vld [vmem:[#allocation20 + $0x60] sm:$0x3]
    %v2854 = vld [vmem:[#allocation20 + $0x68] sm:$0x3]
    %v2856 = vsel %vm629, %v2853, 0
    %v2859 = vsel %vm629, %v2854, 0
    %2861 = vmatprep.subr.mxu0 0.0
    %2862 = vmatpush1.msra.mxu0 0.0
    %2863 = vmatprep.subr.mxu0 0.0
    %2864 = vmatpush1.msra.mxu0 0.0
    %2865 = vmatprep.subr.mxu0 0.0
    %2866 = vmatpush1.msra.mxu0 0.0
    %2867 = vmatprep.subr.mxu0 0.0
    %2868 = vmatpush1.msra.mxu0 0.0
    %2869 = vmatprep.subr.mxu0 0.0
    %2870 = vmatpush1.msra.mxu0 0.0
    %2871 = vmatprep.subr.mxu0 0.0
    %2872 = vmatpush1.msra.mxu0 0.0
    %2873 = vmatprep.subr.mxu0 0.0
    %2874 = vmatpush1.msra.mxu0 0.0
    %2875 = vmatprep.subr.mxu0 0.0
    %2876 = vmatpush1.msra.mxu0 0.0
    %2877 = vmatprep.subr.mxu0 0.0
    %2878 = vmatpush1.msra.mxu0 0.0
    %2879 = vmatprep.subr.mxu0 %v2859
    %2880 = vmatpush1.msra.mxu0 %v2856
    %2881 = vmatprep.subr.mxu0 %v2852
    %2882 = vmatpush1.msra.mxu0 %v2851
    %2883 = vmatprep.subr.mxu0 %v2850
    %2884 = vmatpush1.msra.mxu0 %v2849
    %2885 = vmatprep.subr.mxu0 %v2848
    %2886 = vmatpush1.msra.mxu0 %v2847
    %2887 = vmatprep.subr.mxu0 %v2846
    %2888 = vmatpush1.msra.mxu0 %v2845
    %2889 = vmatprep.subr.mxu0 %v2844
    %2890 = vmatpush1.msra.mxu0 %v2843
    %2891 = vmatprep.subr.mxu0 %v2842
    %2892 = vmatpush1.msra.mxu0 %v2841
    %2893 = vmatprep.subr.mxu0 0.0
    %2894 = vmatpush2.msra.mxu0 0.0
    %2895 = vmatprep.subr.mxu0 0.0
    %2896 = vmatpush2.msra.mxu0 0.0
    %2897 = vmatprep.subr.mxu0 0.0
    %2898 = vmatpush2.msra.mxu0 0.0
    %2899 = vmatprep.subr.mxu0 0.0
    %2900 = vmatpush2.msra.mxu0 0.0
    %2901 = vmatprep.subr.mxu0 0.0
    %2902 = vmatpush2.msra.mxu0 0.0
    %2903 = vmatprep.subr.mxu0 0.0
    %2904 = vmatpush2.msra.mxu0 0.0
    %2905 = vmatprep.subr.mxu0 0.0
    %2906 = vmatpush2.msra.mxu0 0.0
    %2907 = vmatprep.subr.mxu0 0.0
    %2908 = vmatpush2.msra.mxu0 0.0
    %2909 = vmatprep.subr.mxu0 0.0
    %2910 = vmatpush2.msra.mxu0 0.0
    %2911 = vmatprep.subr.mxu0 0.0
    %2912 = vmatpush2.msra.mxu0 0.0
    %2913 = vmatprep.subr.mxu0 0.0
    %2914 = vmatpush2.msra.mxu0 0.0
    %2915 = vmatprep.subr.mxu0 0.0
    %2916 = vmatpush2.msra.mxu0 0.0
    %2917 = vmatprep.subr.mxu0 0.0
    %2918 = vmatpush2.msra.mxu0 0.0
    %2919 = vmatprep.subr.mxu0 0.0
    %2920 = vmatpush2.msra.mxu0 0.0
    %2921 = vmatprep.subr.mxu0 0.0
    %2922 = vmatpush2.msra.mxu0 0.0
    %2923 = vmatprep.subr.mxu0 0.0
    %2924 = vmatpush2.msra.mxu0 0.0
    %2925 = vmatprep.mubr.f32.mxu0 0.0
    %2926 = vmatmul.mubr.f32.gmra.mxu0 %v739
    %v2927 = vpop.f32.mrf.mxu0
    %v2928 = vadd.f32 0.0, %v2927
    %v2929 = vpop.f32.mrf.mxu0
    %v2930 = vadd.f32 0.0, %v2929
    %2931 = vdwg.mxu0
    %v2932 = vadd.f32 %v2831, %v2928
    %v2933 = vadd.f32 %v2833, %v2930
    %v2934 = vxor.u32 %v2932, 2147483648
    %v2935 = vmul.f32 %v2934, 1.442695
    %v2936 = vpow.pop %v2935
    %v2937 = vadd.f32 %v2936, 1.0
    %v2938 = vrcp.pop %v2937
    %v2939 = vmul.f32 1.0, %v2938
    %v2940 = vtanh.pop %v2932
    %v2941 = vtanh.pop %v2933
    %v2942 = vxor.u32 %v2933, 2147483648
    %v2943 = vmul.f32 %v2942, 1.442695
    %v2944 = vpow.pop %v2943
    %v2945 = vadd.f32 %v2944, 1.0
    %v2946 = vrcp.pop %v2945
    %v2947 = vmul.f32 1.0, %v2946
    %v2948 = vmul.f32 %v2939, 0.0
    %2951 = vrot.lane.b32.xlu0 %v2940, 28
    %v2952 = vpop.permute.xlu0 %2951
    %2953 = vrot.lane.b32.xlu0 %v2941, 28
    %v2954 = vpop.permute.xlu0 %2953
    %v2955 = vsel %vm841, %v2952, %v2954
    %v2957 = vmul.f32 %v2939, %v2955
    %2959 = vrot.lane.b32.xlu0 %v2957, 50
    %v2960 = vpop.permute.xlu0 %2959
    %v2962 = vadd.f32 %v2948, %v2960
    %v2963 = vtanh.pop %v2962
    %2965 = vrot.lane.b32.xlu0 %v2963, 100
    %v2966 = vpop.permute.xlu0 %2965
    %v2968 = vmul.f32 %v2947, %v2966
    %2970 = vrot.lane.b32.xlu0 %v2968, 106
    %v2971 = vpop.permute.xlu0 %2970
    %2973 = vst.msk [vmem:[#allocation6] sm:$0x3] %vm860, %v2971
    %v2974 = vsel %vm737, %v2971, 0
    %2976 = vmatprep.subr.mxu0 0.0
    %2977 = vmatpush1.msra.mxu0 0.0
    %2978 = vmatprep.subr.mxu0 0.0
    %2979 = vmatpush1.msra.mxu0 0.0
    %2980 = vmatprep.subr.mxu0 0.0
    %2981 = vmatpush1.msra.mxu0 0.0
    %2982 = vmatprep.subr.mxu0 0.0
    %2983 = vmatpush1.msra.mxu0 0.0
    %2984 = vmatprep.subr.mxu0 0.0
    %2985 = vmatpush1.msra.mxu0 0.0
    %2986 = vmatprep.subr.mxu0 0.0
    %2987 = vmatpush1.msra.mxu0 0.0
    %2988 = vmatprep.subr.mxu0 0.0
    %2989 = vmatpush1.msra.mxu0 0.0
    %2990 = vmatprep.subr.mxu0 0.0
    %2991 = vmatpush1.msra.mxu0 0.0
    %2992 = vmatprep.subr.mxu0 0.0
    %2993 = vmatpush1.msra.mxu0 0.0
    %2994 = vmatprep.subr.mxu0 %v2859
    %2995 = vmatpush1.msra.mxu0 %v2856
    %2996 = vmatprep.subr.mxu0 %v2852
    %2997 = vmatpush1.msra.mxu0 %v2851
    %2998 = vmatprep.subr.mxu0 %v2850
    %2999 = vmatpush1.msra.mxu0 %v2849
    %3000 = vmatprep.subr.mxu0 %v2848
    %3001 = vmatpush1.msra.mxu0 %v2847
    %3002 = vmatprep.subr.mxu0 %v2846
    %3003 = vmatpush1.msra.mxu0 %v2845
    %3004 = vmatprep.subr.mxu0 %v2844
    %3005 = vmatpush1.msra.mxu0 %v2843
    %3006 = vmatprep.subr.mxu0 %v2842
    %3007 = vmatpush1.msra.mxu0 %v2841
    %3008 = vmatprep.subr.mxu0 0.0
    %3009 = vmatpush2.msra.mxu0 0.0
    %3010 = vmatprep.subr.mxu0 0.0
    %3011 = vmatpush2.msra.mxu0 0.0
    %3012 = vmatprep.subr.mxu0 0.0
    %3013 = vmatpush2.msra.mxu0 0.0
    %3014 = vmatprep.subr.mxu0 0.0
    %3015 = vmatpush2.msra.mxu0 0.0
    %3016 = vmatprep.subr.mxu0 0.0
    %3017 = vmatpush2.msra.mxu0 0.0
    %3018 = vmatprep.subr.mxu0 0.0
    %3019 = vmatpush2.msra.mxu0 0.0
    %3020 = vmatprep.subr.mxu0 0.0
    %3021 = vmatpush2.msra.mxu0 0.0
    %3022 = vmatprep.subr.mxu0 0.0
    %3023 = vmatpush2.msra.mxu0 0.0
    %3024 = vmatprep.subr.mxu0 0.0
    %3025 = vmatpush2.msra.mxu0 0.0
    %3026 = vmatprep.subr.mxu0 0.0
    %3027 = vmatpush2.msra.mxu0 0.0
    %3028 = vmatprep.subr.mxu0 0.0
    %3029 = vmatpush2.msra.mxu0 0.0
    %3030 = vmatprep.subr.mxu0 0.0
    %3031 = vmatpush2.msra.mxu0 0.0
    %3032 = vmatprep.subr.mxu0 0.0
    %3033 = vmatpush2.msra.mxu0 0.0
    %3034 = vmatprep.subr.mxu0 0.0
    %3035 = vmatpush2.msra.mxu0 0.0
    %3036 = vmatprep.subr.mxu0 0.0
    %3037 = vmatpush2.msra.mxu0 0.0
    %3038 = vmatprep.subr.mxu0 0.0
    %3039 = vmatpush2.msra.mxu0 0.0
    %3040 = vmatprep.mubr.f32.mxu0 0.0
    %3041 = vmatmul.mubr.f32.gmra.mxu0 %v2974
    %v3042 = vpop.f32.mrf.mxu0
    %v3043 = vadd.f32 0.0, %v3042
    %v3044 = vpop.f32.mrf.mxu0
    %v3045 = vadd.f32 0.0, %v3044
    %3046 = vdwg.mxu0
    %v3049 = vrot.slane %v3043, 6
    %v3050 = vrot.slane %v3045, 6
    %v3053 = vadd.f32 %v2831, %v3049
    %v3054 = vadd.f32 %v2833, %v3050
    %v3055 = vxor.u32 %v3053, 2147483648
    %v3056 = vmul.f32 %v3055, 1.442695
    %v3057 = vpow.pop %v3056
    %v3058 = vadd.f32 %v3057, 1.0
    %v3059 = vrcp.pop %v3058
    %v3060 = vmul.f32 1.0, %v3059
    %v3061 = vtanh.pop %v3053
    %v3062 = vtanh.pop %v3054
    %v3063 = vxor.u32 %v3054, 2147483648
    %v3064 = vmul.f32 %v3063, 1.442695
    %v3065 = vpow.pop %v3064
    %v3066 = vadd.f32 %v3065, 1.0
    %v3067 = vrcp.pop %v3066
    %v3068 = vmul.f32 1.0, %v3067
    %v3070 = vrot.slane %v2962, 6
    %v3072 = vmul.f32 %v3060, %v3070
    %3075 = vrot.lane.b32.xlu0 %v3061, 28
    %v3076 = vpop.permute.xlu0 %3075
    %3077 = vrot.lane.b32.xlu0 %v3062, 28
    %v3078 = vpop.permute.xlu0 %3077
    %v3079 = vsel %vm841, %v3076, %v3078
    %v3081 = vmul.f32 %v3060, %v3079
    %3083 = vrot.lane.b32.xlu0 %v3081, 50
    %v3084 = vpop.permute.xlu0 %3083
    %v3086 = vadd.f32 %v3072, %v3084
    %v3087 = vtanh.pop %v3086
    %3089 = vrot.lane.b32.xlu0 %v3087, 100
    %v3090 = vpop.permute.xlu0 %3089
    %v3092 = vmul.f32 %v3068, %v3090
    %3094 = vrot.lane.b32.xlu0 %v3092, 106
    %v3095 = vpop.permute.xlu0 %3094
    %3097 = vst.msk [vmem:[#allocation6] sm:$0xc] %vm985, %v3095
    %v3098 = vrot.slane %v3092, 2
    %3099 = vrot.lane.b32.xlu0 %v3098, 106
    %v3100 = vpop.permute.xlu0 %3099
    %v3101 = vsel %vm737, %v3100, 0
    %3103 = vmatprep.subr.mxu0 0.0
    %3104 = vmatpush1.msra.mxu0 0.0
    %3105 = vmatprep.subr.mxu0 0.0
    %3106 = vmatpush1.msra.mxu0 0.0
    %3107 = vmatprep.subr.mxu0 0.0
    %3108 = vmatpush1.msra.mxu0 0.0
    %3109 = vmatprep.subr.mxu0 0.0
    %3110 = vmatpush1.msra.mxu0 0.0
    %3111 = vmatprep.subr.mxu0 0.0
    %3112 = vmatpush1.msra.mxu0 0.0
    %3113 = vmatprep.subr.mxu0 0.0
    %3114 = vmatpush1.msra.mxu0 0.0
    %3115 = vmatprep.subr.mxu0 0.0
    %3116 = vmatpush1.msra.mxu0 0.0
    %3117 = vmatprep.subr.mxu0 0.0
    %3118 = vmatpush1.msra.mxu0 0.0
    %3119 = vmatprep.subr.mxu0 0.0
    %3120 = vmatpush1.msra.mxu0 0.0
    %3121 = vmatprep.subr.mxu0 %v2859
    %3122 = vmatpush1.msra.mxu0 %v2856
    %3123 = vmatprep.subr.mxu0 %v2852
    %3124 = vmatpush1.msra.mxu0 %v2851
    %3125 = vmatprep.subr.mxu0 %v2850
    %3126 = vmatpush1.msra.mxu0 %v2849
    %3127 = vmatprep.subr.mxu0 %v2848
    %3128 = vmatpush1.msra.mxu0 %v2847
    %3129 = vmatprep.subr.mxu0 %v2846
    %3130 = vmatpush1.msra.mxu0 %v2845
    %3131 = vmatprep.subr.mxu0 %v2844
    %3132 = vmatpush1.msra.mxu0 %v2843
    %3133 = vmatprep.subr.mxu0 %v2842
    %3134 = vmatpush1.msra.mxu0 %v2841
    %3135 = vmatprep.subr.mxu0 0.0
    %3136 = vmatpush2.msra.mxu0 0.0
    %3137 = vmatprep.subr.mxu0 0.0
    %3138 = vmatpush2.msra.mxu0 0.0
    %3139 = vmatprep.subr.mxu0 0.0
    %3140 = vmatpush2.msra.mxu0 0.0
    %3141 = vmatprep.subr.mxu0 0.0
    %3142 = vmatpush2.msra.mxu0 0.0
    %3143 = vmatprep.subr.mxu0 0.0
    %3144 = vmatpush2.msra.mxu0 0.0
    %3145 = vmatprep.subr.mxu0 0.0
    %3146 = vmatpush2.msra.mxu0 0.0
    %3147 = vmatprep.subr.mxu0 0.0
    %3148 = vmatpush2.msra.mxu0 0.0
    %3149 = vmatprep.subr.mxu0 0.0
    %3150 = vmatpush2.msra.mxu0 0.0
    %3151 = vmatprep.subr.mxu0 0.0
    %3152 = vmatpush2.msra.mxu0 0.0
    %3153 = vmatprep.subr.mxu0 0.0
    %3154 = vmatpush2.msra.mxu0 0.0
    %3155 = vmatprep.subr.mxu0 0.0
    %3156 = vmatpush2.msra.mxu0 0.0
    %3157 = vmatprep.subr.mxu0 0.0
    %3158 = vmatpush2.msra.mxu0 0.0
    %3159 = vmatprep.subr.mxu0 0.0
    %3160 = vmatpush2.msra.mxu0 0.0
    %3161 = vmatprep.subr.mxu0 0.0
    %3162 = vmatpush2.msra.mxu0 0.0
    %3163 = vmatprep.subr.mxu0 0.0
    %3164 = vmatpush2.msra.mxu0 0.0
    %3165 = vmatprep.subr.mxu0 0.0
    %3166 = vmatpush2.msra.mxu0 0.0
    %3167 = vmatprep.mubr.f32.mxu0 0.0
    %3168 = vmatmul.mubr.f32.gmra.mxu0 %v3101
    %v3169 = vpop.f32.mrf.mxu0
    %v3170 = vadd.f32 0.0, %v3169
    %v3171 = vpop.f32.mrf.mxu0
    %v3172 = vadd.f32 0.0, %v3171
    %3173 = vdwg.mxu0
    %v3176 = vrot.slane %v3170, 4
    %v3177 = vrot.slane %v3172, 4
    %v3180 = vadd.f32 %v2831, %v3176
    %v3181 = vadd.f32 %v2833, %v3177
    %v3182 = vxor.u32 %v3180, 2147483648
    %v3183 = vmul.f32 %v3182, 1.442695
    %v3184 = vpow.pop %v3183
    %v3185 = vadd.f32 %v3184, 1.0
    %v3186 = vrcp.pop %v3185
    %v3187 = vmul.f32 1.0, %v3186
    %v3188 = vtanh.pop %v3180
    %v3189 = vtanh.pop %v3181
    %v3190 = vxor.u32 %v3181, 2147483648
    %v3191 = vmul.f32 %v3190, 1.442695
    %v3192 = vpow.pop %v3191
    %v3193 = vadd.f32 %v3192, 1.0
    %v3194 = vrcp.pop %v3193
    %v3195 = vmul.f32 1.0, %v3194
    %v3197 = vrot.slane %v3086, 6
    %v3199 = vmul.f32 %v3187, %v3197
    %3202 = vrot.lane.b32.xlu0 %v3188, 28
    %v3203 = vpop.permute.xlu0 %3202
    %3204 = vrot.lane.b32.xlu0 %v3189, 28
    %v3205 = vpop.permute.xlu0 %3204
    %v3206 = vsel %vm841, %v3203, %v3205
    %v3208 = vmul.f32 %v3187, %v3206
    %3210 = vrot.lane.b32.xlu0 %v3208, 50
    %v3211 = vpop.permute.xlu0 %3210
    %v3213 = vadd.f32 %v3199, %v3211
    %v3214 = vtanh.pop %v3213
    %3216 = vrot.lane.b32.xlu0 %v3214, 100
    %v3217 = vpop.permute.xlu0 %3216
    %v3219 = vmul.f32 %v3195, %v3217
    %3221 = vrot.lane.b32.xlu0 %v3219, 106
    %v3222 = vpop.permute.xlu0 %3221
    %3224 = vst.msk [vmem:[#allocation6] sm:$0x30] %vm1113, %v3222
    %v3225 = vrot.slane %v3219, 4
    %3226 = vrot.lane.b32.xlu0 %v3225, 106
    %v3227 = vpop.permute.xlu0 %3226
    %v3228 = vsel %vm737, %v3227, 0
    %3230 = vmatprep.subr.mxu0 0.0
    %3231 = vmatpush1.msra.mxu0 0.0
    %3232 = vmatprep.subr.mxu0 0.0
    %3233 = vmatpush1.msra.mxu0 0.0
    %3234 = vmatprep.subr.mxu0 0.0
    %3235 = vmatpush1.msra.mxu0 0.0
    %3236 = vmatprep.subr.mxu0 0.0
    %3237 = vmatpush1.msra.mxu0 0.0
    %3238 = vmatprep.subr.mxu0 0.0
    %3239 = vmatpush1.msra.mxu0 0.0
    %3240 = vmatprep.subr.mxu0 0.0
    %3241 = vmatpush1.msra.mxu0 0.0
    %3242 = vmatprep.subr.mxu0 0.0
    %3243 = vmatpush1.msra.mxu0 0.0
    %3244 = vmatprep.subr.mxu0 0.0
    %3245 = vmatpush1.msra.mxu0 0.0
    %3246 = vmatprep.subr.mxu0 0.0
    %3247 = vmatpush1.msra.mxu0 0.0
    %3248 = vmatprep.subr.mxu0 %v2859
    %3249 = vmatpush1.msra.mxu0 %v2856
    %3250 = vmatprep.subr.mxu0 %v2852
    %3251 = vmatpush1.msra.mxu0 %v2851
    %3252 = vmatprep.subr.mxu0 %v2850
    %3253 = vmatpush1.msra.mxu0 %v2849
    %3254 = vmatprep.subr.mxu0 %v2848
    %3255 = vmatpush1.msra.mxu0 %v2847
    %3256 = vmatprep.subr.mxu0 %v2846
    %3257 = vmatpush1.msra.mxu0 %v2845
    %3258 = vmatprep.subr.mxu0 %v2844
    %3259 = vmatpush1.msra.mxu0 %v2843
    %3260 = vmatprep.subr.mxu0 %v2842
    %3261 = vmatpush1.msra.mxu0 %v2841
    %3262 = vmatprep.subr.mxu0 0.0
    %3263 = vmatpush2.msra.mxu0 0.0
    %3264 = vmatprep.subr.mxu0 0.0
    %3265 = vmatpush2.msra.mxu0 0.0
    %3266 = vmatprep.subr.mxu0 0.0
    %3267 = vmatpush2.msra.mxu0 0.0
    %3268 = vmatprep.subr.mxu0 0.0
    %3269 = vmatpush2.msra.mxu0 0.0
    %3270 = vmatprep.subr.mxu0 0.0
    %3271 = vmatpush2.msra.mxu0 0.0
    %3272 = vmatprep.subr.mxu0 0.0
    %3273 = vmatpush2.msra.mxu0 0.0
    %3274 = vmatprep.subr.mxu0 0.0
    %3275 = vmatpush2.msra.mxu0 0.0
    %3276 = vmatprep.subr.mxu0 0.0
    %3277 = vmatpush2.msra.mxu0 0.0
    %3278 = vmatprep.subr.mxu0 0.0
    %3279 = vmatpush2.msra.mxu0 0.0
    %3280 = vmatprep.subr.mxu0 0.0
    %3281 = vmatpush2.msra.mxu0 0.0
    %3282 = vmatprep.subr.mxu0 0.0
    %3283 = vmatpush2.msra.mxu0 0.0
    %3284 = vmatprep.subr.mxu0 0.0
    %3285 = vmatpush2.msra.mxu0 0.0
    %3286 = vmatprep.subr.mxu0 0.0
    %3287 = vmatpush2.msra.mxu0 0.0
    %3288 = vmatprep.subr.mxu0 0.0
    %3289 = vmatpush2.msra.mxu0 0.0
    %3290 = vmatprep.subr.mxu0 0.0
    %3291 = vmatpush2.msra.mxu0 0.0
    %3292 = vmatprep.subr.mxu0 0.0
    %3293 = vmatpush2.msra.mxu0 0.0
    %3294 = vmatprep.mubr.f32.mxu0 0.0
    %3295 = vmatmul.mubr.f32.gmra.mxu0 %v3228
    %v3296 = vpop.f32.mrf.mxu0
    %v3297 = vadd.f32 0.0, %v3296
    %v3298 = vpop.f32.mrf.mxu0
    %v3299 = vadd.f32 0.0, %v3298
    %3300 = vdwg.mxu0
    %v3303 = vrot.slane %v3297, 2
    %v3304 = vrot.slane %v3299, 2
    %v3307 = vadd.f32 %v2831, %v3303
    %v3308 = vadd.f32 %v2833, %v3304
    %v3309 = vxor.u32 %v3307, 2147483648
    %v3310 = vmul.f32 %v3309, 1.442695
    %v3311 = vpow.pop %v3310
    %v3312 = vadd.f32 %v3311, 1.0
    %v3313 = vrcp.pop %v3312
    %v3314 = vmul.f32 1.0, %v3313
    %v3315 = vtanh.pop %v3307
    %v3316 = vtanh.pop %v3308
    %v3317 = vxor.u32 %v3308, 2147483648
    %v3318 = vmul.f32 %v3317, 1.442695
    %v3319 = vpow.pop %v3318
    %v3320 = vadd.f32 %v3319, 1.0
    %v3321 = vrcp.pop %v3320
    %v3322 = vmul.f32 1.0, %v3321
    %v3324 = vrot.slane %v3213, 6
    %v3326 = vmul.f32 %v3314, %v3324
    %3329 = vrot.lane.b32.xlu0 %v3315, 28
    %v3330 = vpop.permute.xlu0 %3329
    %3331 = vrot.lane.b32.xlu0 %v3316, 28
    %v3332 = vpop.permute.xlu0 %3331
    %v3333 = vsel %vm841, %v3330, %v3332
    %v3335 = vmul.f32 %v3314, %v3333
    %3337 = vrot.lane.b32.xlu0 %v3335, 50
    %v3338 = vpop.permute.xlu0 %3337
    %v3340 = vadd.f32 %v3326, %v3338
    %v3341 = vtanh.pop %v3340
    %3343 = vrot.lane.b32.xlu0 %v3341, 100
    %v3344 = vpop.permute.xlu0 %3343
    %v3346 = vmul.f32 %v3322, %v3344
    %3348 = vrot.lane.b32.xlu0 %v3346, 106
    %v3349 = vpop.permute.xlu0 %3348
    %3351 = vst.msk [vmem:[#allocation6] sm:$0xc0] %vm1241, %v3349
    %v3352 = vrot.slane %v3346, 6
    %3353 = vrot.lane.b32.xlu0 %v3352, 106
    %v3354 = vpop.permute.xlu0 %3353
    %v3355 = vsel %vm737, %v3354, 0
    %3357 = vmatprep.subr.mxu0 0.0
    %3358 = vmatpush1.msra.mxu0 0.0
    %3359 = vmatprep.subr.mxu0 0.0
    %3360 = vmatpush1.msra.mxu0 0.0
    %3361 = vmatprep.subr.mxu0 0.0
    %3362 = vmatpush1.msra.mxu0 0.0
    %3363 = vmatprep.subr.mxu0 0.0
    %3364 = vmatpush1.msra.mxu0 0.0
    %3365 = vmatprep.subr.mxu0 0.0
    %3366 = vmatpush1.msra.mxu0 0.0
    %3367 = vmatprep.subr.mxu0 0.0
    %3368 = vmatpush1.msra.mxu0 0.0
    %3369 = vmatprep.subr.mxu0 0.0
    %3370 = vmatpush1.msra.mxu0 0.0
    %3371 = vmatprep.subr.mxu0 0.0
    %3372 = vmatpush1.msra.mxu0 0.0
    %3373 = vmatprep.subr.mxu0 0.0
    %3374 = vmatpush1.msra.mxu0 0.0
    %3375 = vmatprep.subr.mxu0 %v2859
    %3376 = vmatpush1.msra.mxu0 %v2856
    %3377 = vmatprep.subr.mxu0 %v2852
    %3378 = vmatpush1.msra.mxu0 %v2851
    %3379 = vmatprep.subr.mxu0 %v2850
    %3380 = vmatpush1.msra.mxu0 %v2849
    %3381 = vmatprep.subr.mxu0 %v2848
    %3382 = vmatpush1.msra.mxu0 %v2847
    %3383 = vmatprep.subr.mxu0 %v2846
    %3384 = vmatpush1.msra.mxu0 %v2845
    %3385 = vmatprep.subr.mxu0 %v2844
    %3386 = vmatpush1.msra.mxu0 %v2843
    %3387 = vmatprep.subr.mxu0 %v2842
    %3388 = vmatpush1.msra.mxu0 %v2841
    %3389 = vmatprep.subr.mxu0 0.0
    %3390 = vmatpush2.msra.mxu0 0.0
    %3391 = vmatprep.subr.mxu0 0.0
    %3392 = vmatpush2.msra.mxu0 0.0
    %3393 = vmatprep.subr.mxu0 0.0
    %3394 = vmatpush2.msra.mxu0 0.0
    %3395 = vmatprep.subr.mxu0 0.0
    %3396 = vmatpush2.msra.mxu0 0.0
    %3397 = vmatprep.subr.mxu0 0.0
    %3398 = vmatpush2.msra.mxu0 0.0
    %3399 = vmatprep.subr.mxu0 0.0
    %3400 = vmatpush2.msra.mxu0 0.0
    %3401 = vmatprep.subr.mxu0 0.0
    %3402 = vmatpush2.msra.mxu0 0.0
    %3403 = vmatprep.subr.mxu0 0.0
    %3404 = vmatpush2.msra.mxu0 0.0
    %3405 = vmatprep.subr.mxu0 0.0
    %3406 = vmatpush2.msra.mxu0 0.0
    %3407 = vmatprep.subr.mxu0 0.0
    %3408 = vmatpush2.msra.mxu0 0.0
    %3409 = vmatprep.subr.mxu0 0.0
    %3410 = vmatpush2.msra.mxu0 0.0
    %3411 = vmatprep.subr.mxu0 0.0
    %3412 = vmatpush2.msra.mxu0 0.0
    %3413 = vmatprep.subr.mxu0 0.0
    %3414 = vmatpush2.msra.mxu0 0.0
    %3415 = vmatprep.subr.mxu0 0.0
    %3416 = vmatpush2.msra.mxu0 0.0
    %3417 = vmatprep.subr.mxu0 0.0
    %3418 = vmatpush2.msra.mxu0 0.0
    %3419 = vmatprep.subr.mxu0 0.0
    %3420 = vmatpush2.msra.mxu0 0.0
    %3421 = vmatprep.mubr.f32.mxu0 0.0
    %3422 = vmatmul.mubr.f32.gmra.mxu0 %v3355
    %v3423 = vpop.f32.mrf.mxu0
    %v3424 = vadd.f32 0.0, %v3423
    %v3425 = vpop.f32.mrf.mxu0
    %v3426 = vadd.f32 0.0, %v3425
    %3427 = vdwg.mxu0
    %v3428 = vadd.f32 %v2837, %v3424
    %v3429 = vadd.f32 %v2839, %v3426
    %v3430 = vxor.u32 %v3428, 2147483648
    %v3431 = vmul.f32 %v3430, 1.442695
    %v3432 = vpow.pop %v3431
    %v3433 = vadd.f32 %v3432, 1.0
    %v3434 = vrcp.pop %v3433
    %v3435 = vmul.f32 1.0, %v3434
    %v3436 = vtanh.pop %v3428
    %v3437 = vtanh.pop %v3429
    %v3438 = vxor.u32 %v3429, 2147483648
    %v3439 = vmul.f32 %v3438, 1.442695
    %v3440 = vpow.pop %v3439
    %v3441 = vadd.f32 %v3440, 1.0
    %v3442 = vrcp.pop %v3441
    %v3443 = vmul.f32 1.0, %v3442
    %v3445 = vrot.slane %v3340, 6
    %v3447 = vmul.f32 %v3435, %v3445
    %3450 = vrot.lane.b32.xlu0 %v3436, 28
    %v3451 = vpop.permute.xlu0 %3450
    %3452 = vrot.lane.b32.xlu0 %v3437, 28
    %v3453 = vpop.permute.xlu0 %3452
    %v3454 = vsel %vm841, %v3451, %v3453
    %v3456 = vmul.f32 %v3435, %v3454
    %3458 = vrot.lane.b32.xlu0 %v3456, 50
    %v3459 = vpop.permute.xlu0 %3458
    %v3461 = vadd.f32 %v3447, %v3459
    %v3462 = vtanh.pop %v3461
    %3464 = vrot.lane.b32.xlu0 %v3462, 100
    %v3465 = vpop.permute.xlu0 %3464
    %v3467 = vmul.f32 %v3443, %v3465
    %3469 = vrot.lane.b32.xlu0 %v3467, 106
    %v3470 = vpop.permute.xlu0 %3469
    %3472 = vst.msk [vmem:[#allocation6 + $0x8] sm:$0x3] %vm860, %v3470
    %v3473 = vsel %vm737, %v3470, 0
    %3475 = vmatprep.subr.mxu0 0.0
    %3476 = vmatpush1.msra.mxu0 0.0
    %3477 = vmatprep.subr.mxu0 0.0
    %3478 = vmatpush1.msra.mxu0 0.0
    %3479 = vmatprep.subr.mxu0 0.0
    %3480 = vmatpush1.msra.mxu0 0.0
    %3481 = vmatprep.subr.mxu0 0.0
    %3482 = vmatpush1.msra.mxu0 0.0
    %3483 = vmatprep.subr.mxu0 0.0
    %3484 = vmatpush1.msra.mxu0 0.0
    %3485 = vmatprep.subr.mxu0 0.0
    %3486 = vmatpush1.msra.mxu0 0.0
    %3487 = vmatprep.subr.mxu0 0.0
    %3488 = vmatpush1.msra.mxu0 0.0
    %3489 = vmatprep.subr.mxu0 0.0
    %3490 = vmatpush1.msra.mxu0 0.0
    %3491 = vmatprep.subr.mxu0 0.0
    %3492 = vmatpush1.msra.mxu0 0.0
    %3493 = vmatprep.subr.mxu0 %v2859
    %3494 = vmatpush1.msra.mxu0 %v2856
    %3495 = vmatprep.subr.mxu0 %v2852
    %3496 = vmatpush1.msra.mxu0 %v2851
    %3497 = vmatprep.subr.mxu0 %v2850
    %3498 = vmatpush1.msra.mxu0 %v2849
    %3499 = vmatprep.subr.mxu0 %v2848
    %3500 = vmatpush1.msra.mxu0 %v2847
    %3501 = vmatprep.subr.mxu0 %v2846
    %3502 = vmatpush1.msra.mxu0 %v2845
    %3503 = vmatprep.subr.mxu0 %v2844
    %3504 = vmatpush1.msra.mxu0 %v2843
    %3505 = vmatprep.subr.mxu0 %v2842
    %3506 = vmatpush1.msra.mxu0 %v2841
    %3507 = vmatprep.subr.mxu0 0.0
    %3508 = vmatpush2.msra.mxu0 0.0
    %3509 = vmatprep.subr.mxu0 0.0
    %3510 = vmatpush2.msra.mxu0 0.0
    %3511 = vmatprep.subr.mxu0 0.0
    %3512 = vmatpush2.msra.mxu0 0.0
    %3513 = vmatprep.subr.mxu0 0.0
    %3514 = vmatpush2.msra.mxu0 0.0
    %3515 = vmatprep.subr.mxu0 0.0
    %3516 = vmatpush2.msra.mxu0 0.0
    %3517 = vmatprep.subr.mxu0 0.0
    %3518 = vmatpush2.msra.mxu0 0.0
    %3519 = vmatprep.subr.mxu0 0.0
    %3520 = vmatpush2.msra.mxu0 0.0
    %3521 = vmatprep.subr.mxu0 0.0
    %3522 = vmatpush2.msra.mxu0 0.0
    %3523 = vmatprep.subr.mxu0 0.0
    %3524 = vmatpush2.msra.mxu0 0.0
    %3525 = vmatprep.subr.mxu0 0.0
    %3526 = vmatpush2.msra.mxu0 0.0
    %3527 = vmatprep.subr.mxu0 0.0
    %3528 = vmatpush2.msra.mxu0 0.0
    %3529 = vmatprep.subr.mxu0 0.0
    %3530 = vmatpush2.msra.mxu0 0.0
    %3531 = vmatprep.subr.mxu0 0.0
    %3532 = vmatpush2.msra.mxu0 0.0
    %3533 = vmatprep.subr.mxu0 0.0
    %3534 = vmatpush2.msra.mxu0 0.0
    %3535 = vmatprep.subr.mxu0 0.0
    %3536 = vmatpush2.msra.mxu0 0.0
    %3537 = vmatprep.subr.mxu0 0.0
    %3538 = vmatpush2.msra.mxu0 0.0
    %3539 = vmatprep.mubr.f32.mxu0 0.0
    %3540 = vmatmul.mubr.f32.gmra.mxu0 %v3473
    %v3541 = vpop.f32.mrf.mxu0
    %v3542 = vadd.f32 0.0, %v3541
    %v3543 = vpop.f32.mrf.mxu0
    %v3544 = vadd.f32 0.0, %v3543
    %3545 = vdwg.mxu0
    %v3548 = vrot.slane %v3542, 6
    %v3549 = vrot.slane %v3544, 6
    %v3552 = vadd.f32 %v2837, %v3548
    %v3553 = vadd.f32 %v2839, %v3549
    %v3554 = vxor.u32 %v3552, 2147483648
    %v3555 = vmul.f32 %v3554, 1.442695
    %v3556 = vpow.pop %v3555
    %v3557 = vadd.f32 %v3556, 1.0
    %v3558 = vrcp.pop %v3557
    %v3559 = vmul.f32 1.0, %v3558
    %v3560 = vtanh.pop %v3552
    %v3561 = vtanh.pop %v3553
    %v3562 = vxor.u32 %v3553, 2147483648
    %v3563 = vmul.f32 %v3562, 1.442695
    %v3564 = vpow.pop %v3563
    %v3565 = vadd.f32 %v3564, 1.0
    %v3566 = vrcp.pop %v3565
    %v3567 = vmul.f32 1.0, %v3566
    %v3569 = vrot.slane %v3461, 6
    %v3571 = vmul.f32 %v3559, %v3569
    %3574 = vrot.lane.b32.xlu0 %v3560, 28
    %v3575 = vpop.permute.xlu0 %3574
    %3576 = vrot.lane.b32.xlu0 %v3561, 28
    %v3577 = vpop.permute.xlu0 %3576
    %v3578 = vsel %vm841, %v3575, %v3577
    %v3580 = vmul.f32 %v3559, %v3578
    %3582 = vrot.lane.b32.xlu0 %v3580, 50
    %v3583 = vpop.permute.xlu0 %3582
    %v3585 = vadd.f32 %v3571, %v3583
    %v3586 = vtanh.pop %v3585
    %3588 = vrot.lane.b32.xlu0 %v3586, 100
    %v3589 = vpop.permute.xlu0 %3588
    %v3591 = vmul.f32 %v3567, %v3589
    %3593 = vrot.lane.b32.xlu0 %v3591, 106
    %v3594 = vpop.permute.xlu0 %3593
    %3596 = vst.msk [vmem:[#allocation6 + $0x8] sm:$0xc] %vm985, %v3594
    %v3597 = vrot.slane %v3591, 2
    %3598 = vrot.lane.b32.xlu0 %v3597, 106
    %v3599 = vpop.permute.xlu0 %3598
    %v3600 = vsel %vm737, %v3599, 0
    %3602 = vmatprep.subr.mxu0 0.0
    %3603 = vmatpush1.msra.mxu0 0.0
    %3604 = vmatprep.subr.mxu0 0.0
    %3605 = vmatpush1.msra.mxu0 0.0
    %3606 = vmatprep.subr.mxu0 0.0
    %3607 = vmatpush1.msra.mxu0 0.0
    %3608 = vmatprep.subr.mxu0 0.0
    %3609 = vmatpush1.msra.mxu0 0.0
    %3610 = vmatprep.subr.mxu0 0.0
    %3611 = vmatpush1.msra.mxu0 0.0
    %3612 = vmatprep.subr.mxu0 0.0
    %3613 = vmatpush1.msra.mxu0 0.0
    %3614 = vmatprep.subr.mxu0 0.0
    %3615 = vmatpush1.msra.mxu0 0.0
    %3616 = vmatprep.subr.mxu0 0.0
    %3617 = vmatpush1.msra.mxu0 0.0
    %3618 = vmatprep.subr.mxu0 0.0
    %3619 = vmatpush1.msra.mxu0 0.0
    %3620 = vmatprep.subr.mxu0 %v2859
    %3621 = vmatpush1.msra.mxu0 %v2856
    %3622 = vmatprep.subr.mxu0 %v2852
    %3623 = vmatpush1.msra.mxu0 %v2851
    %3624 = vmatprep.subr.mxu0 %v2850
    %3625 = vmatpush1.msra.mxu0 %v2849
    %3626 = vmatprep.subr.mxu0 %v2848
    %3627 = vmatpush1.msra.mxu0 %v2847
    %3628 = vmatprep.subr.mxu0 %v2846
    %3629 = vmatpush1.msra.mxu0 %v2845
    %3630 = vmatprep.subr.mxu0 %v2844
    %3631 = vmatpush1.msra.mxu0 %v2843
    %3632 = vmatprep.subr.mxu0 %v2842
    %3633 = vmatpush1.msra.mxu0 %v2841
    %3634 = vmatprep.subr.mxu0 0.0
    %3635 = vmatpush2.msra.mxu0 0.0
    %3636 = vmatprep.subr.mxu0 0.0
    %3637 = vmatpush2.msra.mxu0 0.0
    %3638 = vmatprep.subr.mxu0 0.0
    %3639 = vmatpush2.msra.mxu0 0.0
    %3640 = vmatprep.subr.mxu0 0.0
    %3641 = vmatpush2.msra.mxu0 0.0
    %3642 = vmatprep.subr.mxu0 0.0
    %3643 = vmatpush2.msra.mxu0 0.0
    %3644 = vmatprep.subr.mxu0 0.0
    %3645 = vmatpush2.msra.mxu0 0.0
    %3646 = vmatprep.subr.mxu0 0.0
    %3647 = vmatpush2.msra.mxu0 0.0
    %3648 = vmatprep.subr.mxu0 0.0
    %3649 = vmatpush2.msra.mxu0 0.0
    %3650 = vmatprep.subr.mxu0 0.0
    %3651 = vmatpush2.msra.mxu0 0.0
    %3652 = vmatprep.subr.mxu0 0.0
    %3653 = vmatpush2.msra.mxu0 0.0
    %3654 = vmatprep.subr.mxu0 0.0
    %3655 = vmatpush2.msra.mxu0 0.0
    %3656 = vmatprep.subr.mxu0 0.0
    %3657 = vmatpush2.msra.mxu0 0.0
    %3658 = vmatprep.subr.mxu0 0.0
    %3659 = vmatpush2.msra.mxu0 0.0
    %3660 = vmatprep.subr.mxu0 0.0
    %3661 = vmatpush2.msra.mxu0 0.0
    %3662 = vmatprep.subr.mxu0 0.0
    %3663 = vmatpush2.msra.mxu0 0.0
    %3664 = vmatprep.subr.mxu0 0.0
    %3665 = vmatpush2.msra.mxu0 0.0
    %3666 = vmatprep.mubr.f32.mxu0 0.0
    %3667 = vmatmul.mubr.f32.gmra.mxu0 %v3600
    %v3668 = vpop.f32.mrf.mxu0
    %v3669 = vadd.f32 0.0, %v3668
    %v3670 = vpop.f32.mrf.mxu0
    %v3671 = vadd.f32 0.0, %v3670
    %3672 = vdwg.mxu0
    %v3675 = vrot.slane %v3669, 4
    %v3676 = vrot.slane %v3671, 4
    %v3679 = vadd.f32 %v2837, %v3675
    %v3680 = vadd.f32 %v2839, %v3676
    %v3681 = vxor.u32 %v3679, 2147483648
    %v3682 = vmul.f32 %v3681, 1.442695
    %v3683 = vpow.pop %v3682
    %v3684 = vadd.f32 %v3683, 1.0
    %v3685 = vrcp.pop %v3684
    %v3686 = vmul.f32 1.0, %v3685
    %v3687 = vtanh.pop %v3679
    %v3688 = vtanh.pop %v3680
    %v3689 = vxor.u32 %v3680, 2147483648
    %v3690 = vmul.f32 %v3689, 1.442695
    %v3691 = vpow.pop %v3690
    %v3692 = vadd.f32 %v3691, 1.0
    %v3693 = vrcp.pop %v3692
    %v3694 = vmul.f32 1.0, %v3693
    %v3696 = vrot.slane %v3585, 6
    %v3698 = vmul.f32 %v3686, %v3696
    %3701 = vrot.lane.b32.xlu0 %v3687, 28
    %v3702 = vpop.permute.xlu0 %3701
    %3703 = vrot.lane.b32.xlu0 %v3688, 28
    %v3704 = vpop.permute.xlu0 %3703
    %v3705 = vsel %vm841, %v3702, %v3704
    %v3707 = vmul.f32 %v3686, %v3705
    %3709 = vrot.lane.b32.xlu0 %v3707, 50
    %v3710 = vpop.permute.xlu0 %3709
    %v3712 = vadd.f32 %v3698, %v3710
    %v3713 = vtanh.pop %v3712
    %3715 = vrot.lane.b32.xlu0 %v3713, 100
    %v3716 = vpop.permute.xlu0 %3715
    %v3718 = vmul.f32 %v3694, %v3716
    %3720 = vrot.lane.b32.xlu0 %v3718, 106
    %v3721 = vpop.permute.xlu0 %3720
    %3723 = vst.msk [vmem:[#allocation6 + $0x8] sm:$0x30] %vm1113, %v3721
    %v3724 = vrot.slane %v3718, 4
    %3725 = vrot.lane.b32.xlu0 %v3724, 106
    %v3726 = vpop.permute.xlu0 %3725
    %v3727 = vsel %vm737, %v3726, 0
    %3729 = vmatprep.subr.mxu0 0.0
    %3730 = vmatpush1.msra.mxu0 0.0
    %3731 = vmatprep.subr.mxu0 0.0
    %3732 = vmatpush1.msra.mxu0 0.0
    %3733 = vmatprep.subr.mxu0 0.0
    %3734 = vmatpush1.msra.mxu0 0.0
    %3735 = vmatprep.subr.mxu0 0.0
    %3736 = vmatpush1.msra.mxu0 0.0
    %3737 = vmatprep.subr.mxu0 0.0
    %3738 = vmatpush1.msra.mxu0 0.0
    %3739 = vmatprep.subr.mxu0 0.0
    %3740 = vmatpush1.msra.mxu0 0.0
    %3741 = vmatprep.subr.mxu0 0.0
    %3742 = vmatpush1.msra.mxu0 0.0
    %3743 = vmatprep.subr.mxu0 0.0
    %3744 = vmatpush1.msra.mxu0 0.0
    %3745 = vmatprep.subr.mxu0 0.0
    %3746 = vmatpush1.msra.mxu0 0.0
    %3747 = vmatprep.subr.mxu0 %v2859
    %3748 = vmatpush1.msra.mxu0 %v2856
    %3749 = vmatprep.subr.mxu0 %v2852
    %3750 = vmatpush1.msra.mxu0 %v2851
    %3751 = vmatprep.subr.mxu0 %v2850
    %3752 = vmatpush1.msra.mxu0 %v2849
    %3753 = vmatprep.subr.mxu0 %v2848
    %3754 = vmatpush1.msra.mxu0 %v2847
    %3755 = vmatprep.subr.mxu0 %v2846
    %3756 = vmatpush1.msra.mxu0 %v2845
    %3757 = vmatprep.subr.mxu0 %v2844
    %3758 = vmatpush1.msra.mxu0 %v2843
    %3759 = vmatprep.subr.mxu0 %v2842
    %3760 = vmatpush1.msra.mxu0 %v2841
    %3761 = vmatprep.subr.mxu0 0.0
    %3762 = vmatpush2.msra.mxu0 0.0
    %3763 = vmatprep.subr.mxu0 0.0
    %3764 = vmatpush2.msra.mxu0 0.0
    %3765 = vmatprep.subr.mxu0 0.0
    %3766 = vmatpush2.msra.mxu0 0.0
    %3767 = vmatprep.subr.mxu0 0.0
    %3768 = vmatpush2.msra.mxu0 0.0
    %3769 = vmatprep.subr.mxu0 0.0
    %3770 = vmatpush2.msra.mxu0 0.0
    %3771 = vmatprep.subr.mxu0 0.0
    %3772 = vmatpush2.msra.mxu0 0.0
    %3773 = vmatprep.subr.mxu0 0.0
    %3774 = vmatpush2.msra.mxu0 0.0
    %3775 = vmatprep.subr.mxu0 0.0
    %3776 = vmatpush2.msra.mxu0 0.0
    %3777 = vmatprep.subr.mxu0 0.0
    %3778 = vmatpush2.msra.mxu0 0.0
    %3779 = vmatprep.subr.mxu0 0.0
    %3780 = vmatpush2.msra.mxu0 0.0
    %3781 = vmatprep.subr.mxu0 0.0
    %3782 = vmatpush2.msra.mxu0 0.0
    %3783 = vmatprep.subr.mxu0 0.0
    %3784 = vmatpush2.msra.mxu0 0.0
    %3785 = vmatprep.subr.mxu0 0.0
    %3786 = vmatpush2.msra.mxu0 0.0
    %3787 = vmatprep.subr.mxu0 0.0
    %3788 = vmatpush2.msra.mxu0 0.0
    %3789 = vmatprep.subr.mxu0 0.0
    %3790 = vmatpush2.msra.mxu0 0.0
    %3791 = vmatprep.subr.mxu0 0.0
    %3792 = vmatpush2.msra.mxu0 0.0
    %3793 = vmatprep.mubr.f32.mxu0 0.0
    %3794 = vmatmul.mubr.f32.gmra.mxu0 %v3727
    %v3795 = vpop.f32.mrf.mxu0
    %v3796 = vadd.f32 0.0, %v3795
    %v3797 = vpop.f32.mrf.mxu0
    %v3798 = vadd.f32 0.0, %v3797
    %3799 = vdwg.mxu0
    %v3802 = vrot.slane %v3796, 2
    %v3803 = vrot.slane %v3798, 2
    %v3806 = vadd.f32 %v2837, %v3802
    %v3807 = vadd.f32 %v2839, %v3803
    %v3808 = vxor.u32 %v3806, 2147483648
    %v3809 = vmul.f32 %v3808, 1.442695
    %v3810 = vpow.pop %v3809
    %v3811 = vadd.f32 %v3810, 1.0
    %v3812 = vrcp.pop %v3811
    %v3813 = vmul.f32 1.0, %v3812
    %v3814 = vtanh.pop %v3806
    %v3815 = vtanh.pop %v3807
    %v3816 = vxor.u32 %v3807, 2147483648
    %v3817 = vmul.f32 %v3816, 1.442695
    %v3818 = vpow.pop %v3817
    %v3819 = vadd.f32 %v3818, 1.0
    %v3820 = vrcp.pop %v3819
    %v3821 = vmul.f32 1.0, %v3820
    %v3823 = vrot.slane %v3712, 6
    %v3825 = vmul.f32 %v3813, %v3823
    %3828 = vrot.lane.b32.xlu0 %v3814, 28
    %v3829 = vpop.permute.xlu0 %3828
    %3830 = vrot.lane.b32.xlu0 %v3815, 28
    %v3831 = vpop.permute.xlu0 %3830
    %v3832 = vsel %vm841, %v3829, %v3831
    %v3834 = vmul.f32 %v3813, %v3832
    %3836 = vrot.lane.b32.xlu0 %v3834, 50
    %v3837 = vpop.permute.xlu0 %3836
    %v3839 = vadd.f32 %v3825, %v3837
    %v3840 = vtanh.pop %v3839
    %3842 = vrot.lane.b32.xlu0 %v3840, 100
    %v3843 = vpop.permute.xlu0 %3842
    %v3845 = vmul.f32 %v3821, %v3843
    %3847 = vrot.lane.b32.xlu0 %v3845, 106
    %v3848 = vpop.permute.xlu0 %3847
    %3850 = vst.msk [vmem:[#allocation6 + $0x8] sm:$0xc0] %vm1241, %v3848
    %v3851 = vld [vmem:[#allocation4] sm:$0xff]
    %v3852 = vld [vmem:[#allocation23] sm:$0xff]
    %v3853 = vld [vmem:[#allocation23 + $0x8] sm:$0xff]
    %v3854 = vld [vmem:[#allocation23 + $0x10] sm:$0xff]
    %v3855 = vld [vmem:[#allocation23 + $0x18] sm:$0xff]
    %v3856 = vld [vmem:[#allocation26] sm:$0x3]
    %v3858 = vlaneseq
    %v3859 = vshrl.u32 %v3858, 7
    %v3860 = vsub.s32 0, %v3859
    %v3861 = vrot.slane %v3856, %v3860
    %v3862 = vlaneseq
    %v3863 = vshrl.u32 %v3862, 7
    %v3864 = vsub.s32 1, %v3863
    %v3865 = vrot.slane %v3856, %v3864
    %v3869 = vsel %vm263, %v3851, 0
    %3871 = vmatprep.subr.mxu0 0.0
    %3872 = vmatpush1.msra.mxu0 0.0
    %3873 = vmatprep.subr.mxu0 0.0
    %3874 = vmatpush1.msra.mxu0 0.0
    %3875 = vmatprep.subr.mxu0 0.0
    %3876 = vmatpush1.msra.mxu0 0.0
    %3877 = vmatprep.subr.mxu0 0.0
    %3878 = vmatpush1.msra.mxu0 0.0
    %3879 = vmatprep.subr.mxu0 0.0
    %3880 = vmatpush1.msra.mxu0 0.0
    %3881 = vmatprep.subr.mxu0 0.0
    %3882 = vmatpush1.msra.mxu0 0.0
    %3883 = vmatprep.subr.mxu0 0.0
    %3884 = vmatpush1.msra.mxu0 0.0
    %3885 = vmatprep.subr.mxu0 0.0
    %3886 = vmatpush1.msra.mxu0 0.0
    %3887 = vmatprep.subr.mxu0 0.0
    %3888 = vmatpush1.msra.mxu0 0.0
    %3889 = vmatprep.subr.mxu0 0.0
    %3890 = vmatpush1.msra.mxu0 0.0
    %3891 = vmatprep.subr.mxu0 0.0
    %3892 = vmatpush1.msra.mxu0 0.0
    %3893 = vmatprep.subr.mxu0 0.0
    %3894 = vmatpush1.msra.mxu0 0.0
    %3895 = vmatprep.subr.mxu0 0.0
    %3896 = vmatpush1.msra.mxu0 0.0
    %3897 = vmatprep.subr.mxu0 0.0
    %3898 = vmatpush1.msra.mxu0 0.0
    %3899 = vmatprep.subr.mxu0 %v3855
    %3900 = vmatpush1.msra.mxu0 %v3854
    %3901 = vmatprep.subr.mxu0 %v3853
    %3902 = vmatpush1.msra.mxu0 %v3852
    %3903 = vmatprep.subr.mxu0 0.0
    %3904 = vmatpush2.msra.mxu0 0.0
    %3905 = vmatprep.subr.mxu0 0.0
    %3906 = vmatpush2.msra.mxu0 0.0
    %3907 = vmatprep.subr.mxu0 0.0
    %3908 = vmatpush2.msra.mxu0 0.0
    %3909 = vmatprep.subr.mxu0 0.0
    %3910 = vmatpush2.msra.mxu0 0.0
    %3911 = vmatprep.subr.mxu0 0.0
    %3912 = vmatpush2.msra.mxu0 0.0
    %3913 = vmatprep.subr.mxu0 0.0
    %3914 = vmatpush2.msra.mxu0 0.0
    %3915 = vmatprep.subr.mxu0 0.0
    %3916 = vmatpush2.msra.mxu0 0.0
    %3917 = vmatprep.subr.mxu0 0.0
    %3918 = vmatpush2.msra.mxu0 0.0
    %3919 = vmatprep.subr.mxu0 0.0
    %3920 = vmatpush2.msra.mxu0 0.0
    %3921 = vmatprep.subr.mxu0 0.0
    %3922 = vmatpush2.msra.mxu0 0.0
    %3923 = vmatprep.subr.mxu0 0.0
    %3924 = vmatpush2.msra.mxu0 0.0
    %3925 = vmatprep.subr.mxu0 0.0
    %3926 = vmatpush2.msra.mxu0 0.0
    %3927 = vmatprep.subr.mxu0 0.0
    %3928 = vmatpush2.msra.mxu0 0.0
    %3929 = vmatprep.subr.mxu0 0.0
    %3930 = vmatpush2.msra.mxu0 0.0
    %3931 = vmatprep.subr.mxu0 0.0
    %3932 = vmatpush2.msra.mxu0 0.0
    %3933 = vmatprep.subr.mxu0 0.0
    %3934 = vmatpush2.msra.mxu0 0.0
    %3935 = vmatprep.mubr.f32.mxu0 0.0
    %3936 = vmatmul.mubr.f32.gmra.mxu0 %v3869
    %v3937 = vpop.f32.mrf.mxu0
    %v3938 = vadd.f32 %v3861, %v3937
    %v3939 = vpop.f32.mrf.mxu0
    %v3940 = vadd.f32 %v3865, %v3939
    %3941 = vdwg.mxu0
    %v3942 = vld [vmem:[#allocation24] sm:$0xff]
    %v3943 = vld [vmem:[#allocation24 + $0x8] sm:$0xff]
    %v3944 = vld [vmem:[#allocation24 + $0x10] sm:$0xff]
    %v3945 = vld [vmem:[#allocation24 + $0x18] sm:$0xff]
    %v3946 = vld [vmem:[#allocation24 + $0x20] sm:$0xff]
    %v3947 = vld [vmem:[#allocation24 + $0x28] sm:$0xff]
    %v3948 = vld [vmem:[#allocation24 + $0x30] sm:$0xff]
    %v3949 = vld [vmem:[#allocation24 + $0x38] sm:$0xff]
    %v3950 = vld [vmem:[#allocation24 + $0x40] sm:$0xff]
    %v3951 = vld [vmem:[#allocation24 + $0x48] sm:$0xff]
    %v3952 = vld [vmem:[#allocation24 + $0x50] sm:$0xff]
    %v3953 = vld [vmem:[#allocation24 + $0x58] sm:$0xff]
    %v3954 = vld [vmem:[#allocation24 + $0x60] sm:$0x3]
    %v3955 = vld [vmem:[#allocation24 + $0x68] sm:$0x3]
    %v3957 = vsel %vm629, %v3954, 0
    %v3960 = vsel %vm629, %v3955, 0
    %3962 = vmatprep.subr.mxu0 0.0
    %3963 = vmatpush1.msra.mxu0 0.0
    %3964 = vmatprep.subr.mxu0 0.0
    %3965 = vmatpush1.msra.mxu0 0.0
    %3966 = vmatprep.subr.mxu0 0.0
    %3967 = vmatpush1.msra.mxu0 0.0
    %3968 = vmatprep.subr.mxu0 0.0
    %3969 = vmatpush1.msra.mxu0 0.0
    %3970 = vmatprep.subr.mxu0 0.0
    %3971 = vmatpush1.msra.mxu0 0.0
    %3972 = vmatprep.subr.mxu0 0.0
    %3973 = vmatpush1.msra.mxu0 0.0
    %3974 = vmatprep.subr.mxu0 0.0
    %3975 = vmatpush1.msra.mxu0 0.0
    %3976 = vmatprep.subr.mxu0 0.0
    %3977 = vmatpush1.msra.mxu0 0.0
    %3978 = vmatprep.subr.mxu0 0.0
    %3979 = vmatpush1.msra.mxu0 0.0
    %3980 = vmatprep.subr.mxu0 %v3960
    %3981 = vmatpush1.msra.mxu0 %v3957
    %3982 = vmatprep.subr.mxu0 %v3953
    %3983 = vmatpush1.msra.mxu0 %v3952
    %3984 = vmatprep.subr.mxu0 %v3951
    %3985 = vmatpush1.msra.mxu0 %v3950
    %3986 = vmatprep.subr.mxu0 %v3949
    %3987 = vmatpush1.msra.mxu0 %v3948
    %3988 = vmatprep.subr.mxu0 %v3947
    %3989 = vmatpush1.msra.mxu0 %v3946
    %3990 = vmatprep.subr.mxu0 %v3945
    %3991 = vmatpush1.msra.mxu0 %v3944
    %3992 = vmatprep.subr.mxu0 %v3943
    %3993 = vmatpush1.msra.mxu0 %v3942
    %3994 = vmatprep.subr.mxu0 0.0
    %3995 = vmatpush2.msra.mxu0 0.0
    %3996 = vmatprep.subr.mxu0 0.0
    %3997 = vmatpush2.msra.mxu0 0.0
    %3998 = vmatprep.subr.mxu0 0.0
    %3999 = vmatpush2.msra.mxu0 0.0
    %4000 = vmatprep.subr.mxu0 0.0
    %4001 = vmatpush2.msra.mxu0 0.0
    %4002 = vmatprep.subr.mxu0 0.0
    %4003 = vmatpush2.msra.mxu0 0.0
    %4004 = vmatprep.subr.mxu0 0.0
    %4005 = vmatpush2.msra.mxu0 0.0
    %4006 = vmatprep.subr.mxu0 0.0
    %4007 = vmatpush2.msra.mxu0 0.0
    %4008 = vmatprep.subr.mxu0 0.0
    %4009 = vmatpush2.msra.mxu0 0.0
    %4010 = vmatprep.subr.mxu0 0.0
    %4011 = vmatpush2.msra.mxu0 0.0
    %4012 = vmatprep.subr.mxu0 0.0
    %4013 = vmatpush2.msra.mxu0 0.0
    %4014 = vmatprep.subr.mxu0 0.0
    %4015 = vmatpush2.msra.mxu0 0.0
    %4016 = vmatprep.subr.mxu0 0.0
    %4017 = vmatpush2.msra.mxu0 0.0
    %4018 = vmatprep.subr.mxu0 0.0
    %4019 = vmatpush2.msra.mxu0 0.0
    %4020 = vmatprep.subr.mxu0 0.0
    %4021 = vmatpush2.msra.mxu0 0.0
    %4022 = vmatprep.subr.mxu0 0.0
    %4023 = vmatpush2.msra.mxu0 0.0
    %4024 = vmatprep.subr.mxu0 0.0
    %4025 = vmatpush2.msra.mxu0 0.0
    %4026 = vmatprep.mubr.f32.mxu0 0.0
    %4027 = vmatmul.mubr.f32.gmra.mxu0 %v739
    %v4028 = vpop.f32.mrf.mxu0
    %v4029 = vadd.f32 0.0, %v4028
    %v4030 = vpop.f32.mrf.mxu0
    %v4031 = vadd.f32 0.0, %v4030
    %4032 = vdwg.mxu0
    %v4033 = vadd.f32 %v3938, %v4029
    %v4034 = vadd.f32 %v3940, %v4031
    %v4035 = vxor.u32 %v4033, 2147483648
    %v4036 = vmul.f32 %v4035, 1.442695
    %v4037 = vpow.pop %v4036
    %v4038 = vadd.f32 %v4037, 1.0
    %v4039 = vrcp.pop %v4038
    %v4040 = vmul.f32 1.0, %v4039
    %v4041 = vtanh.pop %v4033
    %v4042 = vtanh.pop %v4034
    %v4043 = vxor.u32 %v4034, 2147483648
    %v4044 = vmul.f32 %v4043, 1.442695
    %v4045 = vpow.pop %v4044
    %v4046 = vadd.f32 %v4045, 1.0
    %v4047 = vrcp.pop %v4046
    %v4048 = vmul.f32 1.0, %v4047
    %v4049 = vmul.f32 %v4040, 0.0
    %4052 = vrot.lane.b32.xlu0 %v4041, 28
    %v4053 = vpop.permute.xlu0 %4052
    %4054 = vrot.lane.b32.xlu0 %v4042, 28
    %v4055 = vpop.permute.xlu0 %4054
    %v4056 = vsel %vm841, %v4053, %v4055
    %v4058 = vmul.f32 %v4040, %v4056
    %4060 = vrot.lane.b32.xlu0 %v4058, 50
    %v4061 = vpop.permute.xlu0 %4060
    %v4063 = vadd.f32 %v4049, %v4061
    %v4064 = vtanh.pop %v4063
    %4066 = vrot.lane.b32.xlu0 %v4064, 100
    %v4067 = vpop.permute.xlu0 %4066
    %v4069 = vmul.f32 %v4048, %v4067
    %4071 = vrot.lane.b32.xlu0 %v4069, 106
    %v4072 = vpop.permute.xlu0 %4071
    %4074 = vst.msk [vmem:[#allocation7] sm:$0x3] %vm860, %v4072
    %v4075 = vsel %vm737, %v4072, 0
    %4077 = vmatprep.subr.mxu0 0.0
    %4078 = vmatpush1.msra.mxu0 0.0
    %4079 = vmatprep.subr.mxu0 0.0
    %4080 = vmatpush1.msra.mxu0 0.0
    %4081 = vmatprep.subr.mxu0 0.0
    %4082 = vmatpush1.msra.mxu0 0.0
    %4083 = vmatprep.subr.mxu0 0.0
    %4084 = vmatpush1.msra.mxu0 0.0
    %4085 = vmatprep.subr.mxu0 0.0
    %4086 = vmatpush1.msra.mxu0 0.0
    %4087 = vmatprep.subr.mxu0 0.0
    %4088 = vmatpush1.msra.mxu0 0.0
    %4089 = vmatprep.subr.mxu0 0.0
    %4090 = vmatpush1.msra.mxu0 0.0
    %4091 = vmatprep.subr.mxu0 0.0
    %4092 = vmatpush1.msra.mxu0 0.0
    %4093 = vmatprep.subr.mxu0 0.0
    %4094 = vmatpush1.msra.mxu0 0.0
    %4095 = vmatprep.subr.mxu0 %v3960
    %4096 = vmatpush1.msra.mxu0 %v3957
    %4097 = vmatprep.subr.mxu0 %v3953
    %4098 = vmatpush1.msra.mxu0 %v3952
    %4099 = vmatprep.subr.mxu0 %v3951
    %4100 = vmatpush1.msra.mxu0 %v3950
    %4101 = vmatprep.subr.mxu0 %v3949
    %4102 = vmatpush1.msra.mxu0 %v3948
    %4103 = vmatprep.subr.mxu0 %v3947
    %4104 = vmatpush1.msra.mxu0 %v3946
    %4105 = vmatprep.subr.mxu0 %v3945
    %4106 = vmatpush1.msra.mxu0 %v3944
    %4107 = vmatprep.subr.mxu0 %v3943
    %4108 = vmatpush1.msra.mxu0 %v3942
    %4109 = vmatprep.subr.mxu0 0.0
    %4110 = vmatpush2.msra.mxu0 0.0
    %4111 = vmatprep.subr.mxu0 0.0
    %4112 = vmatpush2.msra.mxu0 0.0
    %4113 = vmatprep.subr.mxu0 0.0
    %4114 = vmatpush2.msra.mxu0 0.0
    %4115 = vmatprep.subr.mxu0 0.0
    %4116 = vmatpush2.msra.mxu0 0.0
    %4117 = vmatprep.subr.mxu0 0.0
    %4118 = vmatpush2.msra.mxu0 0.0
    %4119 = vmatprep.subr.mxu0 0.0
    %4120 = vmatpush2.msra.mxu0 0.0
    %4121 = vmatprep.subr.mxu0 0.0
    %4122 = vmatpush2.msra.mxu0 0.0
    %4123 = vmatprep.subr.mxu0 0.0
    %4124 = vmatpush2.msra.mxu0 0.0
    %4125 = vmatprep.subr.mxu0 0.0
    %4126 = vmatpush2.msra.mxu0 0.0
    %4127 = vmatprep.subr.mxu0 0.0
    %4128 = vmatpush2.msra.mxu0 0.0
    %4129 = vmatprep.subr.mxu0 0.0
    %4130 = vmatpush2.msra.mxu0 0.0
    %4131 = vmatprep.subr.mxu0 0.0
    %4132 = vmatpush2.msra.mxu0 0.0
    %4133 = vmatprep.subr.mxu0 0.0
    %4134 = vmatpush2.msra.mxu0 0.0
    %4135 = vmatprep.subr.mxu0 0.0
    %4136 = vmatpush2.msra.mxu0 0.0
    %4137 = vmatprep.subr.mxu0 0.0
    %4138 = vmatpush2.msra.mxu0 0.0
    %4139 = vmatprep.subr.mxu0 0.0
    %4140 = vmatpush2.msra.mxu0 0.0
    %4141 = vmatprep.mubr.f32.mxu0 0.0
    %4142 = vmatmul.mubr.f32.gmra.mxu0 %v4075
    %v4143 = vpop.f32.mrf.mxu0
    %v4144 = vadd.f32 0.0, %v4143
    %v4145 = vpop.f32.mrf.mxu0
    %v4146 = vadd.f32 0.0, %v4145
    %4147 = vdwg.mxu0
    %v4150 = vrot.slane %v4144, 6
    %v4151 = vrot.slane %v4146, 6
    %v4154 = vadd.f32 %v3938, %v4150
    %v4155 = vadd.f32 %v3940, %v4151
    %v4156 = vxor.u32 %v4154, 2147483648
    %v4157 = vmul.f32 %v4156, 1.442695
    %v4158 = vpow.pop %v4157
    %v4159 = vadd.f32 %v4158, 1.0
    %v4160 = vrcp.pop %v4159
    %v4161 = vmul.f32 1.0, %v4160
    %v4162 = vtanh.pop %v4154
    %v4163 = vtanh.pop %v4155
    %v4164 = vxor.u32 %v4155, 2147483648
    %v4165 = vmul.f32 %v4164, 1.442695
    %v4166 = vpow.pop %v4165
    %v4167 = vadd.f32 %v4166, 1.0
    %v4168 = vrcp.pop %v4167
    %v4169 = vmul.f32 1.0, %v4168
    %v4171 = vrot.slane %v4063, 6
    %v4173 = vmul.f32 %v4161, %v4171
    %4176 = vrot.lane.b32.xlu0 %v4162, 28
    %v4177 = vpop.permute.xlu0 %4176
    %4178 = vrot.lane.b32.xlu0 %v4163, 28
    %v4179 = vpop.permute.xlu0 %4178
    %v4180 = vsel %vm841, %v4177, %v4179
    %v4182 = vmul.f32 %v4161, %v4180
    %4184 = vrot.lane.b32.xlu0 %v4182, 50
    %v4185 = vpop.permute.xlu0 %4184
    %v4187 = vadd.f32 %v4173, %v4185
    %v4188 = vtanh.pop %v4187
    %4190 = vrot.lane.b32.xlu0 %v4188, 100
    %v4191 = vpop.permute.xlu0 %4190
    %v4193 = vmul.f32 %v4169, %v4191
    %4195 = vrot.lane.b32.xlu0 %v4193, 106
    %v4196 = vpop.permute.xlu0 %4195
    %4198 = vst.msk [vmem:[#allocation7] sm:$0xc] %vm985, %v4196
    %v4199 = vrot.slane %v4193, 2
    %4200 = vrot.lane.b32.xlu0 %v4199, 106
    %v4201 = vpop.permute.xlu0 %4200
    %v4202 = vsel %vm737, %v4201, 0
    %4204 = vmatprep.subr.mxu0 0.0
    %4205 = vmatpush1.msra.mxu0 0.0
    %4206 = vmatprep.subr.mxu0 0.0
    %4207 = vmatpush1.msra.mxu0 0.0
    %4208 = vmatprep.subr.mxu0 0.0
    %4209 = vmatpush1.msra.mxu0 0.0
    %4210 = vmatprep.subr.mxu0 0.0
    %4211 = vmatpush1.msra.mxu0 0.0
    %4212 = vmatprep.subr.mxu0 0.0
    %4213 = vmatpush1.msra.mxu0 0.0
    %4214 = vmatprep.subr.mxu0 0.0
    %4215 = vmatpush1.msra.mxu0 0.0
    %4216 = vmatprep.subr.mxu0 0.0
    %4217 = vmatpush1.msra.mxu0 0.0
    %4218 = vmatprep.subr.mxu0 0.0
    %4219 = vmatpush1.msra.mxu0 0.0
    %4220 = vmatprep.subr.mxu0 0.0
    %4221 = vmatpush1.msra.mxu0 0.0
    %4222 = vmatprep.subr.mxu0 %v3960
    %4223 = vmatpush1.msra.mxu0 %v3957
    %4224 = vmatprep.subr.mxu0 %v3953
    %4225 = vmatpush1.msra.mxu0 %v3952
    %4226 = vmatprep.subr.mxu0 %v3951
    %4227 = vmatpush1.msra.mxu0 %v3950
    %4228 = vmatprep.subr.mxu0 %v3949
    %4229 = vmatpush1.msra.mxu0 %v3948
    %4230 = vmatprep.subr.mxu0 %v3947
    %4231 = vmatpush1.msra.mxu0 %v3946
    %4232 = vmatprep.subr.mxu0 %v3945
    %4233 = vmatpush1.msra.mxu0 %v3944
    %4234 = vmatprep.subr.mxu0 %v3943
    %4235 = vmatpush1.msra.mxu0 %v3942
    %4236 = vmatprep.subr.mxu0 0.0
    %4237 = vmatpush2.msra.mxu0 0.0
    %4238 = vmatprep.subr.mxu0 0.0
    %4239 = vmatpush2.msra.mxu0 0.0
    %4240 = vmatprep.subr.mxu0 0.0
    %4241 = vmatpush2.msra.mxu0 0.0
    %4242 = vmatprep.subr.mxu0 0.0
    %4243 = vmatpush2.msra.mxu0 0.0
    %4244 = vmatprep.subr.mxu0 0.0
    %4245 = vmatpush2.msra.mxu0 0.0
    %4246 = vmatprep.subr.mxu0 0.0
    %4247 = vmatpush2.msra.mxu0 0.0
    %4248 = vmatprep.subr.mxu0 0.0
    %4249 = vmatpush2.msra.mxu0 0.0
    %4250 = vmatprep.subr.mxu0 0.0
    %4251 = vmatpush2.msra.mxu0 0.0
    %4252 = vmatprep.subr.mxu0 0.0
    %4253 = vmatpush2.msra.mxu0 0.0
    %4254 = vmatprep.subr.mxu0 0.0
    %4255 = vmatpush2.msra.mxu0 0.0
    %4256 = vmatprep.subr.mxu0 0.0
    %4257 = vmatpush2.msra.mxu0 0.0
    %4258 = vmatprep.subr.mxu0 0.0
    %4259 = vmatpush2.msra.mxu0 0.0
    %4260 = vmatprep.subr.mxu0 0.0
    %4261 = vmatpush2.msra.mxu0 0.0
    %4262 = vmatprep.subr.mxu0 0.0
    %4263 = vmatpush2.msra.mxu0 0.0
    %4264 = vmatprep.subr.mxu0 0.0
    %4265 = vmatpush2.msra.mxu0 0.0
    %4266 = vmatprep.subr.mxu0 0.0
    %4267 = vmatpush2.msra.mxu0 0.0
    %4268 = vmatprep.mubr.f32.mxu0 0.0
    %4269 = vmatmul.mubr.f32.gmra.mxu0 %v4202
    %v4270 = vpop.f32.mrf.mxu0
    %v4271 = vadd.f32 0.0, %v4270
    %v4272 = vpop.f32.mrf.mxu0
    %v4273 = vadd.f32 0.0, %v4272
    %4274 = vdwg.mxu0
    %v4277 = vrot.slane %v4271, 4
    %v4278 = vrot.slane %v4273, 4
    %v4281 = vadd.f32 %v3938, %v4277
    %v4282 = vadd.f32 %v3940, %v4278
    %v4283 = vxor.u32 %v4281, 2147483648
    %v4284 = vmul.f32 %v4283, 1.442695
    %v4285 = vpow.pop %v4284
    %v4286 = vadd.f32 %v4285, 1.0
    %v4287 = vrcp.pop %v4286
    %v4288 = vmul.f32 1.0, %v4287
    %v4289 = vtanh.pop %v4281
    %v4290 = vtanh.pop %v4282
    %v4291 = vxor.u32 %v4282, 2147483648
    %v4292 = vmul.f32 %v4291, 1.442695
    %v4293 = vpow.pop %v4292
    %v4294 = vadd.f32 %v4293, 1.0
    %v4295 = vrcp.pop %v4294
    %v4296 = vmul.f32 1.0, %v4295
    %v4298 = vrot.slane %v4187, 6
    %v4300 = vmul.f32 %v4288, %v4298
    %4303 = vrot.lane.b32.xlu0 %v4289, 28
    %v4304 = vpop.permute.xlu0 %4303
    %4305 = vrot.lane.b32.xlu0 %v4290, 28
    %v4306 = vpop.permute.xlu0 %4305
    %v4307 = vsel %vm841, %v4304, %v4306
    %v4309 = vmul.f32 %v4288, %v4307
    %4311 = vrot.lane.b32.xlu0 %v4309, 50
    %v4312 = vpop.permute.xlu0 %4311
    %v4314 = vadd.f32 %v4300, %v4312
    %v4315 = vtanh.pop %v4314
    %4317 = vrot.lane.b32.xlu0 %v4315, 100
    %v4318 = vpop.permute.xlu0 %4317
    %v4320 = vmul.f32 %v4296, %v4318
    %4322 = vrot.lane.b32.xlu0 %v4320, 106
    %v4323 = vpop.permute.xlu0 %4322
    %4325 = vst.msk [vmem:[#allocation7] sm:$0x30] %vm1113, %v4323
    %v4326 = vrot.slane %v4320, 4
    %4327 = vrot.lane.b32.xlu0 %v4326, 106
    %v4328 = vpop.permute.xlu0 %4327
    %v4329 = vsel %vm737, %v4328, 0
    %4331 = vmatprep.subr.mxu0 0.0
    %4332 = vmatpush1.msra.mxu0 0.0
    %4333 = vmatprep.subr.mxu0 0.0
    %4334 = vmatpush1.msra.mxu0 0.0
    %4335 = vmatprep.subr.mxu0 0.0
    %4336 = vmatpush1.msra.mxu0 0.0
    %4337 = vmatprep.subr.mxu0 0.0
    %4338 = vmatpush1.msra.mxu0 0.0
    %4339 = vmatprep.subr.mxu0 0.0
    %4340 = vmatpush1.msra.mxu0 0.0
    %4341 = vmatprep.subr.mxu0 0.0
    %4342 = vmatpush1.msra.mxu0 0.0
    %4343 = vmatprep.subr.mxu0 0.0
    %4344 = vmatpush1.msra.mxu0 0.0
    %4345 = vmatprep.subr.mxu0 0.0
    %4346 = vmatpush1.msra.mxu0 0.0
    %4347 = vmatprep.subr.mxu0 0.0
    %4348 = vmatpush1.msra.mxu0 0.0
    %4349 = vmatprep.subr.mxu0 %v3960
    %4350 = vmatpush1.msra.mxu0 %v3957
    %4351 = vmatprep.subr.mxu0 %v3953
    %4352 = vmatpush1.msra.mxu0 %v3952
    %4353 = vmatprep.subr.mxu0 %v3951
    %4354 = vmatpush1.msra.mxu0 %v3950
    %4355 = vmatprep.subr.mxu0 %v3949
    %4356 = vmatpush1.msra.mxu0 %v3948
    %4357 = vmatprep.subr.mxu0 %v3947
    %4358 = vmatpush1.msra.mxu0 %v3946
    %4359 = vmatprep.subr.mxu0 %v3945
    %4360 = vmatpush1.msra.mxu0 %v3944
    %4361 = vmatprep.subr.mxu0 %v3943
    %4362 = vmatpush1.msra.mxu0 %v3942
    %4363 = vmatprep.subr.mxu0 0.0
    %4364 = vmatpush2.msra.mxu0 0.0
    %4365 = vmatprep.subr.mxu0 0.0
    %4366 = vmatpush2.msra.mxu0 0.0
    %4367 = vmatprep.subr.mxu0 0.0
    %4368 = vmatpush2.msra.mxu0 0.0
    %4369 = vmatprep.subr.mxu0 0.0
    %4370 = vmatpush2.msra.mxu0 0.0
    %4371 = vmatprep.subr.mxu0 0.0
    %4372 = vmatpush2.msra.mxu0 0.0
    %4373 = vmatprep.subr.mxu0 0.0
    %4374 = vmatpush2.msra.mxu0 0.0
    %4375 = vmatprep.subr.mxu0 0.0
    %4376 = vmatpush2.msra.mxu0 0.0
    %4377 = vmatprep.subr.mxu0 0.0
    %4378 = vmatpush2.msra.mxu0 0.0
    %4379 = vmatprep.subr.mxu0 0.0
    %4380 = vmatpush2.msra.mxu0 0.0
    %4381 = vmatprep.subr.mxu0 0.0
    %4382 = vmatpush2.msra.mxu0 0.0
    %4383 = vmatprep.subr.mxu0 0.0
    %4384 = vmatpush2.msra.mxu0 0.0
    %4385 = vmatprep.subr.mxu0 0.0
    %4386 = vmatpush2.msra.mxu0 0.0
    %4387 = vmatprep.subr.mxu0 0.0
    %4388 = vmatpush2.msra.mxu0 0.0
    %4389 = vmatprep.subr.mxu0 0.0
    %4390 = vmatpush2.msra.mxu0 0.0
    %4391 = vmatprep.subr.mxu0 0.0
    %4392 = vmatpush2.msra.mxu0 0.0
    %4393 = vmatprep.subr.mxu0 0.0
    %4394 = vmatpush2.msra.mxu0 0.0
    %4395 = vmatprep.mubr.f32.mxu0 0.0
    %4396 = vmatmul.mubr.f32.gmra.mxu0 %v4329
    %v4397 = vpop.f32.mrf.mxu0
    %v4398 = vadd.f32 0.0, %v4397
    %v4399 = vpop.f32.mrf.mxu0
    %v4400 = vadd.f32 0.0, %v4399
    %4401 = vdwg.mxu0
    %v4404 = vrot.slane %v4398, 2
    %v4405 = vrot.slane %v4400, 2
    %v4408 = vadd.f32 %v3938, %v4404
    %v4409 = vadd.f32 %v3940, %v4405
    %v4410 = vxor.u32 %v4408, 2147483648
    %v4411 = vmul.f32 %v4410, 1.442695
    %v4412 = vpow.pop %v4411
    %v4413 = vadd.f32 %v4412, 1.0
    %v4414 = vrcp.pop %v4413
    %v4415 = vmul.f32 1.0, %v4414
    %v4416 = vtanh.pop %v4408
    %v4417 = vtanh.pop %v4409
    %v4418 = vxor.u32 %v4409, 2147483648
    %v4419 = vmul.f32 %v4418, 1.442695
    %v4420 = vpow.pop %v4419
    %v4421 = vadd.f32 %v4420, 1.0
    %v4422 = vrcp.pop %v4421
    %v4423 = vmul.f32 1.0, %v4422
    %v4425 = vrot.slane %v4314, 6
    %v4427 = vmul.f32 %v4415, %v4425
    %4430 = vrot.lane.b32.xlu0 %v4416, 28
    %v4431 = vpop.permute.xlu0 %4430
    %4432 = vrot.lane.b32.xlu0 %v4417, 28
    %v4433 = vpop.permute.xlu0 %4432
    %v4434 = vsel %vm841, %v4431, %v4433
    %v4436 = vmul.f32 %v4415, %v4434
    %4438 = vrot.lane.b32.xlu0 %v4436, 50
    %v4439 = vpop.permute.xlu0 %4438
    %v4441 = vadd.f32 %v4427, %v4439
    %v4442 = vtanh.pop %v4441
    %4444 = vrot.lane.b32.xlu0 %v4442, 100
    %v4445 = vpop.permute.xlu0 %4444
    %v4447 = vmul.f32 %v4423, %v4445
    %4449 = vrot.lane.b32.xlu0 %v4447, 106
    %v4450 = vpop.permute.xlu0 %4449
    %4452 = vst.msk [vmem:[#allocation7] sm:$0xc0] %vm1241, %v4450
    %v4453 = vld [vmem:[#allocation5] sm:$0xff]
    %v4454 = vld [vmem:[#allocation5 + $0x8] sm:$0xff]
    %v4455 = vld [vmem:[#allocation5 + $0x10] sm:$0xff]
    %v4456 = vld [vmem:[#allocation5 + $0x18] sm:$0xff]
    %v4457 = vld [vmem:[#allocation27] sm:$0xff]
    %v4458 = vld [vmem:[#allocation27 + $0x8] sm:$0xff]
    %v4459 = vld [vmem:[#allocation27 + $0x10] sm:$0xff]
    %v4460 = vld [vmem:[#allocation27 + $0x18] sm:$0xff]
    %v4461 = vld [vmem:[#allocation27 + $0x20] sm:$0xff]
    %v4462 = vld [vmem:[#allocation27 + $0x28] sm:$0xff]
    %v4463 = vld [vmem:[#allocation27 + $0x30] sm:$0x3]
    %v4465 = vsel %vm737, %v4453, 0
    %v4468 = vsel %vm737, %v4454, 0
    %v4471 = vsel %vm737, %v4455, 0
    %v4474 = vsel %vm737, %v4456, 0
    %v4477 = vsel %vm629, %v4463, 0
    %4479 = vmatprep.subr.mxu0 0.0
    %4480 = vmatpush1.msra.mxu0 0.0
    %4481 = vmatprep.subr.mxu0 0.0
    %4482 = vmatpush1.msra.mxu0 0.0
    %4483 = vmatprep.subr.mxu0 0.0
    %4484 = vmatpush1.msra.mxu0 0.0
    %4485 = vmatprep.subr.mxu0 0.0
    %4486 = vmatpush1.msra.mxu0 0.0
    %4487 = vmatprep.subr.mxu0 0.0
    %4488 = vmatpush1.msra.mxu0 0.0
    %4489 = vmatprep.subr.mxu0 0.0
    %4490 = vmatpush1.msra.mxu0 0.0
    %4491 = vmatprep.subr.mxu0 0.0
    %4492 = vmatpush1.msra.mxu0 0.0
    %4493 = vmatprep.subr.mxu0 0.0
    %4494 = vmatpush1.msra.mxu0 0.0
    %4495 = vmatprep.subr.mxu0 0.0
    %4496 = vmatpush1.msra.mxu0 0.0
    %4497 = vmatprep.subr.mxu0 0.0
    %4498 = vmatpush1.msra.mxu0 %v4477
    %4499 = vmatprep.subr.mxu0 0.0
    %4500 = vmatpush1.msra.mxu0 %v4462
    %4501 = vmatprep.subr.mxu0 0.0
    %4502 = vmatpush1.msra.mxu0 %v4461
    %4503 = vmatprep.subr.mxu0 0.0
    %4504 = vmatpush1.msra.mxu0 %v4460
    %4505 = vmatprep.subr.mxu0 0.0
    %4506 = vmatpush1.msra.mxu0 %v4459
    %4507 = vmatprep.subr.mxu0 0.0
    %4508 = vmatpush1.msra.mxu0 %v4458
    %4509 = vmatprep.subr.mxu0 0.0
    %4510 = vmatpush1.msra.mxu0 %v4457
    %4511 = vmatprep.subr.mxu0 0.0
    %4512 = vmatpush2.msra.mxu0 0.0
    %4513 = vmatprep.subr.mxu0 0.0
    %4514 = vmatpush2.msra.mxu0 0.0
    %4515 = vmatprep.subr.mxu0 0.0
    %4516 = vmatpush2.msra.mxu0 0.0
    %4517 = vmatprep.subr.mxu0 0.0
    %4518 = vmatpush2.msra.mxu0 0.0
    %4519 = vmatprep.subr.mxu0 0.0
    %4520 = vmatpush2.msra.mxu0 0.0
    %4521 = vmatprep.subr.mxu0 0.0
    %4522 = vmatpush2.msra.mxu0 0.0
    %4523 = vmatprep.subr.mxu0 0.0
    %4524 = vmatpush2.msra.mxu0 0.0
    %4525 = vmatprep.subr.mxu0 0.0
    %4526 = vmatpush2.msra.mxu0 0.0
    %4527 = vmatprep.subr.mxu0 0.0
    %4528 = vmatpush2.msra.mxu0 0.0
    %4529 = vmatprep.subr.mxu0 0.0
    %4530 = vmatpush2.msra.mxu0 0.0
    %4531 = vmatprep.subr.mxu0 0.0
    %4532 = vmatpush2.msra.mxu0 0.0
    %4533 = vmatprep.subr.mxu0 0.0
    %4534 = vmatpush2.msra.mxu0 0.0
    %4535 = vmatprep.subr.mxu0 0.0
    %4536 = vmatpush2.msra.mxu0 0.0
    %4537 = vmatprep.subr.mxu0 0.0
    %4538 = vmatpush2.msra.mxu0 0.0
    %4539 = vmatprep.subr.mxu0 0.0
    %4540 = vmatpush2.msra.mxu0 0.0
    %4541 = vmatprep.subr.mxu0 0.0
    %4542 = vmatpush2.msra.mxu0 0.0
    %4543 = vmatprep.mubr.f32.mxu0 0.0
    %4544 = vmatmul.mubr.f32.gmra.mxu0 %v4465
    %v4545 = vpop.f32.mrf.mxu0
    %v4546 = vadd.f32 0.0, %v4545
    %v4547 = vpop.f32.mrf.mxu0
    %4548 = vmatprep.mubr.f32.mxu0 0.0
    %4549 = vmatmul.mubr.f32.gmra.mxu0 %v4468
    %v4550 = vpop.f32.mrf.mxu0
    %v4551 = vadd.f32 0.0, %v4550
    %v4552 = vpop.f32.mrf.mxu0
    %4553 = vmatprep.mubr.f32.mxu0 0.0
    %4554 = vmatmul.mubr.f32.gmra.mxu0 %v4471
    %v4555 = vpop.f32.mrf.mxu0
    %v4556 = vadd.f32 0.0, %v4555
    %v4557 = vpop.f32.mrf.mxu0
    %4558 = vmatprep.mubr.f32.mxu0 0.0
    %4559 = vmatmul.mubr.f32.gmra.mxu0 %v4474
    %v4560 = vpop.f32.mrf.mxu0
    %v4561 = vadd.f32 0.0, %v4560
    %v4562 = vpop.f32.mrf.mxu0
    %4563 = vdwg.mxu0
    %v4564 = vld [vmem:[#allocation6] sm:$0xff]
    %v4565 = vld [vmem:[#allocation6 + $0x8] sm:$0xff]
    %v4566 = vld [vmem:[#allocation29] sm:$0xff]
    %v4567 = vld [vmem:[#allocation29 + $0x8] sm:$0xff]
    %v4568 = vld [vmem:[#allocation29 + $0x10] sm:$0xff]
    %v4569 = vld [vmem:[#allocation29 + $0x18] sm:$0xff]
    %v4570 = vld [vmem:[#allocation29 + $0x20] sm:$0xff]
    %v4571 = vld [vmem:[#allocation29 + $0x28] sm:$0xff]
    %v4572 = vld [vmem:[#allocation29 + $0x30] sm:$0x3]
    %v4574 = vsel %vm737, %v4564, 0
    %v4577 = vsel %vm737, %v4565, 0
    %v4580 = vsel %vm629, %v4572, 0
    %4582 = vmatprep.subr.mxu0 0.0
    %4583 = vmatpush1.msra.mxu0 0.0
    %4584 = vmatprep.subr.mxu0 0.0
    %4585 = vmatpush1.msra.mxu0 0.0
    %4586 = vmatprep.subr.mxu0 0.0
    %4587 = vmatpush1.msra.mxu0 0.0
    %4588 = vmatprep.subr.mxu0 0.0
    %4589 = vmatpush1.msra.mxu0 0.0
    %4590 = vmatprep.subr.mxu0 0.0
    %4591 = vmatpush1.msra.mxu0 0.0
    %4592 = vmatprep.subr.mxu0 0.0
    %4593 = vmatpush1.msra.mxu0 0.0
    %4594 = vmatprep.subr.mxu0 0.0
    %4595 = vmatpush1.msra.mxu0 0.0
    %4596 = vmatprep.subr.mxu0 0.0
    %4597 = vmatpush1.msra.mxu0 0.0
    %4598 = vmatprep.subr.mxu0 0.0
    %4599 = vmatpush1.msra.mxu0 0.0
    %4600 = vmatprep.subr.mxu0 0.0
    %4601 = vmatpush1.msra.mxu0 %v4580
    %4602 = vmatprep.subr.mxu0 0.0
    %4603 = vmatpush1.msra.mxu0 %v4571
    %4604 = vmatprep.subr.mxu0 0.0
    %4605 = vmatpush1.msra.mxu0 %v4570
    %4606 = vmatprep.subr.mxu0 0.0
    %4607 = vmatpush1.msra.mxu0 %v4569
    %4608 = vmatprep.subr.mxu0 0.0
    %4609 = vmatpush1.msra.mxu0 %v4568
    %4610 = vmatprep.subr.mxu0 0.0
    %4611 = vmatpush1.msra.mxu0 %v4567
    %4612 = vmatprep.subr.mxu0 0.0
    %4613 = vmatpush1.msra.mxu0 %v4566
    %4614 = vmatprep.subr.mxu0 0.0
    %4615 = vmatpush2.msra.mxu0 0.0
    %4616 = vmatprep.subr.mxu0 0.0
    %4617 = vmatpush2.msra.mxu0 0.0
    %4618 = vmatprep.subr.mxu0 0.0
    %4619 = vmatpush2.msra.mxu0 0.0
    %4620 = vmatprep.subr.mxu0 0.0
    %4621 = vmatpush2.msra.mxu0 0.0
    %4622 = vmatprep.subr.mxu0 0.0
    %4623 = vmatpush2.msra.mxu0 0.0
    %4624 = vmatprep.subr.mxu0 0.0
    %4625 = vmatpush2.msra.mxu0 0.0
    %4626 = vmatprep.subr.mxu0 0.0
    %4627 = vmatpush2.msra.mxu0 0.0
    %4628 = vmatprep.subr.mxu0 0.0
    %4629 = vmatpush2.msra.mxu0 0.0
    %4630 = vmatprep.subr.mxu0 0.0
    %4631 = vmatpush2.msra.mxu0 0.0
    %4632 = vmatprep.subr.mxu0 0.0
    %4633 = vmatpush2.msra.mxu0 0.0
    %4634 = vmatprep.subr.mxu0 0.0
    %4635 = vmatpush2.msra.mxu0 0.0
    %4636 = vmatprep.subr.mxu0 0.0
    %4637 = vmatpush2.msra.mxu0 0.0
    %4638 = vmatprep.subr.mxu0 0.0
    %4639 = vmatpush2.msra.mxu0 0.0
    %4640 = vmatprep.subr.mxu0 0.0
    %4641 = vmatpush2.msra.mxu0 0.0
    %4642 = vmatprep.subr.mxu0 0.0
    %4643 = vmatpush2.msra.mxu0 0.0
    %4644 = vmatprep.subr.mxu0 0.0
    %4645 = vmatpush2.msra.mxu0 0.0
    %4646 = vmatprep.mubr.f32.mxu0 0.0
    %4647 = vmatmul.mubr.f32.gmra.mxu0 %v4574
    %v4648 = vpop.f32.mrf.mxu0
    %v4649 = vadd.f32 0.0, %v4648
    %v4650 = vpop.f32.mrf.mxu0
    %4651 = vmatprep.mubr.f32.mxu0 0.0
    %4652 = vmatmul.mubr.f32.gmra.mxu0 %v4577
    %v4653 = vpop.f32.mrf.mxu0
    %v4654 = vadd.f32 0.0, %v4653
    %v4655 = vpop.f32.mrf.mxu0
    %4656 = vdwg.mxu0
    %v4657 = vld [vmem:[#allocation7] sm:$0xff]
    %v4658 = vld [vmem:[%s16] sm:$0xff]
    %v4659 = vld [vmem:[%s16 + $0x8] sm:$0xff]
    %v4660 = vld [vmem:[%s16 + $0x10] sm:$0xff]
    %v4661 = vld [vmem:[%s16 + $0x18] sm:$0xff]
    %v4662 = vld [vmem:[%s16 + $0x20] sm:$0xff]
    %v4663 = vld [vmem:[%s16 + $0x28] sm:$0xff]
    %v4664 = vld [vmem:[%s16 + $0x30] sm:$0x3]
    %v4666 = vsel %vm737, %v4657, 0
    %v4669 = vsel %vm629, %v4664, 0
    %4671 = vmatprep.subr.mxu0 0.0
    %4672 = vmatpush1.msra.mxu0 0.0
    %4673 = vmatprep.subr.mxu0 0.0
    %4674 = vmatpush1.msra.mxu0 0.0
    %4675 = vmatprep.subr.mxu0 0.0
    %4676 = vmatpush1.msra.mxu0 0.0
    %4677 = vmatprep.subr.mxu0 0.0
    %4678 = vmatpush1.msra.mxu0 0.0
    %4679 = vmatprep.subr.mxu0 0.0
    %4680 = vmatpush1.msra.mxu0 0.0
    %4681 = vmatprep.subr.mxu0 0.0
    %4682 = vmatpush1.msra.mxu0 0.0
    %4683 = vmatprep.subr.mxu0 0.0
    %4684 = vmatpush1.msra.mxu0 0.0
    %4685 = vmatprep.subr.mxu0 0.0
    %4686 = vmatpush1.msra.mxu0 0.0
    %4687 = vmatprep.subr.mxu0 0.0
    %4688 = vmatpush1.msra.mxu0 0.0
    %4689 = vmatprep.subr.mxu0 0.0
    %4690 = vmatpush1.msra.mxu0 %v4669
    %4691 = vmatprep.subr.mxu0 0.0
    %4692 = vmatpush1.msra.mxu0 %v4663
    %4693 = vmatprep.subr.mxu0 0.0
    %4694 = vmatpush1.msra.mxu0 %v4662
    %4695 = vmatprep.subr.mxu0 0.0
    %4696 = vmatpush1.msra.mxu0 %v4661
    %4697 = vmatprep.subr.mxu0 0.0
    %4698 = vmatpush1.msra.mxu0 %v4660
    %4699 = vmatprep.subr.mxu0 0.0
    %4700 = vmatpush1.msra.mxu0 %v4659
    %4701 = vmatprep.subr.mxu0 0.0
    %4702 = vmatpush1.msra.mxu0 %v4658
    %4703 = vmatprep.subr.mxu0 0.0
    %4704 = vmatpush2.msra.mxu0 0.0
    %4705 = vmatprep.subr.mxu0 0.0
    %4706 = vmatpush2.msra.mxu0 0.0
    %4707 = vmatprep.subr.mxu0 0.0
    %4708 = vmatpush2.msra.mxu0 0.0
    %4709 = vmatprep.subr.mxu0 0.0
    %4710 = vmatpush2.msra.mxu0 0.0
    %4711 = vmatprep.subr.mxu0 0.0
    %4712 = vmatpush2.msra.mxu0 0.0
    %4713 = vmatprep.subr.mxu0 0.0
    %4714 = vmatpush2.msra.mxu0 0.0
    %4715 = vmatprep.subr.mxu0 0.0
    %4716 = vmatpush2.msra.mxu0 0.0
    %4717 = vmatprep.subr.mxu0 0.0
    %4718 = vmatpush2.msra.mxu0 0.0
    %4719 = vmatprep.subr.mxu0 0.0
    %4720 = vmatpush2.msra.mxu0 0.0
    %4721 = vmatprep.subr.mxu0 0.0
    %4722 = vmatpush2.msra.mxu0 0.0
    %4723 = vmatprep.subr.mxu0 0.0
    %4724 = vmatpush2.msra.mxu0 0.0
    %4725 = vmatprep.subr.mxu0 0.0
    %4726 = vmatpush2.msra.mxu0 0.0
    %4727 = vmatprep.subr.mxu0 0.0
    %4728 = vmatpush2.msra.mxu0 0.0
    %4729 = vmatprep.subr.mxu0 0.0
    %4730 = vmatpush2.msra.mxu0 0.0
    %4731 = vmatprep.subr.mxu0 0.0
    %4732 = vmatpush2.msra.mxu0 0.0
    %4733 = vmatprep.subr.mxu0 0.0
    %4734 = vmatpush2.msra.mxu0 0.0
    %4735 = vmatprep.mubr.f32.mxu0 0.0
    %4736 = vmatmul.mubr.f32.gmra.mxu0 %v4666
    %v4737 = vpop.f32.mrf.mxu0
    %v4738 = vadd.f32 0.0, %v4737
    %v4739 = vpop.f32.mrf.mxu0
    %4740 = vdwg.mxu0
    %v4741 = vld [vmem:[%s17] sm:$0x1]
    %v4742 = vadd.f32 %v4546, %v4649
    %v4743 = vadd.f32 %v4742, %v4738
    %v4745 = vlaneseq
    %v4746 = vshrl.u32 %v4745, 7
    %v4747 = vsub.s32 0, %v4746
    %v4748 = vrot.slane %v4741, %v4747
    %v4750 = vadd.f32 %v4743, %v4748
    %vm4751 = vcmask 812032
    %4752 = vst.msk [vmem:[#allocation8] sm:$0x3] %vm4751, %v4750
    %v4754 = vrot.slane %v4649, 6
    %v4756 = vadd.f32 %v4546, %v4754
    %v4758 = vrot.slane %v4738, 6
    %v4760 = vadd.f32 %v4756, %v4758
    %v4761 = vadd.f32 %v4760, %v4748
    %vm4762 = vcmask 814082
    %4763 = vst.msk [vmem:[#allocation8] sm:$0xc] %vm4762, %v4761
    %v4764 = vrot.slane %v4738, 4
    %v4766 = vadd.f32 %v4756, %v4764
    %v4767 = vadd.f32 %v4766, %v4748
    %vm4768 = vcmask 816132
    %4769 = vst.msk [vmem:[#allocation8] sm:$0x30] %vm4768, %v4767
    %v4770 = vrot.slane %v4649, 4
    %v4772 = vadd.f32 %v4546, %v4770
    %v4773 = vrot.slane %v4738, 2
    %v4775 = vadd.f32 %v4772, %v4773
    %v4776 = vadd.f32 %v4775, %v4748
    %vm4777 = vcmask 818182
    %4778 = vst.msk [vmem:[#allocation8] sm:$0xc0] %vm4777, %v4776
    %v4779 = vadd.f32 %v4551, %v4770
    %v4780 = vadd.f32 %v4779, %v4773
    %v4781 = vadd.f32 %v4780, %v4748
    %4782 = vst.msk [vmem:[#allocation8 + $0x8] sm:$0x3] %vm4751, %v4781
    %v4783 = vrot.slane %v4649, 2
    %v4785 = vadd.f32 %v4551, %v4783
    %v4786 = vadd.f32 %v4785, %v4738
    %v4787 = vadd.f32 %v4786, %v4748
    %4788 = vst.msk [vmem:[#allocation8 + $0x8] sm:$0xc] %vm4762, %v4787
    %v4789 = vadd.f32 %v4785, %v4758
    %v4790 = vadd.f32 %v4789, %v4748
    %4791 = vst.msk [vmem:[#allocation8 + $0x8] sm:$0x30] %vm4768, %v4790
    %v4792 = vadd.f32 %v4551, %v4649
    %v4793 = vadd.f32 %v4792, %v4764
    %v4794 = vadd.f32 %v4793, %v4748
    %4795 = vst.msk [vmem:[#allocation8 + $0x8] sm:$0xc0] %vm4777, %v4794
    %v4796 = vadd.f32 %v4556, %v4654
    %v4797 = vadd.f32 %v4796, %v4764
    %v4798 = vadd.f32 %v4797, %v4748
    %4799 = vst.msk [vmem:[#allocation8 + $0x10] sm:$0x3] %vm4751, %v4798
    %v4801 = vrot.slane %v4654, 6
    %v4803 = vadd.f32 %v4556, %v4801
    %v4804 = vadd.f32 %v4803, %v4773
    %v4805 = vadd.f32 %v4804, %v4748
    %4806 = vst.msk [vmem:[#allocation8 + $0x10] sm:$0xc] %vm4762, %v4805
    %v4807 = vadd.f32 %v4803, %v4738
    %v4808 = vadd.f32 %v4807, %v4748
    %4809 = vst.msk [vmem:[#allocation8 + $0x10] sm:$0x30] %vm4768, %v4808
    %v4810 = vrot.slane %v4654, 4
    %v4812 = vadd.f32 %v4556, %v4810
    %v4813 = vadd.f32 %v4812, %v4758
    %v4814 = vadd.f32 %v4813, %v4748
    %4815 = vst.msk [vmem:[#allocation8 + $0x10] sm:$0xc0] %vm4777, %v4814
    %v4816 = vadd.f32 %v4561, %v4810
    %v4817 = vadd.f32 %v4816, %v4758
    %v4818 = vadd.f32 %v4817, %v4748
    %4819 = vst.msk [vmem:[#allocation8 + $0x18] sm:$0x3] %vm4751, %v4818
    %v4820 = vrot.slane %v4654, 2
    %v4822 = vadd.f32 %v4561, %v4820
    %v4823 = vadd.f32 %v4822, %v4764
    %v4824 = vadd.f32 %v4823, %v4748
    %4825 = vst.msk [vmem:[#allocation8 + $0x18] sm:$0xc] %vm4762, %v4824
    %v4826 = vadd.f32 %v4822, %v4773
    %v4827 = vadd.f32 %v4826, %v4748
    %4828 = vst.msk [vmem:[#allocation8 + $0x18] sm:$0x30] %vm4768, %v4827
    %v4829 = vadd.f32 %v4561, %v4654
    %v4830 = vadd.f32 %v4829, %v4738
    %v4831 = vadd.f32 %v4830, %v4748
    %4832 = vst.msk [vmem:[#allocation8 + $0x18] sm:$0xc0] %vm4777, %v4831
    %v4833 = vld [vmem:[#allocation8] sm:$0xff]
    %v4834 = vld [vmem:[#allocation8 + $0x8] sm:$0xff]
    %v4835 = vld [vmem:[#allocation8 + $0x10] sm:$0xff]
    %v4836 = vld [vmem:[#allocation8 + $0x18] sm:$0xff]
    %v4837 = vld [vmem:[#allocation30] sm:$0xff]
    %v4838 = vld [vmem:[#allocation30 + $0x8] sm:$0xff]
    %v4839 = vld [vmem:[#allocation30 + $0x10] sm:$0xff]
    %v4840 = vld [vmem:[#allocation30 + $0x18] sm:$0xff]
    %v4841 = vld [vmem:[#allocation30 + $0x20] sm:$0xff]
    %v4842 = vld [vmem:[#allocation30 + $0x28] sm:$0xff]
    %v4843 = vld [vmem:[#allocation30 + $0x30] sm:$0xff]
    %v4844 = vld [vmem:[#allocation30 + $0x38] sm:$0xff]
    %v4845 = vld [vmem:[#allocation30 + $0x40] sm:$0xff]
    %v4846 = vld [vmem:[#allocation30 + $0x48] sm:$0xff]
    %v4847 = vld [vmem:[#allocation30 + $0x50] sm:$0xff]
    %v4848 = vld [vmem:[#allocation30 + $0x58] sm:$0xff]
    %v4849 = vld [vmem:[#allocation30 + $0x60] sm:$0xf]
    %v4850 = vld [vmem:[%s19] sm:$0x1]
    %v4852 = vlaneseq
    %v4853 = vshrl.u32 %v4852, 7
    %v4854 = vsub.s32 0, %v4853
    %v4855 = vrot.slane %v4850, %v4854
    %vm4857 = vcmask 818176
    %v4859 = vsel %vm4857, %v4833, 0
    %v4862 = vsel %vm4857, %v4834, 0
    %v4865 = vsel %vm4857, %v4835, 0
    %v4868 = vsel %vm4857, %v4836, 0
    %vm4870 = vcmask 1043456
    %v4872 = vsel %vm4870, %v4849, 0
    %4874 = vmatprep.subr.mxu0 0.0
    %4875 = vmatpush1.msra.mxu0 0.0
    %4876 = vmatprep.subr.mxu0 0.0
    %4877 = vmatpush1.msra.mxu0 0.0
    %4878 = vmatprep.subr.mxu0 0.0
    %4879 = vmatpush1.msra.mxu0 0.0
    %4880 = vmatprep.subr.mxu0 0.0
    %4881 = vmatpush1.msra.mxu0 %v4872
    %4882 = vmatprep.subr.mxu0 0.0
    %4883 = vmatpush1.msra.mxu0 %v4848
    %4884 = vmatprep.subr.mxu0 0.0
    %4885 = vmatpush1.msra.mxu0 %v4847
    %4886 = vmatprep.subr.mxu0 0.0
    %4887 = vmatpush1.msra.mxu0 %v4846
    %4888 = vmatprep.subr.mxu0 0.0
    %4889 = vmatpush1.msra.mxu0 %v4845
    %4890 = vmatprep.subr.mxu0 0.0
    %4891 = vmatpush1.msra.mxu0 %v4844
    %4892 = vmatprep.subr.mxu0 0.0
    %4893 = vmatpush1.msra.mxu0 %v4843
    %4894 = vmatprep.subr.mxu0 0.0
    %4895 = vmatpush1.msra.mxu0 %v4842
    %4896 = vmatprep.subr.mxu0 0.0
    %4897 = vmatpush1.msra.mxu0 %v4841
    %4898 = vmatprep.subr.mxu0 0.0
    %4899 = vmatpush1.msra.mxu0 %v4840
    %4900 = vmatprep.subr.mxu0 0.0
    %4901 = vmatpush1.msra.mxu0 %v4839
    %4902 = vmatprep.subr.mxu0 0.0
    %4903 = vmatpush1.msra.mxu0 %v4838
    %4904 = vmatprep.subr.mxu0 0.0
    %4905 = vmatpush1.msra.mxu0 %v4837
    %4906 = vmatprep.subr.mxu0 0.0
    %4907 = vmatpush2.msra.mxu0 0.0
    %4908 = vmatprep.subr.mxu0 0.0
    %4909 = vmatpush2.msra.mxu0 0.0
    %4910 = vmatprep.subr.mxu0 0.0
    %4911 = vmatpush2.msra.mxu0 0.0
    %4912 = vmatprep.subr.mxu0 0.0
    %4913 = vmatpush2.msra.mxu0 0.0
    %4914 = vmatprep.subr.mxu0 0.0
    %4915 = vmatpush2.msra.mxu0 0.0
    %4916 = vmatprep.subr.mxu0 0.0
    %4917 = vmatpush2.msra.mxu0 0.0
    %4918 = vmatprep.subr.mxu0 0.0
    %4919 = vmatpush2.msra.mxu0 0.0
    %4920 = vmatprep.subr.mxu0 0.0
    %4921 = vmatpush2.msra.mxu0 0.0
    %4922 = vmatprep.subr.mxu0 0.0
    %4923 = vmatpush2.msra.mxu0 0.0
    %4924 = vmatprep.subr.mxu0 0.0
    %4925 = vmatpush2.msra.mxu0 0.0
    %4926 = vmatprep.subr.mxu0 0.0
    %4927 = vmatpush2.msra.mxu0 0.0
    %4928 = vmatprep.subr.mxu0 0.0
    %4929 = vmatpush2.msra.mxu0 0.0
    %4930 = vmatprep.subr.mxu0 0.0
    %4931 = vmatpush2.msra.mxu0 0.0
    %4932 = vmatprep.subr.mxu0 0.0
    %4933 = vmatpush2.msra.mxu0 0.0
    %4934 = vmatprep.subr.mxu0 0.0
    %4935 = vmatpush2.msra.mxu0 0.0
    %4936 = vmatprep.subr.mxu0 0.0
    %4937 = vmatpush2.msra.mxu0 0.0
    %4938 = vmatprep.mubr.f32.mxu0 0.0
    %4939 = vmatmul.mubr.f32.gmra.mxu0 %v4859
    %v4940 = vpop.f32.mrf.mxu0
    %v4941 = vadd.f32 %v4855, %v4940
    %v4942 = vpop.f32.mrf.mxu0
    %4943 = vmatprep.mubr.f32.mxu0 0.0
    %4944 = vmatmul.mubr.f32.gmra.mxu0 %v4862
    %v4945 = vpop.f32.mrf.mxu0
    %v4946 = vadd.f32 %v4855, %v4945
    %v4947 = vpop.f32.mrf.mxu0
    %4948 = vmatprep.mubr.f32.mxu0 0.0
    %4949 = vmatmul.mubr.f32.gmra.mxu0 %v4865
    %v4950 = vpop.f32.mrf.mxu0
    %v4951 = vadd.f32 %v4855, %v4950
    %v4952 = vpop.f32.mrf.mxu0
    %4953 = vmatprep.mubr.f32.mxu0 0.0
    %4954 = vmatmul.mubr.f32.gmra.mxu0 %v4868
    %v4955 = vpop.f32.mrf.mxu0
    %v4956 = vadd.f32 %v4855, %v4955
    %v4957 = vpop.f32.mrf.mxu0
    %4958 = vdwg.mxu0
    %4959 = vst.msk [vmem:[%s20] sm:$0xff] %vm248, %v4941
    %4960 = vst.msk [vmem:[%s20 + $0x8] sm:$0xff] %vm248, %v4946
    %4961 = vst.msk [vmem:[%s20 + $0x10] sm:$0xff] %vm248, %v4951
    %4962 = vst.msk [vmem:[%s20 + $0x18] sm:$0xff] %vm248, %v4956
    %vm4963 = vcmask 15366
    %4964 = vst.msk [vmem:[#allocation32 - $0x6] sm:$0xc0] %vm4963, %v4956
    // Predicated region
    $region138: #{hybrid_cnn_lstm_forward.1} parent=1 // pred_check
      _
    $region139: #{hybrid_cnn_lstm_forward.1} parent=1 // pred_check_branch
      %4966 = sbr.rel (0) target = $region141
    $region140: #{hybrid_cnn_lstm_forward.1} parent=1 // pred_region
      _
    $region141: #{hybrid_cnn_lstm_forward.1} parent=1 // pred_fallthru
      _
    // Predicated region
    $region142: #{hybrid_cnn_lstm_forward.1} parent=1 // pred_check
      _
    $region143: #{hybrid_cnn_lstm_forward.1} parent=1 // pred_check_branch
      %4968 = sbr.rel (0) target = $region145
    $region144: #{hybrid_cnn_lstm_forward.1} parent=1 // pred_region
      %s4970 = ssub.s32 32, 32
      %4971 = vsyncadd [#allocation11], %s4970
      %s4973 = sshll.u32 [#allocation32], 4
      %s4974 = int_to_ptr.vmem [resolvable:$true] %s4973
      %4976 = dma.vmem_to_hbm [thread:$0]  %s4974, 32, %s21, [#allocation11]
    $region145: #{hybrid_cnn_lstm_forward.1} parent=1 // pred_fallthru
      _
    // Predicated region
    $region146: #{hybrid_cnn_lstm_forward.1} parent=1 // pred_check
      _
    $region147: #{hybrid_cnn_lstm_forward.1} parent=1 // pred_check_branch
      %4978 = sbr.rel (0) target = $region149
    $region148: #{hybrid_cnn_lstm_forward.1} parent=1 // pred_region
      _
    $region149: #{hybrid_cnn_lstm_forward.1} parent=1 // pred_fallthru
      _
    // Predicated region
    $region150: #{hybrid_cnn_lstm_forward.1} parent=1 // pred_check
      _
    $region151: #{hybrid_cnn_lstm_forward.1} parent=1 // pred_check_branch
      %4980 = sbr.rel (0) target = $region153
    $region152: #{hybrid_cnn_lstm_forward.1} parent=1 // pred_region
      %4981 = dma.done [#allocation11], 32
    $region153: #{hybrid_cnn_lstm_forward.1} parent=1 // pred_fallthru
      _
    %4982 = vsyncpa [#allocation10], 1
    %4983 = vsyncpa [#allocation13], 1
    %4984 = vsyncpa [#allocation16], 1
    %4985 = vsyncpa [#allocation19], 1
    %4986 = vsyncpa [#allocation22], 1
    %4987 = vsyncpa [#allocation25], 1
    %4988 = vsyncpa [#allocation28], 1
    %4989 = vsyncpa [#allocation31], 1
    %4990 = vsyncpa [#allocation11], 1

</llo_original>
